<compile_context>
chip_gen: v5e
topology: v5e:2x2
jax: 0.10.0
libtpu: 0.0.40
codegen_flags: <defaults>
</compile_context>

<pallas_src>
import functools

import jax
import jax.numpy as jnp
from jax import lax
from jax.experimental import pallas as pl
from jax.experimental.pallas import tpu as pltpu


_LN_EPS = 1e-5  # torch.nn.LayerNorm default eps


def _round_up(a: int, b: int) -> int:
    return ((a + b - 1) // b) * b


def _final_patch_expand_kernel(x_ref, w1_ref, w2_ref, b2_ref, o_ref, h_ref, *,
                               nslots, cp, n_out, inv_c, eps):
    """expand -> per-slot LayerNorm -> 1x1 conv for one row tile.

    x_ref : (tb, C)           bf16 input rows (one row per (b, h, w) pixel)
    w1_ref: (C, nslots*cp)    bf16 expand weight; slot s at cols [s*cp, s*cp+C)
    w2_ref: (Op, cp)          bf16 conv weight with LN gamma folded in
                              (padded rows/cols are zero)
    b2_ref: (Op, 1)           f32 conv bias from folded LN beta
    o_ref : (nslots, n_out, tb)  output; lane dim = row tile (lane dense)
    h_ref : (tb, nslots*cp)   f32 VMEM scratch holding the expand result
    """
    # Single big MXU matmul for the expand (f32 accumulation), staged in VMEM.
    h_ref[...] = jnp.dot(x_ref[...], w1_ref[...],
                         preferred_element_type=jnp.float32)

    w2 = w2_ref[...]
    b2 = b2_ref[:n_out, :]

    for s in range(nslots):  # static unroll over the 16 pixel-shuffle slots
        hs = h_ref[:, s * cp:(s + 1) * cp]          # (tb, cp) f32, lane aligned
        # LayerNorm statistics over the C real channels. Padded lanes are
        # exact zeros (zero weight columns), so plain full-lane sums are
        # correct; biased variance via E[x^2] - mu^2, matching torch.
        mu = jnp.sum(hs, axis=-1, keepdims=True) * inv_c
        var = jnp.sum(hs * hs, axis=-1, keepdims=True) * inv_c - mu * mu
        var = jnp.maximum(var, 0.0)
        r = lax.rsqrt(var + eps)
        nc = ((hs - mu) * r).astype(w2.dtype)       # (tb, cp) bf16
        # 1x1 conv computed transposed (w2 @ nc^T) so the (Op, tb) result is
        # lane dense along the row tile. gamma is folded into w2; its zeroed
        # padded columns remove the garbage normalization left in padded lanes.
        out_t = lax.dot_general(w2, nc, (((1,), (1,)), ((), ())),
                                preferred_element_type=jnp.float32)
        o_ref[s] = (out_t[:n_out, :] + b2).astype(o_ref.dtype)


def final_patch_expand(x, w_expand, ln_weight, ln_bias, w_conv, *,
                       dim_scale=4, tb=512, eps=_LN_EPS):
    """FinalPatchExpand forward.

    x        : (B, H, W, C)
    w_expand : (dim_scale**2 * C, C)   torch nn.Linear(C, 16*C, bias=False).weight
    ln_weight: (C,)                    torch nn.LayerNorm(C).weight
    ln_bias  : (C,)                    torch nn.LayerNorm(C).bias
    w_conv   : (O, C, 1, 1)            torch nn.Conv2d(C, O, 1, bias=False).weight
    returns  : (B, O, dim_scale*H, dim_scale*W)
    """
    B, H, W, C = x.shape
    P = dim_scale
    P2 = P * P
    O = w_conv.shape[0]
    assert w_expand.shape == (P2 * C, C), "expand weight must be (dim_scale**2*C, C)"
    assert w_conv.shape[1:] == (C, 1, 1)

    Cp = _round_up(C, 128)   # lane-aligned per-slot channel width
    Op = _round_up(O, 8)     # sublane-aligned conv output rows

    # --- parameter prep (done once, outside the kernel) ----------------------
    # Expand weight as a single (C, P2*Cp) matrix: slot s occupies columns
    # [s*Cp, s*Cp + C); padded columns are zero.
    w1 = jnp.transpose(w_expand).reshape(C, P2, C)
    w1 = jnp.pad(w1, ((0, 0), (0, 0), (0, Cp - C))).reshape(C, P2 * Cp)
    w1 = w1.astype(jnp.bfloat16)
    # 1x1 conv weight with LN gamma folded in, and LN beta folded to a bias.
    w2 = w_conv.reshape(O, C)
    w2g = jnp.pad(w2 * ln_weight[None, :], ((0, Op - O), (0, Cp - C)))
    w2g = w2g.astype(jnp.bfloat16)                                  # (Op, Cp)
    b2 = jnp.pad((w2 * ln_bias[None, :]).sum(axis=1), (0, Op - O))
    b2 = b2.reshape(Op, 1).astype(jnp.float32)                      # (Op, 1)

    # --- row tiling -----------------------------------------------------------
    N = B * H * W
    x2d = x.reshape(N, C).astype(jnp.bfloat16)          # bf16 halves input DMA
    tb_eff = min(_round_up(tb, 128), _round_up(N, 128))  # 128-mult (output lane dim)
    n_pad = _round_up(N, tb_eff)
    if n_pad != N:
        # TODO(synk): handle the ragged last tile in-kernel (masked rows) to
        # drop this extra HBM pass; it is a no-op when N divides the tile.
        x2d = jnp.pad(x2d, ((0, n_pad - N), (0, 0)))
    grid = (n_pad // tb_eff,)   # v7x: default tb keeps this > 1 for real sizes

    cost = pl.CostEstimate(
        flops=2 * N * P2 * Cp * (C + Op),
        transcendentals=N * P2,  # one rsqrt per output pixel
        bytes_accessed=int(x2d.size * 2 + w1.size * 2 + w2g.size * 2
                           + b2.size * 4 + P2 * O * n_pad * x.dtype.itemsize),
    )

    # Explicit VMEM budget: double-buffered blocks + the expand scratch.
    block_bytes = (tb_eff * C * 2 + w1.size * 2 + w2g.size * 2 + b2.size * 4
                   + P2 * O * tb_eff * x.dtype.itemsize)
    scratch_bytes = tb_eff * P2 * Cp * 4
    vmem_limit = int(min(128 * 1024 * 1024,
                         max(32 * 1024 * 1024,
                             2 * block_bytes + scratch_bytes + (4 << 20))))
    # TODO(synk): for very large C (16*C*Cp bf16 approaching the budget, esp.
    # v7x's 64 MiB VMEM) tile w1 over a slot/K grid axis instead of one block.

    kernel = functools.partial(
        _final_patch_expand_kernel,
        nslots=P2, cp=Cp, n_out=O, inv_c=1.0 / C, eps=eps)

    out3d = pl.pallas_call(
        kernel,
        out_shape=jax.ShapeDtypeStruct((P2, O, n_pad), x.dtype),
        grid_spec=pltpu.PrefetchScalarGridSpec(
            num_scalar_prefetch=0,
            grid=grid,
            in_specs=[
                pl.BlockSpec((tb_eff, C), lambda i: (i, 0)),     # x rows
                pl.BlockSpec((C, P2 * Cp), lambda i: (0, 0)),    # expand W
                pl.BlockSpec((Op, Cp), lambda i: (0, 0)),        # conv W (gamma folded)
                pl.BlockSpec((Op, 1), lambda i: (0, 0)),         # conv bias (beta folded)
            ],
            out_specs=pl.BlockSpec((P2, O, tb_eff), lambda i: (0, 0, i)),
            scratch_shapes=[pltpu.VMEM((tb_eff, P2 * Cp), jnp.float32)],
        ),
        compiler_params=pltpu.CompilerParams(
            dimension_semantics=("parallel",),
            vmem_limit_bytes=vmem_limit),
        cost_estimate=cost,
    )(x2d, w1, w2g, b2)

    # --- pixel shuffle + NCHW (pure index permutation, no compute) -----------
    out = out3d[:, :, :N].reshape(P, P, O, B, H, W)   # (p1, p2, o, b, h, w)
    out = out.transpose(3, 2, 4, 0, 5, 1)             # (b, o, h, p1, w, p2)
    return out.reshape(B, O, P * H, P * W)


if __name__ == "__main__":
    B, H, W = 2, 8, 8
    channel_dim, img_channels, dim_scale = 32, 4, 4

    key = jax.random.PRNGKey(0)
    kx, ke, kc, kg, kb = jax.random.split(key, 5)

    x = jax.random.normal(kx, (B, H, W, channel_dim), jnp.float32)

    # Parameters in torch layouts (nn.Linear / nn.LayerNorm / nn.Conv2d).
    bound = 1.0 / float(channel_dim) ** 0.5
    w_expand = jax.random.uniform(
        ke, (dim_scale * dim_scale * channel_dim, channel_dim),
        jnp.float32, -bound, bound)
    # Non-trivial affine so the gamma/beta-into-conv fold is actually tested.
    ln_weight = 1.0 + 0.1 * jax.random.normal(kg, (channel_dim,), jnp.float32)
    ln_bias = 0.05 * jax.random.normal(kb, (channel_dim,), jnp.float32)
    w_conv = jax.random.uniform(
        kc, (img_channels, channel_dim, 1, 1), jnp.float32, -bound, bound)

    out = final_patch_expand(x, w_expand, ln_weight, ln_bias, w_conv,
                             dim_scale=dim_scale)
    out = jax.block_until_ready(out)
    assert out.shape == (B, img_channels, dim_scale * H, dim_scale * W), out.shape

    # Pure-JAX reference replicating the torch forward exactly.
    C, P, O = channel_dim, dim_scale, img_channels
    e = x @ w_expand.T                                           # (B,H,W,16C)
    e = e.reshape(B, H, W, P, P, C)                              # (p1 p2 c)
    y = e.transpose(0, 1, 3, 2, 4, 5).reshape(B, P * H, P * W, C)
    mu = y.mean(-1, keepdims=True)
    var = ((y - mu) ** 2).mean(-1, keepdims=True)
    yn = (y - mu) / jnp.sqrt(var + _LN_EPS) * ln_weight + ln_bias
    ref = jnp.einsum("bhwc,oc->bohw", yn, w_conv.reshape(O, C))

    # Tolerance covers bf16 MXU passes in the kernel (and in the f32 reference
    # matmuls at default TPU precision); structural bugs would give O(1) errors.
    err = float(jnp.max(jnp.abs(out - ref)))
    assert jnp.allclose(out, ref, atol=2e-2, rtol=2e-2), f"max abs err {err}"

    print("KERNEL_OK")
</pallas_src>

<mosaic_0001>
module attributes {stable_mosaic.version = 11 : i64} {
  func.func @_final_patch_expand_kernel(%arg0: i32, %arg1: memref<128x32xbf16, #tpu.memory_space<vmem>>, %arg2: memref<32x2048xbf16, #tpu.memory_space<vmem>>, %arg3: memref<8x128xbf16, #tpu.memory_space<vmem>>, %arg4: memref<8x1xf32, #tpu.memory_space<vmem>>, %arg5: memref<16x4x128xf32, #tpu.memory_space<vmem>>, %arg6: memref<128x2048xf32, #tpu.memory_space<vmem>>) attributes {dimension_semantics = [#tpu.dimension_semantics<parallel>], iteration_bounds = array<i64: 1>, scalar_prefetch = 0 : i64, scratch_operands = 1 : i64, tpu.core_type = #tpu.core_type<tc>, window_params = [{transform_indices = @transform_0, window_bounds = array<i64: 128, 32>}, {pipeline_mode = #tpu.pipeline_mode<synchronous>, transform_indices = @transform_1, window_bounds = array<i64: 32, 2048>}, {pipeline_mode = #tpu.pipeline_mode<synchronous>, transform_indices = @transform_2, window_bounds = array<i64: 8, 128>}, {pipeline_mode = #tpu.pipeline_mode<synchronous>, transform_indices = @transform_3, window_bounds = array<i64: 8, 1>}, {transform_indices = @transform_4, window_bounds = array<i64: 16, 4, 128>}]} {
    %c0 = arith.constant 0 : index
    %c0_0 = arith.constant 0 : index
    %0 = vector.load %arg1[%c0, %c0_0] : memref<128x32xbf16, #tpu.memory_space<vmem>>, vector<128x32xbf16>
    %c0_1 = arith.constant 0 : index
    %c0_2 = arith.constant 0 : index
    %1 = vector.load %arg2[%c0_1, %c0_2] : memref<32x2048xbf16, #tpu.memory_space<vmem>>, vector<32x2048xbf16>
    %cst = arith.constant dense<0.000000e+00> : vector<128x2048xf32>
    %2 = tpu.matmul %0, %1, %cst {dimension_numbers = #tpu.dot_dimension_numbers<[1], [0], [0], [1], [0, 0, 1, 1], [], []>} : vector<128x32xbf16>, vector<32x2048xbf16>, vector<128x2048xf32> -> vector<128x2048xf32>
    %c0_3 = arith.constant 0 : index
    %c0_4 = arith.constant 0 : index
    %3 = vector.load %arg6[%c0_3, %c0_4] : memref<128x2048xf32, #tpu.memory_space<vmem>>, vector<128x2048xf32>
    tpu.vector_store %arg6[%c0_3, %c0_4], %2 {strides = array<i32>} : memref<128x2048xf32, #tpu.memory_space<vmem>>, vector<128x2048xf32>,
    %c0_5 = arith.constant 0 : index
    %c0_6 = arith.constant 0 : index
    %4 = vector.load %arg3[%c0_5, %c0_6] : memref<8x128xbf16, #tpu.memory_space<vmem>>, vector<8x128xbf16>
    %c0_7 = arith.constant 0 : index
    %c0_8 = arith.constant 0 : index
    %5 = vector.load %arg4[%c0_7, %c0_8] : memref<8x1xf32, #tpu.memory_space<vmem>>, vector<4x1xf32>
    %c0_9 = arith.constant 0 : index
    %c0_10 = arith.constant 0 : index
    %6 = vector.load %arg6[%c0_9, %c0_10] : memref<128x2048xf32, #tpu.memory_space<vmem>>, vector<128x128xf32>
    %cst_11 = arith.constant dense<0.000000e+00> : vector<128xf32>
    %7 = vector.multi_reduction <add>, %6, %cst_11 [1] : vector<128x128xf32> to vector<128xf32>
    %8 = vector.shape_cast %7 : vector<128xf32> to vector<128x1xf32>
    %cst_12 = arith.constant 3.125000e-02 : f32
    %9 = vector.broadcast %cst_12 : f32 to vector<128x1xf32>
    %10 = arith.mulf %8, %9 : vector<128x1xf32>
    %11 = arith.mulf %6, %6 : vector<128x128xf32>
    %cst_13 = arith.constant dense<0.000000e+00> : vector<128xf32>
    %12 = vector.multi_reduction <add>, %11, %cst_13 [1] : vector<128x128xf32> to vector<128xf32>
    %13 = vector.shape_cast %12 : vector<128xf32> to vector<128x1xf32>
    %cst_14 = arith.constant 3.125000e-02 : f32
    %14 = vector.broadcast %cst_14 : f32 to vector<128x1xf32>
    %15 = arith.mulf %13, %14 : vector<128x1xf32>
    %16 = arith.mulf %10, %10 : vector<128x1xf32>
    %17 = arith.subf %15, %16 : vector<128x1xf32>
    %cst_15 = arith.constant 0.000000e+00 : f32
    %18 = vector.broadcast %cst_15 : f32 to vector<128x1xf32>
    %19 = arith.maximumf %17, %18 : vector<128x1xf32>
    %cst_16 = arith.constant 9.99999974E-6 : f32
    %20 = vector.broadcast %cst_16 : f32 to vector<128x1xf32>
    %21 = arith.addf %19, %20 : vector<128x1xf32>
    %22 = math.rsqrt %21 : vector<128x1xf32>
    %23 = vector.broadcast %10 : vector<128x1xf32> to vector<128x128xf32>
    %24 = arith.subf %6, %23 : vector<128x128xf32>
    %25 = vector.broadcast %22 : vector<128x1xf32> to vector<128x128xf32>
    %26 = arith.mulf %24, %25 : vector<128x128xf32>
    %27 = arith.truncf %26 : vector<128x128xf32> to vector<128x128xbf16>
    %cst_17 = arith.constant dense<0.000000e+00> : vector<8x128xf32>
    %28 = tpu.matmul %4, %27, %cst_17 {dimension_numbers = #tpu.dot_dimension_numbers<[1], [1], [0], [0], [0, 0, 1, 0], [], []>} : vector<8x128xbf16>, vector<128x128xbf16>, vector<8x128xf32> -> vector<8x128xf32>
    %29 = vector.extract_strided_slice %28 {offsets = [0, 0], sizes = [4, 128], strides = [1, 1]} : vector<8x128xf32> to vector<4x128xf32>
    %30 = vector.broadcast %5 : vector<4x1xf32> to vector<4x128xf32>
    %31 = arith.addf %29, %30 : vector<4x128xf32>
    %c0_18 = arith.constant 0 : index
    %c0_19 = arith.constant 0 : index
    %c0_20 = arith.constant 0 : index
    %32 = vector.load %arg5[%c0_18, %c0_19, %c0_20] : memref<16x4x128xf32, #tpu.memory_space<vmem>>, vector<1x4x128xf32>
    %33 = vector.shape_cast %32 : vector<1x4x128xf32> to vector<4x128xf32>
    %34 = vector.shape_cast %31 : vector<4x128xf32> to vector<1x4x128xf32>
    tpu.vector_store %arg5[%c0_18, %c0_19, %c0_20], %34 {strides = array<i32>} : memref<16x4x128xf32, #tpu.memory_space<vmem>>, vector<1x4x128xf32>,
    %c0_21 = arith.constant 0 : index
    %c128 = arith.constant 128 : index
    %35 = vector.load %arg6[%c0_21, %c128] : memref<128x2048xf32, #tpu.memory_space<vmem>>, vector<128x128xf32>
    %cst_22 = arith.constant dense<0.000000e+00> : vector<128xf32>
    %36 = vector.multi_reduction <add>, %35, %cst_22 [1] : vector<128x128xf32> to vector<128xf32>
    %37 = vector.shape_cast %36 : vector<128xf32> to vector<128x1xf32>
    %cst_23 = arith.constant 3.125000e-02 : f32
    %38 = vector.broadcast %cst_23 : f32 to vector<128x1xf32>
    %39 = arith.mulf %37, %38 : vector<128x1xf32>
    %40 = arith.mulf %35, %35 : vector<128x128xf32>
    %cst_24 = arith.constant dense<0.000000e+00> : vector<128xf32>
    %41 = vector.multi_reduction <add>, %40, %cst_24 [1] : vector<128x128xf32> to vector<128xf32>
    %42 = vector.shape_cast %41 : vector<128xf32> to vector<128x1xf32>
    %cst_25 = arith.constant 3.125000e-02 : f32
    %43 = vector.broadcast %cst_25 : f32 to vector<128x1xf32>
    %44 = arith.mulf %42, %43 : vector<128x1xf32>
    %45 = arith.mulf %39, %39 : vector<128x1xf32>
    %46 = arith.subf %44, %45 : vector<128x1xf32>
    %cst_26 = arith.constant 0.000000e+00 : f32
    %47 = vector.broadcast %cst_26 : f32 to vector<128x1xf32>
    %48 = arith.maximumf %46, %47 : vector<128x1xf32>
    %cst_27 = arith.constant 9.99999974E-6 : f32
    %49 = vector.broadcast %cst_27 : f32 to vector<128x1xf32>
    %50 = arith.addf %48, %49 : vector<128x1xf32>
    %51 = math.rsqrt %50 : vector<128x1xf32>
    %52 = vector.broadcast %39 : vector<128x1xf32> to vector<128x128xf32>
    %53 = arith.subf %35, %52 : vector<128x128xf32>
    %54 = vector.broadcast %51 : vector<128x1xf32> to vector<128x128xf32>
    %55 = arith.mulf %53, %54 : vector<128x128xf32>
    %56 = arith.truncf %55 : vector<128x128xf32> to vector<128x128xbf16>
    %cst_28 = arith.constant dense<0.000000e+00> : vector<8x128xf32>
    %57 = tpu.matmul %4, %56, %cst_28 {dimension_numbers = #tpu.dot_dimension_numbers<[1], [1], [0], [0], [0, 0, 1, 0], [], []>} : vector<8x128xbf16>, vector<128x128xbf16>, vector<8x128xf32> -> vector<8x128xf32>
    %58 = vector.extract_strided_slice %57 {offsets = [0, 0], sizes = [4, 128], strides = [1, 1]} : vector<8x128xf32> to vector<4x128xf32>
    %59 = vector.broadcast %5 : vector<4x1xf32> to vector<4x128xf32>
    %60 = arith.addf %58, %59 : vector<4x128xf32>
    %c1 = arith.constant 1 : index
    %c0_29 = arith.constant 0 : index
    %c0_30 = arith.constant 0 : index
    %61 = vector.load %arg5[%c1, %c0_29, %c0_30] : memref<16x4x128xf32, #tpu.memory_space<vmem>>, vector<1x4x128xf32>
    %62 = vector.shape_cast %61 : vector<1x4x128xf32> to vector<4x128xf32>
    %63 = vector.shape_cast %60 : vector<4x128xf32> to vector<1x4x128xf32>
    tpu.vector_store %arg5[%c1, %c0_29, %c0_30], %63 {strides = array<i32>} : memref<16x4x128xf32, #tpu.memory_space<vmem>>, vector<1x4x128xf32>,
    %c0_31 = arith.constant 0 : index
    %c256 = arith.constant 256 : index
    %64 = vector.load %arg6[%c0_31, %c256] : memref<128x2048xf32, #tpu.memory_space<vmem>>, vector<128x128xf32>
    %cst_32 = arith.constant dense<0.000000e+00> : vector<128xf32>
    %65 = vector.multi_reduction <add>, %64, %cst_32 [1] : vector<128x128xf32> to vector<128xf32>
    %66 = vector.shape_cast %65 : vector<128xf32> to vector<128x1xf32>
    %cst_33 = arith.constant 3.125000e-02 : f32
    %67 = vector.broadcast %cst_33 : f32 to vector<128x1xf32>
    %68 = arith.mulf %66, %67 : vector<128x1xf32>
    %69 = arith.mulf %64, %64 : vector<128x128xf32>
    %cst_34 = arith.constant dense<0.000000e+00> : vector<128xf32>
    %70 = vector.multi_reduction <add>, %69, %cst_34 [1] : vector<128x128xf32> to vector<128xf32>
    %71 = vector.shape_cast %70 : vector<128xf32> to vector<128x1xf32>
    %cst_35 = arith.constant 3.125000e-02 : f32
    %72 = vector.broadcast %cst_35 : f32 to vector<128x1xf32>
    %73 = arith.mulf %71, %72 : vector<128x1xf32>
    %74 = arith.mulf %68, %68 : vector<128x1xf32>
    %75 = arith.subf %73, %74 : vector<128x1xf32>
    %cst_36 = arith.constant 0.000000e+00 : f32
    %76 = vector.broadcast %cst_36 : f32 to vector<128x1xf32>
    %77 = arith.maximumf %75, %76 : vector<128x1xf32>
    %cst_37 = arith.constant 9.99999974E-6 : f32
    %78 = vector.broadcast %cst_37 : f32 to vector<128x1xf32>
    %79 = arith.addf %77, %78 : vector<128x1xf32>
    %80 = math.rsqrt %79 : vector<128x1xf32>
    %81 = vector.broadcast %68 : vector<128x1xf32> to vector<128x128xf32>
    %82 = arith.subf %64, %81 : vector<128x128xf32>
    %83 = vector.broadcast %80 : vector<128x1xf32> to vector<128x128xf32>
    %84 = arith.mulf %82, %83 : vector<128x128xf32>
    %85 = arith.truncf %84 : vector<128x128xf32> to vector<128x128xbf16>
    %cst_38 = arith.constant dense<0.000000e+00> : vector<8x128xf32>
    %86 = tpu.matmul %4, %85, %cst_38 {dimension_numbers = #tpu.dot_dimension_numbers<[1], [1], [0], [0], [0, 0, 1, 0], [], []>} : vector<8x128xbf16>, vector<128x128xbf16>, vector<8x128xf32> -> vector<8x128xf32>
    %87 = vector.extract_strided_slice %86 {offsets = [0, 0], sizes = [4, 128], strides = [1, 1]} : vector<8x128xf32> to vector<4x128xf32>
    %88 = vector.broadcast %5 : vector<4x1xf32> to vector<4x128xf32>
    %89 = arith.addf %87, %88 : vector<4x128xf32>
    %c2 = arith.constant 2 : index
    %c0_39 = arith.constant 0 : index
    %c0_40 = arith.constant 0 : index
    %90 = vector.load %arg5[%c2, %c0_39, %c0_40] : memref<16x4x128xf32, #tpu.memory_space<vmem>>, vector<1x4x128xf32>
    %91 = vector.shape_cast %90 : vector<1x4x128xf32> to vector<4x128xf32>
    %92 = vector.shape_cast %89 : vector<4x128xf32> to vector<1x4x128xf32>
    tpu.vector_store %arg5[%c2, %c0_39, %c0_40], %92 {strides = array<i32>} : memref<16x4x128xf32, #tpu.memory_space<vmem>>, vector<1x4x128xf32>,
    %c0_41 = arith.constant 0 : index
    %c384 = arith.constant 384 : index
    %93 = vector.load %arg6[%c0_41, %c384] : memref<128x2048xf32, #tpu.memory_space<vmem>>, vector<128x128xf32>
    %cst_42 = arith.constant dense<0.000000e+00> : vector<128xf32>
    %94 = vector.multi_reduction <add>, %93, %cst_42 [1] : vector<128x128xf32> to vector<128xf32>
    %95 = vector.shape_cast %94 : vector<128xf32> to vector<128x1xf32>
    %cst_43 = arith.constant 3.125000e-02 : f32
    %96 = vector.broadcast %cst_43 : f32 to vector<128x1xf32>
    %97 = arith.mulf %95, %96 : vector<128x1xf32>
    %98 = arith.mulf %93, %93 : vector<128x128xf32>
    %cst_44 = arith.constant dense<0.000000e+00> : vector<128xf32>
    %99 = vector.multi_reduction <add>, %98, %cst_44 [1] : vector<128x128xf32> to vector<128xf32>
    %100 = vector.shape_cast %99 : vector<128xf32> to vector<128x1xf32>
    %cst_45 = arith.constant 3.125000e-02 : f32
    %101 = vector.broadcast %cst_45 : f32 to vector<128x1xf32>
    %102 = arith.mulf %100, %101 : vector<128x1xf32>
    %103 = arith.mulf %97, %97 : vector<128x1xf32>
    %104 = arith.subf %102, %103 : vector<128x1xf32>
    %cst_46 = arith.constant 0.000000e+00 : f32
    %105 = vector.broadcast %cst_46 : f32 to vector<128x1xf32>
    %106 = arith.maximumf %104, %105 : vector<128x1xf32>
    %cst_47 = arith.constant 9.99999974E-6 : f32
    %107 = vector.broadcast %cst_47 : f32 to vector<128x1xf32>
    %108 = arith.addf %106, %107 : vector<128x1xf32>
    %109 = math.rsqrt %108 : vector<128x1xf32>
    %110 = vector.broadcast %97 : vector<128x1xf32> to vector<128x128xf32>
    %111 = arith.subf %93, %110 : vector<128x128xf32>
    %112 = vector.broadcast %109 : vector<128x1xf32> to vector<128x128xf32>
    %113 = arith.mulf %111, %112 : vector<128x128xf32>
    %114 = arith.truncf %113 : vector<128x128xf32> to vector<128x128xbf16>
    %cst_48 = arith.constant dense<0.000000e+00> : vector<8x128xf32>
    %115 = tpu.matmul %4, %114, %cst_48 {dimension_numbers = #tpu.dot_dimension_numbers<[1], [1], [0], [0], [0, 0, 1, 0], [], []>} : vector<8x128xbf16>, vector<128x128xbf16>, vector<8x128xf32> -> vector<8x128xf32>
    %116 = vector.extract_strided_slice %115 {offsets = [0, 0], sizes = [4, 128], strides = [1, 1]} : vector<8x128xf32> to vector<4x128xf32>
    %117 = vector.broadcast %5 : vector<4x1xf32> to vector<4x128xf32>
    %118 = arith.addf %116, %117 : vector<4x128xf32>
    %c3 = arith.constant 3 : index
    %c0_49 = arith.constant 0 : index
    %c0_50 = arith.constant 0 : index
    %119 = vector.load %arg5[%c3, %c0_49, %c0_50] : memref<16x4x128xf32, #tpu.memory_space<vmem>>, vector<1x4x128xf32>
    %120 = vector.shape_cast %119 : vector<1x4x128xf32> to vector<4x128xf32>
    %121 = vector.shape_cast %118 : vector<4x128xf32> to vector<1x4x128xf32>
    tpu.vector_store %arg5[%c3, %c0_49, %c0_50], %121 {strides = array<i32>} : memref<16x4x128xf32, #tpu.memory_space<vmem>>, vector<1x4x128xf32>,
    %c0_51 = arith.constant 0 : index
    %c512 = arith.constant 512 : index
    %122 = vector.load %arg6[%c0_51, %c512] : memref<128x2048xf32, #tpu.memory_space<vmem>>, vector<128x128xf32>
    %cst_52 = arith.constant dense<0.000000e+00> : vector<128xf32>
    %123 = vector.multi_reduction <add>, %122, %cst_52 [1] : vector<128x128xf32> to vector<128xf32>
    %124 = vector.shape_cast %123 : vector<128xf32> to vector<128x1xf32>
    %cst_53 = arith.constant 3.125000e-02 : f32
    %125 = vector.broadcast %cst_53 : f32 to vector<128x1xf32>
    %126 = arith.mulf %124, %125 : vector<128x1xf32>
    %127 = arith.mulf %122, %122 : vector<128x128xf32>
    %cst_54 = arith.constant dense<0.000000e+00> : vector<128xf32>
    %128 = vector.multi_reduction <add>, %127, %cst_54 [1] : vector<128x128xf32> to vector<128xf32>
    %129 = vector.shape_cast %128 : vector<128xf32> to vector<128x1xf32>
    %cst_55 = arith.constant 3.125000e-02 : f32
    %130 = vector.broadcast %cst_55 : f32 to vector<128x1xf32>
    %131 = arith.mulf %129, %130 : vector<128x1xf32>
    %132 = arith.mulf %126, %126 : vector<128x1xf32>
    %133 = arith.subf %131, %132 : vector<128x1xf32>
    %cst_56 = arith.constant 0.000000e+00 : f32
    %134 = vector.broadcast %cst_56 : f32 to vector<128x1xf32>
    %135 = arith.maximumf %133, %134 : vector<128x1xf32>
    %cst_57 = arith.constant 9.99999974E-6 : f32
    %136 = vector.broadcast %cst_57 : f32 to vector<128x1xf32>
    %137 = arith.addf %135, %136 : vector<128x1xf32>
    %138 = math.rsqrt %137 : vector<128x1xf32>
    %139 = vector.broadcast %126 : vector<128x1xf32> to vector<128x128xf32>
    %140 = arith.subf %122, %139 : vector<128x128xf32>
    %141 = vector.broadcast %138 : vector<128x1xf32> to vector<128x128xf32>
    %142 = arith.mulf %140, %141 : vector<128x128xf32>
    %143 = arith.truncf %142 : vector<128x128xf32> to vector<128x128xbf16>
    %cst_58 = arith.constant dense<0.000000e+00> : vector<8x128xf32>
    %144 = tpu.matmul %4, %143, %cst_58 {dimension_numbers = #tpu.dot_dimension_numbers<[1], [1], [0], [0], [0, 0, 1, 0], [], []>} : vector<8x128xbf16>, vector<128x128xbf16>, vector<8x128xf32> -> vector<8x128xf32>
    %145 = vector.extract_strided_slice %144 {offsets = [0, 0], sizes = [4, 128], strides = [1, 1]} : vector<8x128xf32> to vector<4x128xf32>
    %146 = vector.broadcast %5 : vector<4x1xf32> to vector<4x128xf32>
    %147 = arith.addf %145, %146 : vector<4x128xf32>
    %c4 = arith.constant 4 : index
    %c0_59 = arith.constant 0 : index
    %c0_60 = arith.constant 0 : index
    %148 = vector.load %arg5[%c4, %c0_59, %c0_60] : memref<16x4x128xf32, #tpu.memory_space<vmem>>, vector<1x4x128xf32>
    %149 = vector.shape_cast %148 : vector<1x4x128xf32> to vector<4x128xf32>
    %150 = vector.shape_cast %147 : vector<4x128xf32> to vector<1x4x128xf32>
    tpu.vector_store %arg5[%c4, %c0_59, %c0_60], %150 {strides = array<i32>} : memref<16x4x128xf32, #tpu.memory_space<vmem>>, vector<1x4x128xf32>,
    %c0_61 = arith.constant 0 : index
    %c640 = arith.constant 640 : index
    %151 = vector.load %arg6[%c0_61, %c640] : memref<128x2048xf32, #tpu.memory_space<vmem>>, vector<128x128xf32>
    %cst_62 = arith.constant dense<0.000000e+00> : vector<128xf32>
    %152 = vector.multi_reduction <add>, %151, %cst_62 [1] : vector<128x128xf32> to vector<128xf32>
    %153 = vector.shape_cast %152 : vector<128xf32> to vector<128x1xf32>
    %cst_63 = arith.constant 3.125000e-02 : f32
    %154 = vector.broadcast %cst_63 : f32 to vector<128x1xf32>
    %155 = arith.mulf %153, %154 : vector<128x1xf32>
    %156 = arith.mulf %151, %151 : vector<128x128xf32>
    %cst_64 = arith.constant dense<0.000000e+00> : vector<128xf32>
    %157 = vector.multi_reduction <add>, %156, %cst_64 [1] : vector<128x128xf32> to vector<128xf32>
    %158 = vector.shape_cast %157 : vector<128xf32> to vector<128x1xf32>
    %cst_65 = arith.constant 3.125000e-02 : f32
    %159 = vector.broadcast %cst_65 : f32 to vector<128x1xf32>
    %160 = arith.mulf %158, %159 : vector<128x1xf32>
    %161 = arith.mulf %155, %155 : vector<128x1xf32>
    %162 = arith.subf %160, %161 : vector<128x1xf32>
    %cst_66 = arith.constant 0.000000e+00 : f32
    %163 = vector.broadcast %cst_66 : f32 to vector<128x1xf32>
    %164 = arith.maximumf %162, %163 : vector<128x1xf32>
    %cst_67 = arith.constant 9.99999974E-6 : f32
    %165 = vector.broadcast %cst_67 : f32 to vector<128x1xf32>
    %166 = arith.addf %164, %165 : vector<128x1xf32>
    %167 = math.rsqrt %166 : vector<128x1xf32>
    %168 = vector.broadcast %155 : vector<128x1xf32> to vector<128x128xf32>
    %169 = arith.subf %151, %168 : vector<128x128xf32>
    %170 = vector.broadcast %167 : vector<128x1xf32> to vector<128x128xf32>
    %171 = arith.mulf %169, %170 : vector<128x128xf32>
    %172 = arith.truncf %171 : vector<128x128xf32> to vector<128x128xbf16>
    %cst_68 = arith.constant dense<0.000000e+00> : vector<8x128xf32>
    %173 = tpu.matmul %4, %172, %cst_68 {dimension_numbers = #tpu.dot_dimension_numbers<[1], [1], [0], [0], [0, 0, 1, 0], [], []>} : vector<8x128xbf16>, vector<128x128xbf16>, vector<8x128xf32> -> vector<8x128xf32>
    %174 = vector.extract_strided_slice %173 {offsets = [0, 0], sizes = [4, 128], strides = [1, 1]} : vector<8x128xf32> to vector<4x128xf32>
    %175 = vector.broadcast %5 : vector<4x1xf32> to vector<4x128xf32>
    %176 = arith.addf %174, %175 : vector<4x128xf32>
    %c5 = arith.constant 5 : index
    %c0_69 = arith.constant 0 : index
    %c0_70 = arith.constant 0 : index
    %177 = vector.load %arg5[%c5, %c0_69, %c0_70] : memref<16x4x128xf32, #tpu.memory_space<vmem>>, vector<1x4x128xf32>
    %178 = vector.shape_cast %177 : vector<1x4x128xf32> to vector<4x128xf32>
    %179 = vector.shape_cast %176 : vector<4x128xf32> to vector<1x4x128xf32>
    tpu.vector_store %arg5[%c5, %c0_69, %c0_70], %179 {strides = array<i32>} : memref<16x4x128xf32, #tpu.memory_space<vmem>>, vector<1x4x128xf32>,
    %c0_71 = arith.constant 0 : index
    %c768 = arith.constant 768 : index
    %180 = vector.load %arg6[%c0_71, %c768] : memref<128x2048xf32, #tpu.memory_space<vmem>>, vector<128x128xf32>
    %cst_72 = arith.constant dense<0.000000e+00> : vector<128xf32>
    %181 = vector.multi_reduction <add>, %180, %cst_72 [1] : vector<128x128xf32> to vector<128xf32>
    %182 = vector.shape_cast %181 : vector<128xf32> to vector<128x1xf32>
    %cst_73 = arith.constant 3.125000e-02 : f32
    %183 = vector.broadcast %cst_73 : f32 to vector<128x1xf32>
    %184 = arith.mulf %182, %183 : vector<128x1xf32>
    %185 = arith.mulf %180, %180 : vector<128x128xf32>
    %cst_74 = arith.constant dense<0.000000e+00> : vector<128xf32>
    %186 = vector.multi_reduction <add>, %185, %cst_74 [1] : vector<128x128xf32> to vector<128xf32>
    %187 = vector.shape_cast %186 : vector<128xf32> to vector<128x1xf32>
    %cst_75 = arith.constant 3.125000e-02 : f32
    %188 = vector.broadcast %cst_75 : f32 to vector<128x1xf32>
    %189 = arith.mulf %187, %188 : vector<128x1xf32>
    %190 = arith.mulf %184, %184 : vector<128x1xf32>
    %191 = arith.subf %189, %190 : vector<128x1xf32>
    %cst_76 = arith.constant 0.000000e+00 : f32
    %192 = vector.broadcast %cst_76 : f32 to vector<128x1xf32>
    %193 = arith.maximumf %191, %192 : vector<128x1xf32>
    %cst_77 = arith.constant 9.99999974E-6 : f32
    %194 = vector.broadcast %cst_77 : f32 to vector<128x1xf32>
    %195 = arith.addf %193, %194 : vector<128x1xf32>
    %196 = math.rsqrt %195 : vector<128x1xf32>
    %197 = vector.broadcast %184 : vector<128x1xf32> to vector<128x128xf32>
    %198 = arith.subf %180, %197 : vector<128x128xf32>
    %199 = vector.broadcast %196 : vector<128x1xf32> to vector<128x128xf32>
    %200 = arith.mulf %198, %199 : vector<128x128xf32>
    %201 = arith.truncf %200 : vector<128x128xf32> to vector<128x128xbf16>
    %cst_78 = arith.constant dense<0.000000e+00> : vector<8x128xf32>
    %202 = tpu.matmul %4, %201, %cst_78 {dimension_numbers = #tpu.dot_dimension_numbers<[1], [1], [0], [0], [0, 0, 1, 0], [], []>} : vector<8x128xbf16>, vector<128x128xbf16>, vector<8x128xf32> -> vector<8x128xf32>
    %203 = vector.extract_strided_slice %202 {offsets = [0, 0], sizes = [4, 128], strides = [1, 1]} : vector<8x128xf32> to vector<4x128xf32>
    %204 = vector.broadcast %5 : vector<4x1xf32> to vector<4x128xf32>
    %205 = arith.addf %203, %204 : vector<4x128xf32>
    %c6 = arith.constant 6 : index
    %c0_79 = arith.constant 0 : index
    %c0_80 = arith.constant 0 : index
    %206 = vector.load %arg5[%c6, %c0_79, %c0_80] : memref<16x4x128xf32, #tpu.memory_space<vmem>>, vector<1x4x128xf32>
    %207 = vector.shape_cast %206 : vector<1x4x128xf32> to vector<4x128xf32>
    %208 = vector.shape_cast %205 : vector<4x128xf32> to vector<1x4x128xf32>
    tpu.vector_store %arg5[%c6, %c0_79, %c0_80], %208 {strides = array<i32>} : memref<16x4x128xf32, #tpu.memory_space<vmem>>, vector<1x4x128xf32>,
    %c0_81 = arith.constant 0 : index
    %c896 = arith.constant 896 : index
    %209 = vector.load %arg6[%c0_81, %c896] : memref<128x2048xf32, #tpu.memory_space<vmem>>, vector<128x128xf32>
    %cst_82 = arith.constant dense<0.000000e+00> : vector<128xf32>
    %210 = vector.multi_reduction <add>, %209, %cst_82 [1] : vector<128x128xf32> to vector<128xf32>
    %211 = vector.shape_cast %210 : vector<128xf32> to vector<128x1xf32>
    %cst_83 = arith.constant 3.125000e-02 : f32
    %212 = vector.broadcast %cst_83 : f32 to vector<128x1xf32>
    %213 = arith.mulf %211, %212 : vector<128x1xf32>
    %214 = arith.mulf %209, %209 : vector<128x128xf32>
    %cst_84 = arith.constant dense<0.000000e+00> : vector<128xf32>
    %215 = vector.multi_reduction <add>, %214, %cst_84 [1] : vector<128x128xf32> to vector<128xf32>
    %216 = vector.shape_cast %215 : vector<128xf32> to vector<128x1xf32>
    %cst_85 = arith.constant 3.125000e-02 : f32
    %217 = vector.broadcast %cst_85 : f32 to vector<128x1xf32>
    %218 = arith.mulf %216, %217 : vector<128x1xf32>
    %219 = arith.mulf %213, %213 : vector<128x1xf32>
    %220 = arith.subf %218, %219 : vector<128x1xf32>
    %cst_86 = arith.constant 0.000000e+00 : f32
    %221 = vector.broadcast %cst_86 : f32 to vector<128x1xf32>
    %222 = arith.maximumf %220, %221 : vector<128x1xf32>
    %cst_87 = arith.constant 9.99999974E-6 : f32
    %223 = vector.broadcast %cst_87 : f32 to vector<128x1xf32>
    %224 = arith.addf %222, %223 : vector<128x1xf32>
    %225 = math.rsqrt %224 : vector<128x1xf32>
    %226 = vector.broadcast %213 : vector<128x1xf32> to vector<128x128xf32>
    %227 = arith.subf %209, %226 : vector<128x128xf32>
    %228 = vector.broadcast %225 : vector<128x1xf32> to vector<128x128xf32>
    %229 = arith.mulf %227, %228 : vector<128x128xf32>
    %230 = arith.truncf %229 : vector<128x128xf32> to vector<128x128xbf16>
    %cst_88 = arith.constant dense<0.000000e+00> : vector<8x128xf32>
    %231 = tpu.matmul %4, %230, %cst_88 {dimension_numbers = #tpu.dot_dimension_numbers<[1], [1], [0], [0], [0, 0, 1, 0], [], []>} : vector<8x128xbf16>, vector<128x128xbf16>, vector<8x128xf32> -> vector<8x128xf32>
    %232 = vector.extract_strided_slice %231 {offsets = [0, 0], sizes = [4, 128], strides = [1, 1]} : vector<8x128xf32> to vector<4x128xf32>
    %233 = vector.broadcast %5 : vector<4x1xf32> to vector<4x128xf32>
    %234 = arith.addf %232, %233 : vector<4x128xf32>
    %c7 = arith.constant 7 : index
    %c0_89 = arith.constant 0 : index
    %c0_90 = arith.constant 0 : index
    %235 = vector.load %arg5[%c7, %c0_89, %c0_90] : memref<16x4x128xf32, #tpu.memory_space<vmem>>, vector<1x4x128xf32>
    %236 = vector.shape_cast %235 : vector<1x4x128xf32> to vector<4x128xf32>
    %237 = vector.shape_cast %234 : vector<4x128xf32> to vector<1x4x128xf32>
    tpu.vector_store %arg5[%c7, %c0_89, %c0_90], %237 {strides = array<i32>} : memref<16x4x128xf32, #tpu.memory_space<vmem>>, vector<1x4x128xf32>,
    %c0_91 = arith.constant 0 : index
    %c1024 = arith.constant 1024 : index
    %238 = vector.load %arg6[%c0_91, %c1024] : memref<128x2048xf32, #tpu.memory_space<vmem>>, vector<128x128xf32>
    %cst_92 = arith.constant dense<0.000000e+00> : vector<128xf32>
    %239 = vector.multi_reduction <add>, %238, %cst_92 [1] : vector<128x128xf32> to vector<128xf32>
    %240 = vector.shape_cast %239 : vector<128xf32> to vector<128x1xf32>
    %cst_93 = arith.constant 3.125000e-02 : f32
    %241 = vector.broadcast %cst_93 : f32 to vector<128x1xf32>
    %242 = arith.mulf %240, %241 : vector<128x1xf32>
    %243 = arith.mulf %238, %238 : vector<128x128xf32>
    %cst_94 = arith.constant dense<0.000000e+00> : vector<128xf32>
    %244 = vector.multi_reduction <add>, %243, %cst_94 [1] : vector<128x128xf32> to vector<128xf32>
    %245 = vector.shape_cast %244 : vector<128xf32> to vector<128x1xf32>
    %cst_95 = arith.constant 3.125000e-02 : f32
    %246 = vector.broadcast %cst_95 : f32 to vector<128x1xf32>
    %247 = arith.mulf %245, %246 : vector<128x1xf32>
    %248 = arith.mulf %242, %242 : vector<128x1xf32>
    %249 = arith.subf %247, %248 : vector<128x1xf32>
    %cst_96 = arith.constant 0.000000e+00 : f32
    %250 = vector.broadcast %cst_96 : f32 to vector<128x1xf32>
    %251 = arith.maximumf %249, %250 : vector<128x1xf32>
    %cst_97 = arith.constant 9.99999974E-6 : f32
    %252 = vector.broadcast %cst_97 : f32 to vector<128x1xf32>
    %253 = arith.addf %251, %252 : vector<128x1xf32>
    %254 = math.rsqrt %253 : vector<128x1xf32>
    %255 = vector.broadcast %242 : vector<128x1xf32> to vector<128x128xf32>
    %256 = arith.subf %238, %255 : vector<128x128xf32>
    %257 = vector.broadcast %254 : vector<128x1xf32> to vector<128x128xf32>
    %258 = arith.mulf %256, %257 : vector<128x128xf32>
    %259 = arith.truncf %258 : vector<128x128xf32> to vector<128x128xbf16>
    %cst_98 = arith.constant dense<0.000000e+00> : vector<8x128xf32>
    %260 = tpu.matmul %4, %259, %cst_98 {dimension_numbers = #tpu.dot_dimension_numbers<[1], [1], [0], [0], [0, 0, 1, 0], [], []>} : vector<8x128xbf16>, vector<128x128xbf16>, vector<8x128xf32> -> vector<8x128xf32>
    %261 = vector.extract_strided_slice %260 {offsets = [0, 0], sizes = [4, 128], strides = [1, 1]} : vector<8x128xf32> to vector<4x128xf32>
    %262 = vector.broadcast %5 : vector<4x1xf32> to vector<4x128xf32>
    %263 = arith.addf %261, %262 : vector<4x128xf32>
    %c8 = arith.constant 8 : index
    %c0_99 = arith.constant 0 : index
    %c0_100 = arith.constant 0 : index
    %264 = vector.load %arg5[%c8, %c0_99, %c0_100] : memref<16x4x128xf32, #tpu.memory_space<vmem>>, vector<1x4x128xf32>
    %265 = vector.shape_cast %264 : vector<1x4x128xf32> to vector<4x128xf32>
    %266 = vector.shape_cast %263 : vector<4x128xf32> to vector<1x4x128xf32>
    tpu.vector_store %arg5[%c8, %c0_99, %c0_100], %266 {strides = array<i32>} : memref<16x4x128xf32, #tpu.memory_space<vmem>>, vector<1x4x128xf32>,
    %c0_101 = arith.constant 0 : index
    %c1152 = arith.constant 1152 : index
    %267 = vector.load %arg6[%c0_101, %c1152] : memref<128x2048xf32, #tpu.memory_space<vmem>>, vector<128x128xf32>
    %cst_102 = arith.constant dense<0.000000e+00> : vector<128xf32>
    %268 = vector.multi_reduction <add>, %267, %cst_102 [1] : vector<128x128xf32> to vector<128xf32>
    %269 = vector.shape_cast %268 : vector<128xf32> to vector<128x1xf32>
    %cst_103 = arith.constant 3.125000e-02 : f32
    %270 = vector.broadcast %cst_103 : f32 to vector<128x1xf32>
    %271 = arith.mulf %269, %270 : vector<128x1xf32>
    %272 = arith.mulf %267, %267 : vector<128x128xf32>
    %cst_104 = arith.constant dense<0.000000e+00> : vector<128xf32>
    %273 = vector.multi_reduction <add>, %272, %cst_104 [1] : vector<128x128xf32> to vector<128xf32>
    %274 = vector.shape_cast %273 : vector<128xf32> to vector<128x1xf32>
    %cst_105 = arith.constant 3.125000e-02 : f32
    %275 = vector.broadcast %cst_105 : f32 to vector<128x1xf32>
    %276 = arith.mulf %274, %275 : vector<128x1xf32>
    %277 = arith.mulf %271, %271 : vector<128x1xf32>
    %278 = arith.subf %276, %277 : vector<128x1xf32>
    %cst_106 = arith.constant 0.000000e+00 : f32
    %279 = vector.broadcast %cst_106 : f32 to vector<128x1xf32>
    %280 = arith.maximumf %278, %279 : vector<128x1xf32>
    %cst_107 = arith.constant 9.99999974E-6 : f32
    %281 = vector.broadcast %cst_107 : f32 to vector<128x1xf32>
    %282 = arith.addf %280, %281 : vector<128x1xf32>
    %283 = math.rsqrt %282 : vector<128x1xf32>
    %284 = vector.broadcast %271 : vector<128x1xf32> to vector<128x128xf32>
    %285 = arith.subf %267, %284 : vector<128x128xf32>
    %286 = vector.broadcast %283 : vector<128x1xf32> to vector<128x128xf32>
    %287 = arith.mulf %285, %286 : vector<128x128xf32>
    %288 = arith.truncf %287 : vector<128x128xf32> to vector<128x128xbf16>
    %cst_108 = arith.constant dense<0.000000e+00> : vector<8x128xf32>
    %289 = tpu.matmul %4, %288, %cst_108 {dimension_numbers = #tpu.dot_dimension_numbers<[1], [1], [0], [0], [0, 0, 1, 0], [], []>} : vector<8x128xbf16>, vector<128x128xbf16>, vector<8x128xf32> -> vector<8x128xf32>
    %290 = vector.extract_strided_slice %289 {offsets = [0, 0], sizes = [4, 128], strides = [1, 1]} : vector<8x128xf32> to vector<4x128xf32>
    %291 = vector.broadcast %5 : vector<4x1xf32> to vector<4x128xf32>
    %292 = arith.addf %290, %291 : vector<4x128xf32>
    %c9 = arith.constant 9 : index
    %c0_109 = arith.constant 0 : index
    %c0_110 = arith.constant 0 : index
    %293 = vector.load %arg5[%c9, %c0_109, %c0_110] : memref<16x4x128xf32, #tpu.memory_space<vmem>>, vector<1x4x128xf32>
    %294 = vector.shape_cast %293 : vector<1x4x128xf32> to vector<4x128xf32>
    %295 = vector.shape_cast %292 : vector<4x128xf32> to vector<1x4x128xf32>
    tpu.vector_store %arg5[%c9, %c0_109, %c0_110], %295 {strides = array<i32>} : memref<16x4x128xf32, #tpu.memory_space<vmem>>, vector<1x4x128xf32>,
    %c0_111 = arith.constant 0 : index
    %c1280 = arith.constant 1280 : index
    %296 = vector.load %arg6[%c0_111, %c1280] : memref<128x2048xf32, #tpu.memory_space<vmem>>, vector<128x128xf32>
    %cst_112 = arith.constant dense<0.000000e+00> : vector<128xf32>
    %297 = vector.multi_reduction <add>, %296, %cst_112 [1] : vector<128x128xf32> to vector<128xf32>
    %298 = vector.shape_cast %297 : vector<128xf32> to vector<128x1xf32>
    %cst_113 = arith.constant 3.125000e-02 : f32
    %299 = vector.broadcast %cst_113 : f32 to vector<128x1xf32>
    %300 = arith.mulf %298, %299 : vector<128x1xf32>
    %301 = arith.mulf %296, %296 : vector<128x128xf32>
    %cst_114 = arith.constant dense<0.000000e+00> : vector<128xf32>
    %302 = vector.multi_reduction <add>, %301, %cst_114 [1] : vector<128x128xf32> to vector<128xf32>
    %303 = vector.shape_cast %302 : vector<128xf32> to vector<128x1xf32>
    %cst_115 = arith.constant 3.125000e-02 : f32
    %304 = vector.broadcast %cst_115 : f32 to vector<128x1xf32>
    %305 = arith.mulf %303, %304 : vector<128x1xf32>
    %306 = arith.mulf %300, %300 : vector<128x1xf32>
    %307 = arith.subf %305, %306 : vector<128x1xf32>
    %cst_116 = arith.constant 0.000000e+00 : f32
    %308 = vector.broadcast %cst_116 : f32 to vector<128x1xf32>
    %309 = arith.maximumf %307, %308 : vector<128x1xf32>
    %cst_117 = arith.constant 9.99999974E-6 : f32
    %310 = vector.broadcast %cst_117 : f32 to vector<128x1xf32>
    %311 = arith.addf %309, %310 : vector<128x1xf32>
    %312 = math.rsqrt %311 : vector<128x1xf32>
    %313 = vector.broadcast %300 : vector<128x1xf32> to vector<128x128xf32>
    %314 = arith.subf %296, %313 : vector<128x128xf32>
    %315 = vector.broadcast %312 : vector<128x1xf32> to vector<128x128xf32>
    %316 = arith.mulf %314, %315 : vector<128x128xf32>
    %317 = arith.truncf %316 : vector<128x128xf32> to vector<128x128xbf16>
    %cst_118 = arith.constant dense<0.000000e+00> : vector<8x128xf32>
    %318 = tpu.matmul %4, %317, %cst_118 {dimension_numbers = #tpu.dot_dimension_numbers<[1], [1], [0], [0], [0, 0, 1, 0], [], []>} : vector<8x128xbf16>, vector<128x128xbf16>, vector<8x128xf32> -> vector<8x128xf32>
    %319 = vector.extract_strided_slice %318 {offsets = [0, 0], sizes = [4, 128], strides = [1, 1]} : vector<8x128xf32> to vector<4x128xf32>
    %320 = vector.broadcast %5 : vector<4x1xf32> to vector<4x128xf32>
    %321 = arith.addf %319, %320 : vector<4x128xf32>
    %c10 = arith.constant 10 : index
    %c0_119 = arith.constant 0 : index
    %c0_120 = arith.constant 0 : index
    %322 = vector.load %arg5[%c10, %c0_119, %c0_120] : memref<16x4x128xf32, #tpu.memory_space<vmem>>, vector<1x4x128xf32>
    %323 = vector.shape_cast %322 : vector<1x4x128xf32> to vector<4x128xf32>
    %324 = vector.shape_cast %321 : vector<4x128xf32> to vector<1x4x128xf32>
    tpu.vector_store %arg5[%c10, %c0_119, %c0_120], %324 {strides = array<i32>} : memref<16x4x128xf32, #tpu.memory_space<vmem>>, vector<1x4x128xf32>,
    %c0_121 = arith.constant 0 : index
    %c1408 = arith.constant 1408 : index
    %325 = vector.load %arg6[%c0_121, %c1408] : memref<128x2048xf32, #tpu.memory_space<vmem>>, vector<128x128xf32>
    %cst_122 = arith.constant dense<0.000000e+00> : vector<128xf32>
    %326 = vector.multi_reduction <add>, %325, %cst_122 [1] : vector<128x128xf32> to vector<128xf32>
    %327 = vector.shape_cast %326 : vector<128xf32> to vector<128x1xf32>
    %cst_123 = arith.constant 3.125000e-02 : f32
    %328 = vector.broadcast %cst_123 : f32 to vector<128x1xf32>
    %329 = arith.mulf %327, %328 : vector<128x1xf32>
    %330 = arith.mulf %325, %325 : vector<128x128xf32>
    %cst_124 = arith.constant dense<0.000000e+00> : vector<128xf32>
    %331 = vector.multi_reduction <add>, %330, %cst_124 [1] : vector<128x128xf32> to vector<128xf32>
    %332 = vector.shape_cast %331 : vector<128xf32> to vector<128x1xf32>
    %cst_125 = arith.constant 3.125000e-02 : f32
    %333 = vector.broadcast %cst_125 : f32 to vector<128x1xf32>
    %334 = arith.mulf %332, %333 : vector<128x1xf32>
    %335 = arith.mulf %329, %329 : vector<128x1xf32>
    %336 = arith.subf %334, %335 : vector<128x1xf32>
    %cst_126 = arith.constant 0.000000e+00 : f32
    %337 = vector.broadcast %cst_126 : f32 to vector<128x1xf32>
    %338 = arith.maximumf %336, %337 : vector<128x1xf32>
    %cst_127 = arith.constant 9.99999974E-6 : f32
    %339 = vector.broadcast %cst_127 : f32 to vector<128x1xf32>
    %340 = arith.addf %338, %339 : vector<128x1xf32>
    %341 = math.rsqrt %340 : vector<128x1xf32>
    %342 = vector.broadcast %329 : vector<128x1xf32> to vector<128x128xf32>
    %343 = arith.subf %325, %342 : vector<128x128xf32>
    %344 = vector.broadcast %341 : vector<128x1xf32> to vector<128x128xf32>
    %345 = arith.mulf %343, %344 : vector<128x128xf32>
    %346 = arith.truncf %345 : vector<128x128xf32> to vector<128x128xbf16>
    %cst_128 = arith.constant dense<0.000000e+00> : vector<8x128xf32>
    %347 = tpu.matmul %4, %346, %cst_128 {dimension_numbers = #tpu.dot_dimension_numbers<[1], [1], [0], [0], [0, 0, 1, 0], [], []>} : vector<8x128xbf16>, vector<128x128xbf16>, vector<8x128xf32> -> vector<8x128xf32>
    %348 = vector.extract_strided_slice %347 {offsets = [0, 0], sizes = [4, 128], strides = [1, 1]} : vector<8x128xf32> to vector<4x128xf32>
    %349 = vector.broadcast %5 : vector<4x1xf32> to vector<4x128xf32>
    %350 = arith.addf %348, %349 : vector<4x128xf32>
    %c11 = arith.constant 11 : index
    %c0_129 = arith.constant 0 : index
    %c0_130 = arith.constant 0 : index
    %351 = vector.load %arg5[%c11, %c0_129, %c0_130] : memref<16x4x128xf32, #tpu.memory_space<vmem>>, vector<1x4x128xf32>
    %352 = vector.shape_cast %351 : vector<1x4x128xf32> to vector<4x128xf32>
    %353 = vector.shape_cast %350 : vector<4x128xf32> to vector<1x4x128xf32>
    tpu.vector_store %arg5[%c11, %c0_129, %c0_130], %353 {strides = array<i32>} : memref<16x4x128xf32, #tpu.memory_space<vmem>>, vector<1x4x128xf32>,
    %c0_131 = arith.constant 0 : index
    %c1536 = arith.constant 1536 : index
    %354 = vector.load %arg6[%c0_131, %c1536] : memref<128x2048xf32, #tpu.memory_space<vmem>>, vector<128x128xf32>
    %cst_132 = arith.constant dense<0.000000e+00> : vector<128xf32>
    %355 = vector.multi_reduction <add>, %354, %cst_132 [1] : vector<128x128xf32> to vector<128xf32>
    %356 = vector.shape_cast %355 : vector<128xf32> to vector<128x1xf32>
    %cst_133 = arith.constant 3.125000e-02 : f32
    %357 = vector.broadcast %cst_133 : f32 to vector<128x1xf32>
    %358 = arith.mulf %356, %357 : vector<128x1xf32>
    %359 = arith.mulf %354, %354 : vector<128x128xf32>
    %cst_134 = arith.constant dense<0.000000e+00> : vector<128xf32>
    %360 = vector.multi_reduction <add>, %359, %cst_134 [1] : vector<128x128xf32> to vector<128xf32>
    %361 = vector.shape_cast %360 : vector<128xf32> to vector<128x1xf32>
    %cst_135 = arith.constant 3.125000e-02 : f32
    %362 = vector.broadcast %cst_135 : f32 to vector<128x1xf32>
    %363 = arith.mulf %361, %362 : vector<128x1xf32>
    %364 = arith.mulf %358, %358 : vector<128x1xf32>
    %365 = arith.subf %363, %364 : vector<128x1xf32>
    %cst_136 = arith.constant 0.000000e+00 : f32
    %366 = vector.broadcast %cst_136 : f32 to vector<128x1xf32>
    %367 = arith.maximumf %365, %366 : vector<128x1xf32>
    %cst_137 = arith.constant 9.99999974E-6 : f32
    %368 = vector.broadcast %cst_137 : f32 to vector<128x1xf32>
    %369 = arith.addf %367, %368 : vector<128x1xf32>
    %370 = math.rsqrt %369 : vector<128x1xf32>
    %371 = vector.broadcast %358 : vector<128x1xf32> to vector<128x128xf32>
    %372 = arith.subf %354, %371 : vector<128x128xf32>
    %373 = vector.broadcast %370 : vector<128x1xf32> to vector<128x128xf32>
    %374 = arith.mulf %372, %373 : vector<128x128xf32>
    %375 = arith.truncf %374 : vector<128x128xf32> to vector<128x128xbf16>
    %cst_138 = arith.constant dense<0.000000e+00> : vector<8x128xf32>
    %376 = tpu.matmul %4, %375, %cst_138 {dimension_numbers = #tpu.dot_dimension_numbers<[1], [1], [0], [0], [0, 0, 1, 0], [], []>} : vector<8x128xbf16>, vector<128x128xbf16>, vector<8x128xf32> -> vector<8x128xf32>
    %377 = vector.extract_strided_slice %376 {offsets = [0, 0], sizes = [4, 128], strides = [1, 1]} : vector<8x128xf32> to vector<4x128xf32>
    %378 = vector.broadcast %5 : vector<4x1xf32> to vector<4x128xf32>
    %379 = arith.addf %377, %378 : vector<4x128xf32>
    %c12 = arith.constant 12 : index
    %c0_139 = arith.constant 0 : index
    %c0_140 = arith.constant 0 : index
    %380 = vector.load %arg5[%c12, %c0_139, %c0_140] : memref<16x4x128xf32, #tpu.memory_space<vmem>>, vector<1x4x128xf32>
    %381 = vector.shape_cast %380 : vector<1x4x128xf32> to vector<4x128xf32>
    %382 = vector.shape_cast %379 : vector<4x128xf32> to vector<1x4x128xf32>
    tpu.vector_store %arg5[%c12, %c0_139, %c0_140], %382 {strides = array<i32>} : memref<16x4x128xf32, #tpu.memory_space<vmem>>, vector<1x4x128xf32>,
    %c0_141 = arith.constant 0 : index
    %c1664 = arith.constant 1664 : index
    %383 = vector.load %arg6[%c0_141, %c1664] : memref<128x2048xf32, #tpu.memory_space<vmem>>, vector<128x128xf32>
    %cst_142 = arith.constant dense<0.000000e+00> : vector<128xf32>
    %384 = vector.multi_reduction <add>, %383, %cst_142 [1] : vector<128x128xf32> to vector<128xf32>
    %385 = vector.shape_cast %384 : vector<128xf32> to vector<128x1xf32>
    %cst_143 = arith.constant 3.125000e-02 : f32
    %386 = vector.broadcast %cst_143 : f32 to vector<128x1xf32>
    %387 = arith.mulf %385, %386 : vector<128x1xf32>
    %388 = arith.mulf %383, %383 : vector<128x128xf32>
    %cst_144 = arith.constant dense<0.000000e+00> : vector<128xf32>
    %389 = vector.multi_reduction <add>, %388, %cst_144 [1] : vector<128x128xf32> to vector<128xf32>
    %390 = vector.shape_cast %389 : vector<128xf32> to vector<128x1xf32>
    %cst_145 = arith.constant 3.125000e-02 : f32
    %391 = vector.broadcast %cst_145 : f32 to vector<128x1xf32>
    %392 = arith.mulf %390, %391 : vector<128x1xf32>
    %393 = arith.mulf %387, %387 : vector<128x1xf32>
    %394 = arith.subf %392, %393 : vector<128x1xf32>
    %cst_146 = arith.constant 0.000000e+00 : f32
    %395 = vector.broadcast %cst_146 : f32 to vector<128x1xf32>
    %396 = arith.maximumf %394, %395 : vector<128x1xf32>
    %cst_147 = arith.constant 9.99999974E-6 : f32
    %397 = vector.broadcast %cst_147 : f32 to vector<128x1xf32>
    %398 = arith.addf %396, %397 : vector<128x1xf32>
    %399 = math.rsqrt %398 : vector<128x1xf32>
    %400 = vector.broadcast %387 : vector<128x1xf32> to vector<128x128xf32>
    %401 = arith.subf %383, %400 : vector<128x128xf32>
    %402 = vector.broadcast %399 : vector<128x1xf32> to vector<128x128xf32>
    %403 = arith.mulf %401, %402 : vector<128x128xf32>
    %404 = arith.truncf %403 : vector<128x128xf32> to vector<128x128xbf16>
    %cst_148 = arith.constant dense<0.000000e+00> : vector<8x128xf32>
    %405 = tpu.matmul %4, %404, %cst_148 {dimension_numbers = #tpu.dot_dimension_numbers<[1], [1], [0], [0], [0, 0, 1, 0], [], []>} : vector<8x128xbf16>, vector<128x128xbf16>, vector<8x128xf32> -> vector<8x128xf32>
    %406 = vector.extract_strided_slice %405 {offsets = [0, 0], sizes = [4, 128], strides = [1, 1]} : vector<8x128xf32> to vector<4x128xf32>
    %407 = vector.broadcast %5 : vector<4x1xf32> to vector<4x128xf32>
    %408 = arith.addf %406, %407 : vector<4x128xf32>
    %c13 = arith.constant 13 : index
    %c0_149 = arith.constant 0 : index
    %c0_150 = arith.constant 0 : index
    %409 = vector.load %arg5[%c13, %c0_149, %c0_150] : memref<16x4x128xf32, #tpu.memory_space<vmem>>, vector<1x4x128xf32>
    %410 = vector.shape_cast %409 : vector<1x4x128xf32> to vector<4x128xf32>
    %411 = vector.shape_cast %408 : vector<4x128xf32> to vector<1x4x128xf32>
    tpu.vector_store %arg5[%c13, %c0_149, %c0_150], %411 {strides = array<i32>} : memref<16x4x128xf32, #tpu.memory_space<vmem>>, vector<1x4x128xf32>,
    %c0_151 = arith.constant 0 : index
    %c1792 = arith.constant 1792 : index
    %412 = vector.load %arg6[%c0_151, %c1792] : memref<128x2048xf32, #tpu.memory_space<vmem>>, vector<128x128xf32>
    %cst_152 = arith.constant dense<0.000000e+00> : vector<128xf32>
    %413 = vector.multi_reduction <add>, %412, %cst_152 [1] : vector<128x128xf32> to vector<128xf32>
    %414 = vector.shape_cast %413 : vector<128xf32> to vector<128x1xf32>
    %cst_153 = arith.constant 3.125000e-02 : f32
    %415 = vector.broadcast %cst_153 : f32 to vector<128x1xf32>
    %416 = arith.mulf %414, %415 : vector<128x1xf32>
    %417 = arith.mulf %412, %412 : vector<128x128xf32>
    %cst_154 = arith.constant dense<0.000000e+00> : vector<128xf32>
    %418 = vector.multi_reduction <add>, %417, %cst_154 [1] : vector<128x128xf32> to vector<128xf32>
    %419 = vector.shape_cast %418 : vector<128xf32> to vector<128x1xf32>
    %cst_155 = arith.constant 3.125000e-02 : f32
    %420 = vector.broadcast %cst_155 : f32 to vector<128x1xf32>
    %421 = arith.mulf %419, %420 : vector<128x1xf32>
    %422 = arith.mulf %416, %416 : vector<128x1xf32>
    %423 = arith.subf %421, %422 : vector<128x1xf32>
    %cst_156 = arith.constant 0.000000e+00 : f32
    %424 = vector.broadcast %cst_156 : f32 to vector<128x1xf32>
    %425 = arith.maximumf %423, %424 : vector<128x1xf32>
    %cst_157 = arith.constant 9.99999974E-6 : f32
    %426 = vector.broadcast %cst_157 : f32 to vector<128x1xf32>
    %427 = arith.addf %425, %426 : vector<128x1xf32>
    %428 = math.rsqrt %427 : vector<128x1xf32>
    %429 = vector.broadcast %416 : vector<128x1xf32> to vector<128x128xf32>
    %430 = arith.subf %412, %429 : vector<128x128xf32>
    %431 = vector.broadcast %428 : vector<128x1xf32> to vector<128x128xf32>
    %432 = arith.mulf %430, %431 : vector<128x128xf32>
    %433 = arith.truncf %432 : vector<128x128xf32> to vector<128x128xbf16>
    %cst_158 = arith.constant dense<0.000000e+00> : vector<8x128xf32>
    %434 = tpu.matmul %4, %433, %cst_158 {dimension_numbers = #tpu.dot_dimension_numbers<[1], [1], [0], [0], [0, 0, 1, 0], [], []>} : vector<8x128xbf16>, vector<128x128xbf16>, vector<8x128xf32> -> vector<8x128xf32>
    %435 = vector.extract_strided_slice %434 {offsets = [0, 0], sizes = [4, 128], strides = [1, 1]} : vector<8x128xf32> to vector<4x128xf32>
    %436 = vector.broadcast %5 : vector<4x1xf32> to vector<4x128xf32>
    %437 = arith.addf %435, %436 : vector<4x128xf32>
    %c14 = arith.constant 14 : index
    %c0_159 = arith.constant 0 : index
    %c0_160 = arith.constant 0 : index
    %438 = vector.load %arg5[%c14, %c0_159, %c0_160] : memref<16x4x128xf32, #tpu.memory_space<vmem>>, vector<1x4x128xf32>
    %439 = vector.shape_cast %438 : vector<1x4x128xf32> to vector<4x128xf32>
    %440 = vector.shape_cast %437 : vector<4x128xf32> to vector<1x4x128xf32>
    tpu.vector_store %arg5[%c14, %c0_159, %c0_160], %440 {strides = array<i32>} : memref<16x4x128xf32, #tpu.memory_space<vmem>>, vector<1x4x128xf32>,
    %c0_161 = arith.constant 0 : index
    %c1920 = arith.constant 1920 : index
    %441 = vector.load %arg6[%c0_161, %c1920] : memref<128x2048xf32, #tpu.memory_space<vmem>>, vector<128x128xf32>
    %cst_162 = arith.constant dense<0.000000e+00> : vector<128xf32>
    %442 = vector.multi_reduction <add>, %441, %cst_162 [1] : vector<128x128xf32> to vector<128xf32>
    %443 = vector.shape_cast %442 : vector<128xf32> to vector<128x1xf32>
    %cst_163 = arith.constant 3.125000e-02 : f32
    %444 = vector.broadcast %cst_163 : f32 to vector<128x1xf32>
    %445 = arith.mulf %443, %444 : vector<128x1xf32>
    %446 = arith.mulf %441, %441 : vector<128x128xf32>
    %cst_164 = arith.constant dense<0.000000e+00> : vector<128xf32>
    %447 = vector.multi_reduction <add>, %446, %cst_164 [1] : vector<128x128xf32> to vector<128xf32>
    %448 = vector.shape_cast %447 : vector<128xf32> to vector<128x1xf32>
    %cst_165 = arith.constant 3.125000e-02 : f32
    %449 = vector.broadcast %cst_165 : f32 to vector<128x1xf32>
    %450 = arith.mulf %448, %449 : vector<128x1xf32>
    %451 = arith.mulf %445, %445 : vector<128x1xf32>
    %452 = arith.subf %450, %451 : vector<128x1xf32>
    %cst_166 = arith.constant 0.000000e+00 : f32
    %453 = vector.broadcast %cst_166 : f32 to vector<128x1xf32>
    %454 = arith.maximumf %452, %453 : vector<128x1xf32>
    %cst_167 = arith.constant 9.99999974E-6 : f32
    %455 = vector.broadcast %cst_167 : f32 to vector<128x1xf32>
    %456 = arith.addf %454, %455 : vector<128x1xf32>
    %457 = math.rsqrt %456 : vector<128x1xf32>
    %458 = vector.broadcast %445 : vector<128x1xf32> to vector<128x128xf32>
    %459 = arith.subf %441, %458 : vector<128x128xf32>
    %460 = vector.broadcast %457 : vector<128x1xf32> to vector<128x128xf32>
    %461 = arith.mulf %459, %460 : vector<128x128xf32>
    %462 = arith.truncf %461 : vector<128x128xf32> to vector<128x128xbf16>
    %cst_168 = arith.constant dense<0.000000e+00> : vector<8x128xf32>
    %463 = tpu.matmul %4, %462, %cst_168 {dimension_numbers = #tpu.dot_dimension_numbers<[1], [1], [0], [0], [0, 0, 1, 0], [], []>} : vector<8x128xbf16>, vector<128x128xbf16>, vector<8x128xf32> -> vector<8x128xf32>
    %464 = vector.extract_strided_slice %463 {offsets = [0, 0], sizes = [4, 128], strides = [1, 1]} : vector<8x128xf32> to vector<4x128xf32>
    %465 = vector.broadcast %5 : vector<4x1xf32> to vector<4x128xf32>
    %466 = arith.addf %464, %465 : vector<4x128xf32>
    %c15 = arith.constant 15 : index
    %c0_169 = arith.constant 0 : index
    %c0_170 = arith.constant 0 : index
    %467 = vector.load %arg5[%c15, %c0_169, %c0_170] : memref<16x4x128xf32, #tpu.memory_space<vmem>>, vector<1x4x128xf32>
    %468 = vector.shape_cast %467 : vector<1x4x128xf32> to vector<4x128xf32>
    %469 = vector.shape_cast %466 : vector<4x128xf32> to vector<1x4x128xf32>
    tpu.vector_store %arg5[%c15, %c0_169, %c0_170], %469 {strides = array<i32>} : memref<16x4x128xf32, #tpu.memory_space<vmem>>, vector<1x4x128xf32>,
    return
  }
  func.func @transform_0(%arg0: i32) -> (i32, i32) {
    %c0_i32 = arith.constant 0 : i32
    %c0_i32_0 = arith.constant 0 : i32
    return %arg0, %c0_i32 : i32, i32
  }
  func.func @transform_1(%arg0: i32) -> (i32, i32) {
    %c0_i32 = arith.constant 0 : i32
    %c0_i32_0 = arith.constant 0 : i32
    %c0_i32_1 = arith.constant 0 : i32
    return %c0_i32, %c0_i32_0 : i32, i32
  }
  func.func @transform_2(%arg0: i32) -> (i32, i32) {
    %c0_i32 = arith.constant 0 : i32
    %c0_i32_0 = arith.constant 0 : i32
    %c0_i32_1 = arith.constant 0 : i32
    return %c0_i32, %c0_i32_0 : i32, i32
  }
  func.func @transform_3(%arg0: i32) -> (i32, i32) {
    %c0_i32 = arith.constant 0 : i32
    %c0_i32_0 = arith.constant 0 : i32
    %c0_i32_1 = arith.constant 0 : i32
    return %c0_i32, %c0_i32_0 : i32, i32
  }
  func.func @transform_4(%arg0: i32) -> (i32, i32, i32) {
    %c0_i32 = arith.constant 0 : i32
    %c0_i32_0 = arith.constant 0 : i32
    %c0_i32_1 = arith.constant 0 : i32
    return %c0_i32, %c0_i32_0, %arg0 : i32, i32, i32
  }
}

</mosaic_0001>

<llo_original>
// kernel: tpu_custom_call.1
$region0: #{tpu_custom_call.1}
  #allocation0 [shape = 'u32[]', space=smem, size = 0x4, offset = 0x4, fixed_abs, tag = 'smem constant byte address 0x4 - core index']
  #allocation1 [shape = 'u32[72,128]{1,0:T(1,128)}', space=vmem, size = 0x9000, scoped, tag = 'internal scratch']
  #allocation2 [shape = 'f32[128,2048]{1,0:T(8,128)}', space=vmem, size = 0x100000, scoped, tag = 'scratch operand']
  %s0 = inlined_call_operand.vmem [shape: bf16[128,32], index: 0, kind: input, shape index: {}]
  %s1 = inlined_call_operand.hbm [shape: bf16[32,2048], index: 1, kind: input, shape index: {}]
  %s2 = inlined_call_operand.vmem [shape: bf16[8,128], index: 2, kind: input, shape index: {}]
  %s3 = inlined_call_operand.vmem [shape: f32[8,1], index: 3, kind: input, shape index: {}]
  %s4 = inlined_call_operand.hbm [shape: f32[16,4,128], index: 4, kind: output, shape index: {}]
  %s5 = sld [smem:[#allocation0]]
  $region30: #{tpu_custom_call.1} parent=0
    _
  %s7 = ssub.s32 1, %s5
  %s8 = scalar_select 0, %s7, %s5
  $region1: #{tpu_custom_call.1} parent=0
    #allocation3 [shape = 'u8[131072]{0}', space=vmem, size = 0x20000, scoped, tag = 'input window, operand 1, single buffered']
    #allocation4 [shape = 's32[1]{0}', space=sflag, size = 0x4, scoped, tag = 'scoped memory for tpu_custom_call.1']
    #allocation5 [shape = 's32[1]{0}', space=sflag, size = 0x4, scoped, tag = 'scoped memory for tpu_custom_call.1']
    #allocation6 [shape = 'u8[32768]{0}', space=vmem, size = 0x8000, scoped, tag = 'output window, operand 0, single buffered']
    %9 = vsyncpa [#allocation4], 0
    %10 = vsyncpa [#allocation5], 0
    // Predicated region
    $region2: #{tpu_custom_call.1} parent=1 // pred_check
      _
    $region3: #{tpu_custom_call.1} parent=1 // pred_check_branch
      %12 = sbr.rel (0) target = $region5
    $region4: #{tpu_custom_call.1} parent=1 // pred_region
      _
    $region5: #{tpu_custom_call.1} parent=1 // pred_fallthru
      _
    // Predicated region
    $region6: #{tpu_custom_call.1} parent=1 // pred_check
      _
    $region7: #{tpu_custom_call.1} parent=1 // pred_check_branch
      %14 = sbr.rel (0) target = $region9
    $region8: #{tpu_custom_call.1} parent=1 // pred_region
      %16 = vsyncadd [#allocation4], 0
      %s17 = sshll.u32 %s1, 4
      %s18 = int_to_ptr.hbm [resolvable:$true] %s17
      %s19 = sshll.u32 [#allocation3], 4
      %s20 = int_to_ptr.vmem [resolvable:$true] %s19
      %25 = dma.hbm_to_vmem [thread:$0]  %s18, 4096, %s20, [#allocation4], 1024, 1024, 64
    $region9: #{tpu_custom_call.1} parent=1 // pred_fallthru
      _
    // Predicated region
    $region10: #{tpu_custom_call.1} parent=1 // pred_check
      _
    $region11: #{tpu_custom_call.1} parent=1 // pred_check_branch
      %27 = sbr.rel (0) target = $region13
    $region12: #{tpu_custom_call.1} parent=1 // pred_region
      _
    $region13: #{tpu_custom_call.1} parent=1 // pred_fallthru
      _
    // Predicated region
    $region14: #{tpu_custom_call.1} parent=1 // pred_check
      _
    $region15: #{tpu_custom_call.1} parent=1 // pred_check_branch
      %29 = sbr.rel (0) target = $region17
    $region16: #{tpu_custom_call.1} parent=1 // pred_region
      _
    $region17: #{tpu_custom_call.1} parent=1 // pred_fallthru
      _
    // Predicated region
    $region18: #{tpu_custom_call.1} parent=1 // pred_check
      _
    $region19: #{tpu_custom_call.1} parent=1 // pred_check_branch
      %31 = sbr.rel (0) target = $region21
    $region20: #{tpu_custom_call.1} parent=1 // pred_region
      %33 = dma.done [#allocation4], 4096
    $region21: #{tpu_custom_call.1} parent=1 // pred_fallthru
      _
    %v35 = vld [vmem:[%s0] sm:$0xf]
    %v36 = vld [vmem:[%s0 + $0x4] sm:$0xf]
    %v37 = vld [vmem:[%s0 + $0x8] sm:$0xf]
    %v38 = vld [vmem:[%s0 + $0xc] sm:$0xf]
    %v39 = vld [vmem:[%s0 + $0x10] sm:$0xf]
    %v40 = vld [vmem:[%s0 + $0x14] sm:$0xf]
    %v41 = vld [vmem:[%s0 + $0x18] sm:$0xf]
    %v42 = vld [vmem:[%s0 + $0x1c] sm:$0xf]
    %v43 = vld [vmem:[%s0 + $0x20] sm:$0xf]
    %v44 = vld [vmem:[%s0 + $0x24] sm:$0xf]
    %v45 = vld [vmem:[%s0 + $0x28] sm:$0xf]
    %v46 = vld [vmem:[%s0 + $0x2c] sm:$0xf]
    %v47 = vld [vmem:[%s0 + $0x30] sm:$0xf]
    %v48 = vld [vmem:[%s0 + $0x34] sm:$0xf]
    %v49 = vld [vmem:[%s0 + $0x38] sm:$0xf]
    %v50 = vld [vmem:[%s0 + $0x3c] sm:$0xf]
    %v51 = vld [vmem:[#allocation3] sm:$0xff]
    %v52 = vld [vmem:[#allocation3 + $0x8] sm:$0xff]
    %v53 = vld [vmem:[#allocation3 + $0x10] sm:$0xff]
    %v54 = vld [vmem:[#allocation3 + $0x18] sm:$0xff]
    %v55 = vld [vmem:[#allocation3 + $0x20] sm:$0xff]
    %v56 = vld [vmem:[#allocation3 + $0x28] sm:$0xff]
    %v57 = vld [vmem:[#allocation3 + $0x30] sm:$0xff]
    %v58 = vld [vmem:[#allocation3 + $0x38] sm:$0xff]
    %v59 = vld [vmem:[#allocation3 + $0x40] sm:$0xff]
    %v60 = vld [vmem:[#allocation3 + $0x48] sm:$0xff]
    %v61 = vld [vmem:[#allocation3 + $0x50] sm:$0xff]
    %v62 = vld [vmem:[#allocation3 + $0x58] sm:$0xff]
    %v63 = vld [vmem:[#allocation3 + $0x60] sm:$0xff]
    %v64 = vld [vmem:[#allocation3 + $0x68] sm:$0xff]
    %v65 = vld [vmem:[#allocation3 + $0x70] sm:$0xff]
    %v66 = vld [vmem:[#allocation3 + $0x78] sm:$0xff]
    %v67 = vld [vmem:[#allocation3 + $0x80] sm:$0xff]
    %v68 = vld [vmem:[#allocation3 + $0x88] sm:$0xff]
    %v69 = vld [vmem:[#allocation3 + $0x90] sm:$0xff]
    %v70 = vld [vmem:[#allocation3 + $0x98] sm:$0xff]
    %v71 = vld [vmem:[#allocation3 + $0xa0] sm:$0xff]
    %v72 = vld [vmem:[#allocation3 + $0xa8] sm:$0xff]
    %v73 = vld [vmem:[#allocation3 + $0xb0] sm:$0xff]
    %v74 = vld [vmem:[#allocation3 + $0xb8] sm:$0xff]
    %v75 = vld [vmem:[#allocation3 + $0xc0] sm:$0xff]
    %v76 = vld [vmem:[#allocation3 + $0xc8] sm:$0xff]
    %v77 = vld [vmem:[#allocation3 + $0xd0] sm:$0xff]
    %v78 = vld [vmem:[#allocation3 + $0xd8] sm:$0xff]
    %v79 = vld [vmem:[#allocation3 + $0xe0] sm:$0xff]
    %v80 = vld [vmem:[#allocation3 + $0xe8] sm:$0xff]
    %v81 = vld [vmem:[#allocation3 + $0xf0] sm:$0xff]
    %v82 = vld [vmem:[#allocation3 + $0xf8] sm:$0xff]
    %v99 = vunpack.c.l.b16 %v35
    %v100 = vunpack.c.l.b16 %v36
    %v101 = vunpack.c.l.b16 %v37
    %v102 = vunpack.c.l.b16 %v38
    %v103 = vunpack.c.l.b16 %v39
    %v104 = vunpack.c.l.b16 %v40
    %v105 = vunpack.c.l.b16 %v41
    %v106 = vunpack.c.l.b16 %v42
    %v107 = vunpack.c.l.b16 %v43
    %v108 = vunpack.c.l.b16 %v44
    %v109 = vunpack.c.l.b16 %v45
    %v110 = vunpack.c.l.b16 %v46
    %v111 = vunpack.c.l.b16 %v47
    %v112 = vunpack.c.l.b16 %v48
    %v113 = vunpack.c.l.b16 %v49
    %v114 = vunpack.c.l.b16 %v50
    %v115 = vpack.c.b16 %v100, %v99
    %v116 = vpack.c.b16 %v102, %v101
    %v117 = vpack.c.b16 %v104, %v103
    %v118 = vpack.c.b16 %v106, %v105
    %v119 = vpack.c.b16 %v108, %v107
    %v120 = vpack.c.b16 %v110, %v109
    %v121 = vpack.c.b16 %v112, %v111
    %v122 = vpack.c.b16 %v114, %v113
    %v155 = vunpack.c.l.b16 %v51
    %v156 = vunpack.c.h.b16 %v51
    %v157 = vunpack.c.l.b16 %v52
    %v158 = vunpack.c.h.b16 %v52
    %v159 = vunpack.c.l.b16 %v53
    %v160 = vunpack.c.h.b16 %v53
    %v161 = vunpack.c.l.b16 %v54
    %v162 = vunpack.c.h.b16 %v54
    %v163 = vunpack.c.l.b16 %v55
    %v164 = vunpack.c.h.b16 %v55
    %v165 = vunpack.c.l.b16 %v56
    %v166 = vunpack.c.h.b16 %v56
    %v167 = vunpack.c.l.b16 %v57
    %v168 = vunpack.c.h.b16 %v57
    %v169 = vunpack.c.l.b16 %v58
    %v170 = vunpack.c.h.b16 %v58
    %v171 = vunpack.c.l.b16 %v59
    %v172 = vunpack.c.h.b16 %v59
    %v173 = vunpack.c.l.b16 %v60
    %v174 = vunpack.c.h.b16 %v60
    %v175 = vunpack.c.l.b16 %v61
    %v176 = vunpack.c.h.b16 %v61
    %v177 = vunpack.c.l.b16 %v62
    %v178 = vunpack.c.h.b16 %v62
    %v179 = vunpack.c.l.b16 %v63
    %v180 = vunpack.c.h.b16 %v63
    %v181 = vunpack.c.l.b16 %v64
    %v182 = vunpack.c.h.b16 %v64
    %v183 = vunpack.c.l.b16 %v65
    %v184 = vunpack.c.h.b16 %v65
    %v185 = vunpack.c.l.b16 %v66
    %v186 = vunpack.c.h.b16 %v66
    %v187 = vunpack.c.l.b16 %v67
    %v188 = vunpack.c.h.b16 %v67
    %v189 = vunpack.c.l.b16 %v68
    %v190 = vunpack.c.h.b16 %v68
    %v191 = vunpack.c.l.b16 %v69
    %v192 = vunpack.c.h.b16 %v69
    %v193 = vunpack.c.l.b16 %v70
    %v194 = vunpack.c.h.b16 %v70
    %v195 = vunpack.c.l.b16 %v71
    %v196 = vunpack.c.h.b16 %v71
    %v197 = vunpack.c.l.b16 %v72
    %v198 = vunpack.c.h.b16 %v72
    %v199 = vunpack.c.l.b16 %v73
    %v200 = vunpack.c.h.b16 %v73
    %v201 = vunpack.c.l.b16 %v74
    %v202 = vunpack.c.h.b16 %v74
    %v203 = vunpack.c.l.b16 %v75
    %v204 = vunpack.c.h.b16 %v75
    %v205 = vunpack.c.l.b16 %v76
    %v206 = vunpack.c.h.b16 %v76
    %v207 = vunpack.c.l.b16 %v77
    %v208 = vunpack.c.h.b16 %v77
    %v209 = vunpack.c.l.b16 %v78
    %v210 = vunpack.c.h.b16 %v78
    %v211 = vunpack.c.l.b16 %v79
    %v212 = vunpack.c.h.b16 %v79
    %v213 = vunpack.c.l.b16 %v80
    %v214 = vunpack.c.h.b16 %v80
    %v215 = vunpack.c.l.b16 %v81
    %v216 = vunpack.c.h.b16 %v81
    %v217 = vunpack.c.l.b16 %v82
    %v218 = vunpack.c.h.b16 %v82
    %v219 = vpack.c.b16 %v171, %v155
    %v220 = vpack.c.b16 %v172, %v156
    %v221 = vpack.c.b16 %v173, %v157
    %v222 = vpack.c.b16 %v174, %v158
    %v223 = vpack.c.b16 %v175, %v159
    %v224 = vpack.c.b16 %v176, %v160
    %v225 = vpack.c.b16 %v177, %v161
    %v226 = vpack.c.b16 %v178, %v162
    %v227 = vpack.c.b16 %v179, %v163
    %v228 = vpack.c.b16 %v180, %v164
    %v229 = vpack.c.b16 %v181, %v165
    %v230 = vpack.c.b16 %v182, %v166
    %v231 = vpack.c.b16 %v183, %v167
    %v232 = vpack.c.b16 %v184, %v168
    %v233 = vpack.c.b16 %v185, %v169
    %v234 = vpack.c.b16 %v186, %v170
    %v235 = vpack.c.b16 %v203, %v187
    %v236 = vpack.c.b16 %v204, %v188
    %v237 = vpack.c.b16 %v205, %v189
    %v238 = vpack.c.b16 %v206, %v190
    %v239 = vpack.c.b16 %v207, %v191
    %v240 = vpack.c.b16 %v208, %v192
    %v241 = vpack.c.b16 %v209, %v193
    %v242 = vpack.c.b16 %v210, %v194
    %v243 = vpack.c.b16 %v211, %v195
    %v244 = vpack.c.b16 %v212, %v196
    %v245 = vpack.c.b16 %v213, %v197
    %v246 = vpack.c.b16 %v214, %v198
    %v247 = vpack.c.b16 %v215, %v199
    %v248 = vpack.c.b16 %v216, %v200
    %v249 = vpack.c.b16 %v217, %v201
    %v250 = vpack.c.b16 %v218, %v202
    %vm283 = vcmask 261120
    %v285 = vsel %vm283, %v115, 0
    %v288 = vsel %vm283, %v116, 0
    %v291 = vsel %vm283, %v117, 0
    %v294 = vsel %vm283, %v118, 0
    %v297 = vsel %vm283, %v119, 0
    %v300 = vsel %vm283, %v120, 0
    %v303 = vsel %vm283, %v121, 0
    %v306 = vsel %vm283, %v122, 0
    %308 = vmatpush.bf16.msra.mxu0 0
    %309 = vmatpush.bf16.msra.mxu0 0
    %310 = vmatpush.bf16.msra.mxu0 0
    %311 = vmatpush.bf16.msra.mxu0 0
    %312 = vmatpush.bf16.msra.mxu0 0
    %313 = vmatpush.bf16.msra.mxu0 0
    %314 = vmatpush.bf16.msra.mxu0 %v235
    %315 = vmatpush.bf16.msra.mxu0 %v219
    %316 = vmatmul.bf16.gmra.mxu0 %v285
    %v317 = vpop.f32.mrf.mxu0
    %v318 = vadd.f32 0.0, %v317
    %v319 = vpop.f32.mrf.mxu0
    %v320 = vadd.f32 0.0, %v319
    %321 = vmatmul.bf16.gmra.mxu0 %v288
    %v322 = vpop.f32.mrf.mxu0
    %v323 = vadd.f32 0.0, %v322
    %v324 = vpop.f32.mrf.mxu0
    %v325 = vadd.f32 0.0, %v324
    %326 = vmatmul.bf16.gmra.mxu0 %v291
    %v327 = vpop.f32.mrf.mxu0
    %v328 = vadd.f32 0.0, %v327
    %v329 = vpop.f32.mrf.mxu0
    %v330 = vadd.f32 0.0, %v329
    %331 = vmatmul.bf16.gmra.mxu0 %v294
    %v332 = vpop.f32.mrf.mxu0
    %v333 = vadd.f32 0.0, %v332
    %v334 = vpop.f32.mrf.mxu0
    %v335 = vadd.f32 0.0, %v334
    %336 = vmatmul.bf16.gmra.mxu0 %v297
    %v337 = vpop.f32.mrf.mxu0
    %v338 = vadd.f32 0.0, %v337
    %v339 = vpop.f32.mrf.mxu0
    %v340 = vadd.f32 0.0, %v339
    %341 = vmatmul.bf16.gmra.mxu0 %v300
    %v342 = vpop.f32.mrf.mxu0
    %v343 = vadd.f32 0.0, %v342
    %v344 = vpop.f32.mrf.mxu0
    %v345 = vadd.f32 0.0, %v344
    %346 = vmatmul.bf16.gmra.mxu0 %v303
    %v347 = vpop.f32.mrf.mxu0
    %v348 = vadd.f32 0.0, %v347
    %v349 = vpop.f32.mrf.mxu0
    %v350 = vadd.f32 0.0, %v349
    %351 = vmatmul.bf16.gmra.mxu0 %v306
    %v352 = vpop.f32.mrf.mxu0
    %v353 = vadd.f32 0.0, %v352
    %v354 = vpop.f32.mrf.mxu0
    %v355 = vadd.f32 0.0, %v354
    %356 = vdwg.mxu0
    %357 = vmatpush.bf16.msra.mxu0 0
    %358 = vmatpush.bf16.msra.mxu0 0
    %359 = vmatpush.bf16.msra.mxu0 0
    %360 = vmatpush.bf16.msra.mxu0 0
    %361 = vmatpush.bf16.msra.mxu0 0
    %362 = vmatpush.bf16.msra.mxu0 0
    %363 = vmatpush.bf16.msra.mxu0 %v236
    %364 = vmatpush.bf16.msra.mxu0 %v220
    %365 = vmatmul.bf16.gmra.mxu0 %v285
    %v366 = vpop.f32.mrf.mxu0
    %v367 = vadd.f32 0.0, %v366
    %v368 = vpop.f32.mrf.mxu0
    %v369 = vadd.f32 0.0, %v368
    %370 = vmatmul.bf16.gmra.mxu0 %v288
    %v371 = vpop.f32.mrf.mxu0
    %v372 = vadd.f32 0.0, %v371
    %v373 = vpop.f32.mrf.mxu0
    %v374 = vadd.f32 0.0, %v373
    %375 = vmatmul.bf16.gmra.mxu0 %v291
    %v376 = vpop.f32.mrf.mxu0
    %v377 = vadd.f32 0.0, %v376
    %v378 = vpop.f32.mrf.mxu0
    %v379 = vadd.f32 0.0, %v378
    %380 = vmatmul.bf16.gmra.mxu0 %v294
    %v381 = vpop.f32.mrf.mxu0
    %v382 = vadd.f32 0.0, %v381
    %v383 = vpop.f32.mrf.mxu0
    %v384 = vadd.f32 0.0, %v383
    %385 = vmatmul.bf16.gmra.mxu0 %v297
    %v386 = vpop.f32.mrf.mxu0
    %v387 = vadd.f32 0.0, %v386
    %v388 = vpop.f32.mrf.mxu0
    %v389 = vadd.f32 0.0, %v388
    %390 = vmatmul.bf16.gmra.mxu0 %v300
    %v391 = vpop.f32.mrf.mxu0
    %v392 = vadd.f32 0.0, %v391
    %v393 = vpop.f32.mrf.mxu0
    %v394 = vadd.f32 0.0, %v393
    %395 = vmatmul.bf16.gmra.mxu0 %v303
    %v396 = vpop.f32.mrf.mxu0
    %v397 = vadd.f32 0.0, %v396
    %v398 = vpop.f32.mrf.mxu0
    %v399 = vadd.f32 0.0, %v398
    %400 = vmatmul.bf16.gmra.mxu0 %v306
    %v401 = vpop.f32.mrf.mxu0
    %v402 = vadd.f32 0.0, %v401
    %v403 = vpop.f32.mrf.mxu0
    %v404 = vadd.f32 0.0, %v403
    %405 = vdwg.mxu0
    %406 = vmatpush.bf16.msra.mxu0 0
    %407 = vmatpush.bf16.msra.mxu0 0
    %408 = vmatpush.bf16.msra.mxu0 0
    %409 = vmatpush.bf16.msra.mxu0 0
    %410 = vmatpush.bf16.msra.mxu0 0
    %411 = vmatpush.bf16.msra.mxu0 0
    %412 = vmatpush.bf16.msra.mxu0 %v237
    %413 = vmatpush.bf16.msra.mxu0 %v221
    %414 = vmatmul.bf16.gmra.mxu0 %v285
    %v415 = vpop.f32.mrf.mxu0
    %v416 = vadd.f32 0.0, %v415
    %v417 = vpop.f32.mrf.mxu0
    %v418 = vadd.f32 0.0, %v417
    %419 = vmatmul.bf16.gmra.mxu0 %v288
    %v420 = vpop.f32.mrf.mxu0
    %v421 = vadd.f32 0.0, %v420
    %v422 = vpop.f32.mrf.mxu0
    %v423 = vadd.f32 0.0, %v422
    %424 = vmatmul.bf16.gmra.mxu0 %v291
    %v425 = vpop.f32.mrf.mxu0
    %v426 = vadd.f32 0.0, %v425
    %v427 = vpop.f32.mrf.mxu0
    %v428 = vadd.f32 0.0, %v427
    %429 = vmatmul.bf16.gmra.mxu0 %v294
    %v430 = vpop.f32.mrf.mxu0
    %v431 = vadd.f32 0.0, %v430
    %v432 = vpop.f32.mrf.mxu0
    %v433 = vadd.f32 0.0, %v432
    %434 = vmatmul.bf16.gmra.mxu0 %v297
    %v435 = vpop.f32.mrf.mxu0
    %v436 = vadd.f32 0.0, %v435
    %v437 = vpop.f32.mrf.mxu0
    %v438 = vadd.f32 0.0, %v437
    %439 = vmatmul.bf16.gmra.mxu0 %v300
    %v440 = vpop.f32.mrf.mxu0
    %v441 = vadd.f32 0.0, %v440
    %v442 = vpop.f32.mrf.mxu0
    %v443 = vadd.f32 0.0, %v442
    %444 = vmatmul.bf16.gmra.mxu0 %v303
    %v445 = vpop.f32.mrf.mxu0
    %v446 = vadd.f32 0.0, %v445
    %v447 = vpop.f32.mrf.mxu0
    %v448 = vadd.f32 0.0, %v447
    %449 = vmatmul.bf16.gmra.mxu0 %v306
    %v450 = vpop.f32.mrf.mxu0
    %v451 = vadd.f32 0.0, %v450
    %v452 = vpop.f32.mrf.mxu0
    %v453 = vadd.f32 0.0, %v452
    %454 = vdwg.mxu0
    %455 = vmatpush.bf16.msra.mxu0 0
    %456 = vmatpush.bf16.msra.mxu0 0
    %457 = vmatpush.bf16.msra.mxu0 0
    %458 = vmatpush.bf16.msra.mxu0 0
    %459 = vmatpush.bf16.msra.mxu0 0
    %460 = vmatpush.bf16.msra.mxu0 0
    %461 = vmatpush.bf16.msra.mxu0 %v238
    %462 = vmatpush.bf16.msra.mxu0 %v222
    %463 = vmatmul.bf16.gmra.mxu0 %v285
    %v464 = vpop.f32.mrf.mxu0
    %v465 = vadd.f32 0.0, %v464
    %v466 = vpop.f32.mrf.mxu0
    %v467 = vadd.f32 0.0, %v466
    %468 = vmatmul.bf16.gmra.mxu0 %v288
    %v469 = vpop.f32.mrf.mxu0
    %v470 = vadd.f32 0.0, %v469
    %v471 = vpop.f32.mrf.mxu0
    %v472 = vadd.f32 0.0, %v471
    %473 = vmatmul.bf16.gmra.mxu0 %v291
    %v474 = vpop.f32.mrf.mxu0
    %v475 = vadd.f32 0.0, %v474
    %v476 = vpop.f32.mrf.mxu0
    %v477 = vadd.f32 0.0, %v476
    %478 = vmatmul.bf16.gmra.mxu0 %v294
    %v479 = vpop.f32.mrf.mxu0
    %v480 = vadd.f32 0.0, %v479
    %v481 = vpop.f32.mrf.mxu0
    %v482 = vadd.f32 0.0, %v481
    %483 = vmatmul.bf16.gmra.mxu0 %v297
    %v484 = vpop.f32.mrf.mxu0
    %v485 = vadd.f32 0.0, %v484
    %v486 = vpop.f32.mrf.mxu0
    %v487 = vadd.f32 0.0, %v486
    %488 = vmatmul.bf16.gmra.mxu0 %v300
    %v489 = vpop.f32.mrf.mxu0
    %v490 = vadd.f32 0.0, %v489
    %v491 = vpop.f32.mrf.mxu0
    %v492 = vadd.f32 0.0, %v491
    %493 = vmatmul.bf16.gmra.mxu0 %v303
    %v494 = vpop.f32.mrf.mxu0
    %v495 = vadd.f32 0.0, %v494
    %v496 = vpop.f32.mrf.mxu0
    %v497 = vadd.f32 0.0, %v496
    %498 = vmatmul.bf16.gmra.mxu0 %v306
    %v499 = vpop.f32.mrf.mxu0
    %v500 = vadd.f32 0.0, %v499
    %v501 = vpop.f32.mrf.mxu0
    %v502 = vadd.f32 0.0, %v501
    %503 = vdwg.mxu0
    %504 = vmatpush.bf16.msra.mxu0 0
    %505 = vmatpush.bf16.msra.mxu0 0
    %506 = vmatpush.bf16.msra.mxu0 0
    %507 = vmatpush.bf16.msra.mxu0 0
    %508 = vmatpush.bf16.msra.mxu0 0
    %509 = vmatpush.bf16.msra.mxu0 0
    %510 = vmatpush.bf16.msra.mxu0 %v239
    %511 = vmatpush.bf16.msra.mxu0 %v223
    %512 = vmatmul.bf16.gmra.mxu0 %v285
    %v513 = vpop.f32.mrf.mxu0
    %v514 = vadd.f32 0.0, %v513
    %v515 = vpop.f32.mrf.mxu0
    %v516 = vadd.f32 0.0, %v515
    %517 = vmatmul.bf16.gmra.mxu0 %v288
    %v518 = vpop.f32.mrf.mxu0
    %v519 = vadd.f32 0.0, %v518
    %v520 = vpop.f32.mrf.mxu0
    %v521 = vadd.f32 0.0, %v520
    %522 = vmatmul.bf16.gmra.mxu0 %v291
    %v523 = vpop.f32.mrf.mxu0
    %v524 = vadd.f32 0.0, %v523
    %v525 = vpop.f32.mrf.mxu0
    %v526 = vadd.f32 0.0, %v525
    %527 = vmatmul.bf16.gmra.mxu0 %v294
    %v528 = vpop.f32.mrf.mxu0
    %v529 = vadd.f32 0.0, %v528
    %v530 = vpop.f32.mrf.mxu0
    %v531 = vadd.f32 0.0, %v530
    %532 = vmatmul.bf16.gmra.mxu0 %v297
    %v533 = vpop.f32.mrf.mxu0
    %v534 = vadd.f32 0.0, %v533
    %v535 = vpop.f32.mrf.mxu0
    %v536 = vadd.f32 0.0, %v535
    %537 = vmatmul.bf16.gmra.mxu0 %v300
    %v538 = vpop.f32.mrf.mxu0
    %v539 = vadd.f32 0.0, %v538
    %v540 = vpop.f32.mrf.mxu0
    %v541 = vadd.f32 0.0, %v540
    %542 = vmatmul.bf16.gmra.mxu0 %v303
    %v543 = vpop.f32.mrf.mxu0
    %v544 = vadd.f32 0.0, %v543
    %v545 = vpop.f32.mrf.mxu0
    %v546 = vadd.f32 0.0, %v545
    %547 = vmatmul.bf16.gmra.mxu0 %v306
    %v548 = vpop.f32.mrf.mxu0
    %v549 = vadd.f32 0.0, %v548
    %v550 = vpop.f32.mrf.mxu0
    %v551 = vadd.f32 0.0, %v550
    %552 = vdwg.mxu0
    %553 = vmatpush.bf16.msra.mxu0 0
    %554 = vmatpush.bf16.msra.mxu0 0
    %555 = vmatpush.bf16.msra.mxu0 0
    %556 = vmatpush.bf16.msra.mxu0 0
    %557 = vmatpush.bf16.msra.mxu0 0
    %558 = vmatpush.bf16.msra.mxu0 0
    %559 = vmatpush.bf16.msra.mxu0 %v240
    %560 = vmatpush.bf16.msra.mxu0 %v224
    %561 = vmatmul.bf16.gmra.mxu0 %v285
    %v562 = vpop.f32.mrf.mxu0
    %v563 = vadd.f32 0.0, %v562
    %v564 = vpop.f32.mrf.mxu0
    %v565 = vadd.f32 0.0, %v564
    %566 = vmatmul.bf16.gmra.mxu0 %v288
    %v567 = vpop.f32.mrf.mxu0
    %v568 = vadd.f32 0.0, %v567
    %v569 = vpop.f32.mrf.mxu0
    %v570 = vadd.f32 0.0, %v569
    %571 = vmatmul.bf16.gmra.mxu0 %v291
    %v572 = vpop.f32.mrf.mxu0
    %v573 = vadd.f32 0.0, %v572
    %v574 = vpop.f32.mrf.mxu0
    %v575 = vadd.f32 0.0, %v574
    %576 = vmatmul.bf16.gmra.mxu0 %v294
    %v577 = vpop.f32.mrf.mxu0
    %v578 = vadd.f32 0.0, %v577
    %v579 = vpop.f32.mrf.mxu0
    %v580 = vadd.f32 0.0, %v579
    %581 = vmatmul.bf16.gmra.mxu0 %v297
    %v582 = vpop.f32.mrf.mxu0
    %v583 = vadd.f32 0.0, %v582
    %v584 = vpop.f32.mrf.mxu0
    %v585 = vadd.f32 0.0, %v584
    %586 = vmatmul.bf16.gmra.mxu0 %v300
    %v587 = vpop.f32.mrf.mxu0
    %v588 = vadd.f32 0.0, %v587
    %v589 = vpop.f32.mrf.mxu0
    %v590 = vadd.f32 0.0, %v589
    %591 = vmatmul.bf16.gmra.mxu0 %v303
    %v592 = vpop.f32.mrf.mxu0
    %v593 = vadd.f32 0.0, %v592
    %v594 = vpop.f32.mrf.mxu0
    %v595 = vadd.f32 0.0, %v594
    %596 = vmatmul.bf16.gmra.mxu0 %v306
    %v597 = vpop.f32.mrf.mxu0
    %v598 = vadd.f32 0.0, %v597
    %v599 = vpop.f32.mrf.mxu0
    %v600 = vadd.f32 0.0, %v599
    %601 = vdwg.mxu0
    %602 = vmatpush.bf16.msra.mxu0 0
    %603 = vmatpush.bf16.msra.mxu0 0
    %604 = vmatpush.bf16.msra.mxu0 0
    %605 = vmatpush.bf16.msra.mxu0 0
    %606 = vmatpush.bf16.msra.mxu0 0
    %607 = vmatpush.bf16.msra.mxu0 0
    %608 = vmatpush.bf16.msra.mxu0 %v241
    %609 = vmatpush.bf16.msra.mxu0 %v225
    %610 = vmatmul.bf16.gmra.mxu0 %v285
    %v611 = vpop.f32.mrf.mxu0
    %v612 = vadd.f32 0.0, %v611
    %v613 = vpop.f32.mrf.mxu0
    %v614 = vadd.f32 0.0, %v613
    %615 = vmatmul.bf16.gmra.mxu0 %v288
    %v616 = vpop.f32.mrf.mxu0
    %v617 = vadd.f32 0.0, %v616
    %v618 = vpop.f32.mrf.mxu0
    %v619 = vadd.f32 0.0, %v618
    %620 = vmatmul.bf16.gmra.mxu0 %v291
    %v621 = vpop.f32.mrf.mxu0
    %v622 = vadd.f32 0.0, %v621
    %v623 = vpop.f32.mrf.mxu0
    %v624 = vadd.f32 0.0, %v623
    %625 = vmatmul.bf16.gmra.mxu0 %v294
    %v626 = vpop.f32.mrf.mxu0
    %v627 = vadd.f32 0.0, %v626
    %v628 = vpop.f32.mrf.mxu0
    %v629 = vadd.f32 0.0, %v628
    %630 = vmatmul.bf16.gmra.mxu0 %v297
    %v631 = vpop.f32.mrf.mxu0
    %v632 = vadd.f32 0.0, %v631
    %v633 = vpop.f32.mrf.mxu0
    %v634 = vadd.f32 0.0, %v633
    %635 = vmatmul.bf16.gmra.mxu0 %v300
    %v636 = vpop.f32.mrf.mxu0
    %v637 = vadd.f32 0.0, %v636
    %v638 = vpop.f32.mrf.mxu0
    %v639 = vadd.f32 0.0, %v638
    %640 = vmatmul.bf16.gmra.mxu0 %v303
    %v641 = vpop.f32.mrf.mxu0
    %v642 = vadd.f32 0.0, %v641
    %v643 = vpop.f32.mrf.mxu0
    %v644 = vadd.f32 0.0, %v643
    %645 = vmatmul.bf16.gmra.mxu0 %v306
    %v646 = vpop.f32.mrf.mxu0
    %v647 = vadd.f32 0.0, %v646
    %v648 = vpop.f32.mrf.mxu0
    %v649 = vadd.f32 0.0, %v648
    %650 = vdwg.mxu0
    %651 = vmatpush.bf16.msra.mxu0 0
    %652 = vmatpush.bf16.msra.mxu0 0
    %653 = vmatpush.bf16.msra.mxu0 0
    %654 = vmatpush.bf16.msra.mxu0 0
    %655 = vmatpush.bf16.msra.mxu0 0
    %656 = vmatpush.bf16.msra.mxu0 0
    %657 = vmatpush.bf16.msra.mxu0 %v242
    %658 = vmatpush.bf16.msra.mxu0 %v226
    %659 = vmatmul.bf16.gmra.mxu0 %v285
    %v660 = vpop.f32.mrf.mxu0
    %v661 = vadd.f32 0.0, %v660
    %v662 = vpop.f32.mrf.mxu0
    %v663 = vadd.f32 0.0, %v662
    %664 = vmatmul.bf16.gmra.mxu0 %v288
    %v665 = vpop.f32.mrf.mxu0
    %v666 = vadd.f32 0.0, %v665
    %v667 = vpop.f32.mrf.mxu0
    %v668 = vadd.f32 0.0, %v667
    %669 = vmatmul.bf16.gmra.mxu0 %v291
    %v670 = vpop.f32.mrf.mxu0
    %v671 = vadd.f32 0.0, %v670
    %v672 = vpop.f32.mrf.mxu0
    %v673 = vadd.f32 0.0, %v672
    %674 = vmatmul.bf16.gmra.mxu0 %v294
    %v675 = vpop.f32.mrf.mxu0
    %v676 = vadd.f32 0.0, %v675
    %v677 = vpop.f32.mrf.mxu0
    %v678 = vadd.f32 0.0, %v677
    %679 = vmatmul.bf16.gmra.mxu0 %v297
    %v680 = vpop.f32.mrf.mxu0
    %v681 = vadd.f32 0.0, %v680
    %v682 = vpop.f32.mrf.mxu0
    %v683 = vadd.f32 0.0, %v682
    %684 = vmatmul.bf16.gmra.mxu0 %v300
    %v685 = vpop.f32.mrf.mxu0
    %v686 = vadd.f32 0.0, %v685
    %v687 = vpop.f32.mrf.mxu0
    %v688 = vadd.f32 0.0, %v687
    %689 = vmatmul.bf16.gmra.mxu0 %v303
    %v690 = vpop.f32.mrf.mxu0
    %v691 = vadd.f32 0.0, %v690
    %v692 = vpop.f32.mrf.mxu0
    %v693 = vadd.f32 0.0, %v692
    %694 = vmatmul.bf16.gmra.mxu0 %v306
    %v695 = vpop.f32.mrf.mxu0
    %v696 = vadd.f32 0.0, %v695
    %v697 = vpop.f32.mrf.mxu0
    %v698 = vadd.f32 0.0, %v697
    %699 = vdwg.mxu0
    %700 = vmatpush.bf16.msra.mxu0 0
    %701 = vmatpush.bf16.msra.mxu0 0
    %702 = vmatpush.bf16.msra.mxu0 0
    %703 = vmatpush.bf16.msra.mxu0 0
    %704 = vmatpush.bf16.msra.mxu0 0
    %705 = vmatpush.bf16.msra.mxu0 0
    %706 = vmatpush.bf16.msra.mxu0 %v243
    %707 = vmatpush.bf16.msra.mxu0 %v227
    %708 = vmatmul.bf16.gmra.mxu0 %v285
    %v709 = vpop.f32.mrf.mxu0
    %v710 = vadd.f32 0.0, %v709
    %v711 = vpop.f32.mrf.mxu0
    %v712 = vadd.f32 0.0, %v711
    %713 = vmatmul.bf16.gmra.mxu0 %v288
    %v714 = vpop.f32.mrf.mxu0
    %v715 = vadd.f32 0.0, %v714
    %v716 = vpop.f32.mrf.mxu0
    %v717 = vadd.f32 0.0, %v716
    %718 = vmatmul.bf16.gmra.mxu0 %v291
    %v719 = vpop.f32.mrf.mxu0
    %v720 = vadd.f32 0.0, %v719
    %v721 = vpop.f32.mrf.mxu0
    %v722 = vadd.f32 0.0, %v721
    %723 = vmatmul.bf16.gmra.mxu0 %v294
    %v724 = vpop.f32.mrf.mxu0
    %v725 = vadd.f32 0.0, %v724
    %v726 = vpop.f32.mrf.mxu0
    %v727 = vadd.f32 0.0, %v726
    %728 = vmatmul.bf16.gmra.mxu0 %v297
    %v729 = vpop.f32.mrf.mxu0
    %v730 = vadd.f32 0.0, %v729
    %v731 = vpop.f32.mrf.mxu0
    %v732 = vadd.f32 0.0, %v731
    %733 = vmatmul.bf16.gmra.mxu0 %v300
    %v734 = vpop.f32.mrf.mxu0
    %v735 = vadd.f32 0.0, %v734
    %v736 = vpop.f32.mrf.mxu0
    %v737 = vadd.f32 0.0, %v736
    %738 = vmatmul.bf16.gmra.mxu0 %v303
    %v739 = vpop.f32.mrf.mxu0
    %v740 = vadd.f32 0.0, %v739
    %v741 = vpop.f32.mrf.mxu0
    %v742 = vadd.f32 0.0, %v741
    %743 = vmatmul.bf16.gmra.mxu0 %v306
    %v744 = vpop.f32.mrf.mxu0
    %v745 = vadd.f32 0.0, %v744
    %v746 = vpop.f32.mrf.mxu0
    %v747 = vadd.f32 0.0, %v746
    %748 = vdwg.mxu0
    %749 = vmatpush.bf16.msra.mxu0 0
    %750 = vmatpush.bf16.msra.mxu0 0
    %751 = vmatpush.bf16.msra.mxu0 0
    %752 = vmatpush.bf16.msra.mxu0 0
    %753 = vmatpush.bf16.msra.mxu0 0
    %754 = vmatpush.bf16.msra.mxu0 0
    %755 = vmatpush.bf16.msra.mxu0 %v244
    %756 = vmatpush.bf16.msra.mxu0 %v228
    %757 = vmatmul.bf16.gmra.mxu0 %v285
    %v758 = vpop.f32.mrf.mxu0
    %v759 = vadd.f32 0.0, %v758
    %v760 = vpop.f32.mrf.mxu0
    %v761 = vadd.f32 0.0, %v760
    %762 = vmatmul.bf16.gmra.mxu0 %v288
    %v763 = vpop.f32.mrf.mxu0
    %v764 = vadd.f32 0.0, %v763
    %v765 = vpop.f32.mrf.mxu0
    %v766 = vadd.f32 0.0, %v765
    %767 = vmatmul.bf16.gmra.mxu0 %v291
    %v768 = vpop.f32.mrf.mxu0
    %v769 = vadd.f32 0.0, %v768
    %v770 = vpop.f32.mrf.mxu0
    %v771 = vadd.f32 0.0, %v770
    %772 = vmatmul.bf16.gmra.mxu0 %v294
    %v773 = vpop.f32.mrf.mxu0
    %v774 = vadd.f32 0.0, %v773
    %v775 = vpop.f32.mrf.mxu0
    %v776 = vadd.f32 0.0, %v775
    %777 = vmatmul.bf16.gmra.mxu0 %v297
    %v778 = vpop.f32.mrf.mxu0
    %v779 = vadd.f32 0.0, %v778
    %v780 = vpop.f32.mrf.mxu0
    %v781 = vadd.f32 0.0, %v780
    %782 = vmatmul.bf16.gmra.mxu0 %v300
    %v783 = vpop.f32.mrf.mxu0
    %v784 = vadd.f32 0.0, %v783
    %v785 = vpop.f32.mrf.mxu0
    %v786 = vadd.f32 0.0, %v785
    %787 = vmatmul.bf16.gmra.mxu0 %v303
    %v788 = vpop.f32.mrf.mxu0
    %v789 = vadd.f32 0.0, %v788
    %v790 = vpop.f32.mrf.mxu0
    %v791 = vadd.f32 0.0, %v790
    %792 = vmatmul.bf16.gmra.mxu0 %v306
    %v793 = vpop.f32.mrf.mxu0
    %v794 = vadd.f32 0.0, %v793
    %v795 = vpop.f32.mrf.mxu0
    %v796 = vadd.f32 0.0, %v795
    %797 = vdwg.mxu0
    %798 = vmatpush.bf16.msra.mxu0 0
    %799 = vmatpush.bf16.msra.mxu0 0
    %800 = vmatpush.bf16.msra.mxu0 0
    %801 = vmatpush.bf16.msra.mxu0 0
    %802 = vmatpush.bf16.msra.mxu0 0
    %803 = vmatpush.bf16.msra.mxu0 0
    %804 = vmatpush.bf16.msra.mxu0 %v245
    %805 = vmatpush.bf16.msra.mxu0 %v229
    %806 = vmatmul.bf16.gmra.mxu0 %v285
    %v807 = vpop.f32.mrf.mxu0
    %v808 = vadd.f32 0.0, %v807
    %v809 = vpop.f32.mrf.mxu0
    %v810 = vadd.f32 0.0, %v809
    %811 = vmatmul.bf16.gmra.mxu0 %v288
    %v812 = vpop.f32.mrf.mxu0
    %v813 = vadd.f32 0.0, %v812
    %v814 = vpop.f32.mrf.mxu0
    %v815 = vadd.f32 0.0, %v814
    %816 = vmatmul.bf16.gmra.mxu0 %v291
    %v817 = vpop.f32.mrf.mxu0
    %v818 = vadd.f32 0.0, %v817
    %v819 = vpop.f32.mrf.mxu0
    %v820 = vadd.f32 0.0, %v819
    %821 = vmatmul.bf16.gmra.mxu0 %v294
    %v822 = vpop.f32.mrf.mxu0
    %v823 = vadd.f32 0.0, %v822
    %v824 = vpop.f32.mrf.mxu0
    %v825 = vadd.f32 0.0, %v824
    %826 = vmatmul.bf16.gmra.mxu0 %v297
    %v827 = vpop.f32.mrf.mxu0
    %v828 = vadd.f32 0.0, %v827
    %v829 = vpop.f32.mrf.mxu0
    %v830 = vadd.f32 0.0, %v829
    %831 = vmatmul.bf16.gmra.mxu0 %v300
    %v832 = vpop.f32.mrf.mxu0
    %v833 = vadd.f32 0.0, %v832
    %v834 = vpop.f32.mrf.mxu0
    %v835 = vadd.f32 0.0, %v834
    %836 = vmatmul.bf16.gmra.mxu0 %v303
    %v837 = vpop.f32.mrf.mxu0
    %v838 = vadd.f32 0.0, %v837
    %v839 = vpop.f32.mrf.mxu0
    %v840 = vadd.f32 0.0, %v839
    %841 = vmatmul.bf16.gmra.mxu0 %v306
    %v842 = vpop.f32.mrf.mxu0
    %v843 = vadd.f32 0.0, %v842
    %v844 = vpop.f32.mrf.mxu0
    %v845 = vadd.f32 0.0, %v844
    %846 = vdwg.mxu0
    %847 = vmatpush.bf16.msra.mxu0 0
    %848 = vmatpush.bf16.msra.mxu0 0
    %849 = vmatpush.bf16.msra.mxu0 0
    %850 = vmatpush.bf16.msra.mxu0 0
    %851 = vmatpush.bf16.msra.mxu0 0
    %852 = vmatpush.bf16.msra.mxu0 0
    %853 = vmatpush.bf16.msra.mxu0 %v246
    %854 = vmatpush.bf16.msra.mxu0 %v230
    %855 = vmatmul.bf16.gmra.mxu0 %v285
    %v856 = vpop.f32.mrf.mxu0
    %v857 = vadd.f32 0.0, %v856
    %v858 = vpop.f32.mrf.mxu0
    %v859 = vadd.f32 0.0, %v858
    %860 = vmatmul.bf16.gmra.mxu0 %v288
    %v861 = vpop.f32.mrf.mxu0
    %v862 = vadd.f32 0.0, %v861
    %v863 = vpop.f32.mrf.mxu0
    %v864 = vadd.f32 0.0, %v863
    %865 = vmatmul.bf16.gmra.mxu0 %v291
    %v866 = vpop.f32.mrf.mxu0
    %v867 = vadd.f32 0.0, %v866
    %v868 = vpop.f32.mrf.mxu0
    %v869 = vadd.f32 0.0, %v868
    %870 = vmatmul.bf16.gmra.mxu0 %v294
    %v871 = vpop.f32.mrf.mxu0
    %v872 = vadd.f32 0.0, %v871
    %v873 = vpop.f32.mrf.mxu0
    %v874 = vadd.f32 0.0, %v873
    %875 = vmatmul.bf16.gmra.mxu0 %v297
    %v876 = vpop.f32.mrf.mxu0
    %v877 = vadd.f32 0.0, %v876
    %v878 = vpop.f32.mrf.mxu0
    %v879 = vadd.f32 0.0, %v878
    %880 = vmatmul.bf16.gmra.mxu0 %v300
    %v881 = vpop.f32.mrf.mxu0
    %v882 = vadd.f32 0.0, %v881
    %v883 = vpop.f32.mrf.mxu0
    %v884 = vadd.f32 0.0, %v883
    %885 = vmatmul.bf16.gmra.mxu0 %v303
    %v886 = vpop.f32.mrf.mxu0
    %v887 = vadd.f32 0.0, %v886
    %v888 = vpop.f32.mrf.mxu0
    %v889 = vadd.f32 0.0, %v888
    %890 = vmatmul.bf16.gmra.mxu0 %v306
    %v891 = vpop.f32.mrf.mxu0
    %v892 = vadd.f32 0.0, %v891
    %v893 = vpop.f32.mrf.mxu0
    %v894 = vadd.f32 0.0, %v893
    %895 = vdwg.mxu0
    %896 = vmatpush.bf16.msra.mxu0 0
    %897 = vmatpush.bf16.msra.mxu0 0
    %898 = vmatpush.bf16.msra.mxu0 0
    %899 = vmatpush.bf16.msra.mxu0 0
    %900 = vmatpush.bf16.msra.mxu0 0
    %901 = vmatpush.bf16.msra.mxu0 0
    %902 = vmatpush.bf16.msra.mxu0 %v247
    %903 = vmatpush.bf16.msra.mxu0 %v231
    %904 = vmatmul.bf16.gmra.mxu0 %v285
    %v905 = vpop.f32.mrf.mxu0
    %v906 = vadd.f32 0.0, %v905
    %v907 = vpop.f32.mrf.mxu0
    %v908 = vadd.f32 0.0, %v907
    %909 = vmatmul.bf16.gmra.mxu0 %v288
    %v910 = vpop.f32.mrf.mxu0
    %v911 = vadd.f32 0.0, %v910
    %v912 = vpop.f32.mrf.mxu0
    %v913 = vadd.f32 0.0, %v912
    %914 = vmatmul.bf16.gmra.mxu0 %v291
    %v915 = vpop.f32.mrf.mxu0
    %v916 = vadd.f32 0.0, %v915
    %v917 = vpop.f32.mrf.mxu0
    %v918 = vadd.f32 0.0, %v917
    %919 = vmatmul.bf16.gmra.mxu0 %v294
    %v920 = vpop.f32.mrf.mxu0
    %v921 = vadd.f32 0.0, %v920
    %v922 = vpop.f32.mrf.mxu0
    %v923 = vadd.f32 0.0, %v922
    %924 = vmatmul.bf16.gmra.mxu0 %v297
    %v925 = vpop.f32.mrf.mxu0
    %v926 = vadd.f32 0.0, %v925
    %v927 = vpop.f32.mrf.mxu0
    %v928 = vadd.f32 0.0, %v927
    %929 = vmatmul.bf16.gmra.mxu0 %v300
    %v930 = vpop.f32.mrf.mxu0
    %v931 = vadd.f32 0.0, %v930
    %v932 = vpop.f32.mrf.mxu0
    %v933 = vadd.f32 0.0, %v932
    %934 = vmatmul.bf16.gmra.mxu0 %v303
    %v935 = vpop.f32.mrf.mxu0
    %v936 = vadd.f32 0.0, %v935
    %v937 = vpop.f32.mrf.mxu0
    %v938 = vadd.f32 0.0, %v937
    %939 = vmatmul.bf16.gmra.mxu0 %v306
    %v940 = vpop.f32.mrf.mxu0
    %v941 = vadd.f32 0.0, %v940
    %v942 = vpop.f32.mrf.mxu0
    %v943 = vadd.f32 0.0, %v942
    %944 = vdwg.mxu0
    %945 = vmatpush.bf16.msra.mxu0 0
    %946 = vmatpush.bf16.msra.mxu0 0
    %947 = vmatpush.bf16.msra.mxu0 0
    %948 = vmatpush.bf16.msra.mxu0 0
    %949 = vmatpush.bf16.msra.mxu0 0
    %950 = vmatpush.bf16.msra.mxu0 0
    %951 = vmatpush.bf16.msra.mxu0 %v248
    %952 = vmatpush.bf16.msra.mxu0 %v232
    %953 = vmatmul.bf16.gmra.mxu0 %v285
    %v954 = vpop.f32.mrf.mxu0
    %v955 = vadd.f32 0.0, %v954
    %v956 = vpop.f32.mrf.mxu0
    %v957 = vadd.f32 0.0, %v956
    %958 = vmatmul.bf16.gmra.mxu0 %v288
    %v959 = vpop.f32.mrf.mxu0
    %v960 = vadd.f32 0.0, %v959
    %v961 = vpop.f32.mrf.mxu0
    %v962 = vadd.f32 0.0, %v961
    %963 = vmatmul.bf16.gmra.mxu0 %v291
    %v964 = vpop.f32.mrf.mxu0
    %v965 = vadd.f32 0.0, %v964
    %v966 = vpop.f32.mrf.mxu0
    %v967 = vadd.f32 0.0, %v966
    %968 = vmatmul.bf16.gmra.mxu0 %v294
    %v969 = vpop.f32.mrf.mxu0
    %v970 = vadd.f32 0.0, %v969
    %v971 = vpop.f32.mrf.mxu0
    %v972 = vadd.f32 0.0, %v971
    %973 = vmatmul.bf16.gmra.mxu0 %v297
    %v974 = vpop.f32.mrf.mxu0
    %v975 = vadd.f32 0.0, %v974
    %v976 = vpop.f32.mrf.mxu0
    %v977 = vadd.f32 0.0, %v976
    %978 = vmatmul.bf16.gmra.mxu0 %v300
    %v979 = vpop.f32.mrf.mxu0
    %v980 = vadd.f32 0.0, %v979
    %v981 = vpop.f32.mrf.mxu0
    %v982 = vadd.f32 0.0, %v981
    %983 = vmatmul.bf16.gmra.mxu0 %v303
    %v984 = vpop.f32.mrf.mxu0
    %v985 = vadd.f32 0.0, %v984
    %v986 = vpop.f32.mrf.mxu0
    %v987 = vadd.f32 0.0, %v986
    %988 = vmatmul.bf16.gmra.mxu0 %v306
    %v989 = vpop.f32.mrf.mxu0
    %v990 = vadd.f32 0.0, %v989
    %v991 = vpop.f32.mrf.mxu0
    %v992 = vadd.f32 0.0, %v991
    %993 = vdwg.mxu0
    %994 = vmatpush.bf16.msra.mxu0 0
    %995 = vmatpush.bf16.msra.mxu0 0
    %996 = vmatpush.bf16.msra.mxu0 0
    %997 = vmatpush.bf16.msra.mxu0 0
    %998 = vmatpush.bf16.msra.mxu0 0
    %999 = vmatpush.bf16.msra.mxu0 0
    %1000 = vmatpush.bf16.msra.mxu0 %v249
    %1001 = vmatpush.bf16.msra.mxu0 %v233
    %1002 = vmatmul.bf16.gmra.mxu0 %v285
    %v1003 = vpop.f32.mrf.mxu0
    %v1004 = vadd.f32 0.0, %v1003
    %v1005 = vpop.f32.mrf.mxu0
    %v1006 = vadd.f32 0.0, %v1005
    %1007 = vmatmul.bf16.gmra.mxu0 %v288
    %v1008 = vpop.f32.mrf.mxu0
    %v1009 = vadd.f32 0.0, %v1008
    %v1010 = vpop.f32.mrf.mxu0
    %v1011 = vadd.f32 0.0, %v1010
    %1012 = vmatmul.bf16.gmra.mxu0 %v291
    %v1013 = vpop.f32.mrf.mxu0
    %v1014 = vadd.f32 0.0, %v1013
    %v1015 = vpop.f32.mrf.mxu0
    %v1016 = vadd.f32 0.0, %v1015
    %1017 = vmatmul.bf16.gmra.mxu0 %v294
    %v1018 = vpop.f32.mrf.mxu0
    %v1019 = vadd.f32 0.0, %v1018
    %v1020 = vpop.f32.mrf.mxu0
    %v1021 = vadd.f32 0.0, %v1020
    %1022 = vmatmul.bf16.gmra.mxu0 %v297
    %v1023 = vpop.f32.mrf.mxu0
    %v1024 = vadd.f32 0.0, %v1023
    %v1025 = vpop.f32.mrf.mxu0
    %v1026 = vadd.f32 0.0, %v1025
    %1027 = vmatmul.bf16.gmra.mxu0 %v300
    %v1028 = vpop.f32.mrf.mxu0
    %v1029 = vadd.f32 0.0, %v1028
    %v1030 = vpop.f32.mrf.mxu0
    %v1031 = vadd.f32 0.0, %v1030
    %1032 = vmatmul.bf16.gmra.mxu0 %v303
    %v1033 = vpop.f32.mrf.mxu0
    %v1034 = vadd.f32 0.0, %v1033
    %v1035 = vpop.f32.mrf.mxu0
    %v1036 = vadd.f32 0.0, %v1035
    %1037 = vmatmul.bf16.gmra.mxu0 %v306
    %v1038 = vpop.f32.mrf.mxu0
    %v1039 = vadd.f32 0.0, %v1038
    %v1040 = vpop.f32.mrf.mxu0
    %v1041 = vadd.f32 0.0, %v1040
    %1042 = vdwg.mxu0
    %1043 = vmatpush.bf16.msra.mxu0 0
    %1044 = vmatpush.bf16.msra.mxu0 0
    %1045 = vmatpush.bf16.msra.mxu0 0
    %1046 = vmatpush.bf16.msra.mxu0 0
    %1047 = vmatpush.bf16.msra.mxu0 0
    %1048 = vmatpush.bf16.msra.mxu0 0
    %1049 = vmatpush.bf16.msra.mxu0 %v250
    %1050 = vmatpush.bf16.msra.mxu0 %v234
    %1051 = vmatmul.bf16.gmra.mxu0 %v285
    %v1052 = vpop.f32.mrf.mxu0
    %v1053 = vadd.f32 0.0, %v1052
    %v1054 = vpop.f32.mrf.mxu0
    %v1055 = vadd.f32 0.0, %v1054
    %1056 = vmatmul.bf16.gmra.mxu0 %v288
    %v1057 = vpop.f32.mrf.mxu0
    %v1058 = vadd.f32 0.0, %v1057
    %v1059 = vpop.f32.mrf.mxu0
    %v1060 = vadd.f32 0.0, %v1059
    %1061 = vmatmul.bf16.gmra.mxu0 %v291
    %v1062 = vpop.f32.mrf.mxu0
    %v1063 = vadd.f32 0.0, %v1062
    %v1064 = vpop.f32.mrf.mxu0
    %v1065 = vadd.f32 0.0, %v1064
    %1066 = vmatmul.bf16.gmra.mxu0 %v294
    %v1067 = vpop.f32.mrf.mxu0
    %v1068 = vadd.f32 0.0, %v1067
    %v1069 = vpop.f32.mrf.mxu0
    %v1070 = vadd.f32 0.0, %v1069
    %1071 = vmatmul.bf16.gmra.mxu0 %v297
    %v1072 = vpop.f32.mrf.mxu0
    %v1073 = vadd.f32 0.0, %v1072
    %v1074 = vpop.f32.mrf.mxu0
    %v1075 = vadd.f32 0.0, %v1074
    %1076 = vmatmul.bf16.gmra.mxu0 %v300
    %v1077 = vpop.f32.mrf.mxu0
    %v1078 = vadd.f32 0.0, %v1077
    %v1079 = vpop.f32.mrf.mxu0
    %v1080 = vadd.f32 0.0, %v1079
    %1081 = vmatmul.bf16.gmra.mxu0 %v303
    %v1082 = vpop.f32.mrf.mxu0
    %v1083 = vadd.f32 0.0, %v1082
    %v1084 = vpop.f32.mrf.mxu0
    %v1085 = vadd.f32 0.0, %v1084
    %1086 = vmatmul.bf16.gmra.mxu0 %v306
    %v1087 = vpop.f32.mrf.mxu0
    %v1088 = vadd.f32 0.0, %v1087
    %v1089 = vpop.f32.mrf.mxu0
    %v1090 = vadd.f32 0.0, %v1089
    %1091 = vdwg.mxu0
    %1092 = vst [vmem:[#allocation2] sm:$0xff] %v318
    %1093 = vst [vmem:[#allocation2 + $0x8] sm:$0xff] %v367
    %1094 = vst [vmem:[#allocation2 + $0x10] sm:$0xff] %v416
    %1095 = vst [vmem:[#allocation2 + $0x18] sm:$0xff] %v465
    %1096 = vst [vmem:[#allocation2 + $0x20] sm:$0xff] %v514
    %1097 = vst [vmem:[#allocation2 + $0x28] sm:$0xff] %v563
    %1098 = vst [vmem:[#allocation2 + $0x30] sm:$0xff] %v612
    %1099 = vst [vmem:[#allocation2 + $0x38] sm:$0xff] %v661
    %1100 = vst [vmem:[#allocation2 + $0x40] sm:$0xff] %v710
    %1101 = vst [vmem:[#allocation2 + $0x48] sm:$0xff] %v759
    %1102 = vst [vmem:[#allocation2 + $0x50] sm:$0xff] %v808
    %1103 = vst [vmem:[#allocation2 + $0x58] sm:$0xff] %v857
    %1104 = vst [vmem:[#allocation2 + $0x60] sm:$0xff] %v906
    %1105 = vst [vmem:[#allocation2 + $0x68] sm:$0xff] %v955
    %1106 = vst [vmem:[#allocation2 + $0x70] sm:$0xff] %v1004
    %1107 = vst [vmem:[#allocation2 + $0x78] sm:$0xff] %v1053
    %1108 = vst [vmem:[#allocation2 + $0x80] sm:$0xff] %v320
    %1109 = vst [vmem:[#allocation2 + $0x88] sm:$0xff] %v369
    %1110 = vst [vmem:[#allocation2 + $0x90] sm:$0xff] %v418
    %1111 = vst [vmem:[#allocation2 + $0x98] sm:$0xff] %v467
    %1112 = vst [vmem:[#allocation2 + $0xa0] sm:$0xff] %v516
    %1113 = vst [vmem:[#allocation2 + $0xa8] sm:$0xff] %v565
    %1114 = vst [vmem:[#allocation2 + $0xb0] sm:$0xff] %v614
    %1115 = vst [vmem:[#allocation2 + $0xb8] sm:$0xff] %v663
    %1116 = vst [vmem:[#allocation2 + $0xc0] sm:$0xff] %v712
    %1117 = vst [vmem:[#allocation2 + $0xc8] sm:$0xff] %v761
    %1118 = vst [vmem:[#allocation2 + $0xd0] sm:$0xff] %v810
    %1119 = vst [vmem:[#allocation2 + $0xd8] sm:$0xff] %v859
    %1120 = vst [vmem:[#allocation2 + $0xe0] sm:$0xff] %v908
    %1121 = vst [vmem:[#allocation2 + $0xe8] sm:$0xff] %v957
    %1122 = vst [vmem:[#allocation2 + $0xf0] sm:$0xff] %v1006
    %1123 = vst [vmem:[#allocation2 + $0xf8] sm:$0xff] %v1055
    %1124 = vst [vmem:[#allocation2 + $0x100] sm:$0xff] %v323
    %1125 = vst [vmem:[#allocation2 + $0x108] sm:$0xff] %v372
    %1126 = vst [vmem:[#allocation2 + $0x110] sm:$0xff] %v421
    %1127 = vst [vmem:[#allocation2 + $0x118] sm:$0xff] %v470
    %1128 = vst [vmem:[#allocation2 + $0x120] sm:$0xff] %v519
    %1129 = vst [vmem:[#allocation2 + $0x128] sm:$0xff] %v568
    %1130 = vst [vmem:[#allocation2 + $0x130] sm:$0xff] %v617
    %1131 = vst [vmem:[#allocation2 + $0x138] sm:$0xff] %v666
    %1132 = vst [vmem:[#allocation2 + $0x140] sm:$0xff] %v715
    %1133 = vst [vmem:[#allocation2 + $0x148] sm:$0xff] %v764
    %1134 = vst [vmem:[#allocation2 + $0x150] sm:$0xff] %v813
    %1135 = vst [vmem:[#allocation2 + $0x158] sm:$0xff] %v862
    %1136 = vst [vmem:[#allocation2 + $0x160] sm:$0xff] %v911
    %1137 = vst [vmem:[#allocation2 + $0x168] sm:$0xff] %v960
    %1138 = vst [vmem:[#allocation2 + $0x170] sm:$0xff] %v1009
    %1139 = vst [vmem:[#allocation2 + $0x178] sm:$0xff] %v1058
    %1140 = vst [vmem:[#allocation2 + $0x180] sm:$0xff] %v325
    %1141 = vst [vmem:[#allocation2 + $0x188] sm:$0xff] %v374
    %1142 = vst [vmem:[#allocation2 + $0x190] sm:$0xff] %v423
    %1143 = vst [vmem:[#allocation2 + $0x198] sm:$0xff] %v472
    %1144 = vst [vmem:[#allocation2 + $0x1a0] sm:$0xff] %v521
    %1145 = vst [vmem:[#allocation2 + $0x1a8] sm:$0xff] %v570
    %1146 = vst [vmem:[#allocation2 + $0x1b0] sm:$0xff] %v619
    %1147 = vst [vmem:[#allocation2 + $0x1b8] sm:$0xff] %v668
    %1148 = vst [vmem:[#allocation2 + $0x1c0] sm:$0xff] %v717
    %1149 = vst [vmem:[#allocation2 + $0x1c8] sm:$0xff] %v766
    %1150 = vst [vmem:[#allocation2 + $0x1d0] sm:$0xff] %v815
    %1151 = vst [vmem:[#allocation2 + $0x1d8] sm:$0xff] %v864
    %1152 = vst [vmem:[#allocation2 + $0x1e0] sm:$0xff] %v913
    %1153 = vst [vmem:[#allocation2 + $0x1e8] sm:$0xff] %v962
    %1154 = vst [vmem:[#allocation2 + $0x1f0] sm:$0xff] %v1011
    %1155 = vst [vmem:[#allocation2 + $0x1f8] sm:$0xff] %v1060
    %1156 = vst [vmem:[#allocation2 + $0x200] sm:$0xff] %v328
    %1157 = vst [vmem:[#allocation2 + $0x208] sm:$0xff] %v377
    %1158 = vst [vmem:[#allocation2 + $0x210] sm:$0xff] %v426
    %1159 = vst [vmem:[#allocation2 + $0x218] sm:$0xff] %v475
    %1160 = vst [vmem:[#allocation2 + $0x220] sm:$0xff] %v524
    %1161 = vst [vmem:[#allocation2 + $0x228] sm:$0xff] %v573
    %1162 = vst [vmem:[#allocation2 + $0x230] sm:$0xff] %v622
    %1163 = vst [vmem:[#allocation2 + $0x238] sm:$0xff] %v671
    %1164 = vst [vmem:[#allocation2 + $0x240] sm:$0xff] %v720
    %1165 = vst [vmem:[#allocation2 + $0x248] sm:$0xff] %v769
    %1166 = vst [vmem:[#allocation2 + $0x250] sm:$0xff] %v818
    %1167 = vst [vmem:[#allocation2 + $0x258] sm:$0xff] %v867
    %1168 = vst [vmem:[#allocation2 + $0x260] sm:$0xff] %v916
    %1169 = vst [vmem:[#allocation2 + $0x268] sm:$0xff] %v965
    %1170 = vst [vmem:[#allocation2 + $0x270] sm:$0xff] %v1014
    %1171 = vst [vmem:[#allocation2 + $0x278] sm:$0xff] %v1063
    %1172 = vst [vmem:[#allocation2 + $0x280] sm:$0xff] %v330
    %1173 = vst [vmem:[#allocation2 + $0x288] sm:$0xff] %v379
    %1174 = vst [vmem:[#allocation2 + $0x290] sm:$0xff] %v428
    %1175 = vst [vmem:[#allocation2 + $0x298] sm:$0xff] %v477
    %1176 = vst [vmem:[#allocation2 + $0x2a0] sm:$0xff] %v526
    %1177 = vst [vmem:[#allocation2 + $0x2a8] sm:$0xff] %v575
    %1178 = vst [vmem:[#allocation2 + $0x2b0] sm:$0xff] %v624
    %1179 = vst [vmem:[#allocation2 + $0x2b8] sm:$0xff] %v673
    %1180 = vst [vmem:[#allocation2 + $0x2c0] sm:$0xff] %v722
    %1181 = vst [vmem:[#allocation2 + $0x2c8] sm:$0xff] %v771
    %1182 = vst [vmem:[#allocation2 + $0x2d0] sm:$0xff] %v820
    %1183 = vst [vmem:[#allocation2 + $0x2d8] sm:$0xff] %v869
    %1184 = vst [vmem:[#allocation2 + $0x2e0] sm:$0xff] %v918
    %1185 = vst [vmem:[#allocation2 + $0x2e8] sm:$0xff] %v967
    %1186 = vst [vmem:[#allocation2 + $0x2f0] sm:$0xff] %v1016
    %1187 = vst [vmem:[#allocation2 + $0x2f8] sm:$0xff] %v1065
    %1188 = vst [vmem:[#allocation2 + $0x300] sm:$0xff] %v333
    %1189 = vst [vmem:[#allocation2 + $0x308] sm:$0xff] %v382
    %1190 = vst [vmem:[#allocation2 + $0x310] sm:$0xff] %v431
    %1191 = vst [vmem:[#allocation2 + $0x318] sm:$0xff] %v480
    %1192 = vst [vmem:[#allocation2 + $0x320] sm:$0xff] %v529
    %1193 = vst [vmem:[#allocation2 + $0x328] sm:$0xff] %v578
    %1194 = vst [vmem:[#allocation2 + $0x330] sm:$0xff] %v627
    %1195 = vst [vmem:[#allocation2 + $0x338] sm:$0xff] %v676
    %1196 = vst [vmem:[#allocation2 + $0x340] sm:$0xff] %v725
    %1197 = vst [vmem:[#allocation2 + $0x348] sm:$0xff] %v774
    %1198 = vst [vmem:[#allocation2 + $0x350] sm:$0xff] %v823
    %1199 = vst [vmem:[#allocation2 + $0x358] sm:$0xff] %v872
    %1200 = vst [vmem:[#allocation2 + $0x360] sm:$0xff] %v921
    %1201 = vst [vmem:[#allocation2 + $0x368] sm:$0xff] %v970
    %1202 = vst [vmem:[#allocation2 + $0x370] sm:$0xff] %v1019
    %1203 = vst [vmem:[#allocation2 + $0x378] sm:$0xff] %v1068
    %1204 = vst [vmem:[#allocation2 + $0x380] sm:$0xff] %v335
    %1205 = vst [vmem:[#allocation2 + $0x388] sm:$0xff] %v384
    %1206 = vst [vmem:[#allocation2 + $0x390] sm:$0xff] %v433
    %1207 = vst [vmem:[#allocation2 + $0x398] sm:$0xff] %v482
    %1208 = vst [vmem:[#allocation2 + $0x3a0] sm:$0xff] %v531
    %1209 = vst [vmem:[#allocation2 + $0x3a8] sm:$0xff] %v580
    %1210 = vst [vmem:[#allocation2 + $0x3b0] sm:$0xff] %v629
    %1211 = vst [vmem:[#allocation2 + $0x3b8] sm:$0xff] %v678
    %1212 = vst [vmem:[#allocation2 + $0x3c0] sm:$0xff] %v727
    %1213 = vst [vmem:[#allocation2 + $0x3c8] sm:$0xff] %v776
    %1214 = vst [vmem:[#allocation2 + $0x3d0] sm:$0xff] %v825
    %1215 = vst [vmem:[#allocation2 + $0x3d8] sm:$0xff] %v874
    %1216 = vst [vmem:[#allocation2 + $0x3e0] sm:$0xff] %v923
    %1217 = vst [vmem:[#allocation2 + $0x3e8] sm:$0xff] %v972
    %1218 = vst [vmem:[#allocation2 + $0x3f0] sm:$0xff] %v1021
    %1219 = vst [vmem:[#allocation2 + $0x3f8] sm:$0xff] %v1070
    %1220 = vst [vmem:[#allocation2 + $0x400] sm:$0xff] %v338
    %1221 = vst [vmem:[#allocation2 + $0x408] sm:$0xff] %v387
    %1222 = vst [vmem:[#allocation2 + $0x410] sm:$0xff] %v436
    %1223 = vst [vmem:[#allocation2 + $0x418] sm:$0xff] %v485
    %1224 = vst [vmem:[#allocation2 + $0x420] sm:$0xff] %v534
    %1225 = vst [vmem:[#allocation2 + $0x428] sm:$0xff] %v583
    %1226 = vst [vmem:[#allocation2 + $0x430] sm:$0xff] %v632
    %1227 = vst [vmem:[#allocation2 + $0x438] sm:$0xff] %v681
    %1228 = vst [vmem:[#allocation2 + $0x440] sm:$0xff] %v730
    %1229 = vst [vmem:[#allocation2 + $0x448] sm:$0xff] %v779
    %1230 = vst [vmem:[#allocation2 + $0x450] sm:$0xff] %v828
    %1231 = vst [vmem:[#allocation2 + $0x458] sm:$0xff] %v877
    %1232 = vst [vmem:[#allocation2 + $0x460] sm:$0xff] %v926
    %1233 = vst [vmem:[#allocation2 + $0x468] sm:$0xff] %v975
    %1234 = vst [vmem:[#allocation2 + $0x470] sm:$0xff] %v1024
    %1235 = vst [vmem:[#allocation2 + $0x478] sm:$0xff] %v1073
    %1236 = vst [vmem:[#allocation2 + $0x480] sm:$0xff] %v340
    %1237 = vst [vmem:[#allocation2 + $0x488] sm:$0xff] %v389
    %1238 = vst [vmem:[#allocation2 + $0x490] sm:$0xff] %v438
    %1239 = vst [vmem:[#allocation2 + $0x498] sm:$0xff] %v487
    %1240 = vst [vmem:[#allocation2 + $0x4a0] sm:$0xff] %v536
    %1241 = vst [vmem:[#allocation2 + $0x4a8] sm:$0xff] %v585
    %1242 = vst [vmem:[#allocation2 + $0x4b0] sm:$0xff] %v634
    %1243 = vst [vmem:[#allocation2 + $0x4b8] sm:$0xff] %v683
    %1244 = vst [vmem:[#allocation2 + $0x4c0] sm:$0xff] %v732
    %1245 = vst [vmem:[#allocation2 + $0x4c8] sm:$0xff] %v781
    %1246 = vst [vmem:[#allocation2 + $0x4d0] sm:$0xff] %v830
    %1247 = vst [vmem:[#allocation2 + $0x4d8] sm:$0xff] %v879
    %1248 = vst [vmem:[#allocation2 + $0x4e0] sm:$0xff] %v928
    %1249 = vst [vmem:[#allocation2 + $0x4e8] sm:$0xff] %v977
    %1250 = vst [vmem:[#allocation2 + $0x4f0] sm:$0xff] %v1026
    %1251 = vst [vmem:[#allocation2 + $0x4f8] sm:$0xff] %v1075
    %1252 = vst [vmem:[#allocation2 + $0x500] sm:$0xff] %v343
    %1253 = vst [vmem:[#allocation2 + $0x508] sm:$0xff] %v392
    %1254 = vst [vmem:[#allocation2 + $0x510] sm:$0xff] %v441
    %1255 = vst [vmem:[#allocation2 + $0x518] sm:$0xff] %v490
    %1256 = vst [vmem:[#allocation2 + $0x520] sm:$0xff] %v539
    %1257 = vst [vmem:[#allocation2 + $0x528] sm:$0xff] %v588
    %1258 = vst [vmem:[#allocation2 + $0x530] sm:$0xff] %v637
    %1259 = vst [vmem:[#allocation2 + $0x538] sm:$0xff] %v686
    %1260 = vst [vmem:[#allocation2 + $0x540] sm:$0xff] %v735
    %1261 = vst [vmem:[#allocation2 + $0x548] sm:$0xff] %v784
    %1262 = vst [vmem:[#allocation2 + $0x550] sm:$0xff] %v833
    %1263 = vst [vmem:[#allocation2 + $0x558] sm:$0xff] %v882
    %1264 = vst [vmem:[#allocation2 + $0x560] sm:$0xff] %v931
    %1265 = vst [vmem:[#allocation2 + $0x568] sm:$0xff] %v980
    %1266 = vst [vmem:[#allocation2 + $0x570] sm:$0xff] %v1029
    %1267 = vst [vmem:[#allocation2 + $0x578] sm:$0xff] %v1078
    %1268 = vst [vmem:[#allocation2 + $0x580] sm:$0xff] %v345
    %1269 = vst [vmem:[#allocation2 + $0x588] sm:$0xff] %v394
    %1270 = vst [vmem:[#allocation2 + $0x590] sm:$0xff] %v443
    %1271 = vst [vmem:[#allocation2 + $0x598] sm:$0xff] %v492
    %1272 = vst [vmem:[#allocation2 + $0x5a0] sm:$0xff] %v541
    %1273 = vst [vmem:[#allocation2 + $0x5a8] sm:$0xff] %v590
    %1274 = vst [vmem:[#allocation2 + $0x5b0] sm:$0xff] %v639
    %1275 = vst [vmem:[#allocation2 + $0x5b8] sm:$0xff] %v688
    %1276 = vst [vmem:[#allocation2 + $0x5c0] sm:$0xff] %v737
    %1277 = vst [vmem:[#allocation2 + $0x5c8] sm:$0xff] %v786
    %1278 = vst [vmem:[#allocation2 + $0x5d0] sm:$0xff] %v835
    %1279 = vst [vmem:[#allocation2 + $0x5d8] sm:$0xff] %v884
    %1280 = vst [vmem:[#allocation2 + $0x5e0] sm:$0xff] %v933
    %1281 = vst [vmem:[#allocation2 + $0x5e8] sm:$0xff] %v982
    %1282 = vst [vmem:[#allocation2 + $0x5f0] sm:$0xff] %v1031
    %1283 = vst [vmem:[#allocation2 + $0x5f8] sm:$0xff] %v1080
    %1284 = vst [vmem:[#allocation2 + $0x600] sm:$0xff] %v348
    %1285 = vst [vmem:[#allocation2 + $0x608] sm:$0xff] %v397
    %1286 = vst [vmem:[#allocation2 + $0x610] sm:$0xff] %v446
    %1287 = vst [vmem:[#allocation2 + $0x618] sm:$0xff] %v495
    %1288 = vst [vmem:[#allocation2 + $0x620] sm:$0xff] %v544
    %1289 = vst [vmem:[#allocation2 + $0x628] sm:$0xff] %v593
    %1290 = vst [vmem:[#allocation2 + $0x630] sm:$0xff] %v642
    %1291 = vst [vmem:[#allocation2 + $0x638] sm:$0xff] %v691
    %1292 = vst [vmem:[#allocation2 + $0x640] sm:$0xff] %v740
    %1293 = vst [vmem:[#allocation2 + $0x648] sm:$0xff] %v789
    %1294 = vst [vmem:[#allocation2 + $0x650] sm:$0xff] %v838
    %1295 = vst [vmem:[#allocation2 + $0x658] sm:$0xff] %v887
    %1296 = vst [vmem:[#allocation2 + $0x660] sm:$0xff] %v936
    %1297 = vst [vmem:[#allocation2 + $0x668] sm:$0xff] %v985
    %1298 = vst [vmem:[#allocation2 + $0x670] sm:$0xff] %v1034
    %1299 = vst [vmem:[#allocation2 + $0x678] sm:$0xff] %v1083
    %1300 = vst [vmem:[#allocation2 + $0x680] sm:$0xff] %v350
    %1301 = vst [vmem:[#allocation2 + $0x688] sm:$0xff] %v399
    %1302 = vst [vmem:[#allocation2 + $0x690] sm:$0xff] %v448
    %1303 = vst [vmem:[#allocation2 + $0x698] sm:$0xff] %v497
    %1304 = vst [vmem:[#allocation2 + $0x6a0] sm:$0xff] %v546
    %1305 = vst [vmem:[#allocation2 + $0x6a8] sm:$0xff] %v595
    %1306 = vst [vmem:[#allocation2 + $0x6b0] sm:$0xff] %v644
    %1307 = vst [vmem:[#allocation2 + $0x6b8] sm:$0xff] %v693
    %1308 = vst [vmem:[#allocation2 + $0x6c0] sm:$0xff] %v742
    %1309 = vst [vmem:[#allocation2 + $0x6c8] sm:$0xff] %v791
    %1310 = vst [vmem:[#allocation2 + $0x6d0] sm:$0xff] %v840
    %1311 = vst [vmem:[#allocation2 + $0x6d8] sm:$0xff] %v889
    %1312 = vst [vmem:[#allocation2 + $0x6e0] sm:$0xff] %v938
    %1313 = vst [vmem:[#allocation2 + $0x6e8] sm:$0xff] %v987
    %1314 = vst [vmem:[#allocation2 + $0x6f0] sm:$0xff] %v1036
    %1315 = vst [vmem:[#allocation2 + $0x6f8] sm:$0xff] %v1085
    %1316 = vst [vmem:[#allocation2 + $0x700] sm:$0xff] %v353
    %1317 = vst [vmem:[#allocation2 + $0x708] sm:$0xff] %v402
    %1318 = vst [vmem:[#allocation2 + $0x710] sm:$0xff] %v451
    %1319 = vst [vmem:[#allocation2 + $0x718] sm:$0xff] %v500
    %1320 = vst [vmem:[#allocation2 + $0x720] sm:$0xff] %v549
    %1321 = vst [vmem:[#allocation2 + $0x728] sm:$0xff] %v598
    %1322 = vst [vmem:[#allocation2 + $0x730] sm:$0xff] %v647
    %1323 = vst [vmem:[#allocation2 + $0x738] sm:$0xff] %v696
    %1324 = vst [vmem:[#allocation2 + $0x740] sm:$0xff] %v745
    %1325 = vst [vmem:[#allocation2 + $0x748] sm:$0xff] %v794
    %1326 = vst [vmem:[#allocation2 + $0x750] sm:$0xff] %v843
    %1327 = vst [vmem:[#allocation2 + $0x758] sm:$0xff] %v892
    %1328 = vst [vmem:[#allocation2 + $0x760] sm:$0xff] %v941
    %1329 = vst [vmem:[#allocation2 + $0x768] sm:$0xff] %v990
    %1330 = vst [vmem:[#allocation2 + $0x770] sm:$0xff] %v1039
    %1331 = vst [vmem:[#allocation2 + $0x778] sm:$0xff] %v1088
    %1332 = vst [vmem:[#allocation2 + $0x780] sm:$0xff] %v355
    %1333 = vst [vmem:[#allocation2 + $0x788] sm:$0xff] %v404
    %1334 = vst [vmem:[#allocation2 + $0x790] sm:$0xff] %v453
    %1335 = vst [vmem:[#allocation2 + $0x798] sm:$0xff] %v502
    %1336 = vst [vmem:[#allocation2 + $0x7a0] sm:$0xff] %v551
    %1337 = vst [vmem:[#allocation2 + $0x7a8] sm:$0xff] %v600
    %1338 = vst [vmem:[#allocation2 + $0x7b0] sm:$0xff] %v649
    %1339 = vst [vmem:[#allocation2 + $0x7b8] sm:$0xff] %v698
    %1340 = vst [vmem:[#allocation2 + $0x7c0] sm:$0xff] %v747
    %1341 = vst [vmem:[#allocation2 + $0x7c8] sm:$0xff] %v796
    %1342 = vst [vmem:[#allocation2 + $0x7d0] sm:$0xff] %v845
    %1343 = vst [vmem:[#allocation2 + $0x7d8] sm:$0xff] %v894
    %1344 = vst [vmem:[#allocation2 + $0x7e0] sm:$0xff] %v943
    %1345 = vst [vmem:[#allocation2 + $0x7e8] sm:$0xff] %v992
    %1346 = vst [vmem:[#allocation2 + $0x7f0] sm:$0xff] %v1041
    %1347 = vst [vmem:[#allocation2 + $0x7f8] sm:$0xff] %v1090
    %v1348 = vld [vmem:[%s2] sm:$0xf]
    %v1349 = vld [vmem:[%s3] sm:$0xf]
    %v1350 = vld [vmem:[#allocation2] sm:$0xff]
    %v1351 = vld [vmem:[#allocation2 + $0x80] sm:$0xff]
    %v1352 = vld [vmem:[#allocation2 + $0x100] sm:$0xff]
    %v1353 = vld [vmem:[#allocation2 + $0x180] sm:$0xff]
    %v1354 = vld [vmem:[#allocation2 + $0x200] sm:$0xff]
    %v1355 = vld [vmem:[#allocation2 + $0x280] sm:$0xff]
    %v1356 = vld [vmem:[#allocation2 + $0x300] sm:$0xff]
    %v1357 = vld [vmem:[#allocation2 + $0x380] sm:$0xff]
    %v1358 = vld [vmem:[#allocation2 + $0x400] sm:$0xff]
    %v1359 = vld [vmem:[#allocation2 + $0x480] sm:$0xff]
    %v1360 = vld [vmem:[#allocation2 + $0x500] sm:$0xff]
    %v1361 = vld [vmem:[#allocation2 + $0x580] sm:$0xff]
    %v1362 = vld [vmem:[#allocation2 + $0x600] sm:$0xff]
    %v1363 = vld [vmem:[#allocation2 + $0x680] sm:$0xff]
    %v1364 = vld [vmem:[#allocation2 + $0x700] sm:$0xff]
    %v1365 = vld [vmem:[#allocation2 + $0x780] sm:$0xff]
    %1366 = vadd.xlane.f32.xlu0 %v1350
    %v1367 = vpop.xlane.xlu0 %1366
    %1368 = vadd.xlane.f32.xlu0 %v1351
    %v1369 = vpop.xlane.xlu0 %1368
    %1370 = vadd.xlane.f32.xlu0 %v1352
    %v1371 = vpop.xlane.xlu0 %1370
    %1372 = vadd.xlane.f32.xlu0 %v1353
    %v1373 = vpop.xlane.xlu0 %1372
    %1374 = vadd.xlane.f32.xlu0 %v1354
    %v1375 = vpop.xlane.xlu0 %1374
    %1376 = vadd.xlane.f32.xlu0 %v1355
    %v1377 = vpop.xlane.xlu0 %1376
    %1378 = vadd.xlane.f32.xlu0 %v1356
    %v1379 = vpop.xlane.xlu0 %1378
    %1380 = vadd.xlane.f32.xlu0 %v1357
    %v1381 = vpop.xlane.xlu0 %1380
    %1382 = vadd.xlane.f32.xlu0 %v1358
    %v1383 = vpop.xlane.xlu0 %1382
    %1384 = vadd.xlane.f32.xlu0 %v1359
    %v1385 = vpop.xlane.xlu0 %1384
    %1386 = vadd.xlane.f32.xlu0 %v1360
    %v1387 = vpop.xlane.xlu0 %1386
    %1388 = vadd.xlane.f32.xlu0 %v1361
    %v1389 = vpop.xlane.xlu0 %1388
    %1390 = vadd.xlane.f32.xlu0 %v1362
    %v1391 = vpop.xlane.xlu0 %1390
    %1392 = vadd.xlane.f32.xlu0 %v1363
    %v1393 = vpop.xlane.xlu0 %1392
    %1394 = vadd.xlane.f32.xlu0 %v1364
    %v1395 = vpop.xlane.xlu0 %1394
    %1396 = vadd.xlane.f32.xlu0 %v1365
    %v1397 = vpop.xlane.xlu0 %1396
    %v1398 = vmul.f32 %v1367, 0.03125
    %v1399 = vmul.f32 %v1369, 0.03125
    %v1400 = vmul.f32 %v1371, 0.03125
    %v1401 = vmul.f32 %v1373, 0.03125
    %v1402 = vmul.f32 %v1375, 0.03125
    %v1403 = vmul.f32 %v1377, 0.03125
    %v1404 = vmul.f32 %v1379, 0.03125
    %v1405 = vmul.f32 %v1381, 0.03125
    %v1406 = vmul.f32 %v1383, 0.03125
    %v1407 = vmul.f32 %v1385, 0.03125
    %v1408 = vmul.f32 %v1387, 0.03125
    %v1409 = vmul.f32 %v1389, 0.03125
    %v1410 = vmul.f32 %v1391, 0.03125
    %v1411 = vmul.f32 %v1393, 0.03125
    %v1412 = vmul.f32 %v1395, 0.03125
    %v1413 = vmul.f32 %v1397, 0.03125
    %v1414 = vmul.f32 %v1350, %v1350
    %v1415 = vmul.f32 %v1351, %v1351
    %v1416 = vmul.f32 %v1352, %v1352
    %v1417 = vmul.f32 %v1353, %v1353
    %v1418 = vmul.f32 %v1354, %v1354
    %v1419 = vmul.f32 %v1355, %v1355
    %v1420 = vmul.f32 %v1356, %v1356
    %v1421 = vmul.f32 %v1357, %v1357
    %v1422 = vmul.f32 %v1358, %v1358
    %v1423 = vmul.f32 %v1359, %v1359
    %v1424 = vmul.f32 %v1360, %v1360
    %v1425 = vmul.f32 %v1361, %v1361
    %v1426 = vmul.f32 %v1362, %v1362
    %v1427 = vmul.f32 %v1363, %v1363
    %v1428 = vmul.f32 %v1364, %v1364
    %v1429 = vmul.f32 %v1365, %v1365
    %1430 = vadd.xlane.f32.xlu0 %v1414
    %v1431 = vpop.xlane.xlu0 %1430
    %1432 = vadd.xlane.f32.xlu0 %v1415
    %v1433 = vpop.xlane.xlu0 %1432
    %1434 = vadd.xlane.f32.xlu0 %v1416
    %v1435 = vpop.xlane.xlu0 %1434
    %1436 = vadd.xlane.f32.xlu0 %v1417
    %v1437 = vpop.xlane.xlu0 %1436
    %1438 = vadd.xlane.f32.xlu0 %v1418
    %v1439 = vpop.xlane.xlu0 %1438
    %1440 = vadd.xlane.f32.xlu0 %v1419
    %v1441 = vpop.xlane.xlu0 %1440
    %1442 = vadd.xlane.f32.xlu0 %v1420
    %v1443 = vpop.xlane.xlu0 %1442
    %1444 = vadd.xlane.f32.xlu0 %v1421
    %v1445 = vpop.xlane.xlu0 %1444
    %1446 = vadd.xlane.f32.xlu0 %v1422
    %v1447 = vpop.xlane.xlu0 %1446
    %1448 = vadd.xlane.f32.xlu0 %v1423
    %v1449 = vpop.xlane.xlu0 %1448
    %1450 = vadd.xlane.f32.xlu0 %v1424
    %v1451 = vpop.xlane.xlu0 %1450
    %1452 = vadd.xlane.f32.xlu0 %v1425
    %v1453 = vpop.xlane.xlu0 %1452
    %1454 = vadd.xlane.f32.xlu0 %v1426
    %v1455 = vpop.xlane.xlu0 %1454
    %1456 = vadd.xlane.f32.xlu0 %v1427
    %v1457 = vpop.xlane.xlu0 %1456
    %1458 = vadd.xlane.f32.xlu0 %v1428
    %v1459 = vpop.xlane.xlu0 %1458
    %1460 = vadd.xlane.f32.xlu0 %v1429
    %v1461 = vpop.xlane.xlu0 %1460
    %v1462 = vmul.f32 %v1431, 0.03125
    %v1463 = vmul.f32 %v1433, 0.03125
    %v1464 = vmul.f32 %v1435, 0.03125
    %v1465 = vmul.f32 %v1437, 0.03125
    %v1466 = vmul.f32 %v1439, 0.03125
    %v1467 = vmul.f32 %v1441, 0.03125
    %v1468 = vmul.f32 %v1443, 0.03125
    %v1469 = vmul.f32 %v1445, 0.03125
    %v1470 = vmul.f32 %v1447, 0.03125
    %v1471 = vmul.f32 %v1449, 0.03125
    %v1472 = vmul.f32 %v1451, 0.03125
    %v1473 = vmul.f32 %v1453, 0.03125
    %v1474 = vmul.f32 %v1455, 0.03125
    %v1475 = vmul.f32 %v1457, 0.03125
    %v1476 = vmul.f32 %v1459, 0.03125
    %v1477 = vmul.f32 %v1461, 0.03125
    %v1478 = vmul.f32 %v1398, %v1398
    %v1479 = vmul.f32 %v1399, %v1399
    %v1480 = vmul.f32 %v1400, %v1400
    %v1481 = vmul.f32 %v1401, %v1401
    %v1482 = vmul.f32 %v1402, %v1402
    %v1483 = vmul.f32 %v1403, %v1403
    %v1484 = vmul.f32 %v1404, %v1404
    %v1485 = vmul.f32 %v1405, %v1405
    %v1486 = vmul.f32 %v1406, %v1406
    %v1487 = vmul.f32 %v1407, %v1407
    %v1488 = vmul.f32 %v1408, %v1408
    %v1489 = vmul.f32 %v1409, %v1409
    %v1490 = vmul.f32 %v1410, %v1410
    %v1491 = vmul.f32 %v1411, %v1411
    %v1492 = vmul.f32 %v1412, %v1412
    %v1493 = vmul.f32 %v1413, %v1413
    %v1494 = vsub.f32 %v1462, %v1478
    %v1495 = vsub.f32 %v1463, %v1479
    %v1496 = vsub.f32 %v1464, %v1480
    %v1497 = vsub.f32 %v1465, %v1481
    %v1498 = vsub.f32 %v1466, %v1482
    %v1499 = vsub.f32 %v1467, %v1483
    %v1500 = vsub.f32 %v1468, %v1484
    %v1501 = vsub.f32 %v1469, %v1485
    %v1502 = vsub.f32 %v1470, %v1486
    %v1503 = vsub.f32 %v1471, %v1487
    %v1504 = vsub.f32 %v1472, %v1488
    %v1505 = vsub.f32 %v1473, %v1489
    %v1506 = vsub.f32 %v1474, %v1490
    %v1507 = vsub.f32 %v1475, %v1491
    %v1508 = vsub.f32 %v1476, %v1492
    %v1509 = vsub.f32 %v1477, %v1493
    %v1510 = vmax.f32 %v1494, 0.0
    %v1511 = vmax.f32 %v1495, 0.0
    %v1512 = vmax.f32 %v1496, 0.0
    %v1513 = vmax.f32 %v1497, 0.0
    %v1514 = vmax.f32 %v1498, 0.0
    %v1515 = vmax.f32 %v1499, 0.0
    %v1516 = vmax.f32 %v1500, 0.0
    %v1517 = vmax.f32 %v1501, 0.0
    %v1518 = vmax.f32 %v1502, 0.0
    %v1519 = vmax.f32 %v1503, 0.0
    %v1520 = vmax.f32 %v1504, 0.0
    %v1521 = vmax.f32 %v1505, 0.0
    %v1522 = vmax.f32 %v1506, 0.0
    %v1523 = vmax.f32 %v1507, 0.0
    %v1524 = vmax.f32 %v1508, 0.0
    %v1525 = vmax.f32 %v1509, 0.0
    %v1526 = vadd.f32 %v1510, 1e-05
    %v1527 = vadd.f32 %v1511, 1e-05
    %v1528 = vadd.f32 %v1512, 1e-05
    %v1529 = vadd.f32 %v1513, 1e-05
    %v1530 = vadd.f32 %v1514, 1e-05
    %v1531 = vadd.f32 %v1515, 1e-05
    %v1532 = vadd.f32 %v1516, 1e-05
    %v1533 = vadd.f32 %v1517, 1e-05
    %v1534 = vadd.f32 %v1518, 1e-05
    %v1535 = vadd.f32 %v1519, 1e-05
    %v1536 = vadd.f32 %v1520, 1e-05
    %v1537 = vadd.f32 %v1521, 1e-05
    %v1538 = vadd.f32 %v1522, 1e-05
    %v1539 = vadd.f32 %v1523, 1e-05
    %v1540 = vadd.f32 %v1524, 1e-05
    %v1541 = vadd.f32 %v1525, 1e-05
    %v1542 = vrsqrt.pop %v1526
    %v1543 = vmul.f32 %v1542, %v1526
    %v1544 = vmul.f32 %v1543, %v1542
    %v1545 = vmul.f32 0.5, %v1544
    %v1546 = vsub.f32 1.5, %v1545
    %v1547 = vmul.f32 %v1542, %v1546
    %vm1548 = vweird.f32 %v1526
    %vm1549 = vweird.f32 %v1542
    %vm1550 = vmor %vm1548, %vm1549
    %v1551 = vsel %vm1550, %v1542, %v1547
    %v1552 = vrsqrt.pop %v1527
    %v1553 = vmul.f32 %v1552, %v1527
    %v1554 = vmul.f32 %v1553, %v1552
    %v1555 = vmul.f32 0.5, %v1554
    %v1556 = vsub.f32 1.5, %v1555
    %v1557 = vmul.f32 %v1552, %v1556
    %vm1558 = vweird.f32 %v1527
    %vm1559 = vweird.f32 %v1552
    %vm1560 = vmor %vm1558, %vm1559
    %v1561 = vsel %vm1560, %v1552, %v1557
    %v1562 = vrsqrt.pop %v1528
    %v1563 = vmul.f32 %v1562, %v1528
    %v1564 = vmul.f32 %v1563, %v1562
    %v1565 = vmul.f32 0.5, %v1564
    %v1566 = vsub.f32 1.5, %v1565
    %v1567 = vmul.f32 %v1562, %v1566
    %vm1568 = vweird.f32 %v1528
    %vm1569 = vweird.f32 %v1562
    %vm1570 = vmor %vm1568, %vm1569
    %v1571 = vsel %vm1570, %v1562, %v1567
    %v1572 = vrsqrt.pop %v1529
    %v1573 = vmul.f32 %v1572, %v1529
    %v1574 = vmul.f32 %v1573, %v1572
    %v1575 = vmul.f32 0.5, %v1574
    %v1576 = vsub.f32 1.5, %v1575
    %v1577 = vmul.f32 %v1572, %v1576
    %vm1578 = vweird.f32 %v1529
    %vm1579 = vweird.f32 %v1572
    %vm1580 = vmor %vm1578, %vm1579
    %v1581 = vsel %vm1580, %v1572, %v1577
    %v1582 = vrsqrt.pop %v1530
    %v1583 = vmul.f32 %v1582, %v1530
    %v1584 = vmul.f32 %v1583, %v1582
    %v1585 = vmul.f32 0.5, %v1584
    %v1586 = vsub.f32 1.5, %v1585
    %v1587 = vmul.f32 %v1582, %v1586
    %vm1588 = vweird.f32 %v1530
    %vm1589 = vweird.f32 %v1582
    %vm1590 = vmor %vm1588, %vm1589
    %v1591 = vsel %vm1590, %v1582, %v1587
    %v1592 = vrsqrt.pop %v1531
    %v1593 = vmul.f32 %v1592, %v1531
    %v1594 = vmul.f32 %v1593, %v1592
    %v1595 = vmul.f32 0.5, %v1594
    %v1596 = vsub.f32 1.5, %v1595
    %v1597 = vmul.f32 %v1592, %v1596
    %vm1598 = vweird.f32 %v1531
    %vm1599 = vweird.f32 %v1592
    %vm1600 = vmor %vm1598, %vm1599
    %v1601 = vsel %vm1600, %v1592, %v1597
    %v1602 = vrsqrt.pop %v1532
    %v1603 = vmul.f32 %v1602, %v1532
    %v1604 = vmul.f32 %v1603, %v1602
    %v1605 = vmul.f32 0.5, %v1604
    %v1606 = vsub.f32 1.5, %v1605
    %v1607 = vmul.f32 %v1602, %v1606
    %vm1608 = vweird.f32 %v1532
    %vm1609 = vweird.f32 %v1602
    %vm1610 = vmor %vm1608, %vm1609
    %v1611 = vsel %vm1610, %v1602, %v1607
    %v1612 = vrsqrt.pop %v1533
    %v1613 = vmul.f32 %v1612, %v1533
    %v1614 = vmul.f32 %v1613, %v1612
    %v1615 = vmul.f32 0.5, %v1614
    %v1616 = vsub.f32 1.5, %v1615
    %v1617 = vmul.f32 %v1612, %v1616
    %vm1618 = vweird.f32 %v1533
    %vm1619 = vweird.f32 %v1612
    %vm1620 = vmor %vm1618, %vm1619
    %v1621 = vsel %vm1620, %v1612, %v1617
    %v1622 = vrsqrt.pop %v1534
    %v1623 = vmul.f32 %v1622, %v1534
    %v1624 = vmul.f32 %v1623, %v1622
    %v1625 = vmul.f32 0.5, %v1624
    %v1626 = vsub.f32 1.5, %v1625
    %v1627 = vmul.f32 %v1622, %v1626
    %vm1628 = vweird.f32 %v1534
    %vm1629 = vweird.f32 %v1622
    %vm1630 = vmor %vm1628, %vm1629
    %v1631 = vsel %vm1630, %v1622, %v1627
    %v1632 = vrsqrt.pop %v1535
    %v1633 = vmul.f32 %v1632, %v1535
    %v1634 = vmul.f32 %v1633, %v1632
    %v1635 = vmul.f32 0.5, %v1634
    %v1636 = vsub.f32 1.5, %v1635
    %v1637 = vmul.f32 %v1632, %v1636
    %vm1638 = vweird.f32 %v1535
    %vm1639 = vweird.f32 %v1632
    %vm1640 = vmor %vm1638, %vm1639
    %v1641 = vsel %vm1640, %v1632, %v1637
    %v1642 = vrsqrt.pop %v1536
    %v1643 = vmul.f32 %v1642, %v1536
    %v1644 = vmul.f32 %v1643, %v1642
    %v1645 = vmul.f32 0.5, %v1644
    %v1646 = vsub.f32 1.5, %v1645
    %v1647 = vmul.f32 %v1642, %v1646
    %vm1648 = vweird.f32 %v1536
    %vm1649 = vweird.f32 %v1642
    %vm1650 = vmor %vm1648, %vm1649
    %v1651 = vsel %vm1650, %v1642, %v1647
    %v1652 = vrsqrt.pop %v1537
    %v1653 = vmul.f32 %v1652, %v1537
    %v1654 = vmul.f32 %v1653, %v1652
    %v1655 = vmul.f32 0.5, %v1654
    %v1656 = vsub.f32 1.5, %v1655
    %v1657 = vmul.f32 %v1652, %v1656
    %vm1658 = vweird.f32 %v1537
    %vm1659 = vweird.f32 %v1652
    %vm1660 = vmor %vm1658, %vm1659
    %v1661 = vsel %vm1660, %v1652, %v1657
    %v1662 = vrsqrt.pop %v1538
    %v1663 = vmul.f32 %v1662, %v1538
    %v1664 = vmul.f32 %v1663, %v1662
    %v1665 = vmul.f32 0.5, %v1664
    %v1666 = vsub.f32 1.5, %v1665
    %v1667 = vmul.f32 %v1662, %v1666
    %vm1668 = vweird.f32 %v1538
    %vm1669 = vweird.f32 %v1662
    %vm1670 = vmor %vm1668, %vm1669
    %v1671 = vsel %vm1670, %v1662, %v1667
    %v1672 = vrsqrt.pop %v1539
    %v1673 = vmul.f32 %v1672, %v1539
    %v1674 = vmul.f32 %v1673, %v1672
    %v1675 = vmul.f32 0.5, %v1674
    %v1676 = vsub.f32 1.5, %v1675
    %v1677 = vmul.f32 %v1672, %v1676
    %vm1678 = vweird.f32 %v1539
    %vm1679 = vweird.f32 %v1672
    %vm1680 = vmor %vm1678, %vm1679
    %v1681 = vsel %vm1680, %v1672, %v1677
    %v1682 = vrsqrt.pop %v1540
    %v1683 = vmul.f32 %v1682, %v1540
    %v1684 = vmul.f32 %v1683, %v1682
    %v1685 = vmul.f32 0.5, %v1684
    %v1686 = vsub.f32 1.5, %v1685
    %v1687 = vmul.f32 %v1682, %v1686
    %vm1688 = vweird.f32 %v1540
    %vm1689 = vweird.f32 %v1682
    %vm1690 = vmor %vm1688, %vm1689
    %v1691 = vsel %vm1690, %v1682, %v1687
    %v1692 = vrsqrt.pop %v1541
    %v1693 = vmul.f32 %v1692, %v1541
    %v1694 = vmul.f32 %v1693, %v1692
    %v1695 = vmul.f32 0.5, %v1694
    %v1696 = vsub.f32 1.5, %v1695
    %v1697 = vmul.f32 %v1692, %v1696
    %vm1698 = vweird.f32 %v1541
    %vm1699 = vweird.f32 %v1692
    %vm1700 = vmor %vm1698, %vm1699
    %v1701 = vsel %vm1700, %v1692, %v1697
    %v1702 = vsub.f32 %v1350, %v1398
    %v1703 = vsub.f32 %v1351, %v1399
    %v1704 = vsub.f32 %v1352, %v1400
    %v1705 = vsub.f32 %v1353, %v1401
    %v1706 = vsub.f32 %v1354, %v1402
    %v1707 = vsub.f32 %v1355, %v1403
    %v1708 = vsub.f32 %v1356, %v1404
    %v1709 = vsub.f32 %v1357, %v1405
    %v1710 = vsub.f32 %v1358, %v1406
    %v1711 = vsub.f32 %v1359, %v1407
    %v1712 = vsub.f32 %v1360, %v1408
    %v1713 = vsub.f32 %v1361, %v1409
    %v1714 = vsub.f32 %v1362, %v1410
    %v1715 = vsub.f32 %v1363, %v1411
    %v1716 = vsub.f32 %v1364, %v1412
    %v1717 = vsub.f32 %v1365, %v1413
    %v1718 = vmul.f32 %v1702, %v1551
    %v1719 = vmul.f32 %v1703, %v1561
    %v1720 = vmul.f32 %v1704, %v1571
    %v1721 = vmul.f32 %v1705, %v1581
    %v1722 = vmul.f32 %v1706, %v1591
    %v1723 = vmul.f32 %v1707, %v1601
    %v1724 = vmul.f32 %v1708, %v1611
    %v1725 = vmul.f32 %v1709, %v1621
    %v1726 = vmul.f32 %v1710, %v1631
    %v1727 = vmul.f32 %v1711, %v1641
    %v1728 = vmul.f32 %v1712, %v1651
    %v1729 = vmul.f32 %v1713, %v1661
    %v1730 = vmul.f32 %v1714, %v1671
    %v1731 = vmul.f32 %v1715, %v1681
    %v1732 = vmul.f32 %v1716, %v1691
    %v1733 = vmul.f32 %v1717, %v1701
    %v1734 = vpack.c.bf16 %v1719, %v1718
    %v1735 = vpack.c.bf16 %v1721, %v1720
    %v1736 = vpack.c.bf16 %v1723, %v1722
    %v1737 = vpack.c.bf16 %v1725, %v1724
    %v1738 = vpack.c.bf16 %v1727, %v1726
    %v1739 = vpack.c.bf16 %v1729, %v1728
    %v1740 = vpack.c.bf16 %v1731, %v1730
    %v1741 = vpack.c.bf16 %v1733, %v1732
    %1742 = vmatpush.bf16.xpose.msra.mxu0 %v1741
    %1743 = vmatpush.bf16.xpose.msra.mxu0 %v1740
    %1744 = vmatpush.bf16.xpose.msra.mxu0 %v1739
    %1745 = vmatpush.bf16.xpose.msra.mxu0 %v1738
    %1746 = vmatpush.bf16.xpose.msra.mxu0 %v1737
    %1747 = vmatpush.bf16.xpose.msra.mxu0 %v1736
    %1748 = vmatpush.bf16.xpose.msra.mxu0 %v1735
    %1749 = vmatpush.bf16.xpose.msra.mxu0 %v1734
    %1750 = vmatmul.bf16.gmra.mxu0 %v1348
    %v1751 = vpop.f32.mrf.mxu0
    %v1752 = vadd.f32 0.0, %v1751
    %v1753 = vpop.f32.mrf.mxu0
    %1754 = vdwg.mxu0
    %1756 = vset.pattern.permute.xlu0 0
    %1757 = vperm.xlu0 %1756, %v1349
    %v1758 = vpop.permute.xlu0 %1757
    %v1760 = vadd.f32 %v1752, %v1758
    %1761 = vst [vmem:[#allocation6] sm:$0xf] %v1760
    %v1762 = vld [vmem:[#allocation2 + $0x8] sm:$0xff]
    %v1763 = vld [vmem:[#allocation2 + $0x88] sm:$0xff]
    %v1764 = vld [vmem:[#allocation2 + $0x108] sm:$0xff]
    %v1765 = vld [vmem:[#allocation2 + $0x188] sm:$0xff]
    %v1766 = vld [vmem:[#allocation2 + $0x208] sm:$0xff]
    %v1767 = vld [vmem:[#allocation2 + $0x288] sm:$0xff]
    %v1768 = vld [vmem:[#allocation2 + $0x308] sm:$0xff]
    %v1769 = vld [vmem:[#allocation2 + $0x388] sm:$0xff]
    %v1770 = vld [vmem:[#allocation2 + $0x408] sm:$0xff]
    %v1771 = vld [vmem:[#allocation2 + $0x488] sm:$0xff]
    %v1772 = vld [vmem:[#allocation2 + $0x508] sm:$0xff]
    %v1773 = vld [vmem:[#allocation2 + $0x588] sm:$0xff]
    %v1774 = vld [vmem:[#allocation2 + $0x608] sm:$0xff]
    %v1775 = vld [vmem:[#allocation2 + $0x688] sm:$0xff]
    %v1776 = vld [vmem:[#allocation2 + $0x708] sm:$0xff]
    %v1777 = vld [vmem:[#allocation2 + $0x788] sm:$0xff]
    %1778 = vadd.xlane.f32.xlu0 %v1762
    %v1779 = vpop.xlane.xlu0 %1778
    %1780 = vadd.xlane.f32.xlu0 %v1763
    %v1781 = vpop.xlane.xlu0 %1780
    %1782 = vadd.xlane.f32.xlu0 %v1764
    %v1783 = vpop.xlane.xlu0 %1782
    %1784 = vadd.xlane.f32.xlu0 %v1765
    %v1785 = vpop.xlane.xlu0 %1784
    %1786 = vadd.xlane.f32.xlu0 %v1766
    %v1787 = vpop.xlane.xlu0 %1786
    %1788 = vadd.xlane.f32.xlu0 %v1767
    %v1789 = vpop.xlane.xlu0 %1788
    %1790 = vadd.xlane.f32.xlu0 %v1768
    %v1791 = vpop.xlane.xlu0 %1790
    %1792 = vadd.xlane.f32.xlu0 %v1769
    %v1793 = vpop.xlane.xlu0 %1792
    %1794 = vadd.xlane.f32.xlu0 %v1770
    %v1795 = vpop.xlane.xlu0 %1794
    %1796 = vadd.xlane.f32.xlu0 %v1771
    %v1797 = vpop.xlane.xlu0 %1796
    %1798 = vadd.xlane.f32.xlu0 %v1772
    %v1799 = vpop.xlane.xlu0 %1798
    %1800 = vadd.xlane.f32.xlu0 %v1773
    %v1801 = vpop.xlane.xlu0 %1800
    %1802 = vadd.xlane.f32.xlu0 %v1774
    %v1803 = vpop.xlane.xlu0 %1802
    %1804 = vadd.xlane.f32.xlu0 %v1775
    %v1805 = vpop.xlane.xlu0 %1804
    %1806 = vadd.xlane.f32.xlu0 %v1776
    %v1807 = vpop.xlane.xlu0 %1806
    %1808 = vadd.xlane.f32.xlu0 %v1777
    %v1809 = vpop.xlane.xlu0 %1808
    %v1810 = vmul.f32 %v1779, 0.03125
    %v1811 = vmul.f32 %v1781, 0.03125
    %v1812 = vmul.f32 %v1783, 0.03125
    %v1813 = vmul.f32 %v1785, 0.03125
    %v1814 = vmul.f32 %v1787, 0.03125
    %v1815 = vmul.f32 %v1789, 0.03125
    %v1816 = vmul.f32 %v1791, 0.03125
    %v1817 = vmul.f32 %v1793, 0.03125
    %v1818 = vmul.f32 %v1795, 0.03125
    %v1819 = vmul.f32 %v1797, 0.03125
    %v1820 = vmul.f32 %v1799, 0.03125
    %v1821 = vmul.f32 %v1801, 0.03125
    %v1822 = vmul.f32 %v1803, 0.03125
    %v1823 = vmul.f32 %v1805, 0.03125
    %v1824 = vmul.f32 %v1807, 0.03125
    %v1825 = vmul.f32 %v1809, 0.03125
    %v1826 = vmul.f32 %v1762, %v1762
    %v1827 = vmul.f32 %v1763, %v1763
    %v1828 = vmul.f32 %v1764, %v1764
    %v1829 = vmul.f32 %v1765, %v1765
    %v1830 = vmul.f32 %v1766, %v1766
    %v1831 = vmul.f32 %v1767, %v1767
    %v1832 = vmul.f32 %v1768, %v1768
    %v1833 = vmul.f32 %v1769, %v1769
    %v1834 = vmul.f32 %v1770, %v1770
    %v1835 = vmul.f32 %v1771, %v1771
    %v1836 = vmul.f32 %v1772, %v1772
    %v1837 = vmul.f32 %v1773, %v1773
    %v1838 = vmul.f32 %v1774, %v1774
    %v1839 = vmul.f32 %v1775, %v1775
    %v1840 = vmul.f32 %v1776, %v1776
    %v1841 = vmul.f32 %v1777, %v1777
    %1842 = vadd.xlane.f32.xlu0 %v1826
    %v1843 = vpop.xlane.xlu0 %1842
    %1844 = vadd.xlane.f32.xlu0 %v1827
    %v1845 = vpop.xlane.xlu0 %1844
    %1846 = vadd.xlane.f32.xlu0 %v1828
    %v1847 = vpop.xlane.xlu0 %1846
    %1848 = vadd.xlane.f32.xlu0 %v1829
    %v1849 = vpop.xlane.xlu0 %1848
    %1850 = vadd.xlane.f32.xlu0 %v1830
    %v1851 = vpop.xlane.xlu0 %1850
    %1852 = vadd.xlane.f32.xlu0 %v1831
    %v1853 = vpop.xlane.xlu0 %1852
    %1854 = vadd.xlane.f32.xlu0 %v1832
    %v1855 = vpop.xlane.xlu0 %1854
    %1856 = vadd.xlane.f32.xlu0 %v1833
    %v1857 = vpop.xlane.xlu0 %1856
    %1858 = vadd.xlane.f32.xlu0 %v1834
    %v1859 = vpop.xlane.xlu0 %1858
    %1860 = vadd.xlane.f32.xlu0 %v1835
    %v1861 = vpop.xlane.xlu0 %1860
    %1862 = vadd.xlane.f32.xlu0 %v1836
    %v1863 = vpop.xlane.xlu0 %1862
    %1864 = vadd.xlane.f32.xlu0 %v1837
    %v1865 = vpop.xlane.xlu0 %1864
    %1866 = vadd.xlane.f32.xlu0 %v1838
    %v1867 = vpop.xlane.xlu0 %1866
    %1868 = vadd.xlane.f32.xlu0 %v1839
    %v1869 = vpop.xlane.xlu0 %1868
    %1870 = vadd.xlane.f32.xlu0 %v1840
    %v1871 = vpop.xlane.xlu0 %1870
    %1872 = vadd.xlane.f32.xlu0 %v1841
    %v1873 = vpop.xlane.xlu0 %1872
    %v1874 = vmul.f32 %v1843, 0.03125
    %v1875 = vmul.f32 %v1845, 0.03125
    %v1876 = vmul.f32 %v1847, 0.03125
    %v1877 = vmul.f32 %v1849, 0.03125
    %v1878 = vmul.f32 %v1851, 0.03125
    %v1879 = vmul.f32 %v1853, 0.03125
    %v1880 = vmul.f32 %v1855, 0.03125
    %v1881 = vmul.f32 %v1857, 0.03125
    %v1882 = vmul.f32 %v1859, 0.03125
    %v1883 = vmul.f32 %v1861, 0.03125
    %v1884 = vmul.f32 %v1863, 0.03125
    %v1885 = vmul.f32 %v1865, 0.03125
    %v1886 = vmul.f32 %v1867, 0.03125
    %v1887 = vmul.f32 %v1869, 0.03125
    %v1888 = vmul.f32 %v1871, 0.03125
    %v1889 = vmul.f32 %v1873, 0.03125
    %v1890 = vmul.f32 %v1810, %v1810
    %v1891 = vmul.f32 %v1811, %v1811
    %v1892 = vmul.f32 %v1812, %v1812
    %v1893 = vmul.f32 %v1813, %v1813
    %v1894 = vmul.f32 %v1814, %v1814
    %v1895 = vmul.f32 %v1815, %v1815
    %v1896 = vmul.f32 %v1816, %v1816
    %v1897 = vmul.f32 %v1817, %v1817
    %v1898 = vmul.f32 %v1818, %v1818
    %v1899 = vmul.f32 %v1819, %v1819
    %v1900 = vmul.f32 %v1820, %v1820
    %v1901 = vmul.f32 %v1821, %v1821
    %v1902 = vmul.f32 %v1822, %v1822
    %v1903 = vmul.f32 %v1823, %v1823
    %v1904 = vmul.f32 %v1824, %v1824
    %v1905 = vmul.f32 %v1825, %v1825
    %v1906 = vsub.f32 %v1874, %v1890
    %v1907 = vsub.f32 %v1875, %v1891
    %v1908 = vsub.f32 %v1876, %v1892
    %v1909 = vsub.f32 %v1877, %v1893
    %v1910 = vsub.f32 %v1878, %v1894
    %v1911 = vsub.f32 %v1879, %v1895
    %v1912 = vsub.f32 %v1880, %v1896
    %v1913 = vsub.f32 %v1881, %v1897
    %v1914 = vsub.f32 %v1882, %v1898
    %v1915 = vsub.f32 %v1883, %v1899
    %v1916 = vsub.f32 %v1884, %v1900
    %v1917 = vsub.f32 %v1885, %v1901
    %v1918 = vsub.f32 %v1886, %v1902
    %v1919 = vsub.f32 %v1887, %v1903
    %v1920 = vsub.f32 %v1888, %v1904
    %v1921 = vsub.f32 %v1889, %v1905
    %v1922 = vmax.f32 %v1906, 0.0
    %v1923 = vmax.f32 %v1907, 0.0
    %v1924 = vmax.f32 %v1908, 0.0
    %v1925 = vmax.f32 %v1909, 0.0
    %v1926 = vmax.f32 %v1910, 0.0
    %v1927 = vmax.f32 %v1911, 0.0
    %v1928 = vmax.f32 %v1912, 0.0
    %v1929 = vmax.f32 %v1913, 0.0
    %v1930 = vmax.f32 %v1914, 0.0
    %v1931 = vmax.f32 %v1915, 0.0
    %v1932 = vmax.f32 %v1916, 0.0
    %v1933 = vmax.f32 %v1917, 0.0
    %v1934 = vmax.f32 %v1918, 0.0
    %v1935 = vmax.f32 %v1919, 0.0
    %v1936 = vmax.f32 %v1920, 0.0
    %v1937 = vmax.f32 %v1921, 0.0
    %v1938 = vadd.f32 %v1922, 1e-05
    %v1939 = vadd.f32 %v1923, 1e-05
    %v1940 = vadd.f32 %v1924, 1e-05
    %v1941 = vadd.f32 %v1925, 1e-05
    %v1942 = vadd.f32 %v1926, 1e-05
    %v1943 = vadd.f32 %v1927, 1e-05
    %v1944 = vadd.f32 %v1928, 1e-05
    %v1945 = vadd.f32 %v1929, 1e-05
    %v1946 = vadd.f32 %v1930, 1e-05
    %v1947 = vadd.f32 %v1931, 1e-05
    %v1948 = vadd.f32 %v1932, 1e-05
    %v1949 = vadd.f32 %v1933, 1e-05
    %v1950 = vadd.f32 %v1934, 1e-05
    %v1951 = vadd.f32 %v1935, 1e-05
    %v1952 = vadd.f32 %v1936, 1e-05
    %v1953 = vadd.f32 %v1937, 1e-05
    %v1954 = vrsqrt.pop %v1938
    %v1955 = vmul.f32 %v1954, %v1938
    %v1956 = vmul.f32 %v1955, %v1954
    %v1957 = vmul.f32 0.5, %v1956
    %v1958 = vsub.f32 1.5, %v1957
    %v1959 = vmul.f32 %v1954, %v1958
    %vm1960 = vweird.f32 %v1938
    %vm1961 = vweird.f32 %v1954
    %vm1962 = vmor %vm1960, %vm1961
    %v1963 = vsel %vm1962, %v1954, %v1959
    %v1964 = vrsqrt.pop %v1939
    %v1965 = vmul.f32 %v1964, %v1939
    %v1966 = vmul.f32 %v1965, %v1964
    %v1967 = vmul.f32 0.5, %v1966
    %v1968 = vsub.f32 1.5, %v1967
    %v1969 = vmul.f32 %v1964, %v1968
    %vm1970 = vweird.f32 %v1939
    %vm1971 = vweird.f32 %v1964
    %vm1972 = vmor %vm1970, %vm1971
    %v1973 = vsel %vm1972, %v1964, %v1969
    %v1974 = vrsqrt.pop %v1940
    %v1975 = vmul.f32 %v1974, %v1940
    %v1976 = vmul.f32 %v1975, %v1974
    %v1977 = vmul.f32 0.5, %v1976
    %v1978 = vsub.f32 1.5, %v1977
    %v1979 = vmul.f32 %v1974, %v1978
    %vm1980 = vweird.f32 %v1940
    %vm1981 = vweird.f32 %v1974
    %vm1982 = vmor %vm1980, %vm1981
    %v1983 = vsel %vm1982, %v1974, %v1979
    %v1984 = vrsqrt.pop %v1941
    %v1985 = vmul.f32 %v1984, %v1941
    %v1986 = vmul.f32 %v1985, %v1984
    %v1987 = vmul.f32 0.5, %v1986
    %v1988 = vsub.f32 1.5, %v1987
    %v1989 = vmul.f32 %v1984, %v1988
    %vm1990 = vweird.f32 %v1941
    %vm1991 = vweird.f32 %v1984
    %vm1992 = vmor %vm1990, %vm1991
    %v1993 = vsel %vm1992, %v1984, %v1989
    %v1994 = vrsqrt.pop %v1942
    %v1995 = vmul.f32 %v1994, %v1942
    %v1996 = vmul.f32 %v1995, %v1994
    %v1997 = vmul.f32 0.5, %v1996
    %v1998 = vsub.f32 1.5, %v1997
    %v1999 = vmul.f32 %v1994, %v1998
    %vm2000 = vweird.f32 %v1942
    %vm2001 = vweird.f32 %v1994
    %vm2002 = vmor %vm2000, %vm2001
    %v2003 = vsel %vm2002, %v1994, %v1999
    %v2004 = vrsqrt.pop %v1943
    %v2005 = vmul.f32 %v2004, %v1943
    %v2006 = vmul.f32 %v2005, %v2004
    %v2007 = vmul.f32 0.5, %v2006
    %v2008 = vsub.f32 1.5, %v2007
    %v2009 = vmul.f32 %v2004, %v2008
    %vm2010 = vweird.f32 %v1943
    %vm2011 = vweird.f32 %v2004
    %vm2012 = vmor %vm2010, %vm2011
    %v2013 = vsel %vm2012, %v2004, %v2009
    %v2014 = vrsqrt.pop %v1944
    %v2015 = vmul.f32 %v2014, %v1944
    %v2016 = vmul.f32 %v2015, %v2014
    %v2017 = vmul.f32 0.5, %v2016
    %v2018 = vsub.f32 1.5, %v2017
    %v2019 = vmul.f32 %v2014, %v2018
    %vm2020 = vweird.f32 %v1944
    %vm2021 = vweird.f32 %v2014
    %vm2022 = vmor %vm2020, %vm2021
    %v2023 = vsel %vm2022, %v2014, %v2019
    %v2024 = vrsqrt.pop %v1945
    %v2025 = vmul.f32 %v2024, %v1945
    %v2026 = vmul.f32 %v2025, %v2024
    %v2027 = vmul.f32 0.5, %v2026
    %v2028 = vsub.f32 1.5, %v2027
    %v2029 = vmul.f32 %v2024, %v2028
    %vm2030 = vweird.f32 %v1945
    %vm2031 = vweird.f32 %v2024
    %vm2032 = vmor %vm2030, %vm2031
    %v2033 = vsel %vm2032, %v2024, %v2029
    %v2034 = vrsqrt.pop %v1946
    %v2035 = vmul.f32 %v2034, %v1946
    %v2036 = vmul.f32 %v2035, %v2034
    %v2037 = vmul.f32 0.5, %v2036
    %v2038 = vsub.f32 1.5, %v2037
    %v2039 = vmul.f32 %v2034, %v2038
    %vm2040 = vweird.f32 %v1946
    %vm2041 = vweird.f32 %v2034
    %vm2042 = vmor %vm2040, %vm2041
    %v2043 = vsel %vm2042, %v2034, %v2039
    %v2044 = vrsqrt.pop %v1947
    %v2045 = vmul.f32 %v2044, %v1947
    %v2046 = vmul.f32 %v2045, %v2044
    %v2047 = vmul.f32 0.5, %v2046
    %v2048 = vsub.f32 1.5, %v2047
    %v2049 = vmul.f32 %v2044, %v2048
    %vm2050 = vweird.f32 %v1947
    %vm2051 = vweird.f32 %v2044
    %vm2052 = vmor %vm2050, %vm2051
    %v2053 = vsel %vm2052, %v2044, %v2049
    %v2054 = vrsqrt.pop %v1948
    %v2055 = vmul.f32 %v2054, %v1948
    %v2056 = vmul.f32 %v2055, %v2054
    %v2057 = vmul.f32 0.5, %v2056
    %v2058 = vsub.f32 1.5, %v2057
    %v2059 = vmul.f32 %v2054, %v2058
    %vm2060 = vweird.f32 %v1948
    %vm2061 = vweird.f32 %v2054
    %vm2062 = vmor %vm2060, %vm2061
    %v2063 = vsel %vm2062, %v2054, %v2059
    %v2064 = vrsqrt.pop %v1949
    %v2065 = vmul.f32 %v2064, %v1949
    %v2066 = vmul.f32 %v2065, %v2064
    %v2067 = vmul.f32 0.5, %v2066
    %v2068 = vsub.f32 1.5, %v2067
    %v2069 = vmul.f32 %v2064, %v2068
    %vm2070 = vweird.f32 %v1949
    %vm2071 = vweird.f32 %v2064
    %vm2072 = vmor %vm2070, %vm2071
    %v2073 = vsel %vm2072, %v2064, %v2069
    %v2074 = vrsqrt.pop %v1950
    %v2075 = vmul.f32 %v2074, %v1950
    %v2076 = vmul.f32 %v2075, %v2074
    %v2077 = vmul.f32 0.5, %v2076
    %v2078 = vsub.f32 1.5, %v2077
    %v2079 = vmul.f32 %v2074, %v2078
    %vm2080 = vweird.f32 %v1950
    %vm2081 = vweird.f32 %v2074
    %vm2082 = vmor %vm2080, %vm2081
    %v2083 = vsel %vm2082, %v2074, %v2079
    %v2084 = vrsqrt.pop %v1951
    %v2085 = vmul.f32 %v2084, %v1951
    %v2086 = vmul.f32 %v2085, %v2084
    %v2087 = vmul.f32 0.5, %v2086
    %v2088 = vsub.f32 1.5, %v2087
    %v2089 = vmul.f32 %v2084, %v2088
    %vm2090 = vweird.f32 %v1951
    %vm2091 = vweird.f32 %v2084
    %vm2092 = vmor %vm2090, %vm2091
    %v2093 = vsel %vm2092, %v2084, %v2089
    %v2094 = vrsqrt.pop %v1952
    %v2095 = vmul.f32 %v2094, %v1952
    %v2096 = vmul.f32 %v2095, %v2094
    %v2097 = vmul.f32 0.5, %v2096
    %v2098 = vsub.f32 1.5, %v2097
    %v2099 = vmul.f32 %v2094, %v2098
    %vm2100 = vweird.f32 %v1952
    %vm2101 = vweird.f32 %v2094
    %vm2102 = vmor %vm2100, %vm2101
    %v2103 = vsel %vm2102, %v2094, %v2099
    %v2104 = vrsqrt.pop %v1953
    %v2105 = vmul.f32 %v2104, %v1953
    %v2106 = vmul.f32 %v2105, %v2104
    %v2107 = vmul.f32 0.5, %v2106
    %v2108 = vsub.f32 1.5, %v2107
    %v2109 = vmul.f32 %v2104, %v2108
    %vm2110 = vweird.f32 %v1953
    %vm2111 = vweird.f32 %v2104
    %vm2112 = vmor %vm2110, %vm2111
    %v2113 = vsel %vm2112, %v2104, %v2109
    %v2114 = vsub.f32 %v1762, %v1810
    %v2115 = vsub.f32 %v1763, %v1811
    %v2116 = vsub.f32 %v1764, %v1812
    %v2117 = vsub.f32 %v1765, %v1813
    %v2118 = vsub.f32 %v1766, %v1814
    %v2119 = vsub.f32 %v1767, %v1815
    %v2120 = vsub.f32 %v1768, %v1816
    %v2121 = vsub.f32 %v1769, %v1817
    %v2122 = vsub.f32 %v1770, %v1818
    %v2123 = vsub.f32 %v1771, %v1819
    %v2124 = vsub.f32 %v1772, %v1820
    %v2125 = vsub.f32 %v1773, %v1821
    %v2126 = vsub.f32 %v1774, %v1822
    %v2127 = vsub.f32 %v1775, %v1823
    %v2128 = vsub.f32 %v1776, %v1824
    %v2129 = vsub.f32 %v1777, %v1825
    %v2130 = vmul.f32 %v2114, %v1963
    %v2131 = vmul.f32 %v2115, %v1973
    %v2132 = vmul.f32 %v2116, %v1983
    %v2133 = vmul.f32 %v2117, %v1993
    %v2134 = vmul.f32 %v2118, %v2003
    %v2135 = vmul.f32 %v2119, %v2013
    %v2136 = vmul.f32 %v2120, %v2023
    %v2137 = vmul.f32 %v2121, %v2033
    %v2138 = vmul.f32 %v2122, %v2043
    %v2139 = vmul.f32 %v2123, %v2053
    %v2140 = vmul.f32 %v2124, %v2063
    %v2141 = vmul.f32 %v2125, %v2073
    %v2142 = vmul.f32 %v2126, %v2083
    %v2143 = vmul.f32 %v2127, %v2093
    %v2144 = vmul.f32 %v2128, %v2103
    %v2145 = vmul.f32 %v2129, %v2113
    %v2146 = vpack.c.bf16 %v2131, %v2130
    %v2147 = vpack.c.bf16 %v2133, %v2132
    %v2148 = vpack.c.bf16 %v2135, %v2134
    %v2149 = vpack.c.bf16 %v2137, %v2136
    %v2150 = vpack.c.bf16 %v2139, %v2138
    %v2151 = vpack.c.bf16 %v2141, %v2140
    %v2152 = vpack.c.bf16 %v2143, %v2142
    %v2153 = vpack.c.bf16 %v2145, %v2144
    %2154 = vmatpush.bf16.xpose.msra.mxu0 %v2153
    %2155 = vmatpush.bf16.xpose.msra.mxu0 %v2152
    %2156 = vmatpush.bf16.xpose.msra.mxu0 %v2151
    %2157 = vmatpush.bf16.xpose.msra.mxu0 %v2150
    %2158 = vmatpush.bf16.xpose.msra.mxu0 %v2149
    %2159 = vmatpush.bf16.xpose.msra.mxu0 %v2148
    %2160 = vmatpush.bf16.xpose.msra.mxu0 %v2147
    %2161 = vmatpush.bf16.xpose.msra.mxu0 %v2146
    %2162 = vmatmul.bf16.gmra.mxu0 %v1348
    %v2163 = vpop.f32.mrf.mxu0
    %v2164 = vadd.f32 0.0, %v2163
    %v2165 = vpop.f32.mrf.mxu0
    %2166 = vdwg.mxu0
    %v2167 = vadd.f32 %v2164, %v1758
    %s2168 = scalar_lea.vmem [#allocation6], 4
    %2169 = vst [vmem:[%s2168] sm:$0xf] %v2167
    %v2170 = vld [vmem:[#allocation2 + $0x10] sm:$0xff]
    %v2171 = vld [vmem:[#allocation2 + $0x90] sm:$0xff]
    %v2172 = vld [vmem:[#allocation2 + $0x110] sm:$0xff]
    %v2173 = vld [vmem:[#allocation2 + $0x190] sm:$0xff]
    %v2174 = vld [vmem:[#allocation2 + $0x210] sm:$0xff]
    %v2175 = vld [vmem:[#allocation2 + $0x290] sm:$0xff]
    %v2176 = vld [vmem:[#allocation2 + $0x310] sm:$0xff]
    %v2177 = vld [vmem:[#allocation2 + $0x390] sm:$0xff]
    %v2178 = vld [vmem:[#allocation2 + $0x410] sm:$0xff]
    %v2179 = vld [vmem:[#allocation2 + $0x490] sm:$0xff]
    %v2180 = vld [vmem:[#allocation2 + $0x510] sm:$0xff]
    %v2181 = vld [vmem:[#allocation2 + $0x590] sm:$0xff]
    %v2182 = vld [vmem:[#allocation2 + $0x610] sm:$0xff]
    %v2183 = vld [vmem:[#allocation2 + $0x690] sm:$0xff]
    %v2184 = vld [vmem:[#allocation2 + $0x710] sm:$0xff]
    %v2185 = vld [vmem:[#allocation2 + $0x790] sm:$0xff]
    %2186 = vadd.xlane.f32.xlu0 %v2170
    %v2187 = vpop.xlane.xlu0 %2186
    %2188 = vadd.xlane.f32.xlu0 %v2171
    %v2189 = vpop.xlane.xlu0 %2188
    %2190 = vadd.xlane.f32.xlu0 %v2172
    %v2191 = vpop.xlane.xlu0 %2190
    %2192 = vadd.xlane.f32.xlu0 %v2173
    %v2193 = vpop.xlane.xlu0 %2192
    %2194 = vadd.xlane.f32.xlu0 %v2174
    %v2195 = vpop.xlane.xlu0 %2194
    %2196 = vadd.xlane.f32.xlu0 %v2175
    %v2197 = vpop.xlane.xlu0 %2196
    %2198 = vadd.xlane.f32.xlu0 %v2176
    %v2199 = vpop.xlane.xlu0 %2198
    %2200 = vadd.xlane.f32.xlu0 %v2177
    %v2201 = vpop.xlane.xlu0 %2200
    %2202 = vadd.xlane.f32.xlu0 %v2178
    %v2203 = vpop.xlane.xlu0 %2202
    %2204 = vadd.xlane.f32.xlu0 %v2179
    %v2205 = vpop.xlane.xlu0 %2204
    %2206 = vadd.xlane.f32.xlu0 %v2180
    %v2207 = vpop.xlane.xlu0 %2206
    %2208 = vadd.xlane.f32.xlu0 %v2181
    %v2209 = vpop.xlane.xlu0 %2208
    %2210 = vadd.xlane.f32.xlu0 %v2182
    %v2211 = vpop.xlane.xlu0 %2210
    %2212 = vadd.xlane.f32.xlu0 %v2183
    %v2213 = vpop.xlane.xlu0 %2212
    %2214 = vadd.xlane.f32.xlu0 %v2184
    %v2215 = vpop.xlane.xlu0 %2214
    %2216 = vadd.xlane.f32.xlu0 %v2185
    %v2217 = vpop.xlane.xlu0 %2216
    %v2218 = vmul.f32 %v2187, 0.03125
    %v2219 = vmul.f32 %v2189, 0.03125
    %v2220 = vmul.f32 %v2191, 0.03125
    %v2221 = vmul.f32 %v2193, 0.03125
    %v2222 = vmul.f32 %v2195, 0.03125
    %v2223 = vmul.f32 %v2197, 0.03125
    %v2224 = vmul.f32 %v2199, 0.03125
    %v2225 = vmul.f32 %v2201, 0.03125
    %v2226 = vmul.f32 %v2203, 0.03125
    %v2227 = vmul.f32 %v2205, 0.03125
    %v2228 = vmul.f32 %v2207, 0.03125
    %v2229 = vmul.f32 %v2209, 0.03125
    %v2230 = vmul.f32 %v2211, 0.03125
    %v2231 = vmul.f32 %v2213, 0.03125
    %v2232 = vmul.f32 %v2215, 0.03125
    %v2233 = vmul.f32 %v2217, 0.03125
    %v2234 = vmul.f32 %v2170, %v2170
    %v2235 = vmul.f32 %v2171, %v2171
    %v2236 = vmul.f32 %v2172, %v2172
    %v2237 = vmul.f32 %v2173, %v2173
    %v2238 = vmul.f32 %v2174, %v2174
    %v2239 = vmul.f32 %v2175, %v2175
    %v2240 = vmul.f32 %v2176, %v2176
    %v2241 = vmul.f32 %v2177, %v2177
    %v2242 = vmul.f32 %v2178, %v2178
    %v2243 = vmul.f32 %v2179, %v2179
    %v2244 = vmul.f32 %v2180, %v2180
    %v2245 = vmul.f32 %v2181, %v2181
    %v2246 = vmul.f32 %v2182, %v2182
    %v2247 = vmul.f32 %v2183, %v2183
    %v2248 = vmul.f32 %v2184, %v2184
    %v2249 = vmul.f32 %v2185, %v2185
    %2250 = vadd.xlane.f32.xlu0 %v2234
    %v2251 = vpop.xlane.xlu0 %2250
    %2252 = vadd.xlane.f32.xlu0 %v2235
    %v2253 = vpop.xlane.xlu0 %2252
    %2254 = vadd.xlane.f32.xlu0 %v2236
    %v2255 = vpop.xlane.xlu0 %2254
    %2256 = vadd.xlane.f32.xlu0 %v2237
    %v2257 = vpop.xlane.xlu0 %2256
    %2258 = vadd.xlane.f32.xlu0 %v2238
    %v2259 = vpop.xlane.xlu0 %2258
    %2260 = vadd.xlane.f32.xlu0 %v2239
    %v2261 = vpop.xlane.xlu0 %2260
    %2262 = vadd.xlane.f32.xlu0 %v2240
    %v2263 = vpop.xlane.xlu0 %2262
    %2264 = vadd.xlane.f32.xlu0 %v2241
    %v2265 = vpop.xlane.xlu0 %2264
    %2266 = vadd.xlane.f32.xlu0 %v2242
    %v2267 = vpop.xlane.xlu0 %2266
    %2268 = vadd.xlane.f32.xlu0 %v2243
    %v2269 = vpop.xlane.xlu0 %2268
    %2270 = vadd.xlane.f32.xlu0 %v2244
    %v2271 = vpop.xlane.xlu0 %2270
    %2272 = vadd.xlane.f32.xlu0 %v2245
    %v2273 = vpop.xlane.xlu0 %2272
    %2274 = vadd.xlane.f32.xlu0 %v2246
    %v2275 = vpop.xlane.xlu0 %2274
    %2276 = vadd.xlane.f32.xlu0 %v2247
    %v2277 = vpop.xlane.xlu0 %2276
    %2278 = vadd.xlane.f32.xlu0 %v2248
    %v2279 = vpop.xlane.xlu0 %2278
    %2280 = vadd.xlane.f32.xlu0 %v2249
    %v2281 = vpop.xlane.xlu0 %2280
    %v2282 = vmul.f32 %v2251, 0.03125
    %v2283 = vmul.f32 %v2253, 0.03125
    %v2284 = vmul.f32 %v2255, 0.03125
    %v2285 = vmul.f32 %v2257, 0.03125
    %v2286 = vmul.f32 %v2259, 0.03125
    %v2287 = vmul.f32 %v2261, 0.03125
    %v2288 = vmul.f32 %v2263, 0.03125
    %v2289 = vmul.f32 %v2265, 0.03125
    %v2290 = vmul.f32 %v2267, 0.03125
    %v2291 = vmul.f32 %v2269, 0.03125
    %v2292 = vmul.f32 %v2271, 0.03125
    %v2293 = vmul.f32 %v2273, 0.03125
    %v2294 = vmul.f32 %v2275, 0.03125
    %v2295 = vmul.f32 %v2277, 0.03125
    %v2296 = vmul.f32 %v2279, 0.03125
    %v2297 = vmul.f32 %v2281, 0.03125
    %v2298 = vmul.f32 %v2218, %v2218
    %v2299 = vmul.f32 %v2219, %v2219
    %v2300 = vmul.f32 %v2220, %v2220
    %v2301 = vmul.f32 %v2221, %v2221
    %v2302 = vmul.f32 %v2222, %v2222
    %v2303 = vmul.f32 %v2223, %v2223
    %v2304 = vmul.f32 %v2224, %v2224
    %v2305 = vmul.f32 %v2225, %v2225
    %v2306 = vmul.f32 %v2226, %v2226
    %v2307 = vmul.f32 %v2227, %v2227
    %v2308 = vmul.f32 %v2228, %v2228
    %v2309 = vmul.f32 %v2229, %v2229
    %v2310 = vmul.f32 %v2230, %v2230
    %v2311 = vmul.f32 %v2231, %v2231
    %v2312 = vmul.f32 %v2232, %v2232
    %v2313 = vmul.f32 %v2233, %v2233
    %v2314 = vsub.f32 %v2282, %v2298
    %v2315 = vsub.f32 %v2283, %v2299
    %v2316 = vsub.f32 %v2284, %v2300
    %v2317 = vsub.f32 %v2285, %v2301
    %v2318 = vsub.f32 %v2286, %v2302
    %v2319 = vsub.f32 %v2287, %v2303
    %v2320 = vsub.f32 %v2288, %v2304
    %v2321 = vsub.f32 %v2289, %v2305
    %v2322 = vsub.f32 %v2290, %v2306
    %v2323 = vsub.f32 %v2291, %v2307
    %v2324 = vsub.f32 %v2292, %v2308
    %v2325 = vsub.f32 %v2293, %v2309
    %v2326 = vsub.f32 %v2294, %v2310
    %v2327 = vsub.f32 %v2295, %v2311
    %v2328 = vsub.f32 %v2296, %v2312
    %v2329 = vsub.f32 %v2297, %v2313
    %v2330 = vmax.f32 %v2314, 0.0
    %v2331 = vmax.f32 %v2315, 0.0
    %v2332 = vmax.f32 %v2316, 0.0
    %v2333 = vmax.f32 %v2317, 0.0
    %v2334 = vmax.f32 %v2318, 0.0
    %v2335 = vmax.f32 %v2319, 0.0
    %v2336 = vmax.f32 %v2320, 0.0
    %v2337 = vmax.f32 %v2321, 0.0
    %v2338 = vmax.f32 %v2322, 0.0
    %v2339 = vmax.f32 %v2323, 0.0
    %v2340 = vmax.f32 %v2324, 0.0
    %v2341 = vmax.f32 %v2325, 0.0
    %v2342 = vmax.f32 %v2326, 0.0
    %v2343 = vmax.f32 %v2327, 0.0
    %v2344 = vmax.f32 %v2328, 0.0
    %v2345 = vmax.f32 %v2329, 0.0
    %v2346 = vadd.f32 %v2330, 1e-05
    %v2347 = vadd.f32 %v2331, 1e-05
    %v2348 = vadd.f32 %v2332, 1e-05
    %v2349 = vadd.f32 %v2333, 1e-05
    %v2350 = vadd.f32 %v2334, 1e-05
    %v2351 = vadd.f32 %v2335, 1e-05
    %v2352 = vadd.f32 %v2336, 1e-05
    %v2353 = vadd.f32 %v2337, 1e-05
    %v2354 = vadd.f32 %v2338, 1e-05
    %v2355 = vadd.f32 %v2339, 1e-05
    %v2356 = vadd.f32 %v2340, 1e-05
    %v2357 = vadd.f32 %v2341, 1e-05
    %v2358 = vadd.f32 %v2342, 1e-05
    %v2359 = vadd.f32 %v2343, 1e-05
    %v2360 = vadd.f32 %v2344, 1e-05
    %v2361 = vadd.f32 %v2345, 1e-05
    %v2362 = vrsqrt.pop %v2346
    %v2363 = vmul.f32 %v2362, %v2346
    %v2364 = vmul.f32 %v2363, %v2362
    %v2365 = vmul.f32 0.5, %v2364
    %v2366 = vsub.f32 1.5, %v2365
    %v2367 = vmul.f32 %v2362, %v2366
    %vm2368 = vweird.f32 %v2346
    %vm2369 = vweird.f32 %v2362
    %vm2370 = vmor %vm2368, %vm2369
    %v2371 = vsel %vm2370, %v2362, %v2367
    %v2372 = vrsqrt.pop %v2347
    %v2373 = vmul.f32 %v2372, %v2347
    %v2374 = vmul.f32 %v2373, %v2372
    %v2375 = vmul.f32 0.5, %v2374
    %v2376 = vsub.f32 1.5, %v2375
    %v2377 = vmul.f32 %v2372, %v2376
    %vm2378 = vweird.f32 %v2347
    %vm2379 = vweird.f32 %v2372
    %vm2380 = vmor %vm2378, %vm2379
    %v2381 = vsel %vm2380, %v2372, %v2377
    %v2382 = vrsqrt.pop %v2348
    %v2383 = vmul.f32 %v2382, %v2348
    %v2384 = vmul.f32 %v2383, %v2382
    %v2385 = vmul.f32 0.5, %v2384
    %v2386 = vsub.f32 1.5, %v2385
    %v2387 = vmul.f32 %v2382, %v2386
    %vm2388 = vweird.f32 %v2348
    %vm2389 = vweird.f32 %v2382
    %vm2390 = vmor %vm2388, %vm2389
    %v2391 = vsel %vm2390, %v2382, %v2387
    %v2392 = vrsqrt.pop %v2349
    %v2393 = vmul.f32 %v2392, %v2349
    %v2394 = vmul.f32 %v2393, %v2392
    %v2395 = vmul.f32 0.5, %v2394
    %v2396 = vsub.f32 1.5, %v2395
    %v2397 = vmul.f32 %v2392, %v2396
    %vm2398 = vweird.f32 %v2349
    %vm2399 = vweird.f32 %v2392
    %vm2400 = vmor %vm2398, %vm2399
    %v2401 = vsel %vm2400, %v2392, %v2397
    %v2402 = vrsqrt.pop %v2350
    %v2403 = vmul.f32 %v2402, %v2350
    %v2404 = vmul.f32 %v2403, %v2402
    %v2405 = vmul.f32 0.5, %v2404
    %v2406 = vsub.f32 1.5, %v2405
    %v2407 = vmul.f32 %v2402, %v2406
    %vm2408 = vweird.f32 %v2350
    %vm2409 = vweird.f32 %v2402
    %vm2410 = vmor %vm2408, %vm2409
    %v2411 = vsel %vm2410, %v2402, %v2407
    %v2412 = vrsqrt.pop %v2351
    %v2413 = vmul.f32 %v2412, %v2351
    %v2414 = vmul.f32 %v2413, %v2412
    %v2415 = vmul.f32 0.5, %v2414
    %v2416 = vsub.f32 1.5, %v2415
    %v2417 = vmul.f32 %v2412, %v2416
    %vm2418 = vweird.f32 %v2351
    %vm2419 = vweird.f32 %v2412
    %vm2420 = vmor %vm2418, %vm2419
    %v2421 = vsel %vm2420, %v2412, %v2417
    %v2422 = vrsqrt.pop %v2352
    %v2423 = vmul.f32 %v2422, %v2352
    %v2424 = vmul.f32 %v2423, %v2422
    %v2425 = vmul.f32 0.5, %v2424
    %v2426 = vsub.f32 1.5, %v2425
    %v2427 = vmul.f32 %v2422, %v2426
    %vm2428 = vweird.f32 %v2352
    %vm2429 = vweird.f32 %v2422
    %vm2430 = vmor %vm2428, %vm2429
    %v2431 = vsel %vm2430, %v2422, %v2427
    %v2432 = vrsqrt.pop %v2353
    %v2433 = vmul.f32 %v2432, %v2353
    %v2434 = vmul.f32 %v2433, %v2432
    %v2435 = vmul.f32 0.5, %v2434
    %v2436 = vsub.f32 1.5, %v2435
    %v2437 = vmul.f32 %v2432, %v2436
    %vm2438 = vweird.f32 %v2353
    %vm2439 = vweird.f32 %v2432
    %vm2440 = vmor %vm2438, %vm2439
    %v2441 = vsel %vm2440, %v2432, %v2437
    %v2442 = vrsqrt.pop %v2354
    %v2443 = vmul.f32 %v2442, %v2354
    %v2444 = vmul.f32 %v2443, %v2442
    %v2445 = vmul.f32 0.5, %v2444
    %v2446 = vsub.f32 1.5, %v2445
    %v2447 = vmul.f32 %v2442, %v2446
    %vm2448 = vweird.f32 %v2354
    %vm2449 = vweird.f32 %v2442
    %vm2450 = vmor %vm2448, %vm2449
    %v2451 = vsel %vm2450, %v2442, %v2447
    %v2452 = vrsqrt.pop %v2355
    %v2453 = vmul.f32 %v2452, %v2355
    %v2454 = vmul.f32 %v2453, %v2452
    %v2455 = vmul.f32 0.5, %v2454
    %v2456 = vsub.f32 1.5, %v2455
    %v2457 = vmul.f32 %v2452, %v2456
    %vm2458 = vweird.f32 %v2355
    %vm2459 = vweird.f32 %v2452
    %vm2460 = vmor %vm2458, %vm2459
    %v2461 = vsel %vm2460, %v2452, %v2457
    %v2462 = vrsqrt.pop %v2356
    %v2463 = vmul.f32 %v2462, %v2356
    %v2464 = vmul.f32 %v2463, %v2462
    %v2465 = vmul.f32 0.5, %v2464
    %v2466 = vsub.f32 1.5, %v2465
    %v2467 = vmul.f32 %v2462, %v2466
    %vm2468 = vweird.f32 %v2356
    %vm2469 = vweird.f32 %v2462
    %vm2470 = vmor %vm2468, %vm2469
    %v2471 = vsel %vm2470, %v2462, %v2467
    %v2472 = vrsqrt.pop %v2357
    %v2473 = vmul.f32 %v2472, %v2357
    %v2474 = vmul.f32 %v2473, %v2472
    %v2475 = vmul.f32 0.5, %v2474
    %v2476 = vsub.f32 1.5, %v2475
    %v2477 = vmul.f32 %v2472, %v2476
    %vm2478 = vweird.f32 %v2357
    %vm2479 = vweird.f32 %v2472
    %vm2480 = vmor %vm2478, %vm2479
    %v2481 = vsel %vm2480, %v2472, %v2477
    %v2482 = vrsqrt.pop %v2358
    %v2483 = vmul.f32 %v2482, %v2358
    %v2484 = vmul.f32 %v2483, %v2482
    %v2485 = vmul.f32 0.5, %v2484
    %v2486 = vsub.f32 1.5, %v2485
    %v2487 = vmul.f32 %v2482, %v2486
    %vm2488 = vweird.f32 %v2358
    %vm2489 = vweird.f32 %v2482
    %vm2490 = vmor %vm2488, %vm2489
    %v2491 = vsel %vm2490, %v2482, %v2487
    %v2492 = vrsqrt.pop %v2359
    %v2493 = vmul.f32 %v2492, %v2359
    %v2494 = vmul.f32 %v2493, %v2492
    %v2495 = vmul.f32 0.5, %v2494
    %v2496 = vsub.f32 1.5, %v2495
    %v2497 = vmul.f32 %v2492, %v2496
    %vm2498 = vweird.f32 %v2359
    %vm2499 = vweird.f32 %v2492
    %vm2500 = vmor %vm2498, %vm2499
    %v2501 = vsel %vm2500, %v2492, %v2497
    %v2502 = vrsqrt.pop %v2360
    %v2503 = vmul.f32 %v2502, %v2360
    %v2504 = vmul.f32 %v2503, %v2502
    %v2505 = vmul.f32 0.5, %v2504
    %v2506 = vsub.f32 1.5, %v2505
    %v2507 = vmul.f32 %v2502, %v2506
    %vm2508 = vweird.f32 %v2360
    %vm2509 = vweird.f32 %v2502
    %vm2510 = vmor %vm2508, %vm2509
    %v2511 = vsel %vm2510, %v2502, %v2507
    %v2512 = vrsqrt.pop %v2361
    %v2513 = vmul.f32 %v2512, %v2361
    %v2514 = vmul.f32 %v2513, %v2512
    %v2515 = vmul.f32 0.5, %v2514
    %v2516 = vsub.f32 1.5, %v2515
    %v2517 = vmul.f32 %v2512, %v2516
    %vm2518 = vweird.f32 %v2361
    %vm2519 = vweird.f32 %v2512
    %vm2520 = vmor %vm2518, %vm2519
    %v2521 = vsel %vm2520, %v2512, %v2517
    %v2522 = vsub.f32 %v2170, %v2218
    %v2523 = vsub.f32 %v2171, %v2219
    %v2524 = vsub.f32 %v2172, %v2220
    %v2525 = vsub.f32 %v2173, %v2221
    %v2526 = vsub.f32 %v2174, %v2222
    %v2527 = vsub.f32 %v2175, %v2223
    %v2528 = vsub.f32 %v2176, %v2224
    %v2529 = vsub.f32 %v2177, %v2225
    %v2530 = vsub.f32 %v2178, %v2226
    %v2531 = vsub.f32 %v2179, %v2227
    %v2532 = vsub.f32 %v2180, %v2228
    %v2533 = vsub.f32 %v2181, %v2229
    %v2534 = vsub.f32 %v2182, %v2230
    %v2535 = vsub.f32 %v2183, %v2231
    %v2536 = vsub.f32 %v2184, %v2232
    %v2537 = vsub.f32 %v2185, %v2233
    %v2538 = vmul.f32 %v2522, %v2371
    %v2539 = vmul.f32 %v2523, %v2381
    %v2540 = vmul.f32 %v2524, %v2391
    %v2541 = vmul.f32 %v2525, %v2401
    %v2542 = vmul.f32 %v2526, %v2411
    %v2543 = vmul.f32 %v2527, %v2421
    %v2544 = vmul.f32 %v2528, %v2431
    %v2545 = vmul.f32 %v2529, %v2441
    %v2546 = vmul.f32 %v2530, %v2451
    %v2547 = vmul.f32 %v2531, %v2461
    %v2548 = vmul.f32 %v2532, %v2471
    %v2549 = vmul.f32 %v2533, %v2481
    %v2550 = vmul.f32 %v2534, %v2491
    %v2551 = vmul.f32 %v2535, %v2501
    %v2552 = vmul.f32 %v2536, %v2511
    %v2553 = vmul.f32 %v2537, %v2521
    %v2554 = vpack.c.bf16 %v2539, %v2538
    %v2555 = vpack.c.bf16 %v2541, %v2540
    %v2556 = vpack.c.bf16 %v2543, %v2542
    %v2557 = vpack.c.bf16 %v2545, %v2544
    %v2558 = vpack.c.bf16 %v2547, %v2546
    %v2559 = vpack.c.bf16 %v2549, %v2548
    %v2560 = vpack.c.bf16 %v2551, %v2550
    %v2561 = vpack.c.bf16 %v2553, %v2552
    %2562 = vmatpush.bf16.xpose.msra.mxu0 %v2561
    %2563 = vmatpush.bf16.xpose.msra.mxu0 %v2560
    %2564 = vmatpush.bf16.xpose.msra.mxu0 %v2559
    %2565 = vmatpush.bf16.xpose.msra.mxu0 %v2558
    %2566 = vmatpush.bf16.xpose.msra.mxu0 %v2557
    %2567 = vmatpush.bf16.xpose.msra.mxu0 %v2556
    %2568 = vmatpush.bf16.xpose.msra.mxu0 %v2555
    %2569 = vmatpush.bf16.xpose.msra.mxu0 %v2554
    %2570 = vmatmul.bf16.gmra.mxu0 %v1348
    %v2571 = vpop.f32.mrf.mxu0
    %v2572 = vadd.f32 0.0, %v2571
    %v2573 = vpop.f32.mrf.mxu0
    %2574 = vdwg.mxu0
    %v2575 = vadd.f32 %v2572, %v1758
    %s2576 = scalar_lea.vmem [#allocation6], 8
    %2577 = vst [vmem:[%s2576] sm:$0xf] %v2575
    %v2578 = vld [vmem:[#allocation2 + $0x18] sm:$0xff]
    %v2579 = vld [vmem:[#allocation2 + $0x98] sm:$0xff]
    %v2580 = vld [vmem:[#allocation2 + $0x118] sm:$0xff]
    %v2581 = vld [vmem:[#allocation2 + $0x198] sm:$0xff]
    %v2582 = vld [vmem:[#allocation2 + $0x218] sm:$0xff]
    %v2583 = vld [vmem:[#allocation2 + $0x298] sm:$0xff]
    %v2584 = vld [vmem:[#allocation2 + $0x318] sm:$0xff]
    %v2585 = vld [vmem:[#allocation2 + $0x398] sm:$0xff]
    %v2586 = vld [vmem:[#allocation2 + $0x418] sm:$0xff]
    %v2587 = vld [vmem:[#allocation2 + $0x498] sm:$0xff]
    %v2588 = vld [vmem:[#allocation2 + $0x518] sm:$0xff]
    %v2589 = vld [vmem:[#allocation2 + $0x598] sm:$0xff]
    %v2590 = vld [vmem:[#allocation2 + $0x618] sm:$0xff]
    %v2591 = vld [vmem:[#allocation2 + $0x698] sm:$0xff]
    %v2592 = vld [vmem:[#allocation2 + $0x718] sm:$0xff]
    %v2593 = vld [vmem:[#allocation2 + $0x798] sm:$0xff]
    %2594 = vadd.xlane.f32.xlu0 %v2578
    %v2595 = vpop.xlane.xlu0 %2594
    %2596 = vadd.xlane.f32.xlu0 %v2579
    %v2597 = vpop.xlane.xlu0 %2596
    %2598 = vadd.xlane.f32.xlu0 %v2580
    %v2599 = vpop.xlane.xlu0 %2598
    %2600 = vadd.xlane.f32.xlu0 %v2581
    %v2601 = vpop.xlane.xlu0 %2600
    %2602 = vadd.xlane.f32.xlu0 %v2582
    %v2603 = vpop.xlane.xlu0 %2602
    %2604 = vadd.xlane.f32.xlu0 %v2583
    %v2605 = vpop.xlane.xlu0 %2604
    %2606 = vadd.xlane.f32.xlu0 %v2584
    %v2607 = vpop.xlane.xlu0 %2606
    %2608 = vadd.xlane.f32.xlu0 %v2585
    %v2609 = vpop.xlane.xlu0 %2608
    %2610 = vadd.xlane.f32.xlu0 %v2586
    %v2611 = vpop.xlane.xlu0 %2610
    %2612 = vadd.xlane.f32.xlu0 %v2587
    %v2613 = vpop.xlane.xlu0 %2612
    %2614 = vadd.xlane.f32.xlu0 %v2588
    %v2615 = vpop.xlane.xlu0 %2614
    %2616 = vadd.xlane.f32.xlu0 %v2589
    %v2617 = vpop.xlane.xlu0 %2616
    %2618 = vadd.xlane.f32.xlu0 %v2590
    %v2619 = vpop.xlane.xlu0 %2618
    %2620 = vadd.xlane.f32.xlu0 %v2591
    %v2621 = vpop.xlane.xlu0 %2620
    %2622 = vadd.xlane.f32.xlu0 %v2592
    %v2623 = vpop.xlane.xlu0 %2622
    %2624 = vadd.xlane.f32.xlu0 %v2593
    %v2625 = vpop.xlane.xlu0 %2624
    %v2626 = vmul.f32 %v2595, 0.03125
    %v2627 = vmul.f32 %v2597, 0.03125
    %v2628 = vmul.f32 %v2599, 0.03125
    %v2629 = vmul.f32 %v2601, 0.03125
    %v2630 = vmul.f32 %v2603, 0.03125
    %v2631 = vmul.f32 %v2605, 0.03125
    %v2632 = vmul.f32 %v2607, 0.03125
    %v2633 = vmul.f32 %v2609, 0.03125
    %v2634 = vmul.f32 %v2611, 0.03125
    %v2635 = vmul.f32 %v2613, 0.03125
    %v2636 = vmul.f32 %v2615, 0.03125
    %v2637 = vmul.f32 %v2617, 0.03125
    %v2638 = vmul.f32 %v2619, 0.03125
    %v2639 = vmul.f32 %v2621, 0.03125
    %v2640 = vmul.f32 %v2623, 0.03125
    %v2641 = vmul.f32 %v2625, 0.03125
    %v2642 = vmul.f32 %v2578, %v2578
    %v2643 = vmul.f32 %v2579, %v2579
    %v2644 = vmul.f32 %v2580, %v2580
    %v2645 = vmul.f32 %v2581, %v2581
    %v2646 = vmul.f32 %v2582, %v2582
    %v2647 = vmul.f32 %v2583, %v2583
    %v2648 = vmul.f32 %v2584, %v2584
    %v2649 = vmul.f32 %v2585, %v2585
    %v2650 = vmul.f32 %v2586, %v2586
    %v2651 = vmul.f32 %v2587, %v2587
    %v2652 = vmul.f32 %v2588, %v2588
    %v2653 = vmul.f32 %v2589, %v2589
    %v2654 = vmul.f32 %v2590, %v2590
    %v2655 = vmul.f32 %v2591, %v2591
    %v2656 = vmul.f32 %v2592, %v2592
    %v2657 = vmul.f32 %v2593, %v2593
    %2658 = vadd.xlane.f32.xlu0 %v2642
    %v2659 = vpop.xlane.xlu0 %2658
    %2660 = vadd.xlane.f32.xlu0 %v2643
    %v2661 = vpop.xlane.xlu0 %2660
    %2662 = vadd.xlane.f32.xlu0 %v2644
    %v2663 = vpop.xlane.xlu0 %2662
    %2664 = vadd.xlane.f32.xlu0 %v2645
    %v2665 = vpop.xlane.xlu0 %2664
    %2666 = vadd.xlane.f32.xlu0 %v2646
    %v2667 = vpop.xlane.xlu0 %2666
    %2668 = vadd.xlane.f32.xlu0 %v2647
    %v2669 = vpop.xlane.xlu0 %2668
    %2670 = vadd.xlane.f32.xlu0 %v2648
    %v2671 = vpop.xlane.xlu0 %2670
    %2672 = vadd.xlane.f32.xlu0 %v2649
    %v2673 = vpop.xlane.xlu0 %2672
    %2674 = vadd.xlane.f32.xlu0 %v2650
    %v2675 = vpop.xlane.xlu0 %2674
    %2676 = vadd.xlane.f32.xlu0 %v2651
    %v2677 = vpop.xlane.xlu0 %2676
    %2678 = vadd.xlane.f32.xlu0 %v2652
    %v2679 = vpop.xlane.xlu0 %2678
    %2680 = vadd.xlane.f32.xlu0 %v2653
    %v2681 = vpop.xlane.xlu0 %2680
    %2682 = vadd.xlane.f32.xlu0 %v2654
    %v2683 = vpop.xlane.xlu0 %2682
    %2684 = vadd.xlane.f32.xlu0 %v2655
    %v2685 = vpop.xlane.xlu0 %2684
    %2686 = vadd.xlane.f32.xlu0 %v2656
    %v2687 = vpop.xlane.xlu0 %2686
    %2688 = vadd.xlane.f32.xlu0 %v2657
    %v2689 = vpop.xlane.xlu0 %2688
    %v2690 = vmul.f32 %v2659, 0.03125
    %v2691 = vmul.f32 %v2661, 0.03125
    %v2692 = vmul.f32 %v2663, 0.03125
    %v2693 = vmul.f32 %v2665, 0.03125
    %v2694 = vmul.f32 %v2667, 0.03125
    %v2695 = vmul.f32 %v2669, 0.03125
    %v2696 = vmul.f32 %v2671, 0.03125
    %v2697 = vmul.f32 %v2673, 0.03125
    %v2698 = vmul.f32 %v2675, 0.03125
    %v2699 = vmul.f32 %v2677, 0.03125
    %v2700 = vmul.f32 %v2679, 0.03125
    %v2701 = vmul.f32 %v2681, 0.03125
    %v2702 = vmul.f32 %v2683, 0.03125
    %v2703 = vmul.f32 %v2685, 0.03125
    %v2704 = vmul.f32 %v2687, 0.03125
    %v2705 = vmul.f32 %v2689, 0.03125
    %v2706 = vmul.f32 %v2626, %v2626
    %v2707 = vmul.f32 %v2627, %v2627
    %v2708 = vmul.f32 %v2628, %v2628
    %v2709 = vmul.f32 %v2629, %v2629
    %v2710 = vmul.f32 %v2630, %v2630
    %v2711 = vmul.f32 %v2631, %v2631
    %v2712 = vmul.f32 %v2632, %v2632
    %v2713 = vmul.f32 %v2633, %v2633
    %v2714 = vmul.f32 %v2634, %v2634
    %v2715 = vmul.f32 %v2635, %v2635
    %v2716 = vmul.f32 %v2636, %v2636
    %v2717 = vmul.f32 %v2637, %v2637
    %v2718 = vmul.f32 %v2638, %v2638
    %v2719 = vmul.f32 %v2639, %v2639
    %v2720 = vmul.f32 %v2640, %v2640
    %v2721 = vmul.f32 %v2641, %v2641
    %v2722 = vsub.f32 %v2690, %v2706
    %v2723 = vsub.f32 %v2691, %v2707
    %v2724 = vsub.f32 %v2692, %v2708
    %v2725 = vsub.f32 %v2693, %v2709
    %v2726 = vsub.f32 %v2694, %v2710
    %v2727 = vsub.f32 %v2695, %v2711
    %v2728 = vsub.f32 %v2696, %v2712
    %v2729 = vsub.f32 %v2697, %v2713
    %v2730 = vsub.f32 %v2698, %v2714
    %v2731 = vsub.f32 %v2699, %v2715
    %v2732 = vsub.f32 %v2700, %v2716
    %v2733 = vsub.f32 %v2701, %v2717
    %v2734 = vsub.f32 %v2702, %v2718
    %v2735 = vsub.f32 %v2703, %v2719
    %v2736 = vsub.f32 %v2704, %v2720
    %v2737 = vsub.f32 %v2705, %v2721
    %v2738 = vmax.f32 %v2722, 0.0
    %v2739 = vmax.f32 %v2723, 0.0
    %v2740 = vmax.f32 %v2724, 0.0
    %v2741 = vmax.f32 %v2725, 0.0
    %v2742 = vmax.f32 %v2726, 0.0
    %v2743 = vmax.f32 %v2727, 0.0
    %v2744 = vmax.f32 %v2728, 0.0
    %v2745 = vmax.f32 %v2729, 0.0
    %v2746 = vmax.f32 %v2730, 0.0
    %v2747 = vmax.f32 %v2731, 0.0
    %v2748 = vmax.f32 %v2732, 0.0
    %v2749 = vmax.f32 %v2733, 0.0
    %v2750 = vmax.f32 %v2734, 0.0
    %v2751 = vmax.f32 %v2735, 0.0
    %v2752 = vmax.f32 %v2736, 0.0
    %v2753 = vmax.f32 %v2737, 0.0
    %v2754 = vadd.f32 %v2738, 1e-05
    %v2755 = vadd.f32 %v2739, 1e-05
    %v2756 = vadd.f32 %v2740, 1e-05
    %v2757 = vadd.f32 %v2741, 1e-05
    %v2758 = vadd.f32 %v2742, 1e-05
    %v2759 = vadd.f32 %v2743, 1e-05
    %v2760 = vadd.f32 %v2744, 1e-05
    %v2761 = vadd.f32 %v2745, 1e-05
    %v2762 = vadd.f32 %v2746, 1e-05
    %v2763 = vadd.f32 %v2747, 1e-05
    %v2764 = vadd.f32 %v2748, 1e-05
    %v2765 = vadd.f32 %v2749, 1e-05
    %v2766 = vadd.f32 %v2750, 1e-05
    %v2767 = vadd.f32 %v2751, 1e-05
    %v2768 = vadd.f32 %v2752, 1e-05
    %v2769 = vadd.f32 %v2753, 1e-05
    %v2770 = vrsqrt.pop %v2754
    %v2771 = vmul.f32 %v2770, %v2754
    %v2772 = vmul.f32 %v2771, %v2770
    %v2773 = vmul.f32 0.5, %v2772
    %v2774 = vsub.f32 1.5, %v2773
    %v2775 = vmul.f32 %v2770, %v2774
    %vm2776 = vweird.f32 %v2754
    %vm2777 = vweird.f32 %v2770
    %vm2778 = vmor %vm2776, %vm2777
    %v2779 = vsel %vm2778, %v2770, %v2775
    %v2780 = vrsqrt.pop %v2755
    %v2781 = vmul.f32 %v2780, %v2755
    %v2782 = vmul.f32 %v2781, %v2780
    %v2783 = vmul.f32 0.5, %v2782
    %v2784 = vsub.f32 1.5, %v2783
    %v2785 = vmul.f32 %v2780, %v2784
    %vm2786 = vweird.f32 %v2755
    %vm2787 = vweird.f32 %v2780
    %vm2788 = vmor %vm2786, %vm2787
    %v2789 = vsel %vm2788, %v2780, %v2785
    %v2790 = vrsqrt.pop %v2756
    %v2791 = vmul.f32 %v2790, %v2756
    %v2792 = vmul.f32 %v2791, %v2790
    %v2793 = vmul.f32 0.5, %v2792
    %v2794 = vsub.f32 1.5, %v2793
    %v2795 = vmul.f32 %v2790, %v2794
    %vm2796 = vweird.f32 %v2756
    %vm2797 = vweird.f32 %v2790
    %vm2798 = vmor %vm2796, %vm2797
    %v2799 = vsel %vm2798, %v2790, %v2795
    %v2800 = vrsqrt.pop %v2757
    %v2801 = vmul.f32 %v2800, %v2757
    %v2802 = vmul.f32 %v2801, %v2800
    %v2803 = vmul.f32 0.5, %v2802
    %v2804 = vsub.f32 1.5, %v2803
    %v2805 = vmul.f32 %v2800, %v2804
    %vm2806 = vweird.f32 %v2757
    %vm2807 = vweird.f32 %v2800
    %vm2808 = vmor %vm2806, %vm2807
    %v2809 = vsel %vm2808, %v2800, %v2805
    %v2810 = vrsqrt.pop %v2758
    %v2811 = vmul.f32 %v2810, %v2758
    %v2812 = vmul.f32 %v2811, %v2810
    %v2813 = vmul.f32 0.5, %v2812
    %v2814 = vsub.f32 1.5, %v2813
    %v2815 = vmul.f32 %v2810, %v2814
    %vm2816 = vweird.f32 %v2758
    %vm2817 = vweird.f32 %v2810
    %vm2818 = vmor %vm2816, %vm2817
    %v2819 = vsel %vm2818, %v2810, %v2815
    %v2820 = vrsqrt.pop %v2759
    %v2821 = vmul.f32 %v2820, %v2759
    %v2822 = vmul.f32 %v2821, %v2820
    %v2823 = vmul.f32 0.5, %v2822
    %v2824 = vsub.f32 1.5, %v2823
    %v2825 = vmul.f32 %v2820, %v2824
    %vm2826 = vweird.f32 %v2759
    %vm2827 = vweird.f32 %v2820
    %vm2828 = vmor %vm2826, %vm2827
    %v2829 = vsel %vm2828, %v2820, %v2825
    %v2830 = vrsqrt.pop %v2760
    %v2831 = vmul.f32 %v2830, %v2760
    %v2832 = vmul.f32 %v2831, %v2830
    %v2833 = vmul.f32 0.5, %v2832
    %v2834 = vsub.f32 1.5, %v2833
    %v2835 = vmul.f32 %v2830, %v2834
    %vm2836 = vweird.f32 %v2760
    %vm2837 = vweird.f32 %v2830
    %vm2838 = vmor %vm2836, %vm2837
    %v2839 = vsel %vm2838, %v2830, %v2835
    %v2840 = vrsqrt.pop %v2761
    %v2841 = vmul.f32 %v2840, %v2761
    %v2842 = vmul.f32 %v2841, %v2840
    %v2843 = vmul.f32 0.5, %v2842
    %v2844 = vsub.f32 1.5, %v2843
    %v2845 = vmul.f32 %v2840, %v2844
    %vm2846 = vweird.f32 %v2761
    %vm2847 = vweird.f32 %v2840
    %vm2848 = vmor %vm2846, %vm2847
    %v2849 = vsel %vm2848, %v2840, %v2845
    %v2850 = vrsqrt.pop %v2762
    %v2851 = vmul.f32 %v2850, %v2762
    %v2852 = vmul.f32 %v2851, %v2850
    %v2853 = vmul.f32 0.5, %v2852
    %v2854 = vsub.f32 1.5, %v2853
    %v2855 = vmul.f32 %v2850, %v2854
    %vm2856 = vweird.f32 %v2762
    %vm2857 = vweird.f32 %v2850
    %vm2858 = vmor %vm2856, %vm2857
    %v2859 = vsel %vm2858, %v2850, %v2855
    %v2860 = vrsqrt.pop %v2763
    %v2861 = vmul.f32 %v2860, %v2763
    %v2862 = vmul.f32 %v2861, %v2860
    %v2863 = vmul.f32 0.5, %v2862
    %v2864 = vsub.f32 1.5, %v2863
    %v2865 = vmul.f32 %v2860, %v2864
    %vm2866 = vweird.f32 %v2763
    %vm2867 = vweird.f32 %v2860
    %vm2868 = vmor %vm2866, %vm2867
    %v2869 = vsel %vm2868, %v2860, %v2865
    %v2870 = vrsqrt.pop %v2764
    %v2871 = vmul.f32 %v2870, %v2764
    %v2872 = vmul.f32 %v2871, %v2870
    %v2873 = vmul.f32 0.5, %v2872
    %v2874 = vsub.f32 1.5, %v2873
    %v2875 = vmul.f32 %v2870, %v2874
    %vm2876 = vweird.f32 %v2764
    %vm2877 = vweird.f32 %v2870
    %vm2878 = vmor %vm2876, %vm2877
    %v2879 = vsel %vm2878, %v2870, %v2875
    %v2880 = vrsqrt.pop %v2765
    %v2881 = vmul.f32 %v2880, %v2765
    %v2882 = vmul.f32 %v2881, %v2880
    %v2883 = vmul.f32 0.5, %v2882
    %v2884 = vsub.f32 1.5, %v2883
    %v2885 = vmul.f32 %v2880, %v2884
    %vm2886 = vweird.f32 %v2765
    %vm2887 = vweird.f32 %v2880
    %vm2888 = vmor %vm2886, %vm2887
    %v2889 = vsel %vm2888, %v2880, %v2885
    %v2890 = vrsqrt.pop %v2766
    %v2891 = vmul.f32 %v2890, %v2766
    %v2892 = vmul.f32 %v2891, %v2890
    %v2893 = vmul.f32 0.5, %v2892
    %v2894 = vsub.f32 1.5, %v2893
    %v2895 = vmul.f32 %v2890, %v2894
    %vm2896 = vweird.f32 %v2766
    %vm2897 = vweird.f32 %v2890
    %vm2898 = vmor %vm2896, %vm2897
    %v2899 = vsel %vm2898, %v2890, %v2895
    %v2900 = vrsqrt.pop %v2767
    %v2901 = vmul.f32 %v2900, %v2767
    %v2902 = vmul.f32 %v2901, %v2900
    %v2903 = vmul.f32 0.5, %v2902
    %v2904 = vsub.f32 1.5, %v2903
    %v2905 = vmul.f32 %v2900, %v2904
    %vm2906 = vweird.f32 %v2767
    %vm2907 = vweird.f32 %v2900
    %vm2908 = vmor %vm2906, %vm2907
    %v2909 = vsel %vm2908, %v2900, %v2905
    %v2910 = vrsqrt.pop %v2768
    %v2911 = vmul.f32 %v2910, %v2768
    %v2912 = vmul.f32 %v2911, %v2910
    %v2913 = vmul.f32 0.5, %v2912
    %v2914 = vsub.f32 1.5, %v2913
    %v2915 = vmul.f32 %v2910, %v2914
    %vm2916 = vweird.f32 %v2768
    %vm2917 = vweird.f32 %v2910
    %vm2918 = vmor %vm2916, %vm2917
    %v2919 = vsel %vm2918, %v2910, %v2915
    %v2920 = vrsqrt.pop %v2769
    %v2921 = vmul.f32 %v2920, %v2769
    %v2922 = vmul.f32 %v2921, %v2920
    %v2923 = vmul.f32 0.5, %v2922
    %v2924 = vsub.f32 1.5, %v2923
    %v2925 = vmul.f32 %v2920, %v2924
    %vm2926 = vweird.f32 %v2769
    %vm2927 = vweird.f32 %v2920
    %vm2928 = vmor %vm2926, %vm2927
    %v2929 = vsel %vm2928, %v2920, %v2925
    %v2930 = vsub.f32 %v2578, %v2626
    %v2931 = vsub.f32 %v2579, %v2627
    %v2932 = vsub.f32 %v2580, %v2628
    %v2933 = vsub.f32 %v2581, %v2629
    %v2934 = vsub.f32 %v2582, %v2630
    %v2935 = vsub.f32 %v2583, %v2631
    %v2936 = vsub.f32 %v2584, %v2632
    %v2937 = vsub.f32 %v2585, %v2633
    %v2938 = vsub.f32 %v2586, %v2634
    %v2939 = vsub.f32 %v2587, %v2635
    %v2940 = vsub.f32 %v2588, %v2636
    %v2941 = vsub.f32 %v2589, %v2637
    %v2942 = vsub.f32 %v2590, %v2638
    %v2943 = vsub.f32 %v2591, %v2639
    %v2944 = vsub.f32 %v2592, %v2640
    %v2945 = vsub.f32 %v2593, %v2641
    %v2946 = vmul.f32 %v2930, %v2779
    %v2947 = vmul.f32 %v2931, %v2789
    %v2948 = vmul.f32 %v2932, %v2799
    %v2949 = vmul.f32 %v2933, %v2809
    %v2950 = vmul.f32 %v2934, %v2819
    %v2951 = vmul.f32 %v2935, %v2829
    %v2952 = vmul.f32 %v2936, %v2839
    %v2953 = vmul.f32 %v2937, %v2849
    %v2954 = vmul.f32 %v2938, %v2859
    %v2955 = vmul.f32 %v2939, %v2869
    %v2956 = vmul.f32 %v2940, %v2879
    %v2957 = vmul.f32 %v2941, %v2889
    %v2958 = vmul.f32 %v2942, %v2899
    %v2959 = vmul.f32 %v2943, %v2909
    %v2960 = vmul.f32 %v2944, %v2919
    %v2961 = vmul.f32 %v2945, %v2929
    %v2962 = vpack.c.bf16 %v2947, %v2946
    %v2963 = vpack.c.bf16 %v2949, %v2948
    %v2964 = vpack.c.bf16 %v2951, %v2950
    %v2965 = vpack.c.bf16 %v2953, %v2952
    %v2966 = vpack.c.bf16 %v2955, %v2954
    %v2967 = vpack.c.bf16 %v2957, %v2956
    %v2968 = vpack.c.bf16 %v2959, %v2958
    %v2969 = vpack.c.bf16 %v2961, %v2960
    %2970 = vmatpush.bf16.xpose.msra.mxu0 %v2969
    %2971 = vmatpush.bf16.xpose.msra.mxu0 %v2968
    %2972 = vmatpush.bf16.xpose.msra.mxu0 %v2967
    %2973 = vmatpush.bf16.xpose.msra.mxu0 %v2966
    %2974 = vmatpush.bf16.xpose.msra.mxu0 %v2965
    %2975 = vmatpush.bf16.xpose.msra.mxu0 %v2964
    %2976 = vmatpush.bf16.xpose.msra.mxu0 %v2963
    %2977 = vmatpush.bf16.xpose.msra.mxu0 %v2962
    %2978 = vmatmul.bf16.gmra.mxu0 %v1348
    %v2979 = vpop.f32.mrf.mxu0
    %v2980 = vadd.f32 0.0, %v2979
    %v2981 = vpop.f32.mrf.mxu0
    %2982 = vdwg.mxu0
    %v2983 = vadd.f32 %v2980, %v1758
    %s2984 = scalar_lea.vmem [#allocation6], 12
    %2985 = vst [vmem:[%s2984] sm:$0xf] %v2983
    %v2986 = vld [vmem:[#allocation2 + $0x20] sm:$0xff]
    %v2987 = vld [vmem:[#allocation2 + $0xa0] sm:$0xff]
    %v2988 = vld [vmem:[#allocation2 + $0x120] sm:$0xff]
    %v2989 = vld [vmem:[#allocation2 + $0x1a0] sm:$0xff]
    %v2990 = vld [vmem:[#allocation2 + $0x220] sm:$0xff]
    %v2991 = vld [vmem:[#allocation2 + $0x2a0] sm:$0xff]
    %v2992 = vld [vmem:[#allocation2 + $0x320] sm:$0xff]
    %v2993 = vld [vmem:[#allocation2 + $0x3a0] sm:$0xff]
    %v2994 = vld [vmem:[#allocation2 + $0x420] sm:$0xff]
    %v2995 = vld [vmem:[#allocation2 + $0x4a0] sm:$0xff]
    %v2996 = vld [vmem:[#allocation2 + $0x520] sm:$0xff]
    %v2997 = vld [vmem:[#allocation2 + $0x5a0] sm:$0xff]
    %v2998 = vld [vmem:[#allocation2 + $0x620] sm:$0xff]
    %v2999 = vld [vmem:[#allocation2 + $0x6a0] sm:$0xff]
    %v3000 = vld [vmem:[#allocation2 + $0x720] sm:$0xff]
    %v3001 = vld [vmem:[#allocation2 + $0x7a0] sm:$0xff]
    %3002 = vadd.xlane.f32.xlu0 %v2986
    %v3003 = vpop.xlane.xlu0 %3002
    %3004 = vadd.xlane.f32.xlu0 %v2987
    %v3005 = vpop.xlane.xlu0 %3004
    %3006 = vadd.xlane.f32.xlu0 %v2988
    %v3007 = vpop.xlane.xlu0 %3006
    %3008 = vadd.xlane.f32.xlu0 %v2989
    %v3009 = vpop.xlane.xlu0 %3008
    %3010 = vadd.xlane.f32.xlu0 %v2990
    %v3011 = vpop.xlane.xlu0 %3010
    %3012 = vadd.xlane.f32.xlu0 %v2991
    %v3013 = vpop.xlane.xlu0 %3012
    %3014 = vadd.xlane.f32.xlu0 %v2992
    %v3015 = vpop.xlane.xlu0 %3014
    %3016 = vadd.xlane.f32.xlu0 %v2993
    %v3017 = vpop.xlane.xlu0 %3016
    %3018 = vadd.xlane.f32.xlu0 %v2994
    %v3019 = vpop.xlane.xlu0 %3018
    %3020 = vadd.xlane.f32.xlu0 %v2995
    %v3021 = vpop.xlane.xlu0 %3020
    %3022 = vadd.xlane.f32.xlu0 %v2996
    %v3023 = vpop.xlane.xlu0 %3022
    %3024 = vadd.xlane.f32.xlu0 %v2997
    %v3025 = vpop.xlane.xlu0 %3024
    %3026 = vadd.xlane.f32.xlu0 %v2998
    %v3027 = vpop.xlane.xlu0 %3026
    %3028 = vadd.xlane.f32.xlu0 %v2999
    %v3029 = vpop.xlane.xlu0 %3028
    %3030 = vadd.xlane.f32.xlu0 %v3000
    %v3031 = vpop.xlane.xlu0 %3030
    %3032 = vadd.xlane.f32.xlu0 %v3001
    %v3033 = vpop.xlane.xlu0 %3032
    %v3034 = vmul.f32 %v3003, 0.03125
    %v3035 = vmul.f32 %v3005, 0.03125
    %v3036 = vmul.f32 %v3007, 0.03125
    %v3037 = vmul.f32 %v3009, 0.03125
    %v3038 = vmul.f32 %v3011, 0.03125
    %v3039 = vmul.f32 %v3013, 0.03125
    %v3040 = vmul.f32 %v3015, 0.03125
    %v3041 = vmul.f32 %v3017, 0.03125
    %v3042 = vmul.f32 %v3019, 0.03125
    %v3043 = vmul.f32 %v3021, 0.03125
    %v3044 = vmul.f32 %v3023, 0.03125
    %v3045 = vmul.f32 %v3025, 0.03125
    %v3046 = vmul.f32 %v3027, 0.03125
    %v3047 = vmul.f32 %v3029, 0.03125
    %v3048 = vmul.f32 %v3031, 0.03125
    %v3049 = vmul.f32 %v3033, 0.03125
    %v3050 = vmul.f32 %v2986, %v2986
    %v3051 = vmul.f32 %v2987, %v2987
    %v3052 = vmul.f32 %v2988, %v2988
    %v3053 = vmul.f32 %v2989, %v2989
    %v3054 = vmul.f32 %v2990, %v2990
    %v3055 = vmul.f32 %v2991, %v2991
    %v3056 = vmul.f32 %v2992, %v2992
    %v3057 = vmul.f32 %v2993, %v2993
    %v3058 = vmul.f32 %v2994, %v2994
    %v3059 = vmul.f32 %v2995, %v2995
    %v3060 = vmul.f32 %v2996, %v2996
    %v3061 = vmul.f32 %v2997, %v2997
    %v3062 = vmul.f32 %v2998, %v2998
    %v3063 = vmul.f32 %v2999, %v2999
    %v3064 = vmul.f32 %v3000, %v3000
    %v3065 = vmul.f32 %v3001, %v3001
    %3066 = vadd.xlane.f32.xlu0 %v3050
    %v3067 = vpop.xlane.xlu0 %3066
    %3068 = vadd.xlane.f32.xlu0 %v3051
    %v3069 = vpop.xlane.xlu0 %3068
    %3070 = vadd.xlane.f32.xlu0 %v3052
    %v3071 = vpop.xlane.xlu0 %3070
    %3072 = vadd.xlane.f32.xlu0 %v3053
    %v3073 = vpop.xlane.xlu0 %3072
    %3074 = vadd.xlane.f32.xlu0 %v3054
    %v3075 = vpop.xlane.xlu0 %3074
    %3076 = vadd.xlane.f32.xlu0 %v3055
    %v3077 = vpop.xlane.xlu0 %3076
    %3078 = vadd.xlane.f32.xlu0 %v3056
    %v3079 = vpop.xlane.xlu0 %3078
    %3080 = vadd.xlane.f32.xlu0 %v3057
    %v3081 = vpop.xlane.xlu0 %3080
    %3082 = vadd.xlane.f32.xlu0 %v3058
    %v3083 = vpop.xlane.xlu0 %3082
    %3084 = vadd.xlane.f32.xlu0 %v3059
    %v3085 = vpop.xlane.xlu0 %3084
    %3086 = vadd.xlane.f32.xlu0 %v3060
    %v3087 = vpop.xlane.xlu0 %3086
    %3088 = vadd.xlane.f32.xlu0 %v3061
    %v3089 = vpop.xlane.xlu0 %3088
    %3090 = vadd.xlane.f32.xlu0 %v3062
    %v3091 = vpop.xlane.xlu0 %3090
    %3092 = vadd.xlane.f32.xlu0 %v3063
    %v3093 = vpop.xlane.xlu0 %3092
    %3094 = vadd.xlane.f32.xlu0 %v3064
    %v3095 = vpop.xlane.xlu0 %3094
    %3096 = vadd.xlane.f32.xlu0 %v3065
    %v3097 = vpop.xlane.xlu0 %3096
    %v3098 = vmul.f32 %v3067, 0.03125
    %v3099 = vmul.f32 %v3069, 0.03125
    %v3100 = vmul.f32 %v3071, 0.03125
    %v3101 = vmul.f32 %v3073, 0.03125
    %v3102 = vmul.f32 %v3075, 0.03125
    %v3103 = vmul.f32 %v3077, 0.03125
    %v3104 = vmul.f32 %v3079, 0.03125
    %v3105 = vmul.f32 %v3081, 0.03125
    %v3106 = vmul.f32 %v3083, 0.03125
    %v3107 = vmul.f32 %v3085, 0.03125
    %v3108 = vmul.f32 %v3087, 0.03125
    %v3109 = vmul.f32 %v3089, 0.03125
    %v3110 = vmul.f32 %v3091, 0.03125
    %v3111 = vmul.f32 %v3093, 0.03125
    %v3112 = vmul.f32 %v3095, 0.03125
    %v3113 = vmul.f32 %v3097, 0.03125
    %v3114 = vmul.f32 %v3034, %v3034
    %v3115 = vmul.f32 %v3035, %v3035
    %v3116 = vmul.f32 %v3036, %v3036
    %v3117 = vmul.f32 %v3037, %v3037
    %v3118 = vmul.f32 %v3038, %v3038
    %v3119 = vmul.f32 %v3039, %v3039
    %v3120 = vmul.f32 %v3040, %v3040
    %v3121 = vmul.f32 %v3041, %v3041
    %v3122 = vmul.f32 %v3042, %v3042
    %v3123 = vmul.f32 %v3043, %v3043
    %v3124 = vmul.f32 %v3044, %v3044
    %v3125 = vmul.f32 %v3045, %v3045
    %v3126 = vmul.f32 %v3046, %v3046
    %v3127 = vmul.f32 %v3047, %v3047
    %v3128 = vmul.f32 %v3048, %v3048
    %v3129 = vmul.f32 %v3049, %v3049
    %v3130 = vsub.f32 %v3098, %v3114
    %v3131 = vsub.f32 %v3099, %v3115
    %v3132 = vsub.f32 %v3100, %v3116
    %v3133 = vsub.f32 %v3101, %v3117
    %v3134 = vsub.f32 %v3102, %v3118
    %v3135 = vsub.f32 %v3103, %v3119
    %v3136 = vsub.f32 %v3104, %v3120
    %v3137 = vsub.f32 %v3105, %v3121
    %v3138 = vsub.f32 %v3106, %v3122
    %v3139 = vsub.f32 %v3107, %v3123
    %v3140 = vsub.f32 %v3108, %v3124
    %v3141 = vsub.f32 %v3109, %v3125
    %v3142 = vsub.f32 %v3110, %v3126
    %v3143 = vsub.f32 %v3111, %v3127
    %v3144 = vsub.f32 %v3112, %v3128
    %v3145 = vsub.f32 %v3113, %v3129
    %v3146 = vmax.f32 %v3130, 0.0
    %v3147 = vmax.f32 %v3131, 0.0
    %v3148 = vmax.f32 %v3132, 0.0
    %v3149 = vmax.f32 %v3133, 0.0
    %v3150 = vmax.f32 %v3134, 0.0
    %v3151 = vmax.f32 %v3135, 0.0
    %v3152 = vmax.f32 %v3136, 0.0
    %v3153 = vmax.f32 %v3137, 0.0
    %v3154 = vmax.f32 %v3138, 0.0
    %v3155 = vmax.f32 %v3139, 0.0
    %v3156 = vmax.f32 %v3140, 0.0
    %v3157 = vmax.f32 %v3141, 0.0
    %v3158 = vmax.f32 %v3142, 0.0
    %v3159 = vmax.f32 %v3143, 0.0
    %v3160 = vmax.f32 %v3144, 0.0
    %v3161 = vmax.f32 %v3145, 0.0
    %v3162 = vadd.f32 %v3146, 1e-05
    %v3163 = vadd.f32 %v3147, 1e-05
    %v3164 = vadd.f32 %v3148, 1e-05
    %v3165 = vadd.f32 %v3149, 1e-05
    %v3166 = vadd.f32 %v3150, 1e-05
    %v3167 = vadd.f32 %v3151, 1e-05
    %v3168 = vadd.f32 %v3152, 1e-05
    %v3169 = vadd.f32 %v3153, 1e-05
    %v3170 = vadd.f32 %v3154, 1e-05
    %v3171 = vadd.f32 %v3155, 1e-05
    %v3172 = vadd.f32 %v3156, 1e-05
    %v3173 = vadd.f32 %v3157, 1e-05
    %v3174 = vadd.f32 %v3158, 1e-05
    %v3175 = vadd.f32 %v3159, 1e-05
    %v3176 = vadd.f32 %v3160, 1e-05
    %v3177 = vadd.f32 %v3161, 1e-05
    %v3178 = vrsqrt.pop %v3162
    %v3179 = vmul.f32 %v3178, %v3162
    %v3180 = vmul.f32 %v3179, %v3178
    %v3181 = vmul.f32 0.5, %v3180
    %v3182 = vsub.f32 1.5, %v3181
    %v3183 = vmul.f32 %v3178, %v3182
    %vm3184 = vweird.f32 %v3162
    %vm3185 = vweird.f32 %v3178
    %vm3186 = vmor %vm3184, %vm3185
    %v3187 = vsel %vm3186, %v3178, %v3183
    %v3188 = vrsqrt.pop %v3163
    %v3189 = vmul.f32 %v3188, %v3163
    %v3190 = vmul.f32 %v3189, %v3188
    %v3191 = vmul.f32 0.5, %v3190
    %v3192 = vsub.f32 1.5, %v3191
    %v3193 = vmul.f32 %v3188, %v3192
    %vm3194 = vweird.f32 %v3163
    %vm3195 = vweird.f32 %v3188
    %vm3196 = vmor %vm3194, %vm3195
    %v3197 = vsel %vm3196, %v3188, %v3193
    %v3198 = vrsqrt.pop %v3164
    %v3199 = vmul.f32 %v3198, %v3164
    %v3200 = vmul.f32 %v3199, %v3198
    %v3201 = vmul.f32 0.5, %v3200
    %v3202 = vsub.f32 1.5, %v3201
    %v3203 = vmul.f32 %v3198, %v3202
    %vm3204 = vweird.f32 %v3164
    %vm3205 = vweird.f32 %v3198
    %vm3206 = vmor %vm3204, %vm3205
    %v3207 = vsel %vm3206, %v3198, %v3203
    %v3208 = vrsqrt.pop %v3165
    %v3209 = vmul.f32 %v3208, %v3165
    %v3210 = vmul.f32 %v3209, %v3208
    %v3211 = vmul.f32 0.5, %v3210
    %v3212 = vsub.f32 1.5, %v3211
    %v3213 = vmul.f32 %v3208, %v3212
    %vm3214 = vweird.f32 %v3165
    %vm3215 = vweird.f32 %v3208
    %vm3216 = vmor %vm3214, %vm3215
    %v3217 = vsel %vm3216, %v3208, %v3213
    %v3218 = vrsqrt.pop %v3166
    %v3219 = vmul.f32 %v3218, %v3166
    %v3220 = vmul.f32 %v3219, %v3218
    %v3221 = vmul.f32 0.5, %v3220
    %v3222 = vsub.f32 1.5, %v3221
    %v3223 = vmul.f32 %v3218, %v3222
    %vm3224 = vweird.f32 %v3166
    %vm3225 = vweird.f32 %v3218
    %vm3226 = vmor %vm3224, %vm3225
    %v3227 = vsel %vm3226, %v3218, %v3223
    %v3228 = vrsqrt.pop %v3167
    %v3229 = vmul.f32 %v3228, %v3167
    %v3230 = vmul.f32 %v3229, %v3228
    %v3231 = vmul.f32 0.5, %v3230
    %v3232 = vsub.f32 1.5, %v3231
    %v3233 = vmul.f32 %v3228, %v3232
    %vm3234 = vweird.f32 %v3167
    %vm3235 = vweird.f32 %v3228
    %vm3236 = vmor %vm3234, %vm3235
    %v3237 = vsel %vm3236, %v3228, %v3233
    %v3238 = vrsqrt.pop %v3168
    %v3239 = vmul.f32 %v3238, %v3168
    %v3240 = vmul.f32 %v3239, %v3238
    %v3241 = vmul.f32 0.5, %v3240
    %v3242 = vsub.f32 1.5, %v3241
    %v3243 = vmul.f32 %v3238, %v3242
    %vm3244 = vweird.f32 %v3168
    %vm3245 = vweird.f32 %v3238
    %vm3246 = vmor %vm3244, %vm3245
    %v3247 = vsel %vm3246, %v3238, %v3243
    %v3248 = vrsqrt.pop %v3169
    %v3249 = vmul.f32 %v3248, %v3169
    %v3250 = vmul.f32 %v3249, %v3248
    %v3251 = vmul.f32 0.5, %v3250
    %v3252 = vsub.f32 1.5, %v3251
    %v3253 = vmul.f32 %v3248, %v3252
    %vm3254 = vweird.f32 %v3169
    %vm3255 = vweird.f32 %v3248
    %vm3256 = vmor %vm3254, %vm3255
    %v3257 = vsel %vm3256, %v3248, %v3253
    %v3258 = vrsqrt.pop %v3170
    %v3259 = vmul.f32 %v3258, %v3170
    %v3260 = vmul.f32 %v3259, %v3258
    %v3261 = vmul.f32 0.5, %v3260
    %v3262 = vsub.f32 1.5, %v3261
    %v3263 = vmul.f32 %v3258, %v3262
    %vm3264 = vweird.f32 %v3170
    %vm3265 = vweird.f32 %v3258
    %vm3266 = vmor %vm3264, %vm3265
    %v3267 = vsel %vm3266, %v3258, %v3263
    %v3268 = vrsqrt.pop %v3171
    %v3269 = vmul.f32 %v3268, %v3171
    %v3270 = vmul.f32 %v3269, %v3268
    %v3271 = vmul.f32 0.5, %v3270
    %v3272 = vsub.f32 1.5, %v3271
    %v3273 = vmul.f32 %v3268, %v3272
    %vm3274 = vweird.f32 %v3171
    %vm3275 = vweird.f32 %v3268
    %vm3276 = vmor %vm3274, %vm3275
    %v3277 = vsel %vm3276, %v3268, %v3273
    %v3278 = vrsqrt.pop %v3172
    %v3279 = vmul.f32 %v3278, %v3172
    %v3280 = vmul.f32 %v3279, %v3278
    %v3281 = vmul.f32 0.5, %v3280
    %v3282 = vsub.f32 1.5, %v3281
    %v3283 = vmul.f32 %v3278, %v3282
    %vm3284 = vweird.f32 %v3172
    %vm3285 = vweird.f32 %v3278
    %vm3286 = vmor %vm3284, %vm3285
    %v3287 = vsel %vm3286, %v3278, %v3283
    %v3288 = vrsqrt.pop %v3173
    %v3289 = vmul.f32 %v3288, %v3173
    %v3290 = vmul.f32 %v3289, %v3288
    %v3291 = vmul.f32 0.5, %v3290
    %v3292 = vsub.f32 1.5, %v3291
    %v3293 = vmul.f32 %v3288, %v3292
    %vm3294 = vweird.f32 %v3173
    %vm3295 = vweird.f32 %v3288
    %vm3296 = vmor %vm3294, %vm3295
    %v3297 = vsel %vm3296, %v3288, %v3293
    %v3298 = vrsqrt.pop %v3174
    %v3299 = vmul.f32 %v3298, %v3174
    %v3300 = vmul.f32 %v3299, %v3298
    %v3301 = vmul.f32 0.5, %v3300
    %v3302 = vsub.f32 1.5, %v3301
    %v3303 = vmul.f32 %v3298, %v3302
    %vm3304 = vweird.f32 %v3174
    %vm3305 = vweird.f32 %v3298
    %vm3306 = vmor %vm3304, %vm3305
    %v3307 = vsel %vm3306, %v3298, %v3303
    %v3308 = vrsqrt.pop %v3175
    %v3309 = vmul.f32 %v3308, %v3175
    %v3310 = vmul.f32 %v3309, %v3308
    %v3311 = vmul.f32 0.5, %v3310
    %v3312 = vsub.f32 1.5, %v3311
    %v3313 = vmul.f32 %v3308, %v3312
    %vm3314 = vweird.f32 %v3175
    %vm3315 = vweird.f32 %v3308
    %vm3316 = vmor %vm3314, %vm3315
    %v3317 = vsel %vm3316, %v3308, %v3313
    %v3318 = vrsqrt.pop %v3176
    %v3319 = vmul.f32 %v3318, %v3176
    %v3320 = vmul.f32 %v3319, %v3318
    %v3321 = vmul.f32 0.5, %v3320
    %v3322 = vsub.f32 1.5, %v3321
    %v3323 = vmul.f32 %v3318, %v3322
    %vm3324 = vweird.f32 %v3176
    %vm3325 = vweird.f32 %v3318
    %vm3326 = vmor %vm3324, %vm3325
    %v3327 = vsel %vm3326, %v3318, %v3323
    %v3328 = vrsqrt.pop %v3177
    %v3329 = vmul.f32 %v3328, %v3177
    %v3330 = vmul.f32 %v3329, %v3328
    %v3331 = vmul.f32 0.5, %v3330
    %v3332 = vsub.f32 1.5, %v3331
    %v3333 = vmul.f32 %v3328, %v3332
    %vm3334 = vweird.f32 %v3177
    %vm3335 = vweird.f32 %v3328
    %vm3336 = vmor %vm3334, %vm3335
    %v3337 = vsel %vm3336, %v3328, %v3333
    %v3338 = vsub.f32 %v2986, %v3034
    %v3339 = vsub.f32 %v2987, %v3035
    %v3340 = vsub.f32 %v2988, %v3036
    %v3341 = vsub.f32 %v2989, %v3037
    %v3342 = vsub.f32 %v2990, %v3038
    %v3343 = vsub.f32 %v2991, %v3039
    %v3344 = vsub.f32 %v2992, %v3040
    %v3345 = vsub.f32 %v2993, %v3041
    %v3346 = vsub.f32 %v2994, %v3042
    %v3347 = vsub.f32 %v2995, %v3043
    %v3348 = vsub.f32 %v2996, %v3044
    %v3349 = vsub.f32 %v2997, %v3045
    %v3350 = vsub.f32 %v2998, %v3046
    %v3351 = vsub.f32 %v2999, %v3047
    %v3352 = vsub.f32 %v3000, %v3048
    %v3353 = vsub.f32 %v3001, %v3049
    %v3354 = vmul.f32 %v3338, %v3187
    %v3355 = vmul.f32 %v3339, %v3197
    %v3356 = vmul.f32 %v3340, %v3207
    %v3357 = vmul.f32 %v3341, %v3217
    %v3358 = vmul.f32 %v3342, %v3227
    %v3359 = vmul.f32 %v3343, %v3237
    %v3360 = vmul.f32 %v3344, %v3247
    %v3361 = vmul.f32 %v3345, %v3257
    %v3362 = vmul.f32 %v3346, %v3267
    %v3363 = vmul.f32 %v3347, %v3277
    %v3364 = vmul.f32 %v3348, %v3287
    %v3365 = vmul.f32 %v3349, %v3297
    %v3366 = vmul.f32 %v3350, %v3307
    %v3367 = vmul.f32 %v3351, %v3317
    %v3368 = vmul.f32 %v3352, %v3327
    %v3369 = vmul.f32 %v3353, %v3337
    %v3370 = vpack.c.bf16 %v3355, %v3354
    %v3371 = vpack.c.bf16 %v3357, %v3356
    %v3372 = vpack.c.bf16 %v3359, %v3358
    %v3373 = vpack.c.bf16 %v3361, %v3360
    %v3374 = vpack.c.bf16 %v3363, %v3362
    %v3375 = vpack.c.bf16 %v3365, %v3364
    %v3376 = vpack.c.bf16 %v3367, %v3366
    %v3377 = vpack.c.bf16 %v3369, %v3368
    %3378 = vmatpush.bf16.xpose.msra.mxu0 %v3377
    %3379 = vmatpush.bf16.xpose.msra.mxu0 %v3376
    %3380 = vmatpush.bf16.xpose.msra.mxu0 %v3375
    %3381 = vmatpush.bf16.xpose.msra.mxu0 %v3374
    %3382 = vmatpush.bf16.xpose.msra.mxu0 %v3373
    %3383 = vmatpush.bf16.xpose.msra.mxu0 %v3372
    %3384 = vmatpush.bf16.xpose.msra.mxu0 %v3371
    %3385 = vmatpush.bf16.xpose.msra.mxu0 %v3370
    %3386 = vmatmul.bf16.gmra.mxu0 %v1348
    %v3387 = vpop.f32.mrf.mxu0
    %v3388 = vadd.f32 0.0, %v3387
    %v3389 = vpop.f32.mrf.mxu0
    %3390 = vdwg.mxu0
    %v3391 = vadd.f32 %v3388, %v1758
    %s3392 = scalar_lea.vmem [#allocation6], 16
    %3393 = vst [vmem:[%s3392] sm:$0xf] %v3391
    %v3394 = vld [vmem:[#allocation2 + $0x28] sm:$0xff]
    %v3395 = vld [vmem:[#allocation2 + $0xa8] sm:$0xff]
    %v3396 = vld [vmem:[#allocation2 + $0x128] sm:$0xff]
    %v3397 = vld [vmem:[#allocation2 + $0x1a8] sm:$0xff]
    %v3398 = vld [vmem:[#allocation2 + $0x228] sm:$0xff]
    %v3399 = vld [vmem:[#allocation2 + $0x2a8] sm:$0xff]
    %v3400 = vld [vmem:[#allocation2 + $0x328] sm:$0xff]
    %v3401 = vld [vmem:[#allocation2 + $0x3a8] sm:$0xff]
    %v3402 = vld [vmem:[#allocation2 + $0x428] sm:$0xff]
    %v3403 = vld [vmem:[#allocation2 + $0x4a8] sm:$0xff]
    %v3404 = vld [vmem:[#allocation2 + $0x528] sm:$0xff]
    %v3405 = vld [vmem:[#allocation2 + $0x5a8] sm:$0xff]
    %v3406 = vld [vmem:[#allocation2 + $0x628] sm:$0xff]
    %v3407 = vld [vmem:[#allocation2 + $0x6a8] sm:$0xff]
    %v3408 = vld [vmem:[#allocation2 + $0x728] sm:$0xff]
    %v3409 = vld [vmem:[#allocation2 + $0x7a8] sm:$0xff]
    %3410 = vadd.xlane.f32.xlu0 %v3394
    %v3411 = vpop.xlane.xlu0 %3410
    %3412 = vadd.xlane.f32.xlu0 %v3395
    %v3413 = vpop.xlane.xlu0 %3412
    %3414 = vadd.xlane.f32.xlu0 %v3396
    %v3415 = vpop.xlane.xlu0 %3414
    %3416 = vadd.xlane.f32.xlu0 %v3397
    %v3417 = vpop.xlane.xlu0 %3416
    %3418 = vadd.xlane.f32.xlu0 %v3398
    %v3419 = vpop.xlane.xlu0 %3418
    %3420 = vadd.xlane.f32.xlu0 %v3399
    %v3421 = vpop.xlane.xlu0 %3420
    %3422 = vadd.xlane.f32.xlu0 %v3400
    %v3423 = vpop.xlane.xlu0 %3422
    %3424 = vadd.xlane.f32.xlu0 %v3401
    %v3425 = vpop.xlane.xlu0 %3424
    %3426 = vadd.xlane.f32.xlu0 %v3402
    %v3427 = vpop.xlane.xlu0 %3426
    %3428 = vadd.xlane.f32.xlu0 %v3403
    %v3429 = vpop.xlane.xlu0 %3428
    %3430 = vadd.xlane.f32.xlu0 %v3404
    %v3431 = vpop.xlane.xlu0 %3430
    %3432 = vadd.xlane.f32.xlu0 %v3405
    %v3433 = vpop.xlane.xlu0 %3432
    %3434 = vadd.xlane.f32.xlu0 %v3406
    %v3435 = vpop.xlane.xlu0 %3434
    %3436 = vadd.xlane.f32.xlu0 %v3407
    %v3437 = vpop.xlane.xlu0 %3436
    %3438 = vadd.xlane.f32.xlu0 %v3408
    %v3439 = vpop.xlane.xlu0 %3438
    %3440 = vadd.xlane.f32.xlu0 %v3409
    %v3441 = vpop.xlane.xlu0 %3440
    %v3442 = vmul.f32 %v3411, 0.03125
    %v3443 = vmul.f32 %v3413, 0.03125
    %v3444 = vmul.f32 %v3415, 0.03125
    %v3445 = vmul.f32 %v3417, 0.03125
    %v3446 = vmul.f32 %v3419, 0.03125
    %v3447 = vmul.f32 %v3421, 0.03125
    %v3448 = vmul.f32 %v3423, 0.03125
    %v3449 = vmul.f32 %v3425, 0.03125
    %v3450 = vmul.f32 %v3427, 0.03125
    %v3451 = vmul.f32 %v3429, 0.03125
    %v3452 = vmul.f32 %v3431, 0.03125
    %v3453 = vmul.f32 %v3433, 0.03125
    %v3454 = vmul.f32 %v3435, 0.03125
    %v3455 = vmul.f32 %v3437, 0.03125
    %v3456 = vmul.f32 %v3439, 0.03125
    %v3457 = vmul.f32 %v3441, 0.03125
    %v3458 = vmul.f32 %v3394, %v3394
    %v3459 = vmul.f32 %v3395, %v3395
    %v3460 = vmul.f32 %v3396, %v3396
    %v3461 = vmul.f32 %v3397, %v3397
    %v3462 = vmul.f32 %v3398, %v3398
    %v3463 = vmul.f32 %v3399, %v3399
    %v3464 = vmul.f32 %v3400, %v3400
    %v3465 = vmul.f32 %v3401, %v3401
    %v3466 = vmul.f32 %v3402, %v3402
    %v3467 = vmul.f32 %v3403, %v3403
    %v3468 = vmul.f32 %v3404, %v3404
    %v3469 = vmul.f32 %v3405, %v3405
    %v3470 = vmul.f32 %v3406, %v3406
    %v3471 = vmul.f32 %v3407, %v3407
    %v3472 = vmul.f32 %v3408, %v3408
    %v3473 = vmul.f32 %v3409, %v3409
    %3474 = vadd.xlane.f32.xlu0 %v3458
    %v3475 = vpop.xlane.xlu0 %3474
    %3476 = vadd.xlane.f32.xlu0 %v3459
    %v3477 = vpop.xlane.xlu0 %3476
    %3478 = vadd.xlane.f32.xlu0 %v3460
    %v3479 = vpop.xlane.xlu0 %3478
    %3480 = vadd.xlane.f32.xlu0 %v3461
    %v3481 = vpop.xlane.xlu0 %3480
    %3482 = vadd.xlane.f32.xlu0 %v3462
    %v3483 = vpop.xlane.xlu0 %3482
    %3484 = vadd.xlane.f32.xlu0 %v3463
    %v3485 = vpop.xlane.xlu0 %3484
    %3486 = vadd.xlane.f32.xlu0 %v3464
    %v3487 = vpop.xlane.xlu0 %3486
    %3488 = vadd.xlane.f32.xlu0 %v3465
    %v3489 = vpop.xlane.xlu0 %3488
    %3490 = vadd.xlane.f32.xlu0 %v3466
    %v3491 = vpop.xlane.xlu0 %3490
    %3492 = vadd.xlane.f32.xlu0 %v3467
    %v3493 = vpop.xlane.xlu0 %3492
    %3494 = vadd.xlane.f32.xlu0 %v3468
    %v3495 = vpop.xlane.xlu0 %3494
    %3496 = vadd.xlane.f32.xlu0 %v3469
    %v3497 = vpop.xlane.xlu0 %3496
    %3498 = vadd.xlane.f32.xlu0 %v3470
    %v3499 = vpop.xlane.xlu0 %3498
    %3500 = vadd.xlane.f32.xlu0 %v3471
    %v3501 = vpop.xlane.xlu0 %3500
    %3502 = vadd.xlane.f32.xlu0 %v3472
    %v3503 = vpop.xlane.xlu0 %3502
    %3504 = vadd.xlane.f32.xlu0 %v3473
    %v3505 = vpop.xlane.xlu0 %3504
    %v3506 = vmul.f32 %v3475, 0.03125
    %v3507 = vmul.f32 %v3477, 0.03125
    %v3508 = vmul.f32 %v3479, 0.03125
    %v3509 = vmul.f32 %v3481, 0.03125
    %v3510 = vmul.f32 %v3483, 0.03125
    %v3511 = vmul.f32 %v3485, 0.03125
    %v3512 = vmul.f32 %v3487, 0.03125
    %v3513 = vmul.f32 %v3489, 0.03125
    %v3514 = vmul.f32 %v3491, 0.03125
    %v3515 = vmul.f32 %v3493, 0.03125
    %v3516 = vmul.f32 %v3495, 0.03125
    %v3517 = vmul.f32 %v3497, 0.03125
    %v3518 = vmul.f32 %v3499, 0.03125
    %v3519 = vmul.f32 %v3501, 0.03125
    %v3520 = vmul.f32 %v3503, 0.03125
    %v3521 = vmul.f32 %v3505, 0.03125
    %v3522 = vmul.f32 %v3442, %v3442
    %v3523 = vmul.f32 %v3443, %v3443
    %v3524 = vmul.f32 %v3444, %v3444
    %v3525 = vmul.f32 %v3445, %v3445
    %v3526 = vmul.f32 %v3446, %v3446
    %v3527 = vmul.f32 %v3447, %v3447
    %v3528 = vmul.f32 %v3448, %v3448
    %v3529 = vmul.f32 %v3449, %v3449
    %v3530 = vmul.f32 %v3450, %v3450
    %v3531 = vmul.f32 %v3451, %v3451
    %v3532 = vmul.f32 %v3452, %v3452
    %v3533 = vmul.f32 %v3453, %v3453
    %v3534 = vmul.f32 %v3454, %v3454
    %v3535 = vmul.f32 %v3455, %v3455
    %v3536 = vmul.f32 %v3456, %v3456
    %v3537 = vmul.f32 %v3457, %v3457
    %v3538 = vsub.f32 %v3506, %v3522
    %v3539 = vsub.f32 %v3507, %v3523
    %v3540 = vsub.f32 %v3508, %v3524
    %v3541 = vsub.f32 %v3509, %v3525
    %v3542 = vsub.f32 %v3510, %v3526
    %v3543 = vsub.f32 %v3511, %v3527
    %v3544 = vsub.f32 %v3512, %v3528
    %v3545 = vsub.f32 %v3513, %v3529
    %v3546 = vsub.f32 %v3514, %v3530
    %v3547 = vsub.f32 %v3515, %v3531
    %v3548 = vsub.f32 %v3516, %v3532
    %v3549 = vsub.f32 %v3517, %v3533
    %v3550 = vsub.f32 %v3518, %v3534
    %v3551 = vsub.f32 %v3519, %v3535
    %v3552 = vsub.f32 %v3520, %v3536
    %v3553 = vsub.f32 %v3521, %v3537
    %v3554 = vmax.f32 %v3538, 0.0
    %v3555 = vmax.f32 %v3539, 0.0
    %v3556 = vmax.f32 %v3540, 0.0
    %v3557 = vmax.f32 %v3541, 0.0
    %v3558 = vmax.f32 %v3542, 0.0
    %v3559 = vmax.f32 %v3543, 0.0
    %v3560 = vmax.f32 %v3544, 0.0
    %v3561 = vmax.f32 %v3545, 0.0
    %v3562 = vmax.f32 %v3546, 0.0
    %v3563 = vmax.f32 %v3547, 0.0
    %v3564 = vmax.f32 %v3548, 0.0
    %v3565 = vmax.f32 %v3549, 0.0
    %v3566 = vmax.f32 %v3550, 0.0
    %v3567 = vmax.f32 %v3551, 0.0
    %v3568 = vmax.f32 %v3552, 0.0
    %v3569 = vmax.f32 %v3553, 0.0
    %v3570 = vadd.f32 %v3554, 1e-05
    %v3571 = vadd.f32 %v3555, 1e-05
    %v3572 = vadd.f32 %v3556, 1e-05
    %v3573 = vadd.f32 %v3557, 1e-05
    %v3574 = vadd.f32 %v3558, 1e-05
    %v3575 = vadd.f32 %v3559, 1e-05
    %v3576 = vadd.f32 %v3560, 1e-05
    %v3577 = vadd.f32 %v3561, 1e-05
    %v3578 = vadd.f32 %v3562, 1e-05
    %v3579 = vadd.f32 %v3563, 1e-05
    %v3580 = vadd.f32 %v3564, 1e-05
    %v3581 = vadd.f32 %v3565, 1e-05
    %v3582 = vadd.f32 %v3566, 1e-05
    %v3583 = vadd.f32 %v3567, 1e-05
    %v3584 = vadd.f32 %v3568, 1e-05
    %v3585 = vadd.f32 %v3569, 1e-05
    %v3586 = vrsqrt.pop %v3570
    %v3587 = vmul.f32 %v3586, %v3570
    %v3588 = vmul.f32 %v3587, %v3586
    %v3589 = vmul.f32 0.5, %v3588
    %v3590 = vsub.f32 1.5, %v3589
    %v3591 = vmul.f32 %v3586, %v3590
    %vm3592 = vweird.f32 %v3570
    %vm3593 = vweird.f32 %v3586
    %vm3594 = vmor %vm3592, %vm3593
    %v3595 = vsel %vm3594, %v3586, %v3591
    %v3596 = vrsqrt.pop %v3571
    %v3597 = vmul.f32 %v3596, %v3571
    %v3598 = vmul.f32 %v3597, %v3596
    %v3599 = vmul.f32 0.5, %v3598
    %v3600 = vsub.f32 1.5, %v3599
    %v3601 = vmul.f32 %v3596, %v3600
    %vm3602 = vweird.f32 %v3571
    %vm3603 = vweird.f32 %v3596
    %vm3604 = vmor %vm3602, %vm3603
    %v3605 = vsel %vm3604, %v3596, %v3601
    %v3606 = vrsqrt.pop %v3572
    %v3607 = vmul.f32 %v3606, %v3572
    %v3608 = vmul.f32 %v3607, %v3606
    %v3609 = vmul.f32 0.5, %v3608
    %v3610 = vsub.f32 1.5, %v3609
    %v3611 = vmul.f32 %v3606, %v3610
    %vm3612 = vweird.f32 %v3572
    %vm3613 = vweird.f32 %v3606
    %vm3614 = vmor %vm3612, %vm3613
    %v3615 = vsel %vm3614, %v3606, %v3611
    %v3616 = vrsqrt.pop %v3573
    %v3617 = vmul.f32 %v3616, %v3573
    %v3618 = vmul.f32 %v3617, %v3616
    %v3619 = vmul.f32 0.5, %v3618
    %v3620 = vsub.f32 1.5, %v3619
    %v3621 = vmul.f32 %v3616, %v3620
    %vm3622 = vweird.f32 %v3573
    %vm3623 = vweird.f32 %v3616
    %vm3624 = vmor %vm3622, %vm3623
    %v3625 = vsel %vm3624, %v3616, %v3621
    %v3626 = vrsqrt.pop %v3574
    %v3627 = vmul.f32 %v3626, %v3574
    %v3628 = vmul.f32 %v3627, %v3626
    %v3629 = vmul.f32 0.5, %v3628
    %v3630 = vsub.f32 1.5, %v3629
    %v3631 = vmul.f32 %v3626, %v3630
    %vm3632 = vweird.f32 %v3574
    %vm3633 = vweird.f32 %v3626
    %vm3634 = vmor %vm3632, %vm3633
    %v3635 = vsel %vm3634, %v3626, %v3631
    %v3636 = vrsqrt.pop %v3575
    %v3637 = vmul.f32 %v3636, %v3575
    %v3638 = vmul.f32 %v3637, %v3636
    %v3639 = vmul.f32 0.5, %v3638
    %v3640 = vsub.f32 1.5, %v3639
    %v3641 = vmul.f32 %v3636, %v3640
    %vm3642 = vweird.f32 %v3575
    %vm3643 = vweird.f32 %v3636
    %vm3644 = vmor %vm3642, %vm3643
    %v3645 = vsel %vm3644, %v3636, %v3641
    %v3646 = vrsqrt.pop %v3576
    %v3647 = vmul.f32 %v3646, %v3576
    %v3648 = vmul.f32 %v3647, %v3646
    %v3649 = vmul.f32 0.5, %v3648
    %v3650 = vsub.f32 1.5, %v3649
    %v3651 = vmul.f32 %v3646, %v3650
    %vm3652 = vweird.f32 %v3576
    %vm3653 = vweird.f32 %v3646
    %vm3654 = vmor %vm3652, %vm3653
    %v3655 = vsel %vm3654, %v3646, %v3651
    %v3656 = vrsqrt.pop %v3577
    %v3657 = vmul.f32 %v3656, %v3577
    %v3658 = vmul.f32 %v3657, %v3656
    %v3659 = vmul.f32 0.5, %v3658
    %v3660 = vsub.f32 1.5, %v3659
    %v3661 = vmul.f32 %v3656, %v3660
    %vm3662 = vweird.f32 %v3577
    %vm3663 = vweird.f32 %v3656
    %vm3664 = vmor %vm3662, %vm3663
    %v3665 = vsel %vm3664, %v3656, %v3661
    %v3666 = vrsqrt.pop %v3578
    %v3667 = vmul.f32 %v3666, %v3578
    %v3668 = vmul.f32 %v3667, %v3666
    %v3669 = vmul.f32 0.5, %v3668
    %v3670 = vsub.f32 1.5, %v3669
    %v3671 = vmul.f32 %v3666, %v3670
    %vm3672 = vweird.f32 %v3578
    %vm3673 = vweird.f32 %v3666
    %vm3674 = vmor %vm3672, %vm3673
    %v3675 = vsel %vm3674, %v3666, %v3671
    %v3676 = vrsqrt.pop %v3579
    %v3677 = vmul.f32 %v3676, %v3579
    %v3678 = vmul.f32 %v3677, %v3676
    %v3679 = vmul.f32 0.5, %v3678
    %v3680 = vsub.f32 1.5, %v3679
    %v3681 = vmul.f32 %v3676, %v3680
    %vm3682 = vweird.f32 %v3579
    %vm3683 = vweird.f32 %v3676
    %vm3684 = vmor %vm3682, %vm3683
    %v3685 = vsel %vm3684, %v3676, %v3681
    %v3686 = vrsqrt.pop %v3580
    %v3687 = vmul.f32 %v3686, %v3580
    %v3688 = vmul.f32 %v3687, %v3686
    %v3689 = vmul.f32 0.5, %v3688
    %v3690 = vsub.f32 1.5, %v3689
    %v3691 = vmul.f32 %v3686, %v3690
    %vm3692 = vweird.f32 %v3580
    %vm3693 = vweird.f32 %v3686
    %vm3694 = vmor %vm3692, %vm3693
    %v3695 = vsel %vm3694, %v3686, %v3691
    %v3696 = vrsqrt.pop %v3581
    %v3697 = vmul.f32 %v3696, %v3581
    %v3698 = vmul.f32 %v3697, %v3696
    %v3699 = vmul.f32 0.5, %v3698
    %v3700 = vsub.f32 1.5, %v3699
    %v3701 = vmul.f32 %v3696, %v3700
    %vm3702 = vweird.f32 %v3581
    %vm3703 = vweird.f32 %v3696
    %vm3704 = vmor %vm3702, %vm3703
    %v3705 = vsel %vm3704, %v3696, %v3701
    %v3706 = vrsqrt.pop %v3582
    %v3707 = vmul.f32 %v3706, %v3582
    %v3708 = vmul.f32 %v3707, %v3706
    %v3709 = vmul.f32 0.5, %v3708
    %v3710 = vsub.f32 1.5, %v3709
    %v3711 = vmul.f32 %v3706, %v3710
    %vm3712 = vweird.f32 %v3582
    %vm3713 = vweird.f32 %v3706
    %vm3714 = vmor %vm3712, %vm3713
    %v3715 = vsel %vm3714, %v3706, %v3711
    %v3716 = vrsqrt.pop %v3583
    %v3717 = vmul.f32 %v3716, %v3583
    %v3718 = vmul.f32 %v3717, %v3716
    %v3719 = vmul.f32 0.5, %v3718
    %v3720 = vsub.f32 1.5, %v3719
    %v3721 = vmul.f32 %v3716, %v3720
    %vm3722 = vweird.f32 %v3583
    %vm3723 = vweird.f32 %v3716
    %vm3724 = vmor %vm3722, %vm3723
    %v3725 = vsel %vm3724, %v3716, %v3721
    %v3726 = vrsqrt.pop %v3584
    %v3727 = vmul.f32 %v3726, %v3584
    %v3728 = vmul.f32 %v3727, %v3726
    %v3729 = vmul.f32 0.5, %v3728
    %v3730 = vsub.f32 1.5, %v3729
    %v3731 = vmul.f32 %v3726, %v3730
    %vm3732 = vweird.f32 %v3584
    %vm3733 = vweird.f32 %v3726
    %vm3734 = vmor %vm3732, %vm3733
    %v3735 = vsel %vm3734, %v3726, %v3731
    %v3736 = vrsqrt.pop %v3585
    %v3737 = vmul.f32 %v3736, %v3585
    %v3738 = vmul.f32 %v3737, %v3736
    %v3739 = vmul.f32 0.5, %v3738
    %v3740 = vsub.f32 1.5, %v3739
    %v3741 = vmul.f32 %v3736, %v3740
    %vm3742 = vweird.f32 %v3585
    %vm3743 = vweird.f32 %v3736
    %vm3744 = vmor %vm3742, %vm3743
    %v3745 = vsel %vm3744, %v3736, %v3741
    %v3746 = vsub.f32 %v3394, %v3442
    %v3747 = vsub.f32 %v3395, %v3443
    %v3748 = vsub.f32 %v3396, %v3444
    %v3749 = vsub.f32 %v3397, %v3445
    %v3750 = vsub.f32 %v3398, %v3446
    %v3751 = vsub.f32 %v3399, %v3447
    %v3752 = vsub.f32 %v3400, %v3448
    %v3753 = vsub.f32 %v3401, %v3449
    %v3754 = vsub.f32 %v3402, %v3450
    %v3755 = vsub.f32 %v3403, %v3451
    %v3756 = vsub.f32 %v3404, %v3452
    %v3757 = vsub.f32 %v3405, %v3453
    %v3758 = vsub.f32 %v3406, %v3454
    %v3759 = vsub.f32 %v3407, %v3455
    %v3760 = vsub.f32 %v3408, %v3456
    %v3761 = vsub.f32 %v3409, %v3457
    %v3762 = vmul.f32 %v3746, %v3595
    %v3763 = vmul.f32 %v3747, %v3605
    %v3764 = vmul.f32 %v3748, %v3615
    %v3765 = vmul.f32 %v3749, %v3625
    %v3766 = vmul.f32 %v3750, %v3635
    %v3767 = vmul.f32 %v3751, %v3645
    %v3768 = vmul.f32 %v3752, %v3655
    %v3769 = vmul.f32 %v3753, %v3665
    %v3770 = vmul.f32 %v3754, %v3675
    %v3771 = vmul.f32 %v3755, %v3685
    %v3772 = vmul.f32 %v3756, %v3695
    %v3773 = vmul.f32 %v3757, %v3705
    %v3774 = vmul.f32 %v3758, %v3715
    %v3775 = vmul.f32 %v3759, %v3725
    %v3776 = vmul.f32 %v3760, %v3735
    %v3777 = vmul.f32 %v3761, %v3745
    %v3778 = vpack.c.bf16 %v3763, %v3762
    %v3779 = vpack.c.bf16 %v3765, %v3764
    %v3780 = vpack.c.bf16 %v3767, %v3766
    %v3781 = vpack.c.bf16 %v3769, %v3768
    %v3782 = vpack.c.bf16 %v3771, %v3770
    %v3783 = vpack.c.bf16 %v3773, %v3772
    %v3784 = vpack.c.bf16 %v3775, %v3774
    %v3785 = vpack.c.bf16 %v3777, %v3776
    %3786 = vmatpush.bf16.xpose.msra.mxu0 %v3785
    %3787 = vmatpush.bf16.xpose.msra.mxu0 %v3784
    %3788 = vmatpush.bf16.xpose.msra.mxu0 %v3783
    %3789 = vmatpush.bf16.xpose.msra.mxu0 %v3782
    %3790 = vmatpush.bf16.xpose.msra.mxu0 %v3781
    %3791 = vmatpush.bf16.xpose.msra.mxu0 %v3780
    %3792 = vmatpush.bf16.xpose.msra.mxu0 %v3779
    %3793 = vmatpush.bf16.xpose.msra.mxu0 %v3778
    %3794 = vmatmul.bf16.gmra.mxu0 %v1348
    %v3795 = vpop.f32.mrf.mxu0
    %v3796 = vadd.f32 0.0, %v3795
    %v3797 = vpop.f32.mrf.mxu0
    %3798 = vdwg.mxu0
    %v3799 = vadd.f32 %v3796, %v1758
    %s3800 = scalar_lea.vmem [#allocation6], 20
    %3801 = vst [vmem:[%s3800] sm:$0xf] %v3799
    %v3802 = vld [vmem:[#allocation2 + $0x30] sm:$0xff]
    %v3803 = vld [vmem:[#allocation2 + $0xb0] sm:$0xff]
    %v3804 = vld [vmem:[#allocation2 + $0x130] sm:$0xff]
    %v3805 = vld [vmem:[#allocation2 + $0x1b0] sm:$0xff]
    %v3806 = vld [vmem:[#allocation2 + $0x230] sm:$0xff]
    %v3807 = vld [vmem:[#allocation2 + $0x2b0] sm:$0xff]
    %v3808 = vld [vmem:[#allocation2 + $0x330] sm:$0xff]
    %v3809 = vld [vmem:[#allocation2 + $0x3b0] sm:$0xff]
    %v3810 = vld [vmem:[#allocation2 + $0x430] sm:$0xff]
    %v3811 = vld [vmem:[#allocation2 + $0x4b0] sm:$0xff]
    %v3812 = vld [vmem:[#allocation2 + $0x530] sm:$0xff]
    %v3813 = vld [vmem:[#allocation2 + $0x5b0] sm:$0xff]
    %v3814 = vld [vmem:[#allocation2 + $0x630] sm:$0xff]
    %v3815 = vld [vmem:[#allocation2 + $0x6b0] sm:$0xff]
    %v3816 = vld [vmem:[#allocation2 + $0x730] sm:$0xff]
    %v3817 = vld [vmem:[#allocation2 + $0x7b0] sm:$0xff]
    %3818 = vadd.xlane.f32.xlu0 %v3802
    %v3819 = vpop.xlane.xlu0 %3818
    %3820 = vadd.xlane.f32.xlu0 %v3803
    %v3821 = vpop.xlane.xlu0 %3820
    %3822 = vadd.xlane.f32.xlu0 %v3804
    %v3823 = vpop.xlane.xlu0 %3822
    %3824 = vadd.xlane.f32.xlu0 %v3805
    %v3825 = vpop.xlane.xlu0 %3824
    %3826 = vadd.xlane.f32.xlu0 %v3806
    %v3827 = vpop.xlane.xlu0 %3826
    %3828 = vadd.xlane.f32.xlu0 %v3807
    %v3829 = vpop.xlane.xlu0 %3828
    %3830 = vadd.xlane.f32.xlu0 %v3808
    %v3831 = vpop.xlane.xlu0 %3830
    %3832 = vadd.xlane.f32.xlu0 %v3809
    %v3833 = vpop.xlane.xlu0 %3832
    %3834 = vadd.xlane.f32.xlu0 %v3810
    %v3835 = vpop.xlane.xlu0 %3834
    %3836 = vadd.xlane.f32.xlu0 %v3811
    %v3837 = vpop.xlane.xlu0 %3836
    %3838 = vadd.xlane.f32.xlu0 %v3812
    %v3839 = vpop.xlane.xlu0 %3838
    %3840 = vadd.xlane.f32.xlu0 %v3813
    %v3841 = vpop.xlane.xlu0 %3840
    %3842 = vadd.xlane.f32.xlu0 %v3814
    %v3843 = vpop.xlane.xlu0 %3842
    %3844 = vadd.xlane.f32.xlu0 %v3815
    %v3845 = vpop.xlane.xlu0 %3844
    %3846 = vadd.xlane.f32.xlu0 %v3816
    %v3847 = vpop.xlane.xlu0 %3846
    %3848 = vadd.xlane.f32.xlu0 %v3817
    %v3849 = vpop.xlane.xlu0 %3848
    %v3850 = vmul.f32 %v3819, 0.03125
    %v3851 = vmul.f32 %v3821, 0.03125
    %v3852 = vmul.f32 %v3823, 0.03125
    %v3853 = vmul.f32 %v3825, 0.03125
    %v3854 = vmul.f32 %v3827, 0.03125
    %v3855 = vmul.f32 %v3829, 0.03125
    %v3856 = vmul.f32 %v3831, 0.03125
    %v3857 = vmul.f32 %v3833, 0.03125
    %v3858 = vmul.f32 %v3835, 0.03125
    %v3859 = vmul.f32 %v3837, 0.03125
    %v3860 = vmul.f32 %v3839, 0.03125
    %v3861 = vmul.f32 %v3841, 0.03125
    %v3862 = vmul.f32 %v3843, 0.03125
    %v3863 = vmul.f32 %v3845, 0.03125
    %v3864 = vmul.f32 %v3847, 0.03125
    %v3865 = vmul.f32 %v3849, 0.03125
    %v3866 = vmul.f32 %v3802, %v3802
    %v3867 = vmul.f32 %v3803, %v3803
    %v3868 = vmul.f32 %v3804, %v3804
    %v3869 = vmul.f32 %v3805, %v3805
    %v3870 = vmul.f32 %v3806, %v3806
    %v3871 = vmul.f32 %v3807, %v3807
    %v3872 = vmul.f32 %v3808, %v3808
    %v3873 = vmul.f32 %v3809, %v3809
    %v3874 = vmul.f32 %v3810, %v3810
    %v3875 = vmul.f32 %v3811, %v3811
    %v3876 = vmul.f32 %v3812, %v3812
    %v3877 = vmul.f32 %v3813, %v3813
    %v3878 = vmul.f32 %v3814, %v3814
    %v3879 = vmul.f32 %v3815, %v3815
    %v3880 = vmul.f32 %v3816, %v3816
    %v3881 = vmul.f32 %v3817, %v3817
    %3882 = vadd.xlane.f32.xlu0 %v3866
    %v3883 = vpop.xlane.xlu0 %3882
    %3884 = vadd.xlane.f32.xlu0 %v3867
    %v3885 = vpop.xlane.xlu0 %3884
    %3886 = vadd.xlane.f32.xlu0 %v3868
    %v3887 = vpop.xlane.xlu0 %3886
    %3888 = vadd.xlane.f32.xlu0 %v3869
    %v3889 = vpop.xlane.xlu0 %3888
    %3890 = vadd.xlane.f32.xlu0 %v3870
    %v3891 = vpop.xlane.xlu0 %3890
    %3892 = vadd.xlane.f32.xlu0 %v3871
    %v3893 = vpop.xlane.xlu0 %3892
    %3894 = vadd.xlane.f32.xlu0 %v3872
    %v3895 = vpop.xlane.xlu0 %3894
    %3896 = vadd.xlane.f32.xlu0 %v3873
    %v3897 = vpop.xlane.xlu0 %3896
    %3898 = vadd.xlane.f32.xlu0 %v3874
    %v3899 = vpop.xlane.xlu0 %3898
    %3900 = vadd.xlane.f32.xlu0 %v3875
    %v3901 = vpop.xlane.xlu0 %3900
    %3902 = vadd.xlane.f32.xlu0 %v3876
    %v3903 = vpop.xlane.xlu0 %3902
    %3904 = vadd.xlane.f32.xlu0 %v3877
    %v3905 = vpop.xlane.xlu0 %3904
    %3906 = vadd.xlane.f32.xlu0 %v3878
    %v3907 = vpop.xlane.xlu0 %3906
    %3908 = vadd.xlane.f32.xlu0 %v3879
    %v3909 = vpop.xlane.xlu0 %3908
    %3910 = vadd.xlane.f32.xlu0 %v3880
    %v3911 = vpop.xlane.xlu0 %3910
    %3912 = vadd.xlane.f32.xlu0 %v3881
    %v3913 = vpop.xlane.xlu0 %3912
    %v3914 = vmul.f32 %v3883, 0.03125
    %v3915 = vmul.f32 %v3885, 0.03125
    %v3916 = vmul.f32 %v3887, 0.03125
    %v3917 = vmul.f32 %v3889, 0.03125
    %v3918 = vmul.f32 %v3891, 0.03125
    %v3919 = vmul.f32 %v3893, 0.03125
    %v3920 = vmul.f32 %v3895, 0.03125
    %v3921 = vmul.f32 %v3897, 0.03125
    %v3922 = vmul.f32 %v3899, 0.03125
    %v3923 = vmul.f32 %v3901, 0.03125
    %v3924 = vmul.f32 %v3903, 0.03125
    %v3925 = vmul.f32 %v3905, 0.03125
    %v3926 = vmul.f32 %v3907, 0.03125
    %v3927 = vmul.f32 %v3909, 0.03125
    %v3928 = vmul.f32 %v3911, 0.03125
    %v3929 = vmul.f32 %v3913, 0.03125
    %v3930 = vmul.f32 %v3850, %v3850
    %v3931 = vmul.f32 %v3851, %v3851
    %v3932 = vmul.f32 %v3852, %v3852
    %v3933 = vmul.f32 %v3853, %v3853
    %v3934 = vmul.f32 %v3854, %v3854
    %v3935 = vmul.f32 %v3855, %v3855
    %v3936 = vmul.f32 %v3856, %v3856
    %v3937 = vmul.f32 %v3857, %v3857
    %v3938 = vmul.f32 %v3858, %v3858
    %v3939 = vmul.f32 %v3859, %v3859
    %v3940 = vmul.f32 %v3860, %v3860
    %v3941 = vmul.f32 %v3861, %v3861
    %v3942 = vmul.f32 %v3862, %v3862
    %v3943 = vmul.f32 %v3863, %v3863
    %v3944 = vmul.f32 %v3864, %v3864
    %v3945 = vmul.f32 %v3865, %v3865
    %v3946 = vsub.f32 %v3914, %v3930
    %v3947 = vsub.f32 %v3915, %v3931
    %v3948 = vsub.f32 %v3916, %v3932
    %v3949 = vsub.f32 %v3917, %v3933
    %v3950 = vsub.f32 %v3918, %v3934
    %v3951 = vsub.f32 %v3919, %v3935
    %v3952 = vsub.f32 %v3920, %v3936
    %v3953 = vsub.f32 %v3921, %v3937
    %v3954 = vsub.f32 %v3922, %v3938
    %v3955 = vsub.f32 %v3923, %v3939
    %v3956 = vsub.f32 %v3924, %v3940
    %v3957 = vsub.f32 %v3925, %v3941
    %v3958 = vsub.f32 %v3926, %v3942
    %v3959 = vsub.f32 %v3927, %v3943
    %v3960 = vsub.f32 %v3928, %v3944
    %v3961 = vsub.f32 %v3929, %v3945
    %v3962 = vmax.f32 %v3946, 0.0
    %v3963 = vmax.f32 %v3947, 0.0
    %v3964 = vmax.f32 %v3948, 0.0
    %v3965 = vmax.f32 %v3949, 0.0
    %v3966 = vmax.f32 %v3950, 0.0
    %v3967 = vmax.f32 %v3951, 0.0
    %v3968 = vmax.f32 %v3952, 0.0
    %v3969 = vmax.f32 %v3953, 0.0
    %v3970 = vmax.f32 %v3954, 0.0
    %v3971 = vmax.f32 %v3955, 0.0
    %v3972 = vmax.f32 %v3956, 0.0
    %v3973 = vmax.f32 %v3957, 0.0
    %v3974 = vmax.f32 %v3958, 0.0
    %v3975 = vmax.f32 %v3959, 0.0
    %v3976 = vmax.f32 %v3960, 0.0
    %v3977 = vmax.f32 %v3961, 0.0
    %v3978 = vadd.f32 %v3962, 1e-05
    %v3979 = vadd.f32 %v3963, 1e-05
    %v3980 = vadd.f32 %v3964, 1e-05
    %v3981 = vadd.f32 %v3965, 1e-05
    %v3982 = vadd.f32 %v3966, 1e-05
    %v3983 = vadd.f32 %v3967, 1e-05
    %v3984 = vadd.f32 %v3968, 1e-05
    %v3985 = vadd.f32 %v3969, 1e-05
    %v3986 = vadd.f32 %v3970, 1e-05
    %v3987 = vadd.f32 %v3971, 1e-05
    %v3988 = vadd.f32 %v3972, 1e-05
    %v3989 = vadd.f32 %v3973, 1e-05
    %v3990 = vadd.f32 %v3974, 1e-05
    %v3991 = vadd.f32 %v3975, 1e-05
    %v3992 = vadd.f32 %v3976, 1e-05
    %v3993 = vadd.f32 %v3977, 1e-05
    %v3994 = vrsqrt.pop %v3978
    %v3995 = vmul.f32 %v3994, %v3978
    %v3996 = vmul.f32 %v3995, %v3994
    %v3997 = vmul.f32 0.5, %v3996
    %v3998 = vsub.f32 1.5, %v3997
    %v3999 = vmul.f32 %v3994, %v3998
    %vm4000 = vweird.f32 %v3978
    %vm4001 = vweird.f32 %v3994
    %vm4002 = vmor %vm4000, %vm4001
    %v4003 = vsel %vm4002, %v3994, %v3999
    %v4004 = vrsqrt.pop %v3979
    %v4005 = vmul.f32 %v4004, %v3979
    %v4006 = vmul.f32 %v4005, %v4004
    %v4007 = vmul.f32 0.5, %v4006
    %v4008 = vsub.f32 1.5, %v4007
    %v4009 = vmul.f32 %v4004, %v4008
    %vm4010 = vweird.f32 %v3979
    %vm4011 = vweird.f32 %v4004
    %vm4012 = vmor %vm4010, %vm4011
    %v4013 = vsel %vm4012, %v4004, %v4009
    %v4014 = vrsqrt.pop %v3980
    %v4015 = vmul.f32 %v4014, %v3980
    %v4016 = vmul.f32 %v4015, %v4014
    %v4017 = vmul.f32 0.5, %v4016
    %v4018 = vsub.f32 1.5, %v4017
    %v4019 = vmul.f32 %v4014, %v4018
    %vm4020 = vweird.f32 %v3980
    %vm4021 = vweird.f32 %v4014
    %vm4022 = vmor %vm4020, %vm4021
    %v4023 = vsel %vm4022, %v4014, %v4019
    %v4024 = vrsqrt.pop %v3981
    %v4025 = vmul.f32 %v4024, %v3981
    %v4026 = vmul.f32 %v4025, %v4024
    %v4027 = vmul.f32 0.5, %v4026
    %v4028 = vsub.f32 1.5, %v4027
    %v4029 = vmul.f32 %v4024, %v4028
    %vm4030 = vweird.f32 %v3981
    %vm4031 = vweird.f32 %v4024
    %vm4032 = vmor %vm4030, %vm4031
    %v4033 = vsel %vm4032, %v4024, %v4029
    %v4034 = vrsqrt.pop %v3982
    %v4035 = vmul.f32 %v4034, %v3982
    %v4036 = vmul.f32 %v4035, %v4034
    %v4037 = vmul.f32 0.5, %v4036
    %v4038 = vsub.f32 1.5, %v4037
    %v4039 = vmul.f32 %v4034, %v4038
    %vm4040 = vweird.f32 %v3982
    %vm4041 = vweird.f32 %v4034
    %vm4042 = vmor %vm4040, %vm4041
    %v4043 = vsel %vm4042, %v4034, %v4039
    %v4044 = vrsqrt.pop %v3983
    %v4045 = vmul.f32 %v4044, %v3983
    %v4046 = vmul.f32 %v4045, %v4044
    %v4047 = vmul.f32 0.5, %v4046
    %v4048 = vsub.f32 1.5, %v4047
    %v4049 = vmul.f32 %v4044, %v4048
    %vm4050 = vweird.f32 %v3983
    %vm4051 = vweird.f32 %v4044
    %vm4052 = vmor %vm4050, %vm4051
    %v4053 = vsel %vm4052, %v4044, %v4049
    %v4054 = vrsqrt.pop %v3984
    %v4055 = vmul.f32 %v4054, %v3984
    %v4056 = vmul.f32 %v4055, %v4054
    %v4057 = vmul.f32 0.5, %v4056
    %v4058 = vsub.f32 1.5, %v4057
    %v4059 = vmul.f32 %v4054, %v4058
    %vm4060 = vweird.f32 %v3984
    %vm4061 = vweird.f32 %v4054
    %vm4062 = vmor %vm4060, %vm4061
    %v4063 = vsel %vm4062, %v4054, %v4059
    %v4064 = vrsqrt.pop %v3985
    %v4065 = vmul.f32 %v4064, %v3985
    %v4066 = vmul.f32 %v4065, %v4064
    %v4067 = vmul.f32 0.5, %v4066
    %v4068 = vsub.f32 1.5, %v4067
    %v4069 = vmul.f32 %v4064, %v4068
    %vm4070 = vweird.f32 %v3985
    %vm4071 = vweird.f32 %v4064
    %vm4072 = vmor %vm4070, %vm4071
    %v4073 = vsel %vm4072, %v4064, %v4069
    %v4074 = vrsqrt.pop %v3986
    %v4075 = vmul.f32 %v4074, %v3986
    %v4076 = vmul.f32 %v4075, %v4074
    %v4077 = vmul.f32 0.5, %v4076
    %v4078 = vsub.f32 1.5, %v4077
    %v4079 = vmul.f32 %v4074, %v4078
    %vm4080 = vweird.f32 %v3986
    %vm4081 = vweird.f32 %v4074
    %vm4082 = vmor %vm4080, %vm4081
    %v4083 = vsel %vm4082, %v4074, %v4079
    %v4084 = vrsqrt.pop %v3987
    %v4085 = vmul.f32 %v4084, %v3987
    %v4086 = vmul.f32 %v4085, %v4084
    %v4087 = vmul.f32 0.5, %v4086
    %v4088 = vsub.f32 1.5, %v4087
    %v4089 = vmul.f32 %v4084, %v4088
    %vm4090 = vweird.f32 %v3987
    %vm4091 = vweird.f32 %v4084
    %vm4092 = vmor %vm4090, %vm4091
    %v4093 = vsel %vm4092, %v4084, %v4089
    %v4094 = vrsqrt.pop %v3988
    %v4095 = vmul.f32 %v4094, %v3988
    %v4096 = vmul.f32 %v4095, %v4094
    %v4097 = vmul.f32 0.5, %v4096
    %v4098 = vsub.f32 1.5, %v4097
    %v4099 = vmul.f32 %v4094, %v4098
    %vm4100 = vweird.f32 %v3988
    %vm4101 = vweird.f32 %v4094
    %vm4102 = vmor %vm4100, %vm4101
    %v4103 = vsel %vm4102, %v4094, %v4099
    %v4104 = vrsqrt.pop %v3989
    %v4105 = vmul.f32 %v4104, %v3989
    %v4106 = vmul.f32 %v4105, %v4104
    %v4107 = vmul.f32 0.5, %v4106
    %v4108 = vsub.f32 1.5, %v4107
    %v4109 = vmul.f32 %v4104, %v4108
    %vm4110 = vweird.f32 %v3989
    %vm4111 = vweird.f32 %v4104
    %vm4112 = vmor %vm4110, %vm4111
    %v4113 = vsel %vm4112, %v4104, %v4109
    %v4114 = vrsqrt.pop %v3990
    %v4115 = vmul.f32 %v4114, %v3990
    %v4116 = vmul.f32 %v4115, %v4114
    %v4117 = vmul.f32 0.5, %v4116
    %v4118 = vsub.f32 1.5, %v4117
    %v4119 = vmul.f32 %v4114, %v4118
    %vm4120 = vweird.f32 %v3990
    %vm4121 = vweird.f32 %v4114
    %vm4122 = vmor %vm4120, %vm4121
    %v4123 = vsel %vm4122, %v4114, %v4119
    %v4124 = vrsqrt.pop %v3991
    %v4125 = vmul.f32 %v4124, %v3991
    %v4126 = vmul.f32 %v4125, %v4124
    %v4127 = vmul.f32 0.5, %v4126
    %v4128 = vsub.f32 1.5, %v4127
    %v4129 = vmul.f32 %v4124, %v4128
    %vm4130 = vweird.f32 %v3991
    %vm4131 = vweird.f32 %v4124
    %vm4132 = vmor %vm4130, %vm4131
    %v4133 = vsel %vm4132, %v4124, %v4129
    %v4134 = vrsqrt.pop %v3992
    %v4135 = vmul.f32 %v4134, %v3992
    %v4136 = vmul.f32 %v4135, %v4134
    %v4137 = vmul.f32 0.5, %v4136
    %v4138 = vsub.f32 1.5, %v4137
    %v4139 = vmul.f32 %v4134, %v4138
    %vm4140 = vweird.f32 %v3992
    %vm4141 = vweird.f32 %v4134
    %vm4142 = vmor %vm4140, %vm4141
    %v4143 = vsel %vm4142, %v4134, %v4139
    %v4144 = vrsqrt.pop %v3993
    %v4145 = vmul.f32 %v4144, %v3993
    %v4146 = vmul.f32 %v4145, %v4144
    %v4147 = vmul.f32 0.5, %v4146
    %v4148 = vsub.f32 1.5, %v4147
    %v4149 = vmul.f32 %v4144, %v4148
    %vm4150 = vweird.f32 %v3993
    %vm4151 = vweird.f32 %v4144
    %vm4152 = vmor %vm4150, %vm4151
    %v4153 = vsel %vm4152, %v4144, %v4149
    %v4154 = vsub.f32 %v3802, %v3850
    %v4155 = vsub.f32 %v3803, %v3851
    %v4156 = vsub.f32 %v3804, %v3852
    %v4157 = vsub.f32 %v3805, %v3853
    %v4158 = vsub.f32 %v3806, %v3854
    %v4159 = vsub.f32 %v3807, %v3855
    %v4160 = vsub.f32 %v3808, %v3856
    %v4161 = vsub.f32 %v3809, %v3857
    %v4162 = vsub.f32 %v3810, %v3858
    %v4163 = vsub.f32 %v3811, %v3859
    %v4164 = vsub.f32 %v3812, %v3860
    %v4165 = vsub.f32 %v3813, %v3861
    %v4166 = vsub.f32 %v3814, %v3862
    %v4167 = vsub.f32 %v3815, %v3863
    %v4168 = vsub.f32 %v3816, %v3864
    %v4169 = vsub.f32 %v3817, %v3865
    %v4170 = vmul.f32 %v4154, %v4003
    %v4171 = vmul.f32 %v4155, %v4013
    %v4172 = vmul.f32 %v4156, %v4023
    %v4173 = vmul.f32 %v4157, %v4033
    %v4174 = vmul.f32 %v4158, %v4043
    %v4175 = vmul.f32 %v4159, %v4053
    %v4176 = vmul.f32 %v4160, %v4063
    %v4177 = vmul.f32 %v4161, %v4073
    %v4178 = vmul.f32 %v4162, %v4083
    %v4179 = vmul.f32 %v4163, %v4093
    %v4180 = vmul.f32 %v4164, %v4103
    %v4181 = vmul.f32 %v4165, %v4113
    %v4182 = vmul.f32 %v4166, %v4123
    %v4183 = vmul.f32 %v4167, %v4133
    %v4184 = vmul.f32 %v4168, %v4143
    %v4185 = vmul.f32 %v4169, %v4153
    %v4186 = vpack.c.bf16 %v4171, %v4170
    %v4187 = vpack.c.bf16 %v4173, %v4172
    %v4188 = vpack.c.bf16 %v4175, %v4174
    %v4189 = vpack.c.bf16 %v4177, %v4176
    %v4190 = vpack.c.bf16 %v4179, %v4178
    %v4191 = vpack.c.bf16 %v4181, %v4180
    %v4192 = vpack.c.bf16 %v4183, %v4182
    %v4193 = vpack.c.bf16 %v4185, %v4184
    %4194 = vmatpush.bf16.xpose.msra.mxu0 %v4193
    %4195 = vmatpush.bf16.xpose.msra.mxu0 %v4192
    %4196 = vmatpush.bf16.xpose.msra.mxu0 %v4191
    %4197 = vmatpush.bf16.xpose.msra.mxu0 %v4190
    %4198 = vmatpush.bf16.xpose.msra.mxu0 %v4189
    %4199 = vmatpush.bf16.xpose.msra.mxu0 %v4188
    %4200 = vmatpush.bf16.xpose.msra.mxu0 %v4187
    %4201 = vmatpush.bf16.xpose.msra.mxu0 %v4186
    %4202 = vmatmul.bf16.gmra.mxu0 %v1348
    %v4203 = vpop.f32.mrf.mxu0
    %v4204 = vadd.f32 0.0, %v4203
    %v4205 = vpop.f32.mrf.mxu0
    %4206 = vdwg.mxu0
    %v4207 = vadd.f32 %v4204, %v1758
    %s4208 = scalar_lea.vmem [#allocation6], 24
    %4209 = vst [vmem:[%s4208] sm:$0xf] %v4207
    %v4210 = vld [vmem:[#allocation2 + $0x38] sm:$0xff]
    %v4211 = vld [vmem:[#allocation2 + $0xb8] sm:$0xff]
    %v4212 = vld [vmem:[#allocation2 + $0x138] sm:$0xff]
    %v4213 = vld [vmem:[#allocation2 + $0x1b8] sm:$0xff]
    %v4214 = vld [vmem:[#allocation2 + $0x238] sm:$0xff]
    %v4215 = vld [vmem:[#allocation2 + $0x2b8] sm:$0xff]
    %v4216 = vld [vmem:[#allocation2 + $0x338] sm:$0xff]
    %v4217 = vld [vmem:[#allocation2 + $0x3b8] sm:$0xff]
    %v4218 = vld [vmem:[#allocation2 + $0x438] sm:$0xff]
    %v4219 = vld [vmem:[#allocation2 + $0x4b8] sm:$0xff]
    %v4220 = vld [vmem:[#allocation2 + $0x538] sm:$0xff]
    %v4221 = vld [vmem:[#allocation2 + $0x5b8] sm:$0xff]
    %v4222 = vld [vmem:[#allocation2 + $0x638] sm:$0xff]
    %v4223 = vld [vmem:[#allocation2 + $0x6b8] sm:$0xff]
    %v4224 = vld [vmem:[#allocation2 + $0x738] sm:$0xff]
    %v4225 = vld [vmem:[#allocation2 + $0x7b8] sm:$0xff]
    %4226 = vadd.xlane.f32.xlu0 %v4210
    %v4227 = vpop.xlane.xlu0 %4226
    %4228 = vadd.xlane.f32.xlu0 %v4211
    %v4229 = vpop.xlane.xlu0 %4228
    %4230 = vadd.xlane.f32.xlu0 %v4212
    %v4231 = vpop.xlane.xlu0 %4230
    %4232 = vadd.xlane.f32.xlu0 %v4213
    %v4233 = vpop.xlane.xlu0 %4232
    %4234 = vadd.xlane.f32.xlu0 %v4214
    %v4235 = vpop.xlane.xlu0 %4234
    %4236 = vadd.xlane.f32.xlu0 %v4215
    %v4237 = vpop.xlane.xlu0 %4236
    %4238 = vadd.xlane.f32.xlu0 %v4216
    %v4239 = vpop.xlane.xlu0 %4238
    %4240 = vadd.xlane.f32.xlu0 %v4217
    %v4241 = vpop.xlane.xlu0 %4240
    %4242 = vadd.xlane.f32.xlu0 %v4218
    %v4243 = vpop.xlane.xlu0 %4242
    %4244 = vadd.xlane.f32.xlu0 %v4219
    %v4245 = vpop.xlane.xlu0 %4244
    %4246 = vadd.xlane.f32.xlu0 %v4220
    %v4247 = vpop.xlane.xlu0 %4246
    %4248 = vadd.xlane.f32.xlu0 %v4221
    %v4249 = vpop.xlane.xlu0 %4248
    %4250 = vadd.xlane.f32.xlu0 %v4222
    %v4251 = vpop.xlane.xlu0 %4250
    %4252 = vadd.xlane.f32.xlu0 %v4223
    %v4253 = vpop.xlane.xlu0 %4252
    %4254 = vadd.xlane.f32.xlu0 %v4224
    %v4255 = vpop.xlane.xlu0 %4254
    %4256 = vadd.xlane.f32.xlu0 %v4225
    %v4257 = vpop.xlane.xlu0 %4256
    %v4258 = vmul.f32 %v4227, 0.03125
    %v4259 = vmul.f32 %v4229, 0.03125
    %v4260 = vmul.f32 %v4231, 0.03125
    %v4261 = vmul.f32 %v4233, 0.03125
    %v4262 = vmul.f32 %v4235, 0.03125
    %v4263 = vmul.f32 %v4237, 0.03125
    %v4264 = vmul.f32 %v4239, 0.03125
    %v4265 = vmul.f32 %v4241, 0.03125
    %v4266 = vmul.f32 %v4243, 0.03125
    %v4267 = vmul.f32 %v4245, 0.03125
    %v4268 = vmul.f32 %v4247, 0.03125
    %v4269 = vmul.f32 %v4249, 0.03125
    %v4270 = vmul.f32 %v4251, 0.03125
    %v4271 = vmul.f32 %v4253, 0.03125
    %v4272 = vmul.f32 %v4255, 0.03125
    %v4273 = vmul.f32 %v4257, 0.03125
    %v4274 = vmul.f32 %v4210, %v4210
    %v4275 = vmul.f32 %v4211, %v4211
    %v4276 = vmul.f32 %v4212, %v4212
    %v4277 = vmul.f32 %v4213, %v4213
    %v4278 = vmul.f32 %v4214, %v4214
    %v4279 = vmul.f32 %v4215, %v4215
    %v4280 = vmul.f32 %v4216, %v4216
    %v4281 = vmul.f32 %v4217, %v4217
    %v4282 = vmul.f32 %v4218, %v4218
    %v4283 = vmul.f32 %v4219, %v4219
    %v4284 = vmul.f32 %v4220, %v4220
    %v4285 = vmul.f32 %v4221, %v4221
    %v4286 = vmul.f32 %v4222, %v4222
    %v4287 = vmul.f32 %v4223, %v4223
    %v4288 = vmul.f32 %v4224, %v4224
    %v4289 = vmul.f32 %v4225, %v4225
    %4290 = vadd.xlane.f32.xlu0 %v4274
    %v4291 = vpop.xlane.xlu0 %4290
    %4292 = vadd.xlane.f32.xlu0 %v4275
    %v4293 = vpop.xlane.xlu0 %4292
    %4294 = vadd.xlane.f32.xlu0 %v4276
    %v4295 = vpop.xlane.xlu0 %4294
    %4296 = vadd.xlane.f32.xlu0 %v4277
    %v4297 = vpop.xlane.xlu0 %4296
    %4298 = vadd.xlane.f32.xlu0 %v4278
    %v4299 = vpop.xlane.xlu0 %4298
    %4300 = vadd.xlane.f32.xlu0 %v4279
    %v4301 = vpop.xlane.xlu0 %4300
    %4302 = vadd.xlane.f32.xlu0 %v4280
    %v4303 = vpop.xlane.xlu0 %4302
    %4304 = vadd.xlane.f32.xlu0 %v4281
    %v4305 = vpop.xlane.xlu0 %4304
    %4306 = vadd.xlane.f32.xlu0 %v4282
    %v4307 = vpop.xlane.xlu0 %4306
    %4308 = vadd.xlane.f32.xlu0 %v4283
    %v4309 = vpop.xlane.xlu0 %4308
    %4310 = vadd.xlane.f32.xlu0 %v4284
    %v4311 = vpop.xlane.xlu0 %4310
    %4312 = vadd.xlane.f32.xlu0 %v4285
    %v4313 = vpop.xlane.xlu0 %4312
    %4314 = vadd.xlane.f32.xlu0 %v4286
    %v4315 = vpop.xlane.xlu0 %4314
    %4316 = vadd.xlane.f32.xlu0 %v4287
    %v4317 = vpop.xlane.xlu0 %4316
    %4318 = vadd.xlane.f32.xlu0 %v4288
    %v4319 = vpop.xlane.xlu0 %4318
    %4320 = vadd.xlane.f32.xlu0 %v4289
    %v4321 = vpop.xlane.xlu0 %4320
    %v4322 = vmul.f32 %v4291, 0.03125
    %v4323 = vmul.f32 %v4293, 0.03125
    %v4324 = vmul.f32 %v4295, 0.03125
    %v4325 = vmul.f32 %v4297, 0.03125
    %v4326 = vmul.f32 %v4299, 0.03125
    %v4327 = vmul.f32 %v4301, 0.03125
    %v4328 = vmul.f32 %v4303, 0.03125
    %v4329 = vmul.f32 %v4305, 0.03125
    %v4330 = vmul.f32 %v4307, 0.03125
    %v4331 = vmul.f32 %v4309, 0.03125
    %v4332 = vmul.f32 %v4311, 0.03125
    %v4333 = vmul.f32 %v4313, 0.03125
    %v4334 = vmul.f32 %v4315, 0.03125
    %v4335 = vmul.f32 %v4317, 0.03125
    %v4336 = vmul.f32 %v4319, 0.03125
    %v4337 = vmul.f32 %v4321, 0.03125
    %v4338 = vmul.f32 %v4258, %v4258
    %v4339 = vmul.f32 %v4259, %v4259
    %v4340 = vmul.f32 %v4260, %v4260
    %v4341 = vmul.f32 %v4261, %v4261
    %v4342 = vmul.f32 %v4262, %v4262
    %v4343 = vmul.f32 %v4263, %v4263
    %v4344 = vmul.f32 %v4264, %v4264
    %v4345 = vmul.f32 %v4265, %v4265
    %v4346 = vmul.f32 %v4266, %v4266
    %v4347 = vmul.f32 %v4267, %v4267
    %v4348 = vmul.f32 %v4268, %v4268
    %v4349 = vmul.f32 %v4269, %v4269
    %v4350 = vmul.f32 %v4270, %v4270
    %v4351 = vmul.f32 %v4271, %v4271
    %v4352 = vmul.f32 %v4272, %v4272
    %v4353 = vmul.f32 %v4273, %v4273
    %v4354 = vsub.f32 %v4322, %v4338
    %v4355 = vsub.f32 %v4323, %v4339
    %v4356 = vsub.f32 %v4324, %v4340
    %v4357 = vsub.f32 %v4325, %v4341
    %v4358 = vsub.f32 %v4326, %v4342
    %v4359 = vsub.f32 %v4327, %v4343
    %v4360 = vsub.f32 %v4328, %v4344
    %v4361 = vsub.f32 %v4329, %v4345
    %v4362 = vsub.f32 %v4330, %v4346
    %v4363 = vsub.f32 %v4331, %v4347
    %v4364 = vsub.f32 %v4332, %v4348
    %v4365 = vsub.f32 %v4333, %v4349
    %v4366 = vsub.f32 %v4334, %v4350
    %v4367 = vsub.f32 %v4335, %v4351
    %v4368 = vsub.f32 %v4336, %v4352
    %v4369 = vsub.f32 %v4337, %v4353
    %v4370 = vmax.f32 %v4354, 0.0
    %v4371 = vmax.f32 %v4355, 0.0
    %v4372 = vmax.f32 %v4356, 0.0
    %v4373 = vmax.f32 %v4357, 0.0
    %v4374 = vmax.f32 %v4358, 0.0
    %v4375 = vmax.f32 %v4359, 0.0
    %v4376 = vmax.f32 %v4360, 0.0
    %v4377 = vmax.f32 %v4361, 0.0
    %v4378 = vmax.f32 %v4362, 0.0
    %v4379 = vmax.f32 %v4363, 0.0
    %v4380 = vmax.f32 %v4364, 0.0
    %v4381 = vmax.f32 %v4365, 0.0
    %v4382 = vmax.f32 %v4366, 0.0
    %v4383 = vmax.f32 %v4367, 0.0
    %v4384 = vmax.f32 %v4368, 0.0
    %v4385 = vmax.f32 %v4369, 0.0
    %v4386 = vadd.f32 %v4370, 1e-05
    %v4387 = vadd.f32 %v4371, 1e-05
    %v4388 = vadd.f32 %v4372, 1e-05
    %v4389 = vadd.f32 %v4373, 1e-05
    %v4390 = vadd.f32 %v4374, 1e-05
    %v4391 = vadd.f32 %v4375, 1e-05
    %v4392 = vadd.f32 %v4376, 1e-05
    %v4393 = vadd.f32 %v4377, 1e-05
    %v4394 = vadd.f32 %v4378, 1e-05
    %v4395 = vadd.f32 %v4379, 1e-05
    %v4396 = vadd.f32 %v4380, 1e-05
    %v4397 = vadd.f32 %v4381, 1e-05
    %v4398 = vadd.f32 %v4382, 1e-05
    %v4399 = vadd.f32 %v4383, 1e-05
    %v4400 = vadd.f32 %v4384, 1e-05
    %v4401 = vadd.f32 %v4385, 1e-05
    %v4402 = vrsqrt.pop %v4386
    %v4403 = vmul.f32 %v4402, %v4386
    %v4404 = vmul.f32 %v4403, %v4402
    %v4405 = vmul.f32 0.5, %v4404
    %v4406 = vsub.f32 1.5, %v4405
    %v4407 = vmul.f32 %v4402, %v4406
    %vm4408 = vweird.f32 %v4386
    %vm4409 = vweird.f32 %v4402
    %vm4410 = vmor %vm4408, %vm4409
    %v4411 = vsel %vm4410, %v4402, %v4407
    %v4412 = vrsqrt.pop %v4387
    %v4413 = vmul.f32 %v4412, %v4387
    %v4414 = vmul.f32 %v4413, %v4412
    %v4415 = vmul.f32 0.5, %v4414
    %v4416 = vsub.f32 1.5, %v4415
    %v4417 = vmul.f32 %v4412, %v4416
    %vm4418 = vweird.f32 %v4387
    %vm4419 = vweird.f32 %v4412
    %vm4420 = vmor %vm4418, %vm4419
    %v4421 = vsel %vm4420, %v4412, %v4417
    %v4422 = vrsqrt.pop %v4388
    %v4423 = vmul.f32 %v4422, %v4388
    %v4424 = vmul.f32 %v4423, %v4422
    %v4425 = vmul.f32 0.5, %v4424
    %v4426 = vsub.f32 1.5, %v4425
    %v4427 = vmul.f32 %v4422, %v4426
    %vm4428 = vweird.f32 %v4388
    %vm4429 = vweird.f32 %v4422
    %vm4430 = vmor %vm4428, %vm4429
    %v4431 = vsel %vm4430, %v4422, %v4427
    %v4432 = vrsqrt.pop %v4389
    %v4433 = vmul.f32 %v4432, %v4389
    %v4434 = vmul.f32 %v4433, %v4432
    %v4435 = vmul.f32 0.5, %v4434
    %v4436 = vsub.f32 1.5, %v4435
    %v4437 = vmul.f32 %v4432, %v4436
    %vm4438 = vweird.f32 %v4389
    %vm4439 = vweird.f32 %v4432
    %vm4440 = vmor %vm4438, %vm4439
    %v4441 = vsel %vm4440, %v4432, %v4437
    %v4442 = vrsqrt.pop %v4390
    %v4443 = vmul.f32 %v4442, %v4390
    %v4444 = vmul.f32 %v4443, %v4442
    %v4445 = vmul.f32 0.5, %v4444
    %v4446 = vsub.f32 1.5, %v4445
    %v4447 = vmul.f32 %v4442, %v4446
    %vm4448 = vweird.f32 %v4390
    %vm4449 = vweird.f32 %v4442
    %vm4450 = vmor %vm4448, %vm4449
    %v4451 = vsel %vm4450, %v4442, %v4447
    %v4452 = vrsqrt.pop %v4391
    %v4453 = vmul.f32 %v4452, %v4391
    %v4454 = vmul.f32 %v4453, %v4452
    %v4455 = vmul.f32 0.5, %v4454
    %v4456 = vsub.f32 1.5, %v4455
    %v4457 = vmul.f32 %v4452, %v4456
    %vm4458 = vweird.f32 %v4391
    %vm4459 = vweird.f32 %v4452
    %vm4460 = vmor %vm4458, %vm4459
    %v4461 = vsel %vm4460, %v4452, %v4457
    %v4462 = vrsqrt.pop %v4392
    %v4463 = vmul.f32 %v4462, %v4392
    %v4464 = vmul.f32 %v4463, %v4462
    %v4465 = vmul.f32 0.5, %v4464
    %v4466 = vsub.f32 1.5, %v4465
    %v4467 = vmul.f32 %v4462, %v4466
    %vm4468 = vweird.f32 %v4392
    %vm4469 = vweird.f32 %v4462
    %vm4470 = vmor %vm4468, %vm4469
    %v4471 = vsel %vm4470, %v4462, %v4467
    %v4472 = vrsqrt.pop %v4393
    %v4473 = vmul.f32 %v4472, %v4393
    %v4474 = vmul.f32 %v4473, %v4472
    %v4475 = vmul.f32 0.5, %v4474
    %v4476 = vsub.f32 1.5, %v4475
    %v4477 = vmul.f32 %v4472, %v4476
    %vm4478 = vweird.f32 %v4393
    %vm4479 = vweird.f32 %v4472
    %vm4480 = vmor %vm4478, %vm4479
    %v4481 = vsel %vm4480, %v4472, %v4477
    %v4482 = vrsqrt.pop %v4394
    %v4483 = vmul.f32 %v4482, %v4394
    %v4484 = vmul.f32 %v4483, %v4482
    %v4485 = vmul.f32 0.5, %v4484
    %v4486 = vsub.f32 1.5, %v4485
    %v4487 = vmul.f32 %v4482, %v4486
    %vm4488 = vweird.f32 %v4394
    %vm4489 = vweird.f32 %v4482
    %vm4490 = vmor %vm4488, %vm4489
    %v4491 = vsel %vm4490, %v4482, %v4487
    %v4492 = vrsqrt.pop %v4395
    %v4493 = vmul.f32 %v4492, %v4395
    %v4494 = vmul.f32 %v4493, %v4492
    %v4495 = vmul.f32 0.5, %v4494
    %v4496 = vsub.f32 1.5, %v4495
    %v4497 = vmul.f32 %v4492, %v4496
    %vm4498 = vweird.f32 %v4395
    %vm4499 = vweird.f32 %v4492
    %vm4500 = vmor %vm4498, %vm4499
    %v4501 = vsel %vm4500, %v4492, %v4497
    %v4502 = vrsqrt.pop %v4396
    %v4503 = vmul.f32 %v4502, %v4396
    %v4504 = vmul.f32 %v4503, %v4502
    %v4505 = vmul.f32 0.5, %v4504
    %v4506 = vsub.f32 1.5, %v4505
    %v4507 = vmul.f32 %v4502, %v4506
    %vm4508 = vweird.f32 %v4396
    %vm4509 = vweird.f32 %v4502
    %vm4510 = vmor %vm4508, %vm4509
    %v4511 = vsel %vm4510, %v4502, %v4507
    %v4512 = vrsqrt.pop %v4397
    %v4513 = vmul.f32 %v4512, %v4397
    %v4514 = vmul.f32 %v4513, %v4512
    %v4515 = vmul.f32 0.5, %v4514
    %v4516 = vsub.f32 1.5, %v4515
    %v4517 = vmul.f32 %v4512, %v4516
    %vm4518 = vweird.f32 %v4397
    %vm4519 = vweird.f32 %v4512
    %vm4520 = vmor %vm4518, %vm4519
    %v4521 = vsel %vm4520, %v4512, %v4517
    %v4522 = vrsqrt.pop %v4398
    %v4523 = vmul.f32 %v4522, %v4398
    %v4524 = vmul.f32 %v4523, %v4522
    %v4525 = vmul.f32 0.5, %v4524
    %v4526 = vsub.f32 1.5, %v4525
    %v4527 = vmul.f32 %v4522, %v4526
    %vm4528 = vweird.f32 %v4398
    %vm4529 = vweird.f32 %v4522
    %vm4530 = vmor %vm4528, %vm4529
    %v4531 = vsel %vm4530, %v4522, %v4527
    %v4532 = vrsqrt.pop %v4399
    %v4533 = vmul.f32 %v4532, %v4399
    %v4534 = vmul.f32 %v4533, %v4532
    %v4535 = vmul.f32 0.5, %v4534
    %v4536 = vsub.f32 1.5, %v4535
    %v4537 = vmul.f32 %v4532, %v4536
    %vm4538 = vweird.f32 %v4399
    %vm4539 = vweird.f32 %v4532
    %vm4540 = vmor %vm4538, %vm4539
    %v4541 = vsel %vm4540, %v4532, %v4537
    %v4542 = vrsqrt.pop %v4400
    %v4543 = vmul.f32 %v4542, %v4400
    %v4544 = vmul.f32 %v4543, %v4542
    %v4545 = vmul.f32 0.5, %v4544
    %v4546 = vsub.f32 1.5, %v4545
    %v4547 = vmul.f32 %v4542, %v4546
    %vm4548 = vweird.f32 %v4400
    %vm4549 = vweird.f32 %v4542
    %vm4550 = vmor %vm4548, %vm4549
    %v4551 = vsel %vm4550, %v4542, %v4547
    %v4552 = vrsqrt.pop %v4401
    %v4553 = vmul.f32 %v4552, %v4401
    %v4554 = vmul.f32 %v4553, %v4552
    %v4555 = vmul.f32 0.5, %v4554
    %v4556 = vsub.f32 1.5, %v4555
    %v4557 = vmul.f32 %v4552, %v4556
    %vm4558 = vweird.f32 %v4401
    %vm4559 = vweird.f32 %v4552
    %vm4560 = vmor %vm4558, %vm4559
    %v4561 = vsel %vm4560, %v4552, %v4557
    %v4562 = vsub.f32 %v4210, %v4258
    %v4563 = vsub.f32 %v4211, %v4259
    %v4564 = vsub.f32 %v4212, %v4260
    %v4565 = vsub.f32 %v4213, %v4261
    %v4566 = vsub.f32 %v4214, %v4262
    %v4567 = vsub.f32 %v4215, %v4263
    %v4568 = vsub.f32 %v4216, %v4264
    %v4569 = vsub.f32 %v4217, %v4265
    %v4570 = vsub.f32 %v4218, %v4266
    %v4571 = vsub.f32 %v4219, %v4267
    %v4572 = vsub.f32 %v4220, %v4268
    %v4573 = vsub.f32 %v4221, %v4269
    %v4574 = vsub.f32 %v4222, %v4270
    %v4575 = vsub.f32 %v4223, %v4271
    %v4576 = vsub.f32 %v4224, %v4272
    %v4577 = vsub.f32 %v4225, %v4273
    %v4578 = vmul.f32 %v4562, %v4411
    %v4579 = vmul.f32 %v4563, %v4421
    %v4580 = vmul.f32 %v4564, %v4431
    %v4581 = vmul.f32 %v4565, %v4441
    %v4582 = vmul.f32 %v4566, %v4451
    %v4583 = vmul.f32 %v4567, %v4461
    %v4584 = vmul.f32 %v4568, %v4471
    %v4585 = vmul.f32 %v4569, %v4481
    %v4586 = vmul.f32 %v4570, %v4491
    %v4587 = vmul.f32 %v4571, %v4501
    %v4588 = vmul.f32 %v4572, %v4511
    %v4589 = vmul.f32 %v4573, %v4521
    %v4590 = vmul.f32 %v4574, %v4531
    %v4591 = vmul.f32 %v4575, %v4541
    %v4592 = vmul.f32 %v4576, %v4551
    %v4593 = vmul.f32 %v4577, %v4561
    %v4594 = vpack.c.bf16 %v4579, %v4578
    %v4595 = vpack.c.bf16 %v4581, %v4580
    %v4596 = vpack.c.bf16 %v4583, %v4582
    %v4597 = vpack.c.bf16 %v4585, %v4584
    %v4598 = vpack.c.bf16 %v4587, %v4586
    %v4599 = vpack.c.bf16 %v4589, %v4588
    %v4600 = vpack.c.bf16 %v4591, %v4590
    %v4601 = vpack.c.bf16 %v4593, %v4592
    %4602 = vmatpush.bf16.xpose.msra.mxu0 %v4601
    %4603 = vmatpush.bf16.xpose.msra.mxu0 %v4600
    %4604 = vmatpush.bf16.xpose.msra.mxu0 %v4599
    %4605 = vmatpush.bf16.xpose.msra.mxu0 %v4598
    %4606 = vmatpush.bf16.xpose.msra.mxu0 %v4597
    %4607 = vmatpush.bf16.xpose.msra.mxu0 %v4596
    %4608 = vmatpush.bf16.xpose.msra.mxu0 %v4595
    %4609 = vmatpush.bf16.xpose.msra.mxu0 %v4594
    %4610 = vmatmul.bf16.gmra.mxu0 %v1348
    %v4611 = vpop.f32.mrf.mxu0
    %v4612 = vadd.f32 0.0, %v4611
    %v4613 = vpop.f32.mrf.mxu0
    %4614 = vdwg.mxu0
    %v4615 = vadd.f32 %v4612, %v1758
    %s4616 = scalar_lea.vmem [#allocation6], 28
    %4617 = vst [vmem:[%s4616] sm:$0xf] %v4615
    %v4618 = vld [vmem:[#allocation2 + $0x40] sm:$0xff]
    %v4619 = vld [vmem:[#allocation2 + $0xc0] sm:$0xff]
    %v4620 = vld [vmem:[#allocation2 + $0x140] sm:$0xff]
    %v4621 = vld [vmem:[#allocation2 + $0x1c0] sm:$0xff]
    %v4622 = vld [vmem:[#allocation2 + $0x240] sm:$0xff]
    %v4623 = vld [vmem:[#allocation2 + $0x2c0] sm:$0xff]
    %v4624 = vld [vmem:[#allocation2 + $0x340] sm:$0xff]
    %v4625 = vld [vmem:[#allocation2 + $0x3c0] sm:$0xff]
    %v4626 = vld [vmem:[#allocation2 + $0x440] sm:$0xff]
    %v4627 = vld [vmem:[#allocation2 + $0x4c0] sm:$0xff]
    %v4628 = vld [vmem:[#allocation2 + $0x540] sm:$0xff]
    %v4629 = vld [vmem:[#allocation2 + $0x5c0] sm:$0xff]
    %v4630 = vld [vmem:[#allocation2 + $0x640] sm:$0xff]
    %v4631 = vld [vmem:[#allocation2 + $0x6c0] sm:$0xff]
    %v4632 = vld [vmem:[#allocation2 + $0x740] sm:$0xff]
    %v4633 = vld [vmem:[#allocation2 + $0x7c0] sm:$0xff]
    %4634 = vadd.xlane.f32.xlu0 %v4618
    %v4635 = vpop.xlane.xlu0 %4634
    %4636 = vadd.xlane.f32.xlu0 %v4619
    %v4637 = vpop.xlane.xlu0 %4636
    %4638 = vadd.xlane.f32.xlu0 %v4620
    %v4639 = vpop.xlane.xlu0 %4638
    %4640 = vadd.xlane.f32.xlu0 %v4621
    %v4641 = vpop.xlane.xlu0 %4640
    %4642 = vadd.xlane.f32.xlu0 %v4622
    %v4643 = vpop.xlane.xlu0 %4642
    %4644 = vadd.xlane.f32.xlu0 %v4623
    %v4645 = vpop.xlane.xlu0 %4644
    %4646 = vadd.xlane.f32.xlu0 %v4624
    %v4647 = vpop.xlane.xlu0 %4646
    %4648 = vadd.xlane.f32.xlu0 %v4625
    %v4649 = vpop.xlane.xlu0 %4648
    %4650 = vadd.xlane.f32.xlu0 %v4626
    %v4651 = vpop.xlane.xlu0 %4650
    %4652 = vadd.xlane.f32.xlu0 %v4627
    %v4653 = vpop.xlane.xlu0 %4652
    %4654 = vadd.xlane.f32.xlu0 %v4628
    %v4655 = vpop.xlane.xlu0 %4654
    %4656 = vadd.xlane.f32.xlu0 %v4629
    %v4657 = vpop.xlane.xlu0 %4656
    %4658 = vadd.xlane.f32.xlu0 %v4630
    %v4659 = vpop.xlane.xlu0 %4658
    %4660 = vadd.xlane.f32.xlu0 %v4631
    %v4661 = vpop.xlane.xlu0 %4660
    %4662 = vadd.xlane.f32.xlu0 %v4632
    %v4663 = vpop.xlane.xlu0 %4662
    %4664 = vadd.xlane.f32.xlu0 %v4633
    %v4665 = vpop.xlane.xlu0 %4664
    %v4666 = vmul.f32 %v4635, 0.03125
    %v4667 = vmul.f32 %v4637, 0.03125
    %v4668 = vmul.f32 %v4639, 0.03125
    %v4669 = vmul.f32 %v4641, 0.03125
    %v4670 = vmul.f32 %v4643, 0.03125
    %v4671 = vmul.f32 %v4645, 0.03125
    %v4672 = vmul.f32 %v4647, 0.03125
    %v4673 = vmul.f32 %v4649, 0.03125
    %v4674 = vmul.f32 %v4651, 0.03125
    %v4675 = vmul.f32 %v4653, 0.03125
    %v4676 = vmul.f32 %v4655, 0.03125
    %v4677 = vmul.f32 %v4657, 0.03125
    %v4678 = vmul.f32 %v4659, 0.03125
    %v4679 = vmul.f32 %v4661, 0.03125
    %v4680 = vmul.f32 %v4663, 0.03125
    %v4681 = vmul.f32 %v4665, 0.03125
    %v4682 = vmul.f32 %v4618, %v4618
    %v4683 = vmul.f32 %v4619, %v4619
    %v4684 = vmul.f32 %v4620, %v4620
    %v4685 = vmul.f32 %v4621, %v4621
    %v4686 = vmul.f32 %v4622, %v4622
    %v4687 = vmul.f32 %v4623, %v4623
    %v4688 = vmul.f32 %v4624, %v4624
    %v4689 = vmul.f32 %v4625, %v4625
    %v4690 = vmul.f32 %v4626, %v4626
    %v4691 = vmul.f32 %v4627, %v4627
    %v4692 = vmul.f32 %v4628, %v4628
    %v4693 = vmul.f32 %v4629, %v4629
    %v4694 = vmul.f32 %v4630, %v4630
    %v4695 = vmul.f32 %v4631, %v4631
    %v4696 = vmul.f32 %v4632, %v4632
    %v4697 = vmul.f32 %v4633, %v4633
    %4698 = vadd.xlane.f32.xlu0 %v4682
    %v4699 = vpop.xlane.xlu0 %4698
    %4700 = vadd.xlane.f32.xlu0 %v4683
    %v4701 = vpop.xlane.xlu0 %4700
    %4702 = vadd.xlane.f32.xlu0 %v4684
    %v4703 = vpop.xlane.xlu0 %4702
    %4704 = vadd.xlane.f32.xlu0 %v4685
    %v4705 = vpop.xlane.xlu0 %4704
    %4706 = vadd.xlane.f32.xlu0 %v4686
    %v4707 = vpop.xlane.xlu0 %4706
    %4708 = vadd.xlane.f32.xlu0 %v4687
    %v4709 = vpop.xlane.xlu0 %4708
    %4710 = vadd.xlane.f32.xlu0 %v4688
    %v4711 = vpop.xlane.xlu0 %4710
    %4712 = vadd.xlane.f32.xlu0 %v4689
    %v4713 = vpop.xlane.xlu0 %4712
    %4714 = vadd.xlane.f32.xlu0 %v4690
    %v4715 = vpop.xlane.xlu0 %4714
    %4716 = vadd.xlane.f32.xlu0 %v4691
    %v4717 = vpop.xlane.xlu0 %4716
    %4718 = vadd.xlane.f32.xlu0 %v4692
    %v4719 = vpop.xlane.xlu0 %4718
    %4720 = vadd.xlane.f32.xlu0 %v4693
    %v4721 = vpop.xlane.xlu0 %4720
    %4722 = vadd.xlane.f32.xlu0 %v4694
    %v4723 = vpop.xlane.xlu0 %4722
    %4724 = vadd.xlane.f32.xlu0 %v4695
    %v4725 = vpop.xlane.xlu0 %4724
    %4726 = vadd.xlane.f32.xlu0 %v4696
    %v4727 = vpop.xlane.xlu0 %4726
    %4728 = vadd.xlane.f32.xlu0 %v4697
    %v4729 = vpop.xlane.xlu0 %4728
    %v4730 = vmul.f32 %v4699, 0.03125
    %v4731 = vmul.f32 %v4701, 0.03125
    %v4732 = vmul.f32 %v4703, 0.03125
    %v4733 = vmul.f32 %v4705, 0.03125
    %v4734 = vmul.f32 %v4707, 0.03125
    %v4735 = vmul.f32 %v4709, 0.03125
    %v4736 = vmul.f32 %v4711, 0.03125
    %v4737 = vmul.f32 %v4713, 0.03125
    %v4738 = vmul.f32 %v4715, 0.03125
    %v4739 = vmul.f32 %v4717, 0.03125
    %v4740 = vmul.f32 %v4719, 0.03125
    %v4741 = vmul.f32 %v4721, 0.03125
    %v4742 = vmul.f32 %v4723, 0.03125
    %v4743 = vmul.f32 %v4725, 0.03125
    %v4744 = vmul.f32 %v4727, 0.03125
    %v4745 = vmul.f32 %v4729, 0.03125
    %v4746 = vmul.f32 %v4666, %v4666
    %v4747 = vmul.f32 %v4667, %v4667
    %v4748 = vmul.f32 %v4668, %v4668
    %v4749 = vmul.f32 %v4669, %v4669
    %v4750 = vmul.f32 %v4670, %v4670
    %v4751 = vmul.f32 %v4671, %v4671
    %v4752 = vmul.f32 %v4672, %v4672
    %v4753 = vmul.f32 %v4673, %v4673
    %v4754 = vmul.f32 %v4674, %v4674
    %v4755 = vmul.f32 %v4675, %v4675
    %v4756 = vmul.f32 %v4676, %v4676
    %v4757 = vmul.f32 %v4677, %v4677
    %v4758 = vmul.f32 %v4678, %v4678
    %v4759 = vmul.f32 %v4679, %v4679
    %v4760 = vmul.f32 %v4680, %v4680
    %v4761 = vmul.f32 %v4681, %v4681
    %v4762 = vsub.f32 %v4730, %v4746
    %v4763 = vsub.f32 %v4731, %v4747
    %v4764 = vsub.f32 %v4732, %v4748
    %v4765 = vsub.f32 %v4733, %v4749
    %v4766 = vsub.f32 %v4734, %v4750
    %v4767 = vsub.f32 %v4735, %v4751
    %v4768 = vsub.f32 %v4736, %v4752
    %v4769 = vsub.f32 %v4737, %v4753
    %v4770 = vsub.f32 %v4738, %v4754
    %v4771 = vsub.f32 %v4739, %v4755
    %v4772 = vsub.f32 %v4740, %v4756
    %v4773 = vsub.f32 %v4741, %v4757
    %v4774 = vsub.f32 %v4742, %v4758
    %v4775 = vsub.f32 %v4743, %v4759
    %v4776 = vsub.f32 %v4744, %v4760
    %v4777 = vsub.f32 %v4745, %v4761
    %v4778 = vmax.f32 %v4762, 0.0
    %v4779 = vmax.f32 %v4763, 0.0
    %v4780 = vmax.f32 %v4764, 0.0
    %v4781 = vmax.f32 %v4765, 0.0
    %v4782 = vmax.f32 %v4766, 0.0
    %v4783 = vmax.f32 %v4767, 0.0
    %v4784 = vmax.f32 %v4768, 0.0
    %v4785 = vmax.f32 %v4769, 0.0
    %v4786 = vmax.f32 %v4770, 0.0
    %v4787 = vmax.f32 %v4771, 0.0
    %v4788 = vmax.f32 %v4772, 0.0
    %v4789 = vmax.f32 %v4773, 0.0
    %v4790 = vmax.f32 %v4774, 0.0
    %v4791 = vmax.f32 %v4775, 0.0
    %v4792 = vmax.f32 %v4776, 0.0
    %v4793 = vmax.f32 %v4777, 0.0
    %v4794 = vadd.f32 %v4778, 1e-05
    %v4795 = vadd.f32 %v4779, 1e-05
    %v4796 = vadd.f32 %v4780, 1e-05
    %v4797 = vadd.f32 %v4781, 1e-05
    %v4798 = vadd.f32 %v4782, 1e-05
    %v4799 = vadd.f32 %v4783, 1e-05
    %v4800 = vadd.f32 %v4784, 1e-05
    %v4801 = vadd.f32 %v4785, 1e-05
    %v4802 = vadd.f32 %v4786, 1e-05
    %v4803 = vadd.f32 %v4787, 1e-05
    %v4804 = vadd.f32 %v4788, 1e-05
    %v4805 = vadd.f32 %v4789, 1e-05
    %v4806 = vadd.f32 %v4790, 1e-05
    %v4807 = vadd.f32 %v4791, 1e-05
    %v4808 = vadd.f32 %v4792, 1e-05
    %v4809 = vadd.f32 %v4793, 1e-05
    %v4810 = vrsqrt.pop %v4794
    %v4811 = vmul.f32 %v4810, %v4794
    %v4812 = vmul.f32 %v4811, %v4810
    %v4813 = vmul.f32 0.5, %v4812
    %v4814 = vsub.f32 1.5, %v4813
    %v4815 = vmul.f32 %v4810, %v4814
    %vm4816 = vweird.f32 %v4794
    %vm4817 = vweird.f32 %v4810
    %vm4818 = vmor %vm4816, %vm4817
    %v4819 = vsel %vm4818, %v4810, %v4815
    %v4820 = vrsqrt.pop %v4795
    %v4821 = vmul.f32 %v4820, %v4795
    %v4822 = vmul.f32 %v4821, %v4820
    %v4823 = vmul.f32 0.5, %v4822
    %v4824 = vsub.f32 1.5, %v4823
    %v4825 = vmul.f32 %v4820, %v4824
    %vm4826 = vweird.f32 %v4795
    %vm4827 = vweird.f32 %v4820
    %vm4828 = vmor %vm4826, %vm4827
    %v4829 = vsel %vm4828, %v4820, %v4825
    %v4830 = vrsqrt.pop %v4796
    %v4831 = vmul.f32 %v4830, %v4796
    %v4832 = vmul.f32 %v4831, %v4830
    %v4833 = vmul.f32 0.5, %v4832
    %v4834 = vsub.f32 1.5, %v4833
    %v4835 = vmul.f32 %v4830, %v4834
    %vm4836 = vweird.f32 %v4796
    %vm4837 = vweird.f32 %v4830
    %vm4838 = vmor %vm4836, %vm4837
    %v4839 = vsel %vm4838, %v4830, %v4835
    %v4840 = vrsqrt.pop %v4797
    %v4841 = vmul.f32 %v4840, %v4797
    %v4842 = vmul.f32 %v4841, %v4840
    %v4843 = vmul.f32 0.5, %v4842
    %v4844 = vsub.f32 1.5, %v4843
    %v4845 = vmul.f32 %v4840, %v4844
    %vm4846 = vweird.f32 %v4797
    %vm4847 = vweird.f32 %v4840
    %vm4848 = vmor %vm4846, %vm4847
    %v4849 = vsel %vm4848, %v4840, %v4845
    %v4850 = vrsqrt.pop %v4798
    %v4851 = vmul.f32 %v4850, %v4798
    %v4852 = vmul.f32 %v4851, %v4850
    %v4853 = vmul.f32 0.5, %v4852
    %v4854 = vsub.f32 1.5, %v4853
    %v4855 = vmul.f32 %v4850, %v4854
    %vm4856 = vweird.f32 %v4798
    %vm4857 = vweird.f32 %v4850
    %vm4858 = vmor %vm4856, %vm4857
    %v4859 = vsel %vm4858, %v4850, %v4855
    %v4860 = vrsqrt.pop %v4799
    %v4861 = vmul.f32 %v4860, %v4799
    %v4862 = vmul.f32 %v4861, %v4860
    %v4863 = vmul.f32 0.5, %v4862
    %v4864 = vsub.f32 1.5, %v4863
    %v4865 = vmul.f32 %v4860, %v4864
    %vm4866 = vweird.f32 %v4799
    %vm4867 = vweird.f32 %v4860
    %vm4868 = vmor %vm4866, %vm4867
    %v4869 = vsel %vm4868, %v4860, %v4865
    %v4870 = vrsqrt.pop %v4800
    %v4871 = vmul.f32 %v4870, %v4800
    %v4872 = vmul.f32 %v4871, %v4870
    %v4873 = vmul.f32 0.5, %v4872
    %v4874 = vsub.f32 1.5, %v4873
    %v4875 = vmul.f32 %v4870, %v4874
    %vm4876 = vweird.f32 %v4800
    %vm4877 = vweird.f32 %v4870
    %vm4878 = vmor %vm4876, %vm4877
    %v4879 = vsel %vm4878, %v4870, %v4875
    %v4880 = vrsqrt.pop %v4801
    %v4881 = vmul.f32 %v4880, %v4801
    %v4882 = vmul.f32 %v4881, %v4880
    %v4883 = vmul.f32 0.5, %v4882
    %v4884 = vsub.f32 1.5, %v4883
    %v4885 = vmul.f32 %v4880, %v4884
    %vm4886 = vweird.f32 %v4801
    %vm4887 = vweird.f32 %v4880
    %vm4888 = vmor %vm4886, %vm4887
    %v4889 = vsel %vm4888, %v4880, %v4885
    %v4890 = vrsqrt.pop %v4802
    %v4891 = vmul.f32 %v4890, %v4802
    %v4892 = vmul.f32 %v4891, %v4890
    %v4893 = vmul.f32 0.5, %v4892
    %v4894 = vsub.f32 1.5, %v4893
    %v4895 = vmul.f32 %v4890, %v4894
    %vm4896 = vweird.f32 %v4802
    %vm4897 = vweird.f32 %v4890
    %vm4898 = vmor %vm4896, %vm4897
    %v4899 = vsel %vm4898, %v4890, %v4895
    %v4900 = vrsqrt.pop %v4803
    %v4901 = vmul.f32 %v4900, %v4803
    %v4902 = vmul.f32 %v4901, %v4900
    %v4903 = vmul.f32 0.5, %v4902
    %v4904 = vsub.f32 1.5, %v4903
    %v4905 = vmul.f32 %v4900, %v4904
    %vm4906 = vweird.f32 %v4803
    %vm4907 = vweird.f32 %v4900
    %vm4908 = vmor %vm4906, %vm4907
    %v4909 = vsel %vm4908, %v4900, %v4905
    %v4910 = vrsqrt.pop %v4804
    %v4911 = vmul.f32 %v4910, %v4804
    %v4912 = vmul.f32 %v4911, %v4910
    %v4913 = vmul.f32 0.5, %v4912
    %v4914 = vsub.f32 1.5, %v4913
    %v4915 = vmul.f32 %v4910, %v4914
    %vm4916 = vweird.f32 %v4804
    %vm4917 = vweird.f32 %v4910
    %vm4918 = vmor %vm4916, %vm4917
    %v4919 = vsel %vm4918, %v4910, %v4915
    %v4920 = vrsqrt.pop %v4805
    %v4921 = vmul.f32 %v4920, %v4805
    %v4922 = vmul.f32 %v4921, %v4920
    %v4923 = vmul.f32 0.5, %v4922
    %v4924 = vsub.f32 1.5, %v4923
    %v4925 = vmul.f32 %v4920, %v4924
    %vm4926 = vweird.f32 %v4805
    %vm4927 = vweird.f32 %v4920
    %vm4928 = vmor %vm4926, %vm4927
    %v4929 = vsel %vm4928, %v4920, %v4925
    %v4930 = vrsqrt.pop %v4806
    %v4931 = vmul.f32 %v4930, %v4806
    %v4932 = vmul.f32 %v4931, %v4930
    %v4933 = vmul.f32 0.5, %v4932
    %v4934 = vsub.f32 1.5, %v4933
    %v4935 = vmul.f32 %v4930, %v4934
    %vm4936 = vweird.f32 %v4806
    %vm4937 = vweird.f32 %v4930
    %vm4938 = vmor %vm4936, %vm4937
    %v4939 = vsel %vm4938, %v4930, %v4935
    %v4940 = vrsqrt.pop %v4807
    %v4941 = vmul.f32 %v4940, %v4807
    %v4942 = vmul.f32 %v4941, %v4940
    %v4943 = vmul.f32 0.5, %v4942
    %v4944 = vsub.f32 1.5, %v4943
    %v4945 = vmul.f32 %v4940, %v4944
    %vm4946 = vweird.f32 %v4807
    %vm4947 = vweird.f32 %v4940
    %vm4948 = vmor %vm4946, %vm4947
    %v4949 = vsel %vm4948, %v4940, %v4945
    %v4950 = vrsqrt.pop %v4808
    %v4951 = vmul.f32 %v4950, %v4808
    %v4952 = vmul.f32 %v4951, %v4950
    %v4953 = vmul.f32 0.5, %v4952
    %v4954 = vsub.f32 1.5, %v4953
    %v4955 = vmul.f32 %v4950, %v4954
    %vm4956 = vweird.f32 %v4808
    %vm4957 = vweird.f32 %v4950
    %vm4958 = vmor %vm4956, %vm4957
    %v4959 = vsel %vm4958, %v4950, %v4955
    %v4960 = vrsqrt.pop %v4809
    %v4961 = vmul.f32 %v4960, %v4809
    %v4962 = vmul.f32 %v4961, %v4960
    %v4963 = vmul.f32 0.5, %v4962
    %v4964 = vsub.f32 1.5, %v4963
    %v4965 = vmul.f32 %v4960, %v4964
    %vm4966 = vweird.f32 %v4809
    %vm4967 = vweird.f32 %v4960
    %vm4968 = vmor %vm4966, %vm4967
    %v4969 = vsel %vm4968, %v4960, %v4965
    %v4970 = vsub.f32 %v4618, %v4666
    %v4971 = vsub.f32 %v4619, %v4667
    %v4972 = vsub.f32 %v4620, %v4668
    %v4973 = vsub.f32 %v4621, %v4669
    %v4974 = vsub.f32 %v4622, %v4670
    %v4975 = vsub.f32 %v4623, %v4671
    %v4976 = vsub.f32 %v4624, %v4672
    %v4977 = vsub.f32 %v4625, %v4673
    %v4978 = vsub.f32 %v4626, %v4674
    %v4979 = vsub.f32 %v4627, %v4675
    %v4980 = vsub.f32 %v4628, %v4676
    %v4981 = vsub.f32 %v4629, %v4677
    %v4982 = vsub.f32 %v4630, %v4678
    %v4983 = vsub.f32 %v4631, %v4679
    %v4984 = vsub.f32 %v4632, %v4680
    %v4985 = vsub.f32 %v4633, %v4681
    %v4986 = vmul.f32 %v4970, %v4819
    %v4987 = vmul.f32 %v4971, %v4829
    %v4988 = vmul.f32 %v4972, %v4839
    %v4989 = vmul.f32 %v4973, %v4849
    %v4990 = vmul.f32 %v4974, %v4859
    %v4991 = vmul.f32 %v4975, %v4869
    %v4992 = vmul.f32 %v4976, %v4879
    %v4993 = vmul.f32 %v4977, %v4889
    %v4994 = vmul.f32 %v4978, %v4899
    %v4995 = vmul.f32 %v4979, %v4909
    %v4996 = vmul.f32 %v4980, %v4919
    %v4997 = vmul.f32 %v4981, %v4929
    %v4998 = vmul.f32 %v4982, %v4939
    %v4999 = vmul.f32 %v4983, %v4949
    %v5000 = vmul.f32 %v4984, %v4959
    %v5001 = vmul.f32 %v4985, %v4969
    %v5002 = vpack.c.bf16 %v4987, %v4986
    %v5003 = vpack.c.bf16 %v4989, %v4988
    %v5004 = vpack.c.bf16 %v4991, %v4990
    %v5005 = vpack.c.bf16 %v4993, %v4992
    %v5006 = vpack.c.bf16 %v4995, %v4994
    %v5007 = vpack.c.bf16 %v4997, %v4996
    %v5008 = vpack.c.bf16 %v4999, %v4998
    %v5009 = vpack.c.bf16 %v5001, %v5000
    %5010 = vmatpush.bf16.xpose.msra.mxu0 %v5009
    %5011 = vmatpush.bf16.xpose.msra.mxu0 %v5008
    %5012 = vmatpush.bf16.xpose.msra.mxu0 %v5007
    %5013 = vmatpush.bf16.xpose.msra.mxu0 %v5006
    %5014 = vmatpush.bf16.xpose.msra.mxu0 %v5005
    %5015 = vmatpush.bf16.xpose.msra.mxu0 %v5004
    %5016 = vmatpush.bf16.xpose.msra.mxu0 %v5003
    %5017 = vmatpush.bf16.xpose.msra.mxu0 %v5002
    %5018 = vmatmul.bf16.gmra.mxu0 %v1348
    %v5019 = vpop.f32.mrf.mxu0
    %v5020 = vadd.f32 0.0, %v5019
    %v5021 = vpop.f32.mrf.mxu0
    %5022 = vdwg.mxu0
    %v5023 = vadd.f32 %v5020, %v1758
    %s5024 = scalar_lea.vmem [#allocation6], 32
    %5025 = vst [vmem:[%s5024] sm:$0xf] %v5023
    %v5026 = vld [vmem:[#allocation2 + $0x48] sm:$0xff]
    %v5027 = vld [vmem:[#allocation2 + $0xc8] sm:$0xff]
    %v5028 = vld [vmem:[#allocation2 + $0x148] sm:$0xff]
    %v5029 = vld [vmem:[#allocation2 + $0x1c8] sm:$0xff]
    %v5030 = vld [vmem:[#allocation2 + $0x248] sm:$0xff]
    %v5031 = vld [vmem:[#allocation2 + $0x2c8] sm:$0xff]
    %v5032 = vld [vmem:[#allocation2 + $0x348] sm:$0xff]
    %v5033 = vld [vmem:[#allocation2 + $0x3c8] sm:$0xff]
    %v5034 = vld [vmem:[#allocation2 + $0x448] sm:$0xff]
    %v5035 = vld [vmem:[#allocation2 + $0x4c8] sm:$0xff]
    %v5036 = vld [vmem:[#allocation2 + $0x548] sm:$0xff]
    %v5037 = vld [vmem:[#allocation2 + $0x5c8] sm:$0xff]
    %v5038 = vld [vmem:[#allocation2 + $0x648] sm:$0xff]
    %v5039 = vld [vmem:[#allocation2 + $0x6c8] sm:$0xff]
    %v5040 = vld [vmem:[#allocation2 + $0x748] sm:$0xff]
    %v5041 = vld [vmem:[#allocation2 + $0x7c8] sm:$0xff]
    %5042 = vadd.xlane.f32.xlu0 %v5026
    %v5043 = vpop.xlane.xlu0 %5042
    %5044 = vadd.xlane.f32.xlu0 %v5027
    %v5045 = vpop.xlane.xlu0 %5044
    %5046 = vadd.xlane.f32.xlu0 %v5028
    %v5047 = vpop.xlane.xlu0 %5046
    %5048 = vadd.xlane.f32.xlu0 %v5029
    %v5049 = vpop.xlane.xlu0 %5048
    %5050 = vadd.xlane.f32.xlu0 %v5030
    %v5051 = vpop.xlane.xlu0 %5050
    %5052 = vadd.xlane.f32.xlu0 %v5031
    %v5053 = vpop.xlane.xlu0 %5052
    %5054 = vadd.xlane.f32.xlu0 %v5032
    %v5055 = vpop.xlane.xlu0 %5054
    %5056 = vadd.xlane.f32.xlu0 %v5033
    %v5057 = vpop.xlane.xlu0 %5056
    %5058 = vadd.xlane.f32.xlu0 %v5034
    %v5059 = vpop.xlane.xlu0 %5058
    %5060 = vadd.xlane.f32.xlu0 %v5035
    %v5061 = vpop.xlane.xlu0 %5060
    %5062 = vadd.xlane.f32.xlu0 %v5036
    %v5063 = vpop.xlane.xlu0 %5062
    %5064 = vadd.xlane.f32.xlu0 %v5037
    %v5065 = vpop.xlane.xlu0 %5064
    %5066 = vadd.xlane.f32.xlu0 %v5038
    %v5067 = vpop.xlane.xlu0 %5066
    %5068 = vadd.xlane.f32.xlu0 %v5039
    %v5069 = vpop.xlane.xlu0 %5068
    %5070 = vadd.xlane.f32.xlu0 %v5040
    %v5071 = vpop.xlane.xlu0 %5070
    %5072 = vadd.xlane.f32.xlu0 %v5041
    %v5073 = vpop.xlane.xlu0 %5072
    %v5074 = vmul.f32 %v5043, 0.03125
    %v5075 = vmul.f32 %v5045, 0.03125
    %v5076 = vmul.f32 %v5047, 0.03125
    %v5077 = vmul.f32 %v5049, 0.03125
    %v5078 = vmul.f32 %v5051, 0.03125
    %v5079 = vmul.f32 %v5053, 0.03125
    %v5080 = vmul.f32 %v5055, 0.03125
    %v5081 = vmul.f32 %v5057, 0.03125
    %v5082 = vmul.f32 %v5059, 0.03125
    %v5083 = vmul.f32 %v5061, 0.03125
    %v5084 = vmul.f32 %v5063, 0.03125
    %v5085 = vmul.f32 %v5065, 0.03125
    %v5086 = vmul.f32 %v5067, 0.03125
    %v5087 = vmul.f32 %v5069, 0.03125
    %v5088 = vmul.f32 %v5071, 0.03125
    %v5089 = vmul.f32 %v5073, 0.03125
    %v5090 = vmul.f32 %v5026, %v5026
    %v5091 = vmul.f32 %v5027, %v5027
    %v5092 = vmul.f32 %v5028, %v5028
    %v5093 = vmul.f32 %v5029, %v5029
    %v5094 = vmul.f32 %v5030, %v5030
    %v5095 = vmul.f32 %v5031, %v5031
    %v5096 = vmul.f32 %v5032, %v5032
    %v5097 = vmul.f32 %v5033, %v5033
    %v5098 = vmul.f32 %v5034, %v5034
    %v5099 = vmul.f32 %v5035, %v5035
    %v5100 = vmul.f32 %v5036, %v5036
    %v5101 = vmul.f32 %v5037, %v5037
    %v5102 = vmul.f32 %v5038, %v5038
    %v5103 = vmul.f32 %v5039, %v5039
    %v5104 = vmul.f32 %v5040, %v5040
    %v5105 = vmul.f32 %v5041, %v5041
    %5106 = vadd.xlane.f32.xlu0 %v5090
    %v5107 = vpop.xlane.xlu0 %5106
    %5108 = vadd.xlane.f32.xlu0 %v5091
    %v5109 = vpop.xlane.xlu0 %5108
    %5110 = vadd.xlane.f32.xlu0 %v5092
    %v5111 = vpop.xlane.xlu0 %5110
    %5112 = vadd.xlane.f32.xlu0 %v5093
    %v5113 = vpop.xlane.xlu0 %5112
    %5114 = vadd.xlane.f32.xlu0 %v5094
    %v5115 = vpop.xlane.xlu0 %5114
    %5116 = vadd.xlane.f32.xlu0 %v5095
    %v5117 = vpop.xlane.xlu0 %5116
    %5118 = vadd.xlane.f32.xlu0 %v5096
    %v5119 = vpop.xlane.xlu0 %5118
    %5120 = vadd.xlane.f32.xlu0 %v5097
    %v5121 = vpop.xlane.xlu0 %5120
    %5122 = vadd.xlane.f32.xlu0 %v5098
    %v5123 = vpop.xlane.xlu0 %5122
    %5124 = vadd.xlane.f32.xlu0 %v5099
    %v5125 = vpop.xlane.xlu0 %5124
    %5126 = vadd.xlane.f32.xlu0 %v5100
    %v5127 = vpop.xlane.xlu0 %5126
    %5128 = vadd.xlane.f32.xlu0 %v5101
    %v5129 = vpop.xlane.xlu0 %5128
    %5130 = vadd.xlane.f32.xlu0 %v5102
    %v5131 = vpop.xlane.xlu0 %5130
    %5132 = vadd.xlane.f32.xlu0 %v5103
    %v5133 = vpop.xlane.xlu0 %5132
    %5134 = vadd.xlane.f32.xlu0 %v5104
    %v5135 = vpop.xlane.xlu0 %5134
    %5136 = vadd.xlane.f32.xlu0 %v5105
    %v5137 = vpop.xlane.xlu0 %5136
    %v5138 = vmul.f32 %v5107, 0.03125
    %v5139 = vmul.f32 %v5109, 0.03125
    %v5140 = vmul.f32 %v5111, 0.03125
    %v5141 = vmul.f32 %v5113, 0.03125
    %v5142 = vmul.f32 %v5115, 0.03125
    %v5143 = vmul.f32 %v5117, 0.03125
    %v5144 = vmul.f32 %v5119, 0.03125
    %v5145 = vmul.f32 %v5121, 0.03125
    %v5146 = vmul.f32 %v5123, 0.03125
    %v5147 = vmul.f32 %v5125, 0.03125
    %v5148 = vmul.f32 %v5127, 0.03125
    %v5149 = vmul.f32 %v5129, 0.03125
    %v5150 = vmul.f32 %v5131, 0.03125
    %v5151 = vmul.f32 %v5133, 0.03125
    %v5152 = vmul.f32 %v5135, 0.03125
    %v5153 = vmul.f32 %v5137, 0.03125
    %v5154 = vmul.f32 %v5074, %v5074
    %v5155 = vmul.f32 %v5075, %v5075
    %v5156 = vmul.f32 %v5076, %v5076
    %v5157 = vmul.f32 %v5077, %v5077
    %v5158 = vmul.f32 %v5078, %v5078
    %v5159 = vmul.f32 %v5079, %v5079
    %v5160 = vmul.f32 %v5080, %v5080
    %v5161 = vmul.f32 %v5081, %v5081
    %v5162 = vmul.f32 %v5082, %v5082
    %v5163 = vmul.f32 %v5083, %v5083
    %v5164 = vmul.f32 %v5084, %v5084
    %v5165 = vmul.f32 %v5085, %v5085
    %v5166 = vmul.f32 %v5086, %v5086
    %v5167 = vmul.f32 %v5087, %v5087
    %v5168 = vmul.f32 %v5088, %v5088
    %v5169 = vmul.f32 %v5089, %v5089
    %v5170 = vsub.f32 %v5138, %v5154
    %v5171 = vsub.f32 %v5139, %v5155
    %v5172 = vsub.f32 %v5140, %v5156
    %v5173 = vsub.f32 %v5141, %v5157
    %v5174 = vsub.f32 %v5142, %v5158
    %v5175 = vsub.f32 %v5143, %v5159
    %v5176 = vsub.f32 %v5144, %v5160
    %v5177 = vsub.f32 %v5145, %v5161
    %v5178 = vsub.f32 %v5146, %v5162
    %v5179 = vsub.f32 %v5147, %v5163
    %v5180 = vsub.f32 %v5148, %v5164
    %v5181 = vsub.f32 %v5149, %v5165
    %v5182 = vsub.f32 %v5150, %v5166
    %v5183 = vsub.f32 %v5151, %v5167
    %v5184 = vsub.f32 %v5152, %v5168
    %v5185 = vsub.f32 %v5153, %v5169
    %v5186 = vmax.f32 %v5170, 0.0
    %v5187 = vmax.f32 %v5171, 0.0
    %v5188 = vmax.f32 %v5172, 0.0
    %v5189 = vmax.f32 %v5173, 0.0
    %v5190 = vmax.f32 %v5174, 0.0
    %v5191 = vmax.f32 %v5175, 0.0
    %v5192 = vmax.f32 %v5176, 0.0
    %v5193 = vmax.f32 %v5177, 0.0
    %v5194 = vmax.f32 %v5178, 0.0
    %v5195 = vmax.f32 %v5179, 0.0
    %v5196 = vmax.f32 %v5180, 0.0
    %v5197 = vmax.f32 %v5181, 0.0
    %v5198 = vmax.f32 %v5182, 0.0
    %v5199 = vmax.f32 %v5183, 0.0
    %v5200 = vmax.f32 %v5184, 0.0
    %v5201 = vmax.f32 %v5185, 0.0
    %v5202 = vadd.f32 %v5186, 1e-05
    %v5203 = vadd.f32 %v5187, 1e-05
    %v5204 = vadd.f32 %v5188, 1e-05
    %v5205 = vadd.f32 %v5189, 1e-05
    %v5206 = vadd.f32 %v5190, 1e-05
    %v5207 = vadd.f32 %v5191, 1e-05
    %v5208 = vadd.f32 %v5192, 1e-05
    %v5209 = vadd.f32 %v5193, 1e-05
    %v5210 = vadd.f32 %v5194, 1e-05
    %v5211 = vadd.f32 %v5195, 1e-05
    %v5212 = vadd.f32 %v5196, 1e-05
    %v5213 = vadd.f32 %v5197, 1e-05
    %v5214 = vadd.f32 %v5198, 1e-05
    %v5215 = vadd.f32 %v5199, 1e-05
    %v5216 = vadd.f32 %v5200, 1e-05
    %v5217 = vadd.f32 %v5201, 1e-05
    %v5218 = vrsqrt.pop %v5202
    %v5219 = vmul.f32 %v5218, %v5202
    %v5220 = vmul.f32 %v5219, %v5218
    %v5221 = vmul.f32 0.5, %v5220
    %v5222 = vsub.f32 1.5, %v5221
    %v5223 = vmul.f32 %v5218, %v5222
    %vm5224 = vweird.f32 %v5202
    %vm5225 = vweird.f32 %v5218
    %vm5226 = vmor %vm5224, %vm5225
    %v5227 = vsel %vm5226, %v5218, %v5223
    %v5228 = vrsqrt.pop %v5203
    %v5229 = vmul.f32 %v5228, %v5203
    %v5230 = vmul.f32 %v5229, %v5228
    %v5231 = vmul.f32 0.5, %v5230
    %v5232 = vsub.f32 1.5, %v5231
    %v5233 = vmul.f32 %v5228, %v5232
    %vm5234 = vweird.f32 %v5203
    %vm5235 = vweird.f32 %v5228
    %vm5236 = vmor %vm5234, %vm5235
    %v5237 = vsel %vm5236, %v5228, %v5233
    %v5238 = vrsqrt.pop %v5204
    %v5239 = vmul.f32 %v5238, %v5204
    %v5240 = vmul.f32 %v5239, %v5238
    %v5241 = vmul.f32 0.5, %v5240
    %v5242 = vsub.f32 1.5, %v5241
    %v5243 = vmul.f32 %v5238, %v5242
    %vm5244 = vweird.f32 %v5204
    %vm5245 = vweird.f32 %v5238
    %vm5246 = vmor %vm5244, %vm5245
    %v5247 = vsel %vm5246, %v5238, %v5243
    %v5248 = vrsqrt.pop %v5205
    %v5249 = vmul.f32 %v5248, %v5205
    %v5250 = vmul.f32 %v5249, %v5248
    %v5251 = vmul.f32 0.5, %v5250
    %v5252 = vsub.f32 1.5, %v5251
    %v5253 = vmul.f32 %v5248, %v5252
    %vm5254 = vweird.f32 %v5205
    %vm5255 = vweird.f32 %v5248
    %vm5256 = vmor %vm5254, %vm5255
    %v5257 = vsel %vm5256, %v5248, %v5253
    %v5258 = vrsqrt.pop %v5206
    %v5259 = vmul.f32 %v5258, %v5206
    %v5260 = vmul.f32 %v5259, %v5258
    %v5261 = vmul.f32 0.5, %v5260
    %v5262 = vsub.f32 1.5, %v5261
    %v5263 = vmul.f32 %v5258, %v5262
    %vm5264 = vweird.f32 %v5206
    %vm5265 = vweird.f32 %v5258
    %vm5266 = vmor %vm5264, %vm5265
    %v5267 = vsel %vm5266, %v5258, %v5263
    %v5268 = vrsqrt.pop %v5207
    %v5269 = vmul.f32 %v5268, %v5207
    %v5270 = vmul.f32 %v5269, %v5268
    %v5271 = vmul.f32 0.5, %v5270
    %v5272 = vsub.f32 1.5, %v5271
    %v5273 = vmul.f32 %v5268, %v5272
    %vm5274 = vweird.f32 %v5207
    %vm5275 = vweird.f32 %v5268
    %vm5276 = vmor %vm5274, %vm5275
    %v5277 = vsel %vm5276, %v5268, %v5273
    %v5278 = vrsqrt.pop %v5208
    %v5279 = vmul.f32 %v5278, %v5208
    %v5280 = vmul.f32 %v5279, %v5278
    %v5281 = vmul.f32 0.5, %v5280
    %v5282 = vsub.f32 1.5, %v5281
    %v5283 = vmul.f32 %v5278, %v5282
    %vm5284 = vweird.f32 %v5208
    %vm5285 = vweird.f32 %v5278
    %vm5286 = vmor %vm5284, %vm5285
    %v5287 = vsel %vm5286, %v5278, %v5283
    %v5288 = vrsqrt.pop %v5209
    %v5289 = vmul.f32 %v5288, %v5209
    %v5290 = vmul.f32 %v5289, %v5288
    %v5291 = vmul.f32 0.5, %v5290
    %v5292 = vsub.f32 1.5, %v5291
    %v5293 = vmul.f32 %v5288, %v5292
    %vm5294 = vweird.f32 %v5209
    %vm5295 = vweird.f32 %v5288
    %vm5296 = vmor %vm5294, %vm5295
    %v5297 = vsel %vm5296, %v5288, %v5293
    %v5298 = vrsqrt.pop %v5210
    %v5299 = vmul.f32 %v5298, %v5210
    %v5300 = vmul.f32 %v5299, %v5298
    %v5301 = vmul.f32 0.5, %v5300
    %v5302 = vsub.f32 1.5, %v5301
    %v5303 = vmul.f32 %v5298, %v5302
    %vm5304 = vweird.f32 %v5210
    %vm5305 = vweird.f32 %v5298
    %vm5306 = vmor %vm5304, %vm5305
    %v5307 = vsel %vm5306, %v5298, %v5303
    %v5308 = vrsqrt.pop %v5211
    %v5309 = vmul.f32 %v5308, %v5211
    %v5310 = vmul.f32 %v5309, %v5308
    %v5311 = vmul.f32 0.5, %v5310
    %v5312 = vsub.f32 1.5, %v5311
    %v5313 = vmul.f32 %v5308, %v5312
    %vm5314 = vweird.f32 %v5211
    %vm5315 = vweird.f32 %v5308
    %vm5316 = vmor %vm5314, %vm5315
    %v5317 = vsel %vm5316, %v5308, %v5313
    %v5318 = vrsqrt.pop %v5212
    %v5319 = vmul.f32 %v5318, %v5212
    %v5320 = vmul.f32 %v5319, %v5318
    %v5321 = vmul.f32 0.5, %v5320
    %v5322 = vsub.f32 1.5, %v5321
    %v5323 = vmul.f32 %v5318, %v5322
    %vm5324 = vweird.f32 %v5212
    %vm5325 = vweird.f32 %v5318
    %vm5326 = vmor %vm5324, %vm5325
    %v5327 = vsel %vm5326, %v5318, %v5323
    %v5328 = vrsqrt.pop %v5213
    %v5329 = vmul.f32 %v5328, %v5213
    %v5330 = vmul.f32 %v5329, %v5328
    %v5331 = vmul.f32 0.5, %v5330
    %v5332 = vsub.f32 1.5, %v5331
    %v5333 = vmul.f32 %v5328, %v5332
    %vm5334 = vweird.f32 %v5213
    %vm5335 = vweird.f32 %v5328
    %vm5336 = vmor %vm5334, %vm5335
    %v5337 = vsel %vm5336, %v5328, %v5333
    %v5338 = vrsqrt.pop %v5214
    %v5339 = vmul.f32 %v5338, %v5214
    %v5340 = vmul.f32 %v5339, %v5338
    %v5341 = vmul.f32 0.5, %v5340
    %v5342 = vsub.f32 1.5, %v5341
    %v5343 = vmul.f32 %v5338, %v5342
    %vm5344 = vweird.f32 %v5214
    %vm5345 = vweird.f32 %v5338
    %vm5346 = vmor %vm5344, %vm5345
    %v5347 = vsel %vm5346, %v5338, %v5343
    %v5348 = vrsqrt.pop %v5215
    %v5349 = vmul.f32 %v5348, %v5215
    %v5350 = vmul.f32 %v5349, %v5348
    %v5351 = vmul.f32 0.5, %v5350
    %v5352 = vsub.f32 1.5, %v5351
    %v5353 = vmul.f32 %v5348, %v5352
    %vm5354 = vweird.f32 %v5215
    %vm5355 = vweird.f32 %v5348
    %vm5356 = vmor %vm5354, %vm5355
    %v5357 = vsel %vm5356, %v5348, %v5353
    %v5358 = vrsqrt.pop %v5216
    %v5359 = vmul.f32 %v5358, %v5216
    %v5360 = vmul.f32 %v5359, %v5358
    %v5361 = vmul.f32 0.5, %v5360
    %v5362 = vsub.f32 1.5, %v5361
    %v5363 = vmul.f32 %v5358, %v5362
    %vm5364 = vweird.f32 %v5216
    %vm5365 = vweird.f32 %v5358
    %vm5366 = vmor %vm5364, %vm5365
    %v5367 = vsel %vm5366, %v5358, %v5363
    %v5368 = vrsqrt.pop %v5217
    %v5369 = vmul.f32 %v5368, %v5217
    %v5370 = vmul.f32 %v5369, %v5368
    %v5371 = vmul.f32 0.5, %v5370
    %v5372 = vsub.f32 1.5, %v5371
    %v5373 = vmul.f32 %v5368, %v5372
    %vm5374 = vweird.f32 %v5217
    %vm5375 = vweird.f32 %v5368
    %vm5376 = vmor %vm5374, %vm5375
    %v5377 = vsel %vm5376, %v5368, %v5373
    %v5378 = vsub.f32 %v5026, %v5074
    %v5379 = vsub.f32 %v5027, %v5075
    %v5380 = vsub.f32 %v5028, %v5076
    %v5381 = vsub.f32 %v5029, %v5077
    %v5382 = vsub.f32 %v5030, %v5078
    %v5383 = vsub.f32 %v5031, %v5079
    %v5384 = vsub.f32 %v5032, %v5080
    %v5385 = vsub.f32 %v5033, %v5081
    %v5386 = vsub.f32 %v5034, %v5082
    %v5387 = vsub.f32 %v5035, %v5083
    %v5388 = vsub.f32 %v5036, %v5084
    %v5389 = vsub.f32 %v5037, %v5085
    %v5390 = vsub.f32 %v5038, %v5086
    %v5391 = vsub.f32 %v5039, %v5087
    %v5392 = vsub.f32 %v5040, %v5088
    %v5393 = vsub.f32 %v5041, %v5089
    %v5394 = vmul.f32 %v5378, %v5227
    %v5395 = vmul.f32 %v5379, %v5237
    %v5396 = vmul.f32 %v5380, %v5247
    %v5397 = vmul.f32 %v5381, %v5257
    %v5398 = vmul.f32 %v5382, %v5267
    %v5399 = vmul.f32 %v5383, %v5277
    %v5400 = vmul.f32 %v5384, %v5287
    %v5401 = vmul.f32 %v5385, %v5297
    %v5402 = vmul.f32 %v5386, %v5307
    %v5403 = vmul.f32 %v5387, %v5317
    %v5404 = vmul.f32 %v5388, %v5327
    %v5405 = vmul.f32 %v5389, %v5337
    %v5406 = vmul.f32 %v5390, %v5347
    %v5407 = vmul.f32 %v5391, %v5357
    %v5408 = vmul.f32 %v5392, %v5367
    %v5409 = vmul.f32 %v5393, %v5377
    %v5410 = vpack.c.bf16 %v5395, %v5394
    %v5411 = vpack.c.bf16 %v5397, %v5396
    %v5412 = vpack.c.bf16 %v5399, %v5398
    %v5413 = vpack.c.bf16 %v5401, %v5400
    %v5414 = vpack.c.bf16 %v5403, %v5402
    %v5415 = vpack.c.bf16 %v5405, %v5404
    %v5416 = vpack.c.bf16 %v5407, %v5406
    %v5417 = vpack.c.bf16 %v5409, %v5408
    %5418 = vmatpush.bf16.xpose.msra.mxu0 %v5417
    %5419 = vmatpush.bf16.xpose.msra.mxu0 %v5416
    %5420 = vmatpush.bf16.xpose.msra.mxu0 %v5415
    %5421 = vmatpush.bf16.xpose.msra.mxu0 %v5414
    %5422 = vmatpush.bf16.xpose.msra.mxu0 %v5413
    %5423 = vmatpush.bf16.xpose.msra.mxu0 %v5412
    %5424 = vmatpush.bf16.xpose.msra.mxu0 %v5411
    %5425 = vmatpush.bf16.xpose.msra.mxu0 %v5410
    %5426 = vmatmul.bf16.gmra.mxu0 %v1348
    %v5427 = vpop.f32.mrf.mxu0
    %v5428 = vadd.f32 0.0, %v5427
    %v5429 = vpop.f32.mrf.mxu0
    %5430 = vdwg.mxu0
    %v5431 = vadd.f32 %v5428, %v1758
    %s5432 = scalar_lea.vmem [#allocation6], 36
    %5433 = vst [vmem:[%s5432] sm:$0xf] %v5431
    %v5434 = vld [vmem:[#allocation2 + $0x50] sm:$0xff]
    %v5435 = vld [vmem:[#allocation2 + $0xd0] sm:$0xff]
    %v5436 = vld [vmem:[#allocation2 + $0x150] sm:$0xff]
    %v5437 = vld [vmem:[#allocation2 + $0x1d0] sm:$0xff]
    %v5438 = vld [vmem:[#allocation2 + $0x250] sm:$0xff]
    %v5439 = vld [vmem:[#allocation2 + $0x2d0] sm:$0xff]
    %v5440 = vld [vmem:[#allocation2 + $0x350] sm:$0xff]
    %v5441 = vld [vmem:[#allocation2 + $0x3d0] sm:$0xff]
    %v5442 = vld [vmem:[#allocation2 + $0x450] sm:$0xff]
    %v5443 = vld [vmem:[#allocation2 + $0x4d0] sm:$0xff]
    %v5444 = vld [vmem:[#allocation2 + $0x550] sm:$0xff]
    %v5445 = vld [vmem:[#allocation2 + $0x5d0] sm:$0xff]
    %v5446 = vld [vmem:[#allocation2 + $0x650] sm:$0xff]
    %v5447 = vld [vmem:[#allocation2 + $0x6d0] sm:$0xff]
    %v5448 = vld [vmem:[#allocation2 + $0x750] sm:$0xff]
    %v5449 = vld [vmem:[#allocation2 + $0x7d0] sm:$0xff]
    %5450 = vadd.xlane.f32.xlu0 %v5434
    %v5451 = vpop.xlane.xlu0 %5450
    %5452 = vadd.xlane.f32.xlu0 %v5435
    %v5453 = vpop.xlane.xlu0 %5452
    %5454 = vadd.xlane.f32.xlu0 %v5436
    %v5455 = vpop.xlane.xlu0 %5454
    %5456 = vadd.xlane.f32.xlu0 %v5437
    %v5457 = vpop.xlane.xlu0 %5456
    %5458 = vadd.xlane.f32.xlu0 %v5438
    %v5459 = vpop.xlane.xlu0 %5458
    %5460 = vadd.xlane.f32.xlu0 %v5439
    %v5461 = vpop.xlane.xlu0 %5460
    %5462 = vadd.xlane.f32.xlu0 %v5440
    %v5463 = vpop.xlane.xlu0 %5462
    %5464 = vadd.xlane.f32.xlu0 %v5441
    %v5465 = vpop.xlane.xlu0 %5464
    %5466 = vadd.xlane.f32.xlu0 %v5442
    %v5467 = vpop.xlane.xlu0 %5466
    %5468 = vadd.xlane.f32.xlu0 %v5443
    %v5469 = vpop.xlane.xlu0 %5468
    %5470 = vadd.xlane.f32.xlu0 %v5444
    %v5471 = vpop.xlane.xlu0 %5470
    %5472 = vadd.xlane.f32.xlu0 %v5445
    %v5473 = vpop.xlane.xlu0 %5472
    %5474 = vadd.xlane.f32.xlu0 %v5446
    %v5475 = vpop.xlane.xlu0 %5474
    %5476 = vadd.xlane.f32.xlu0 %v5447
    %v5477 = vpop.xlane.xlu0 %5476
    %5478 = vadd.xlane.f32.xlu0 %v5448
    %v5479 = vpop.xlane.xlu0 %5478
    %5480 = vadd.xlane.f32.xlu0 %v5449
    %v5481 = vpop.xlane.xlu0 %5480
    %v5482 = vmul.f32 %v5451, 0.03125
    %v5483 = vmul.f32 %v5453, 0.03125
    %v5484 = vmul.f32 %v5455, 0.03125
    %v5485 = vmul.f32 %v5457, 0.03125
    %v5486 = vmul.f32 %v5459, 0.03125
    %v5487 = vmul.f32 %v5461, 0.03125
    %v5488 = vmul.f32 %v5463, 0.03125
    %v5489 = vmul.f32 %v5465, 0.03125
    %v5490 = vmul.f32 %v5467, 0.03125
    %v5491 = vmul.f32 %v5469, 0.03125
    %v5492 = vmul.f32 %v5471, 0.03125
    %v5493 = vmul.f32 %v5473, 0.03125
    %v5494 = vmul.f32 %v5475, 0.03125
    %v5495 = vmul.f32 %v5477, 0.03125
    %v5496 = vmul.f32 %v5479, 0.03125
    %v5497 = vmul.f32 %v5481, 0.03125
    %v5498 = vmul.f32 %v5434, %v5434
    %v5499 = vmul.f32 %v5435, %v5435
    %v5500 = vmul.f32 %v5436, %v5436
    %v5501 = vmul.f32 %v5437, %v5437
    %v5502 = vmul.f32 %v5438, %v5438
    %v5503 = vmul.f32 %v5439, %v5439
    %v5504 = vmul.f32 %v5440, %v5440
    %v5505 = vmul.f32 %v5441, %v5441
    %v5506 = vmul.f32 %v5442, %v5442
    %v5507 = vmul.f32 %v5443, %v5443
    %v5508 = vmul.f32 %v5444, %v5444
    %v5509 = vmul.f32 %v5445, %v5445
    %v5510 = vmul.f32 %v5446, %v5446
    %v5511 = vmul.f32 %v5447, %v5447
    %v5512 = vmul.f32 %v5448, %v5448
    %v5513 = vmul.f32 %v5449, %v5449
    %5514 = vadd.xlane.f32.xlu0 %v5498
    %v5515 = vpop.xlane.xlu0 %5514
    %5516 = vadd.xlane.f32.xlu0 %v5499
    %v5517 = vpop.xlane.xlu0 %5516
    %5518 = vadd.xlane.f32.xlu0 %v5500
    %v5519 = vpop.xlane.xlu0 %5518
    %5520 = vadd.xlane.f32.xlu0 %v5501
    %v5521 = vpop.xlane.xlu0 %5520
    %5522 = vadd.xlane.f32.xlu0 %v5502
    %v5523 = vpop.xlane.xlu0 %5522
    %5524 = vadd.xlane.f32.xlu0 %v5503
    %v5525 = vpop.xlane.xlu0 %5524
    %5526 = vadd.xlane.f32.xlu0 %v5504
    %v5527 = vpop.xlane.xlu0 %5526
    %5528 = vadd.xlane.f32.xlu0 %v5505
    %v5529 = vpop.xlane.xlu0 %5528
    %5530 = vadd.xlane.f32.xlu0 %v5506
    %v5531 = vpop.xlane.xlu0 %5530
    %5532 = vadd.xlane.f32.xlu0 %v5507
    %v5533 = vpop.xlane.xlu0 %5532
    %5534 = vadd.xlane.f32.xlu0 %v5508
    %v5535 = vpop.xlane.xlu0 %5534
    %5536 = vadd.xlane.f32.xlu0 %v5509
    %v5537 = vpop.xlane.xlu0 %5536
    %5538 = vadd.xlane.f32.xlu0 %v5510
    %v5539 = vpop.xlane.xlu0 %5538
    %5540 = vadd.xlane.f32.xlu0 %v5511
    %v5541 = vpop.xlane.xlu0 %5540
    %5542 = vadd.xlane.f32.xlu0 %v5512
    %v5543 = vpop.xlane.xlu0 %5542
    %5544 = vadd.xlane.f32.xlu0 %v5513
    %v5545 = vpop.xlane.xlu0 %5544
    %v5546 = vmul.f32 %v5515, 0.03125
    %v5547 = vmul.f32 %v5517, 0.03125
    %v5548 = vmul.f32 %v5519, 0.03125
    %v5549 = vmul.f32 %v5521, 0.03125
    %v5550 = vmul.f32 %v5523, 0.03125
    %v5551 = vmul.f32 %v5525, 0.03125
    %v5552 = vmul.f32 %v5527, 0.03125
    %v5553 = vmul.f32 %v5529, 0.03125
    %v5554 = vmul.f32 %v5531, 0.03125
    %v5555 = vmul.f32 %v5533, 0.03125
    %v5556 = vmul.f32 %v5535, 0.03125
    %v5557 = vmul.f32 %v5537, 0.03125
    %v5558 = vmul.f32 %v5539, 0.03125
    %v5559 = vmul.f32 %v5541, 0.03125
    %v5560 = vmul.f32 %v5543, 0.03125
    %v5561 = vmul.f32 %v5545, 0.03125
    %v5562 = vmul.f32 %v5482, %v5482
    %v5563 = vmul.f32 %v5483, %v5483
    %v5564 = vmul.f32 %v5484, %v5484
    %v5565 = vmul.f32 %v5485, %v5485
    %v5566 = vmul.f32 %v5486, %v5486
    %v5567 = vmul.f32 %v5487, %v5487
    %v5568 = vmul.f32 %v5488, %v5488
    %v5569 = vmul.f32 %v5489, %v5489
    %v5570 = vmul.f32 %v5490, %v5490
    %v5571 = vmul.f32 %v5491, %v5491
    %v5572 = vmul.f32 %v5492, %v5492
    %v5573 = vmul.f32 %v5493, %v5493
    %v5574 = vmul.f32 %v5494, %v5494
    %v5575 = vmul.f32 %v5495, %v5495
    %v5576 = vmul.f32 %v5496, %v5496
    %v5577 = vmul.f32 %v5497, %v5497
    %v5578 = vsub.f32 %v5546, %v5562
    %v5579 = vsub.f32 %v5547, %v5563
    %v5580 = vsub.f32 %v5548, %v5564
    %v5581 = vsub.f32 %v5549, %v5565
    %v5582 = vsub.f32 %v5550, %v5566
    %v5583 = vsub.f32 %v5551, %v5567
    %v5584 = vsub.f32 %v5552, %v5568
    %v5585 = vsub.f32 %v5553, %v5569
    %v5586 = vsub.f32 %v5554, %v5570
    %v5587 = vsub.f32 %v5555, %v5571
    %v5588 = vsub.f32 %v5556, %v5572
    %v5589 = vsub.f32 %v5557, %v5573
    %v5590 = vsub.f32 %v5558, %v5574
    %v5591 = vsub.f32 %v5559, %v5575
    %v5592 = vsub.f32 %v5560, %v5576
    %v5593 = vsub.f32 %v5561, %v5577
    %v5594 = vmax.f32 %v5578, 0.0
    %v5595 = vmax.f32 %v5579, 0.0
    %v5596 = vmax.f32 %v5580, 0.0
    %v5597 = vmax.f32 %v5581, 0.0
    %v5598 = vmax.f32 %v5582, 0.0
    %v5599 = vmax.f32 %v5583, 0.0
    %v5600 = vmax.f32 %v5584, 0.0
    %v5601 = vmax.f32 %v5585, 0.0
    %v5602 = vmax.f32 %v5586, 0.0
    %v5603 = vmax.f32 %v5587, 0.0
    %v5604 = vmax.f32 %v5588, 0.0
    %v5605 = vmax.f32 %v5589, 0.0
    %v5606 = vmax.f32 %v5590, 0.0
    %v5607 = vmax.f32 %v5591, 0.0
    %v5608 = vmax.f32 %v5592, 0.0
    %v5609 = vmax.f32 %v5593, 0.0
    %v5610 = vadd.f32 %v5594, 1e-05
    %v5611 = vadd.f32 %v5595, 1e-05
    %v5612 = vadd.f32 %v5596, 1e-05
    %v5613 = vadd.f32 %v5597, 1e-05
    %v5614 = vadd.f32 %v5598, 1e-05
    %v5615 = vadd.f32 %v5599, 1e-05
    %v5616 = vadd.f32 %v5600, 1e-05
    %v5617 = vadd.f32 %v5601, 1e-05
    %v5618 = vadd.f32 %v5602, 1e-05
    %v5619 = vadd.f32 %v5603, 1e-05
    %v5620 = vadd.f32 %v5604, 1e-05
    %v5621 = vadd.f32 %v5605, 1e-05
    %v5622 = vadd.f32 %v5606, 1e-05
    %v5623 = vadd.f32 %v5607, 1e-05
    %v5624 = vadd.f32 %v5608, 1e-05
    %v5625 = vadd.f32 %v5609, 1e-05
    %v5626 = vrsqrt.pop %v5610
    %v5627 = vmul.f32 %v5626, %v5610
    %v5628 = vmul.f32 %v5627, %v5626
    %v5629 = vmul.f32 0.5, %v5628
    %v5630 = vsub.f32 1.5, %v5629
    %v5631 = vmul.f32 %v5626, %v5630
    %vm5632 = vweird.f32 %v5610
    %vm5633 = vweird.f32 %v5626
    %vm5634 = vmor %vm5632, %vm5633
    %v5635 = vsel %vm5634, %v5626, %v5631
    %v5636 = vrsqrt.pop %v5611
    %v5637 = vmul.f32 %v5636, %v5611
    %v5638 = vmul.f32 %v5637, %v5636
    %v5639 = vmul.f32 0.5, %v5638
    %v5640 = vsub.f32 1.5, %v5639
    %v5641 = vmul.f32 %v5636, %v5640
    %vm5642 = vweird.f32 %v5611
    %vm5643 = vweird.f32 %v5636
    %vm5644 = vmor %vm5642, %vm5643
    %v5645 = vsel %vm5644, %v5636, %v5641
    %v5646 = vrsqrt.pop %v5612
    %v5647 = vmul.f32 %v5646, %v5612
    %v5648 = vmul.f32 %v5647, %v5646
    %v5649 = vmul.f32 0.5, %v5648
    %v5650 = vsub.f32 1.5, %v5649
    %v5651 = vmul.f32 %v5646, %v5650
    %vm5652 = vweird.f32 %v5612
    %vm5653 = vweird.f32 %v5646
    %vm5654 = vmor %vm5652, %vm5653
    %v5655 = vsel %vm5654, %v5646, %v5651
    %v5656 = vrsqrt.pop %v5613
    %v5657 = vmul.f32 %v5656, %v5613
    %v5658 = vmul.f32 %v5657, %v5656
    %v5659 = vmul.f32 0.5, %v5658
    %v5660 = vsub.f32 1.5, %v5659
    %v5661 = vmul.f32 %v5656, %v5660
    %vm5662 = vweird.f32 %v5613
    %vm5663 = vweird.f32 %v5656
    %vm5664 = vmor %vm5662, %vm5663
    %v5665 = vsel %vm5664, %v5656, %v5661
    %v5666 = vrsqrt.pop %v5614
    %v5667 = vmul.f32 %v5666, %v5614
    %v5668 = vmul.f32 %v5667, %v5666
    %v5669 = vmul.f32 0.5, %v5668
    %v5670 = vsub.f32 1.5, %v5669
    %v5671 = vmul.f32 %v5666, %v5670
    %vm5672 = vweird.f32 %v5614
    %vm5673 = vweird.f32 %v5666
    %vm5674 = vmor %vm5672, %vm5673
    %v5675 = vsel %vm5674, %v5666, %v5671
    %v5676 = vrsqrt.pop %v5615
    %v5677 = vmul.f32 %v5676, %v5615
    %v5678 = vmul.f32 %v5677, %v5676
    %v5679 = vmul.f32 0.5, %v5678
    %v5680 = vsub.f32 1.5, %v5679
    %v5681 = vmul.f32 %v5676, %v5680
    %vm5682 = vweird.f32 %v5615
    %vm5683 = vweird.f32 %v5676
    %vm5684 = vmor %vm5682, %vm5683
    %v5685 = vsel %vm5684, %v5676, %v5681
    %v5686 = vrsqrt.pop %v5616
    %v5687 = vmul.f32 %v5686, %v5616
    %v5688 = vmul.f32 %v5687, %v5686
    %v5689 = vmul.f32 0.5, %v5688
    %v5690 = vsub.f32 1.5, %v5689
    %v5691 = vmul.f32 %v5686, %v5690
    %vm5692 = vweird.f32 %v5616
    %vm5693 = vweird.f32 %v5686
    %vm5694 = vmor %vm5692, %vm5693
    %v5695 = vsel %vm5694, %v5686, %v5691
    %v5696 = vrsqrt.pop %v5617
    %v5697 = vmul.f32 %v5696, %v5617
    %v5698 = vmul.f32 %v5697, %v5696
    %v5699 = vmul.f32 0.5, %v5698
    %v5700 = vsub.f32 1.5, %v5699
    %v5701 = vmul.f32 %v5696, %v5700
    %vm5702 = vweird.f32 %v5617
    %vm5703 = vweird.f32 %v5696
    %vm5704 = vmor %vm5702, %vm5703
    %v5705 = vsel %vm5704, %v5696, %v5701
    %v5706 = vrsqrt.pop %v5618
    %v5707 = vmul.f32 %v5706, %v5618
    %v5708 = vmul.f32 %v5707, %v5706
    %v5709 = vmul.f32 0.5, %v5708
    %v5710 = vsub.f32 1.5, %v5709
    %v5711 = vmul.f32 %v5706, %v5710
    %vm5712 = vweird.f32 %v5618
    %vm5713 = vweird.f32 %v5706
    %vm5714 = vmor %vm5712, %vm5713
    %v5715 = vsel %vm5714, %v5706, %v5711
    %v5716 = vrsqrt.pop %v5619
    %v5717 = vmul.f32 %v5716, %v5619
    %v5718 = vmul.f32 %v5717, %v5716
    %v5719 = vmul.f32 0.5, %v5718
    %v5720 = vsub.f32 1.5, %v5719
    %v5721 = vmul.f32 %v5716, %v5720
    %vm5722 = vweird.f32 %v5619
    %vm5723 = vweird.f32 %v5716
    %vm5724 = vmor %vm5722, %vm5723
    %v5725 = vsel %vm5724, %v5716, %v5721
    %v5726 = vrsqrt.pop %v5620
    %v5727 = vmul.f32 %v5726, %v5620
    %v5728 = vmul.f32 %v5727, %v5726
    %v5729 = vmul.f32 0.5, %v5728
    %v5730 = vsub.f32 1.5, %v5729
    %v5731 = vmul.f32 %v5726, %v5730
    %vm5732 = vweird.f32 %v5620
    %vm5733 = vweird.f32 %v5726
    %vm5734 = vmor %vm5732, %vm5733
    %v5735 = vsel %vm5734, %v5726, %v5731
    %v5736 = vrsqrt.pop %v5621
    %v5737 = vmul.f32 %v5736, %v5621
    %v5738 = vmul.f32 %v5737, %v5736
    %v5739 = vmul.f32 0.5, %v5738
    %v5740 = vsub.f32 1.5, %v5739
    %v5741 = vmul.f32 %v5736, %v5740
    %vm5742 = vweird.f32 %v5621
    %vm5743 = vweird.f32 %v5736
    %vm5744 = vmor %vm5742, %vm5743
    %v5745 = vsel %vm5744, %v5736, %v5741
    %v5746 = vrsqrt.pop %v5622
    %v5747 = vmul.f32 %v5746, %v5622
    %v5748 = vmul.f32 %v5747, %v5746
    %v5749 = vmul.f32 0.5, %v5748
    %v5750 = vsub.f32 1.5, %v5749
    %v5751 = vmul.f32 %v5746, %v5750
    %vm5752 = vweird.f32 %v5622
    %vm5753 = vweird.f32 %v5746
    %vm5754 = vmor %vm5752, %vm5753
    %v5755 = vsel %vm5754, %v5746, %v5751
    %v5756 = vrsqrt.pop %v5623
    %v5757 = vmul.f32 %v5756, %v5623
    %v5758 = vmul.f32 %v5757, %v5756
    %v5759 = vmul.f32 0.5, %v5758
    %v5760 = vsub.f32 1.5, %v5759
    %v5761 = vmul.f32 %v5756, %v5760
    %vm5762 = vweird.f32 %v5623
    %vm5763 = vweird.f32 %v5756
    %vm5764 = vmor %vm5762, %vm5763
    %v5765 = vsel %vm5764, %v5756, %v5761
    %v5766 = vrsqrt.pop %v5624
    %v5767 = vmul.f32 %v5766, %v5624
    %v5768 = vmul.f32 %v5767, %v5766
    %v5769 = vmul.f32 0.5, %v5768
    %v5770 = vsub.f32 1.5, %v5769
    %v5771 = vmul.f32 %v5766, %v5770
    %vm5772 = vweird.f32 %v5624
    %vm5773 = vweird.f32 %v5766
    %vm5774 = vmor %vm5772, %vm5773
    %v5775 = vsel %vm5774, %v5766, %v5771
    %v5776 = vrsqrt.pop %v5625
    %v5777 = vmul.f32 %v5776, %v5625
    %v5778 = vmul.f32 %v5777, %v5776
    %v5779 = vmul.f32 0.5, %v5778
    %v5780 = vsub.f32 1.5, %v5779
    %v5781 = vmul.f32 %v5776, %v5780
    %vm5782 = vweird.f32 %v5625
    %vm5783 = vweird.f32 %v5776
    %vm5784 = vmor %vm5782, %vm5783
    %v5785 = vsel %vm5784, %v5776, %v5781
    %v5786 = vsub.f32 %v5434, %v5482
    %v5787 = vsub.f32 %v5435, %v5483
    %v5788 = vsub.f32 %v5436, %v5484
    %v5789 = vsub.f32 %v5437, %v5485
    %v5790 = vsub.f32 %v5438, %v5486
    %v5791 = vsub.f32 %v5439, %v5487
    %v5792 = vsub.f32 %v5440, %v5488
    %v5793 = vsub.f32 %v5441, %v5489
    %v5794 = vsub.f32 %v5442, %v5490
    %v5795 = vsub.f32 %v5443, %v5491
    %v5796 = vsub.f32 %v5444, %v5492
    %v5797 = vsub.f32 %v5445, %v5493
    %v5798 = vsub.f32 %v5446, %v5494
    %v5799 = vsub.f32 %v5447, %v5495
    %v5800 = vsub.f32 %v5448, %v5496
    %v5801 = vsub.f32 %v5449, %v5497
    %v5802 = vmul.f32 %v5786, %v5635
    %v5803 = vmul.f32 %v5787, %v5645
    %v5804 = vmul.f32 %v5788, %v5655
    %v5805 = vmul.f32 %v5789, %v5665
    %v5806 = vmul.f32 %v5790, %v5675
    %v5807 = vmul.f32 %v5791, %v5685
    %v5808 = vmul.f32 %v5792, %v5695
    %v5809 = vmul.f32 %v5793, %v5705
    %v5810 = vmul.f32 %v5794, %v5715
    %v5811 = vmul.f32 %v5795, %v5725
    %v5812 = vmul.f32 %v5796, %v5735
    %v5813 = vmul.f32 %v5797, %v5745
    %v5814 = vmul.f32 %v5798, %v5755
    %v5815 = vmul.f32 %v5799, %v5765
    %v5816 = vmul.f32 %v5800, %v5775
    %v5817 = vmul.f32 %v5801, %v5785
    %v5818 = vpack.c.bf16 %v5803, %v5802
    %v5819 = vpack.c.bf16 %v5805, %v5804
    %v5820 = vpack.c.bf16 %v5807, %v5806
    %v5821 = vpack.c.bf16 %v5809, %v5808
    %v5822 = vpack.c.bf16 %v5811, %v5810
    %v5823 = vpack.c.bf16 %v5813, %v5812
    %v5824 = vpack.c.bf16 %v5815, %v5814
    %v5825 = vpack.c.bf16 %v5817, %v5816
    %5826 = vmatpush.bf16.xpose.msra.mxu0 %v5825
    %5827 = vmatpush.bf16.xpose.msra.mxu0 %v5824
    %5828 = vmatpush.bf16.xpose.msra.mxu0 %v5823
    %5829 = vmatpush.bf16.xpose.msra.mxu0 %v5822
    %5830 = vmatpush.bf16.xpose.msra.mxu0 %v5821
    %5831 = vmatpush.bf16.xpose.msra.mxu0 %v5820
    %5832 = vmatpush.bf16.xpose.msra.mxu0 %v5819
    %5833 = vmatpush.bf16.xpose.msra.mxu0 %v5818
    %5834 = vmatmul.bf16.gmra.mxu0 %v1348
    %v5835 = vpop.f32.mrf.mxu0
    %v5836 = vadd.f32 0.0, %v5835
    %v5837 = vpop.f32.mrf.mxu0
    %5838 = vdwg.mxu0
    %v5839 = vadd.f32 %v5836, %v1758
    %s5840 = scalar_lea.vmem [#allocation6], 40
    %5841 = vst [vmem:[%s5840] sm:$0xf] %v5839
    %v5842 = vld [vmem:[#allocation2 + $0x58] sm:$0xff]
    %v5843 = vld [vmem:[#allocation2 + $0xd8] sm:$0xff]
    %v5844 = vld [vmem:[#allocation2 + $0x158] sm:$0xff]
    %v5845 = vld [vmem:[#allocation2 + $0x1d8] sm:$0xff]
    %v5846 = vld [vmem:[#allocation2 + $0x258] sm:$0xff]
    %v5847 = vld [vmem:[#allocation2 + $0x2d8] sm:$0xff]
    %v5848 = vld [vmem:[#allocation2 + $0x358] sm:$0xff]
    %v5849 = vld [vmem:[#allocation2 + $0x3d8] sm:$0xff]
    %v5850 = vld [vmem:[#allocation2 + $0x458] sm:$0xff]
    %v5851 = vld [vmem:[#allocation2 + $0x4d8] sm:$0xff]
    %v5852 = vld [vmem:[#allocation2 + $0x558] sm:$0xff]
    %v5853 = vld [vmem:[#allocation2 + $0x5d8] sm:$0xff]
    %v5854 = vld [vmem:[#allocation2 + $0x658] sm:$0xff]
    %v5855 = vld [vmem:[#allocation2 + $0x6d8] sm:$0xff]
    %v5856 = vld [vmem:[#allocation2 + $0x758] sm:$0xff]
    %v5857 = vld [vmem:[#allocation2 + $0x7d8] sm:$0xff]
    %5858 = vadd.xlane.f32.xlu0 %v5842
    %v5859 = vpop.xlane.xlu0 %5858
    %5860 = vadd.xlane.f32.xlu0 %v5843
    %v5861 = vpop.xlane.xlu0 %5860
    %5862 = vadd.xlane.f32.xlu0 %v5844
    %v5863 = vpop.xlane.xlu0 %5862
    %5864 = vadd.xlane.f32.xlu0 %v5845
    %v5865 = vpop.xlane.xlu0 %5864
    %5866 = vadd.xlane.f32.xlu0 %v5846
    %v5867 = vpop.xlane.xlu0 %5866
    %5868 = vadd.xlane.f32.xlu0 %v5847
    %v5869 = vpop.xlane.xlu0 %5868
    %5870 = vadd.xlane.f32.xlu0 %v5848
    %v5871 = vpop.xlane.xlu0 %5870
    %5872 = vadd.xlane.f32.xlu0 %v5849
    %v5873 = vpop.xlane.xlu0 %5872
    %5874 = vadd.xlane.f32.xlu0 %v5850
    %v5875 = vpop.xlane.xlu0 %5874
    %5876 = vadd.xlane.f32.xlu0 %v5851
    %v5877 = vpop.xlane.xlu0 %5876
    %5878 = vadd.xlane.f32.xlu0 %v5852
    %v5879 = vpop.xlane.xlu0 %5878
    %5880 = vadd.xlane.f32.xlu0 %v5853
    %v5881 = vpop.xlane.xlu0 %5880
    %5882 = vadd.xlane.f32.xlu0 %v5854
    %v5883 = vpop.xlane.xlu0 %5882
    %5884 = vadd.xlane.f32.xlu0 %v5855
    %v5885 = vpop.xlane.xlu0 %5884
    %5886 = vadd.xlane.f32.xlu0 %v5856
    %v5887 = vpop.xlane.xlu0 %5886
    %5888 = vadd.xlane.f32.xlu0 %v5857
    %v5889 = vpop.xlane.xlu0 %5888
    %v5890 = vmul.f32 %v5859, 0.03125
    %v5891 = vmul.f32 %v5861, 0.03125
    %v5892 = vmul.f32 %v5863, 0.03125
    %v5893 = vmul.f32 %v5865, 0.03125
    %v5894 = vmul.f32 %v5867, 0.03125
    %v5895 = vmul.f32 %v5869, 0.03125
    %v5896 = vmul.f32 %v5871, 0.03125
    %v5897 = vmul.f32 %v5873, 0.03125
    %v5898 = vmul.f32 %v5875, 0.03125
    %v5899 = vmul.f32 %v5877, 0.03125
    %v5900 = vmul.f32 %v5879, 0.03125
    %v5901 = vmul.f32 %v5881, 0.03125
    %v5902 = vmul.f32 %v5883, 0.03125
    %v5903 = vmul.f32 %v5885, 0.03125
    %v5904 = vmul.f32 %v5887, 0.03125
    %v5905 = vmul.f32 %v5889, 0.03125
    %v5906 = vmul.f32 %v5842, %v5842
    %v5907 = vmul.f32 %v5843, %v5843
    %v5908 = vmul.f32 %v5844, %v5844
    %v5909 = vmul.f32 %v5845, %v5845
    %v5910 = vmul.f32 %v5846, %v5846
    %v5911 = vmul.f32 %v5847, %v5847
    %v5912 = vmul.f32 %v5848, %v5848
    %v5913 = vmul.f32 %v5849, %v5849
    %v5914 = vmul.f32 %v5850, %v5850
    %v5915 = vmul.f32 %v5851, %v5851
    %v5916 = vmul.f32 %v5852, %v5852
    %v5917 = vmul.f32 %v5853, %v5853
    %v5918 = vmul.f32 %v5854, %v5854
    %v5919 = vmul.f32 %v5855, %v5855
    %v5920 = vmul.f32 %v5856, %v5856
    %v5921 = vmul.f32 %v5857, %v5857
    %5922 = vadd.xlane.f32.xlu0 %v5906
    %v5923 = vpop.xlane.xlu0 %5922
    %5924 = vadd.xlane.f32.xlu0 %v5907
    %v5925 = vpop.xlane.xlu0 %5924
    %5926 = vadd.xlane.f32.xlu0 %v5908
    %v5927 = vpop.xlane.xlu0 %5926
    %5928 = vadd.xlane.f32.xlu0 %v5909
    %v5929 = vpop.xlane.xlu0 %5928
    %5930 = vadd.xlane.f32.xlu0 %v5910
    %v5931 = vpop.xlane.xlu0 %5930
    %5932 = vadd.xlane.f32.xlu0 %v5911
    %v5933 = vpop.xlane.xlu0 %5932
    %5934 = vadd.xlane.f32.xlu0 %v5912
    %v5935 = vpop.xlane.xlu0 %5934
    %5936 = vadd.xlane.f32.xlu0 %v5913
    %v5937 = vpop.xlane.xlu0 %5936
    %5938 = vadd.xlane.f32.xlu0 %v5914
    %v5939 = vpop.xlane.xlu0 %5938
    %5940 = vadd.xlane.f32.xlu0 %v5915
    %v5941 = vpop.xlane.xlu0 %5940
    %5942 = vadd.xlane.f32.xlu0 %v5916
    %v5943 = vpop.xlane.xlu0 %5942
    %5944 = vadd.xlane.f32.xlu0 %v5917
    %v5945 = vpop.xlane.xlu0 %5944
    %5946 = vadd.xlane.f32.xlu0 %v5918
    %v5947 = vpop.xlane.xlu0 %5946
    %5948 = vadd.xlane.f32.xlu0 %v5919
    %v5949 = vpop.xlane.xlu0 %5948
    %5950 = vadd.xlane.f32.xlu0 %v5920
    %v5951 = vpop.xlane.xlu0 %5950
    %5952 = vadd.xlane.f32.xlu0 %v5921
    %v5953 = vpop.xlane.xlu0 %5952
    %v5954 = vmul.f32 %v5923, 0.03125
    %v5955 = vmul.f32 %v5925, 0.03125
    %v5956 = vmul.f32 %v5927, 0.03125
    %v5957 = vmul.f32 %v5929, 0.03125
    %v5958 = vmul.f32 %v5931, 0.03125
    %v5959 = vmul.f32 %v5933, 0.03125
    %v5960 = vmul.f32 %v5935, 0.03125
    %v5961 = vmul.f32 %v5937, 0.03125
    %v5962 = vmul.f32 %v5939, 0.03125
    %v5963 = vmul.f32 %v5941, 0.03125
    %v5964 = vmul.f32 %v5943, 0.03125
    %v5965 = vmul.f32 %v5945, 0.03125
    %v5966 = vmul.f32 %v5947, 0.03125
    %v5967 = vmul.f32 %v5949, 0.03125
    %v5968 = vmul.f32 %v5951, 0.03125
    %v5969 = vmul.f32 %v5953, 0.03125
    %v5970 = vmul.f32 %v5890, %v5890
    %v5971 = vmul.f32 %v5891, %v5891
    %v5972 = vmul.f32 %v5892, %v5892
    %v5973 = vmul.f32 %v5893, %v5893
    %v5974 = vmul.f32 %v5894, %v5894
    %v5975 = vmul.f32 %v5895, %v5895
    %v5976 = vmul.f32 %v5896, %v5896
    %v5977 = vmul.f32 %v5897, %v5897
    %v5978 = vmul.f32 %v5898, %v5898
    %v5979 = vmul.f32 %v5899, %v5899
    %v5980 = vmul.f32 %v5900, %v5900
    %v5981 = vmul.f32 %v5901, %v5901
    %v5982 = vmul.f32 %v5902, %v5902
    %v5983 = vmul.f32 %v5903, %v5903
    %v5984 = vmul.f32 %v5904, %v5904
    %v5985 = vmul.f32 %v5905, %v5905
    %v5986 = vsub.f32 %v5954, %v5970
    %v5987 = vsub.f32 %v5955, %v5971
    %v5988 = vsub.f32 %v5956, %v5972
    %v5989 = vsub.f32 %v5957, %v5973
    %v5990 = vsub.f32 %v5958, %v5974
    %v5991 = vsub.f32 %v5959, %v5975
    %v5992 = vsub.f32 %v5960, %v5976
    %v5993 = vsub.f32 %v5961, %v5977
    %v5994 = vsub.f32 %v5962, %v5978
    %v5995 = vsub.f32 %v5963, %v5979
    %v5996 = vsub.f32 %v5964, %v5980
    %v5997 = vsub.f32 %v5965, %v5981
    %v5998 = vsub.f32 %v5966, %v5982
    %v5999 = vsub.f32 %v5967, %v5983
    %v6000 = vsub.f32 %v5968, %v5984
    %v6001 = vsub.f32 %v5969, %v5985
    %v6002 = vmax.f32 %v5986, 0.0
    %v6003 = vmax.f32 %v5987, 0.0
    %v6004 = vmax.f32 %v5988, 0.0
    %v6005 = vmax.f32 %v5989, 0.0
    %v6006 = vmax.f32 %v5990, 0.0
    %v6007 = vmax.f32 %v5991, 0.0
    %v6008 = vmax.f32 %v5992, 0.0
    %v6009 = vmax.f32 %v5993, 0.0
    %v6010 = vmax.f32 %v5994, 0.0
    %v6011 = vmax.f32 %v5995, 0.0
    %v6012 = vmax.f32 %v5996, 0.0
    %v6013 = vmax.f32 %v5997, 0.0
    %v6014 = vmax.f32 %v5998, 0.0
    %v6015 = vmax.f32 %v5999, 0.0
    %v6016 = vmax.f32 %v6000, 0.0
    %v6017 = vmax.f32 %v6001, 0.0
    %v6018 = vadd.f32 %v6002, 1e-05
    %v6019 = vadd.f32 %v6003, 1e-05
    %v6020 = vadd.f32 %v6004, 1e-05
    %v6021 = vadd.f32 %v6005, 1e-05
    %v6022 = vadd.f32 %v6006, 1e-05
    %v6023 = vadd.f32 %v6007, 1e-05
    %v6024 = vadd.f32 %v6008, 1e-05
    %v6025 = vadd.f32 %v6009, 1e-05
    %v6026 = vadd.f32 %v6010, 1e-05
    %v6027 = vadd.f32 %v6011, 1e-05
    %v6028 = vadd.f32 %v6012, 1e-05
    %v6029 = vadd.f32 %v6013, 1e-05
    %v6030 = vadd.f32 %v6014, 1e-05
    %v6031 = vadd.f32 %v6015, 1e-05
    %v6032 = vadd.f32 %v6016, 1e-05
    %v6033 = vadd.f32 %v6017, 1e-05
    %v6034 = vrsqrt.pop %v6018
    %v6035 = vmul.f32 %v6034, %v6018
    %v6036 = vmul.f32 %v6035, %v6034
    %v6037 = vmul.f32 0.5, %v6036
    %v6038 = vsub.f32 1.5, %v6037
    %v6039 = vmul.f32 %v6034, %v6038
    %vm6040 = vweird.f32 %v6018
    %vm6041 = vweird.f32 %v6034
    %vm6042 = vmor %vm6040, %vm6041
    %v6043 = vsel %vm6042, %v6034, %v6039
    %v6044 = vrsqrt.pop %v6019
    %v6045 = vmul.f32 %v6044, %v6019
    %v6046 = vmul.f32 %v6045, %v6044
    %v6047 = vmul.f32 0.5, %v6046
    %v6048 = vsub.f32 1.5, %v6047
    %v6049 = vmul.f32 %v6044, %v6048
    %vm6050 = vweird.f32 %v6019
    %vm6051 = vweird.f32 %v6044
    %vm6052 = vmor %vm6050, %vm6051
    %v6053 = vsel %vm6052, %v6044, %v6049
    %v6054 = vrsqrt.pop %v6020
    %v6055 = vmul.f32 %v6054, %v6020
    %v6056 = vmul.f32 %v6055, %v6054
    %v6057 = vmul.f32 0.5, %v6056
    %v6058 = vsub.f32 1.5, %v6057
    %v6059 = vmul.f32 %v6054, %v6058
    %vm6060 = vweird.f32 %v6020
    %vm6061 = vweird.f32 %v6054
    %vm6062 = vmor %vm6060, %vm6061
    %v6063 = vsel %vm6062, %v6054, %v6059
    %v6064 = vrsqrt.pop %v6021
    %v6065 = vmul.f32 %v6064, %v6021
    %v6066 = vmul.f32 %v6065, %v6064
    %v6067 = vmul.f32 0.5, %v6066
    %v6068 = vsub.f32 1.5, %v6067
    %v6069 = vmul.f32 %v6064, %v6068
    %vm6070 = vweird.f32 %v6021
    %vm6071 = vweird.f32 %v6064
    %vm6072 = vmor %vm6070, %vm6071
    %v6073 = vsel %vm6072, %v6064, %v6069
    %v6074 = vrsqrt.pop %v6022
    %v6075 = vmul.f32 %v6074, %v6022
    %v6076 = vmul.f32 %v6075, %v6074
    %v6077 = vmul.f32 0.5, %v6076
    %v6078 = vsub.f32 1.5, %v6077
    %v6079 = vmul.f32 %v6074, %v6078
    %vm6080 = vweird.f32 %v6022
    %vm6081 = vweird.f32 %v6074
    %vm6082 = vmor %vm6080, %vm6081
    %v6083 = vsel %vm6082, %v6074, %v6079
    %v6084 = vrsqrt.pop %v6023
    %v6085 = vmul.f32 %v6084, %v6023
    %v6086 = vmul.f32 %v6085, %v6084
    %v6087 = vmul.f32 0.5, %v6086
    %v6088 = vsub.f32 1.5, %v6087
    %v6089 = vmul.f32 %v6084, %v6088
    %vm6090 = vweird.f32 %v6023
    %vm6091 = vweird.f32 %v6084
    %vm6092 = vmor %vm6090, %vm6091
    %v6093 = vsel %vm6092, %v6084, %v6089
    %v6094 = vrsqrt.pop %v6024
    %v6095 = vmul.f32 %v6094, %v6024
    %v6096 = vmul.f32 %v6095, %v6094
    %v6097 = vmul.f32 0.5, %v6096
    %v6098 = vsub.f32 1.5, %v6097
    %v6099 = vmul.f32 %v6094, %v6098
    %vm6100 = vweird.f32 %v6024
    %vm6101 = vweird.f32 %v6094
    %vm6102 = vmor %vm6100, %vm6101
    %v6103 = vsel %vm6102, %v6094, %v6099
    %v6104 = vrsqrt.pop %v6025
    %v6105 = vmul.f32 %v6104, %v6025
    %v6106 = vmul.f32 %v6105, %v6104
    %v6107 = vmul.f32 0.5, %v6106
    %v6108 = vsub.f32 1.5, %v6107
    %v6109 = vmul.f32 %v6104, %v6108
    %vm6110 = vweird.f32 %v6025
    %vm6111 = vweird.f32 %v6104
    %vm6112 = vmor %vm6110, %vm6111
    %v6113 = vsel %vm6112, %v6104, %v6109
    %v6114 = vrsqrt.pop %v6026
    %v6115 = vmul.f32 %v6114, %v6026
    %v6116 = vmul.f32 %v6115, %v6114
    %v6117 = vmul.f32 0.5, %v6116
    %v6118 = vsub.f32 1.5, %v6117
    %v6119 = vmul.f32 %v6114, %v6118
    %vm6120 = vweird.f32 %v6026
    %vm6121 = vweird.f32 %v6114
    %vm6122 = vmor %vm6120, %vm6121
    %v6123 = vsel %vm6122, %v6114, %v6119
    %v6124 = vrsqrt.pop %v6027
    %v6125 = vmul.f32 %v6124, %v6027
    %v6126 = vmul.f32 %v6125, %v6124
    %v6127 = vmul.f32 0.5, %v6126
    %v6128 = vsub.f32 1.5, %v6127
    %v6129 = vmul.f32 %v6124, %v6128
    %vm6130 = vweird.f32 %v6027
    %vm6131 = vweird.f32 %v6124
    %vm6132 = vmor %vm6130, %vm6131
    %v6133 = vsel %vm6132, %v6124, %v6129
    %v6134 = vrsqrt.pop %v6028
    %v6135 = vmul.f32 %v6134, %v6028
    %v6136 = vmul.f32 %v6135, %v6134
    %v6137 = vmul.f32 0.5, %v6136
    %v6138 = vsub.f32 1.5, %v6137
    %v6139 = vmul.f32 %v6134, %v6138
    %vm6140 = vweird.f32 %v6028
    %vm6141 = vweird.f32 %v6134
    %vm6142 = vmor %vm6140, %vm6141
    %v6143 = vsel %vm6142, %v6134, %v6139
    %v6144 = vrsqrt.pop %v6029
    %v6145 = vmul.f32 %v6144, %v6029
    %v6146 = vmul.f32 %v6145, %v6144
    %v6147 = vmul.f32 0.5, %v6146
    %v6148 = vsub.f32 1.5, %v6147
    %v6149 = vmul.f32 %v6144, %v6148
    %vm6150 = vweird.f32 %v6029
    %vm6151 = vweird.f32 %v6144
    %vm6152 = vmor %vm6150, %vm6151
    %v6153 = vsel %vm6152, %v6144, %v6149
    %v6154 = vrsqrt.pop %v6030
    %v6155 = vmul.f32 %v6154, %v6030
    %v6156 = vmul.f32 %v6155, %v6154
    %v6157 = vmul.f32 0.5, %v6156
    %v6158 = vsub.f32 1.5, %v6157
    %v6159 = vmul.f32 %v6154, %v6158
    %vm6160 = vweird.f32 %v6030
    %vm6161 = vweird.f32 %v6154
    %vm6162 = vmor %vm6160, %vm6161
    %v6163 = vsel %vm6162, %v6154, %v6159
    %v6164 = vrsqrt.pop %v6031
    %v6165 = vmul.f32 %v6164, %v6031
    %v6166 = vmul.f32 %v6165, %v6164
    %v6167 = vmul.f32 0.5, %v6166
    %v6168 = vsub.f32 1.5, %v6167
    %v6169 = vmul.f32 %v6164, %v6168
    %vm6170 = vweird.f32 %v6031
    %vm6171 = vweird.f32 %v6164
    %vm6172 = vmor %vm6170, %vm6171
    %v6173 = vsel %vm6172, %v6164, %v6169
    %v6174 = vrsqrt.pop %v6032
    %v6175 = vmul.f32 %v6174, %v6032
    %v6176 = vmul.f32 %v6175, %v6174
    %v6177 = vmul.f32 0.5, %v6176
    %v6178 = vsub.f32 1.5, %v6177
    %v6179 = vmul.f32 %v6174, %v6178
    %vm6180 = vweird.f32 %v6032
    %vm6181 = vweird.f32 %v6174
    %vm6182 = vmor %vm6180, %vm6181
    %v6183 = vsel %vm6182, %v6174, %v6179
    %v6184 = vrsqrt.pop %v6033
    %v6185 = vmul.f32 %v6184, %v6033
    %v6186 = vmul.f32 %v6185, %v6184
    %v6187 = vmul.f32 0.5, %v6186
    %v6188 = vsub.f32 1.5, %v6187
    %v6189 = vmul.f32 %v6184, %v6188
    %vm6190 = vweird.f32 %v6033
    %vm6191 = vweird.f32 %v6184
    %vm6192 = vmor %vm6190, %vm6191
    %v6193 = vsel %vm6192, %v6184, %v6189
    %v6194 = vsub.f32 %v5842, %v5890
    %v6195 = vsub.f32 %v5843, %v5891
    %v6196 = vsub.f32 %v5844, %v5892
    %v6197 = vsub.f32 %v5845, %v5893
    %v6198 = vsub.f32 %v5846, %v5894
    %v6199 = vsub.f32 %v5847, %v5895
    %v6200 = vsub.f32 %v5848, %v5896
    %v6201 = vsub.f32 %v5849, %v5897
    %v6202 = vsub.f32 %v5850, %v5898
    %v6203 = vsub.f32 %v5851, %v5899
    %v6204 = vsub.f32 %v5852, %v5900
    %v6205 = vsub.f32 %v5853, %v5901
    %v6206 = vsub.f32 %v5854, %v5902
    %v6207 = vsub.f32 %v5855, %v5903
    %v6208 = vsub.f32 %v5856, %v5904
    %v6209 = vsub.f32 %v5857, %v5905
    %v6210 = vmul.f32 %v6194, %v6043
    %v6211 = vmul.f32 %v6195, %v6053
    %v6212 = vmul.f32 %v6196, %v6063
    %v6213 = vmul.f32 %v6197, %v6073
    %v6214 = vmul.f32 %v6198, %v6083
    %v6215 = vmul.f32 %v6199, %v6093
    %v6216 = vmul.f32 %v6200, %v6103
    %v6217 = vmul.f32 %v6201, %v6113
    %v6218 = vmul.f32 %v6202, %v6123
    %v6219 = vmul.f32 %v6203, %v6133
    %v6220 = vmul.f32 %v6204, %v6143
    %v6221 = vmul.f32 %v6205, %v6153
    %v6222 = vmul.f32 %v6206, %v6163
    %v6223 = vmul.f32 %v6207, %v6173
    %v6224 = vmul.f32 %v6208, %v6183
    %v6225 = vmul.f32 %v6209, %v6193
    %v6226 = vpack.c.bf16 %v6211, %v6210
    %v6227 = vpack.c.bf16 %v6213, %v6212
    %v6228 = vpack.c.bf16 %v6215, %v6214
    %v6229 = vpack.c.bf16 %v6217, %v6216
    %v6230 = vpack.c.bf16 %v6219, %v6218
    %v6231 = vpack.c.bf16 %v6221, %v6220
    %v6232 = vpack.c.bf16 %v6223, %v6222
    %v6233 = vpack.c.bf16 %v6225, %v6224
    %6234 = vmatpush.bf16.xpose.msra.mxu0 %v6233
    %6235 = vmatpush.bf16.xpose.msra.mxu0 %v6232
    %6236 = vmatpush.bf16.xpose.msra.mxu0 %v6231
    %6237 = vmatpush.bf16.xpose.msra.mxu0 %v6230
    %6238 = vmatpush.bf16.xpose.msra.mxu0 %v6229
    %6239 = vmatpush.bf16.xpose.msra.mxu0 %v6228
    %6240 = vmatpush.bf16.xpose.msra.mxu0 %v6227
    %6241 = vmatpush.bf16.xpose.msra.mxu0 %v6226
    %6242 = vmatmul.bf16.gmra.mxu0 %v1348
    %v6243 = vpop.f32.mrf.mxu0
    %v6244 = vadd.f32 0.0, %v6243
    %v6245 = vpop.f32.mrf.mxu0
    %6246 = vdwg.mxu0
    %v6247 = vadd.f32 %v6244, %v1758
    %s6248 = scalar_lea.vmem [#allocation6], 44
    %6249 = vst [vmem:[%s6248] sm:$0xf] %v6247
    %v6250 = vld [vmem:[#allocation2 + $0x60] sm:$0xff]
    %v6251 = vld [vmem:[#allocation2 + $0xe0] sm:$0xff]
    %v6252 = vld [vmem:[#allocation2 + $0x160] sm:$0xff]
    %v6253 = vld [vmem:[#allocation2 + $0x1e0] sm:$0xff]
    %v6254 = vld [vmem:[#allocation2 + $0x260] sm:$0xff]
    %v6255 = vld [vmem:[#allocation2 + $0x2e0] sm:$0xff]
    %v6256 = vld [vmem:[#allocation2 + $0x360] sm:$0xff]
    %v6257 = vld [vmem:[#allocation2 + $0x3e0] sm:$0xff]
    %v6258 = vld [vmem:[#allocation2 + $0x460] sm:$0xff]
    %v6259 = vld [vmem:[#allocation2 + $0x4e0] sm:$0xff]
    %v6260 = vld [vmem:[#allocation2 + $0x560] sm:$0xff]
    %v6261 = vld [vmem:[#allocation2 + $0x5e0] sm:$0xff]
    %v6262 = vld [vmem:[#allocation2 + $0x660] sm:$0xff]
    %v6263 = vld [vmem:[#allocation2 + $0x6e0] sm:$0xff]
    %v6264 = vld [vmem:[#allocation2 + $0x760] sm:$0xff]
    %v6265 = vld [vmem:[#allocation2 + $0x7e0] sm:$0xff]
    %6266 = vadd.xlane.f32.xlu0 %v6250
    %v6267 = vpop.xlane.xlu0 %6266
    %6268 = vadd.xlane.f32.xlu0 %v6251
    %v6269 = vpop.xlane.xlu0 %6268
    %6270 = vadd.xlane.f32.xlu0 %v6252
    %v6271 = vpop.xlane.xlu0 %6270
    %6272 = vadd.xlane.f32.xlu0 %v6253
    %v6273 = vpop.xlane.xlu0 %6272
    %6274 = vadd.xlane.f32.xlu0 %v6254
    %v6275 = vpop.xlane.xlu0 %6274
    %6276 = vadd.xlane.f32.xlu0 %v6255
    %v6277 = vpop.xlane.xlu0 %6276
    %6278 = vadd.xlane.f32.xlu0 %v6256
    %v6279 = vpop.xlane.xlu0 %6278
    %6280 = vadd.xlane.f32.xlu0 %v6257
    %v6281 = vpop.xlane.xlu0 %6280
    %6282 = vadd.xlane.f32.xlu0 %v6258
    %v6283 = vpop.xlane.xlu0 %6282
    %6284 = vadd.xlane.f32.xlu0 %v6259
    %v6285 = vpop.xlane.xlu0 %6284
    %6286 = vadd.xlane.f32.xlu0 %v6260
    %v6287 = vpop.xlane.xlu0 %6286
    %6288 = vadd.xlane.f32.xlu0 %v6261
    %v6289 = vpop.xlane.xlu0 %6288
    %6290 = vadd.xlane.f32.xlu0 %v6262
    %v6291 = vpop.xlane.xlu0 %6290
    %6292 = vadd.xlane.f32.xlu0 %v6263
    %v6293 = vpop.xlane.xlu0 %6292
    %6294 = vadd.xlane.f32.xlu0 %v6264
    %v6295 = vpop.xlane.xlu0 %6294
    %6296 = vadd.xlane.f32.xlu0 %v6265
    %v6297 = vpop.xlane.xlu0 %6296
    %v6298 = vmul.f32 %v6267, 0.03125
    %v6299 = vmul.f32 %v6269, 0.03125
    %v6300 = vmul.f32 %v6271, 0.03125
    %v6301 = vmul.f32 %v6273, 0.03125
    %v6302 = vmul.f32 %v6275, 0.03125
    %v6303 = vmul.f32 %v6277, 0.03125
    %v6304 = vmul.f32 %v6279, 0.03125
    %v6305 = vmul.f32 %v6281, 0.03125
    %v6306 = vmul.f32 %v6283, 0.03125
    %v6307 = vmul.f32 %v6285, 0.03125
    %v6308 = vmul.f32 %v6287, 0.03125
    %v6309 = vmul.f32 %v6289, 0.03125
    %v6310 = vmul.f32 %v6291, 0.03125
    %v6311 = vmul.f32 %v6293, 0.03125
    %v6312 = vmul.f32 %v6295, 0.03125
    %v6313 = vmul.f32 %v6297, 0.03125
    %v6314 = vmul.f32 %v6250, %v6250
    %v6315 = vmul.f32 %v6251, %v6251
    %v6316 = vmul.f32 %v6252, %v6252
    %v6317 = vmul.f32 %v6253, %v6253
    %v6318 = vmul.f32 %v6254, %v6254
    %v6319 = vmul.f32 %v6255, %v6255
    %v6320 = vmul.f32 %v6256, %v6256
    %v6321 = vmul.f32 %v6257, %v6257
    %v6322 = vmul.f32 %v6258, %v6258
    %v6323 = vmul.f32 %v6259, %v6259
    %v6324 = vmul.f32 %v6260, %v6260
    %v6325 = vmul.f32 %v6261, %v6261
    %v6326 = vmul.f32 %v6262, %v6262
    %v6327 = vmul.f32 %v6263, %v6263
    %v6328 = vmul.f32 %v6264, %v6264
    %v6329 = vmul.f32 %v6265, %v6265
    %6330 = vadd.xlane.f32.xlu0 %v6314
    %v6331 = vpop.xlane.xlu0 %6330
    %6332 = vadd.xlane.f32.xlu0 %v6315
    %v6333 = vpop.xlane.xlu0 %6332
    %6334 = vadd.xlane.f32.xlu0 %v6316
    %v6335 = vpop.xlane.xlu0 %6334
    %6336 = vadd.xlane.f32.xlu0 %v6317
    %v6337 = vpop.xlane.xlu0 %6336
    %6338 = vadd.xlane.f32.xlu0 %v6318
    %v6339 = vpop.xlane.xlu0 %6338
    %6340 = vadd.xlane.f32.xlu0 %v6319
    %v6341 = vpop.xlane.xlu0 %6340
    %6342 = vadd.xlane.f32.xlu0 %v6320
    %v6343 = vpop.xlane.xlu0 %6342
    %6344 = vadd.xlane.f32.xlu0 %v6321
    %v6345 = vpop.xlane.xlu0 %6344
    %6346 = vadd.xlane.f32.xlu0 %v6322
    %v6347 = vpop.xlane.xlu0 %6346
    %6348 = vadd.xlane.f32.xlu0 %v6323
    %v6349 = vpop.xlane.xlu0 %6348
    %6350 = vadd.xlane.f32.xlu0 %v6324
    %v6351 = vpop.xlane.xlu0 %6350
    %6352 = vadd.xlane.f32.xlu0 %v6325
    %v6353 = vpop.xlane.xlu0 %6352
    %6354 = vadd.xlane.f32.xlu0 %v6326
    %v6355 = vpop.xlane.xlu0 %6354
    %6356 = vadd.xlane.f32.xlu0 %v6327
    %v6357 = vpop.xlane.xlu0 %6356
    %6358 = vadd.xlane.f32.xlu0 %v6328
    %v6359 = vpop.xlane.xlu0 %6358
    %6360 = vadd.xlane.f32.xlu0 %v6329
    %v6361 = vpop.xlane.xlu0 %6360
    %v6362 = vmul.f32 %v6331, 0.03125
    %v6363 = vmul.f32 %v6333, 0.03125
    %v6364 = vmul.f32 %v6335, 0.03125
    %v6365 = vmul.f32 %v6337, 0.03125
    %v6366 = vmul.f32 %v6339, 0.03125
    %v6367 = vmul.f32 %v6341, 0.03125
    %v6368 = vmul.f32 %v6343, 0.03125
    %v6369 = vmul.f32 %v6345, 0.03125
    %v6370 = vmul.f32 %v6347, 0.03125
    %v6371 = vmul.f32 %v6349, 0.03125
    %v6372 = vmul.f32 %v6351, 0.03125
    %v6373 = vmul.f32 %v6353, 0.03125
    %v6374 = vmul.f32 %v6355, 0.03125
    %v6375 = vmul.f32 %v6357, 0.03125
    %v6376 = vmul.f32 %v6359, 0.03125
    %v6377 = vmul.f32 %v6361, 0.03125
    %v6378 = vmul.f32 %v6298, %v6298
    %v6379 = vmul.f32 %v6299, %v6299
    %v6380 = vmul.f32 %v6300, %v6300
    %v6381 = vmul.f32 %v6301, %v6301
    %v6382 = vmul.f32 %v6302, %v6302
    %v6383 = vmul.f32 %v6303, %v6303
    %v6384 = vmul.f32 %v6304, %v6304
    %v6385 = vmul.f32 %v6305, %v6305
    %v6386 = vmul.f32 %v6306, %v6306
    %v6387 = vmul.f32 %v6307, %v6307
    %v6388 = vmul.f32 %v6308, %v6308
    %v6389 = vmul.f32 %v6309, %v6309
    %v6390 = vmul.f32 %v6310, %v6310
    %v6391 = vmul.f32 %v6311, %v6311
    %v6392 = vmul.f32 %v6312, %v6312
    %v6393 = vmul.f32 %v6313, %v6313
    %v6394 = vsub.f32 %v6362, %v6378
    %v6395 = vsub.f32 %v6363, %v6379
    %v6396 = vsub.f32 %v6364, %v6380
    %v6397 = vsub.f32 %v6365, %v6381
    %v6398 = vsub.f32 %v6366, %v6382
    %v6399 = vsub.f32 %v6367, %v6383
    %v6400 = vsub.f32 %v6368, %v6384
    %v6401 = vsub.f32 %v6369, %v6385
    %v6402 = vsub.f32 %v6370, %v6386
    %v6403 = vsub.f32 %v6371, %v6387
    %v6404 = vsub.f32 %v6372, %v6388
    %v6405 = vsub.f32 %v6373, %v6389
    %v6406 = vsub.f32 %v6374, %v6390
    %v6407 = vsub.f32 %v6375, %v6391
    %v6408 = vsub.f32 %v6376, %v6392
    %v6409 = vsub.f32 %v6377, %v6393
    %v6410 = vmax.f32 %v6394, 0.0
    %v6411 = vmax.f32 %v6395, 0.0
    %v6412 = vmax.f32 %v6396, 0.0
    %v6413 = vmax.f32 %v6397, 0.0
    %v6414 = vmax.f32 %v6398, 0.0
    %v6415 = vmax.f32 %v6399, 0.0
    %v6416 = vmax.f32 %v6400, 0.0
    %v6417 = vmax.f32 %v6401, 0.0
    %v6418 = vmax.f32 %v6402, 0.0
    %v6419 = vmax.f32 %v6403, 0.0
    %v6420 = vmax.f32 %v6404, 0.0
    %v6421 = vmax.f32 %v6405, 0.0
    %v6422 = vmax.f32 %v6406, 0.0
    %v6423 = vmax.f32 %v6407, 0.0
    %v6424 = vmax.f32 %v6408, 0.0
    %v6425 = vmax.f32 %v6409, 0.0
    %v6426 = vadd.f32 %v6410, 1e-05
    %v6427 = vadd.f32 %v6411, 1e-05
    %v6428 = vadd.f32 %v6412, 1e-05
    %v6429 = vadd.f32 %v6413, 1e-05
    %v6430 = vadd.f32 %v6414, 1e-05
    %v6431 = vadd.f32 %v6415, 1e-05
    %v6432 = vadd.f32 %v6416, 1e-05
    %v6433 = vadd.f32 %v6417, 1e-05
    %v6434 = vadd.f32 %v6418, 1e-05
    %v6435 = vadd.f32 %v6419, 1e-05
    %v6436 = vadd.f32 %v6420, 1e-05
    %v6437 = vadd.f32 %v6421, 1e-05
    %v6438 = vadd.f32 %v6422, 1e-05
    %v6439 = vadd.f32 %v6423, 1e-05
    %v6440 = vadd.f32 %v6424, 1e-05
    %v6441 = vadd.f32 %v6425, 1e-05
    %v6442 = vrsqrt.pop %v6426
    %v6443 = vmul.f32 %v6442, %v6426
    %v6444 = vmul.f32 %v6443, %v6442
    %v6445 = vmul.f32 0.5, %v6444
    %v6446 = vsub.f32 1.5, %v6445
    %v6447 = vmul.f32 %v6442, %v6446
    %vm6448 = vweird.f32 %v6426
    %vm6449 = vweird.f32 %v6442
    %vm6450 = vmor %vm6448, %vm6449
    %v6451 = vsel %vm6450, %v6442, %v6447
    %v6452 = vrsqrt.pop %v6427
    %v6453 = vmul.f32 %v6452, %v6427
    %v6454 = vmul.f32 %v6453, %v6452
    %v6455 = vmul.f32 0.5, %v6454
    %v6456 = vsub.f32 1.5, %v6455
    %v6457 = vmul.f32 %v6452, %v6456
    %vm6458 = vweird.f32 %v6427
    %vm6459 = vweird.f32 %v6452
    %vm6460 = vmor %vm6458, %vm6459
    %v6461 = vsel %vm6460, %v6452, %v6457
    %v6462 = vrsqrt.pop %v6428
    %v6463 = vmul.f32 %v6462, %v6428
    %v6464 = vmul.f32 %v6463, %v6462
    %v6465 = vmul.f32 0.5, %v6464
    %v6466 = vsub.f32 1.5, %v6465
    %v6467 = vmul.f32 %v6462, %v6466
    %vm6468 = vweird.f32 %v6428
    %vm6469 = vweird.f32 %v6462
    %vm6470 = vmor %vm6468, %vm6469
    %v6471 = vsel %vm6470, %v6462, %v6467
    %v6472 = vrsqrt.pop %v6429
    %v6473 = vmul.f32 %v6472, %v6429
    %v6474 = vmul.f32 %v6473, %v6472
    %v6475 = vmul.f32 0.5, %v6474
    %v6476 = vsub.f32 1.5, %v6475
    %v6477 = vmul.f32 %v6472, %v6476
    %vm6478 = vweird.f32 %v6429
    %vm6479 = vweird.f32 %v6472
    %vm6480 = vmor %vm6478, %vm6479
    %v6481 = vsel %vm6480, %v6472, %v6477
    %v6482 = vrsqrt.pop %v6430
    %v6483 = vmul.f32 %v6482, %v6430
    %v6484 = vmul.f32 %v6483, %v6482
    %v6485 = vmul.f32 0.5, %v6484
    %v6486 = vsub.f32 1.5, %v6485
    %v6487 = vmul.f32 %v6482, %v6486
    %vm6488 = vweird.f32 %v6430
    %vm6489 = vweird.f32 %v6482
    %vm6490 = vmor %vm6488, %vm6489
    %v6491 = vsel %vm6490, %v6482, %v6487
    %v6492 = vrsqrt.pop %v6431
    %v6493 = vmul.f32 %v6492, %v6431
    %v6494 = vmul.f32 %v6493, %v6492
    %v6495 = vmul.f32 0.5, %v6494
    %v6496 = vsub.f32 1.5, %v6495
    %v6497 = vmul.f32 %v6492, %v6496
    %vm6498 = vweird.f32 %v6431
    %vm6499 = vweird.f32 %v6492
    %vm6500 = vmor %vm6498, %vm6499
    %v6501 = vsel %vm6500, %v6492, %v6497
    %v6502 = vrsqrt.pop %v6432
    %v6503 = vmul.f32 %v6502, %v6432
    %v6504 = vmul.f32 %v6503, %v6502
    %v6505 = vmul.f32 0.5, %v6504
    %v6506 = vsub.f32 1.5, %v6505
    %v6507 = vmul.f32 %v6502, %v6506
    %vm6508 = vweird.f32 %v6432
    %vm6509 = vweird.f32 %v6502
    %vm6510 = vmor %vm6508, %vm6509
    %v6511 = vsel %vm6510, %v6502, %v6507
    %v6512 = vrsqrt.pop %v6433
    %v6513 = vmul.f32 %v6512, %v6433
    %v6514 = vmul.f32 %v6513, %v6512
    %v6515 = vmul.f32 0.5, %v6514
    %v6516 = vsub.f32 1.5, %v6515
    %v6517 = vmul.f32 %v6512, %v6516
    %vm6518 = vweird.f32 %v6433
    %vm6519 = vweird.f32 %v6512
    %vm6520 = vmor %vm6518, %vm6519
    %v6521 = vsel %vm6520, %v6512, %v6517
    %v6522 = vrsqrt.pop %v6434
    %v6523 = vmul.f32 %v6522, %v6434
    %v6524 = vmul.f32 %v6523, %v6522
    %v6525 = vmul.f32 0.5, %v6524
    %v6526 = vsub.f32 1.5, %v6525
    %v6527 = vmul.f32 %v6522, %v6526
    %vm6528 = vweird.f32 %v6434
    %vm6529 = vweird.f32 %v6522
    %vm6530 = vmor %vm6528, %vm6529
    %v6531 = vsel %vm6530, %v6522, %v6527
    %v6532 = vrsqrt.pop %v6435
    %v6533 = vmul.f32 %v6532, %v6435
    %v6534 = vmul.f32 %v6533, %v6532
    %v6535 = vmul.f32 0.5, %v6534
    %v6536 = vsub.f32 1.5, %v6535
    %v6537 = vmul.f32 %v6532, %v6536
    %vm6538 = vweird.f32 %v6435
    %vm6539 = vweird.f32 %v6532
    %vm6540 = vmor %vm6538, %vm6539
    %v6541 = vsel %vm6540, %v6532, %v6537
    %v6542 = vrsqrt.pop %v6436
    %v6543 = vmul.f32 %v6542, %v6436
    %v6544 = vmul.f32 %v6543, %v6542
    %v6545 = vmul.f32 0.5, %v6544
    %v6546 = vsub.f32 1.5, %v6545
    %v6547 = vmul.f32 %v6542, %v6546
    %vm6548 = vweird.f32 %v6436
    %vm6549 = vweird.f32 %v6542
    %vm6550 = vmor %vm6548, %vm6549
    %v6551 = vsel %vm6550, %v6542, %v6547
    %v6552 = vrsqrt.pop %v6437
    %v6553 = vmul.f32 %v6552, %v6437
    %v6554 = vmul.f32 %v6553, %v6552
    %v6555 = vmul.f32 0.5, %v6554
    %v6556 = vsub.f32 1.5, %v6555
    %v6557 = vmul.f32 %v6552, %v6556
    %vm6558 = vweird.f32 %v6437
    %vm6559 = vweird.f32 %v6552
    %vm6560 = vmor %vm6558, %vm6559
    %v6561 = vsel %vm6560, %v6552, %v6557
    %v6562 = vrsqrt.pop %v6438
    %v6563 = vmul.f32 %v6562, %v6438
    %v6564 = vmul.f32 %v6563, %v6562
    %v6565 = vmul.f32 0.5, %v6564
    %v6566 = vsub.f32 1.5, %v6565
    %v6567 = vmul.f32 %v6562, %v6566
    %vm6568 = vweird.f32 %v6438
    %vm6569 = vweird.f32 %v6562
    %vm6570 = vmor %vm6568, %vm6569
    %v6571 = vsel %vm6570, %v6562, %v6567
    %v6572 = vrsqrt.pop %v6439
    %v6573 = vmul.f32 %v6572, %v6439
    %v6574 = vmul.f32 %v6573, %v6572
    %v6575 = vmul.f32 0.5, %v6574
    %v6576 = vsub.f32 1.5, %v6575
    %v6577 = vmul.f32 %v6572, %v6576
    %vm6578 = vweird.f32 %v6439
    %vm6579 = vweird.f32 %v6572
    %vm6580 = vmor %vm6578, %vm6579
    %v6581 = vsel %vm6580, %v6572, %v6577
    %v6582 = vrsqrt.pop %v6440
    %v6583 = vmul.f32 %v6582, %v6440
    %v6584 = vmul.f32 %v6583, %v6582
    %v6585 = vmul.f32 0.5, %v6584
    %v6586 = vsub.f32 1.5, %v6585
    %v6587 = vmul.f32 %v6582, %v6586
    %vm6588 = vweird.f32 %v6440
    %vm6589 = vweird.f32 %v6582
    %vm6590 = vmor %vm6588, %vm6589
    %v6591 = vsel %vm6590, %v6582, %v6587
    %v6592 = vrsqrt.pop %v6441
    %v6593 = vmul.f32 %v6592, %v6441
    %v6594 = vmul.f32 %v6593, %v6592
    %v6595 = vmul.f32 0.5, %v6594
    %v6596 = vsub.f32 1.5, %v6595
    %v6597 = vmul.f32 %v6592, %v6596
    %vm6598 = vweird.f32 %v6441
    %vm6599 = vweird.f32 %v6592
    %vm6600 = vmor %vm6598, %vm6599
    %v6601 = vsel %vm6600, %v6592, %v6597
    %v6602 = vsub.f32 %v6250, %v6298
    %v6603 = vsub.f32 %v6251, %v6299
    %v6604 = vsub.f32 %v6252, %v6300
    %v6605 = vsub.f32 %v6253, %v6301
    %v6606 = vsub.f32 %v6254, %v6302
    %v6607 = vsub.f32 %v6255, %v6303
    %v6608 = vsub.f32 %v6256, %v6304
    %v6609 = vsub.f32 %v6257, %v6305
    %v6610 = vsub.f32 %v6258, %v6306
    %v6611 = vsub.f32 %v6259, %v6307
    %v6612 = vsub.f32 %v6260, %v6308
    %v6613 = vsub.f32 %v6261, %v6309
    %v6614 = vsub.f32 %v6262, %v6310
    %v6615 = vsub.f32 %v6263, %v6311
    %v6616 = vsub.f32 %v6264, %v6312
    %v6617 = vsub.f32 %v6265, %v6313
    %v6618 = vmul.f32 %v6602, %v6451
    %v6619 = vmul.f32 %v6603, %v6461
    %v6620 = vmul.f32 %v6604, %v6471
    %v6621 = vmul.f32 %v6605, %v6481
    %v6622 = vmul.f32 %v6606, %v6491
    %v6623 = vmul.f32 %v6607, %v6501
    %v6624 = vmul.f32 %v6608, %v6511
    %v6625 = vmul.f32 %v6609, %v6521
    %v6626 = vmul.f32 %v6610, %v6531
    %v6627 = vmul.f32 %v6611, %v6541
    %v6628 = vmul.f32 %v6612, %v6551
    %v6629 = vmul.f32 %v6613, %v6561
    %v6630 = vmul.f32 %v6614, %v6571
    %v6631 = vmul.f32 %v6615, %v6581
    %v6632 = vmul.f32 %v6616, %v6591
    %v6633 = vmul.f32 %v6617, %v6601
    %v6634 = vpack.c.bf16 %v6619, %v6618
    %v6635 = vpack.c.bf16 %v6621, %v6620
    %v6636 = vpack.c.bf16 %v6623, %v6622
    %v6637 = vpack.c.bf16 %v6625, %v6624
    %v6638 = vpack.c.bf16 %v6627, %v6626
    %v6639 = vpack.c.bf16 %v6629, %v6628
    %v6640 = vpack.c.bf16 %v6631, %v6630
    %v6641 = vpack.c.bf16 %v6633, %v6632
    %6642 = vmatpush.bf16.xpose.msra.mxu0 %v6641
    %6643 = vmatpush.bf16.xpose.msra.mxu0 %v6640
    %6644 = vmatpush.bf16.xpose.msra.mxu0 %v6639
    %6645 = vmatpush.bf16.xpose.msra.mxu0 %v6638
    %6646 = vmatpush.bf16.xpose.msra.mxu0 %v6637
    %6647 = vmatpush.bf16.xpose.msra.mxu0 %v6636
    %6648 = vmatpush.bf16.xpose.msra.mxu0 %v6635
    %6649 = vmatpush.bf16.xpose.msra.mxu0 %v6634
    %6650 = vmatmul.bf16.gmra.mxu0 %v1348
    %v6651 = vpop.f32.mrf.mxu0
    %v6652 = vadd.f32 0.0, %v6651
    %v6653 = vpop.f32.mrf.mxu0
    %6654 = vdwg.mxu0
    %v6655 = vadd.f32 %v6652, %v1758
    %s6656 = scalar_lea.vmem [#allocation6], 48
    %6657 = vst [vmem:[%s6656] sm:$0xf] %v6655
    %v6658 = vld [vmem:[#allocation2 + $0x68] sm:$0xff]
    %v6659 = vld [vmem:[#allocation2 + $0xe8] sm:$0xff]
    %v6660 = vld [vmem:[#allocation2 + $0x168] sm:$0xff]
    %v6661 = vld [vmem:[#allocation2 + $0x1e8] sm:$0xff]
    %v6662 = vld [vmem:[#allocation2 + $0x268] sm:$0xff]
    %v6663 = vld [vmem:[#allocation2 + $0x2e8] sm:$0xff]
    %v6664 = vld [vmem:[#allocation2 + $0x368] sm:$0xff]
    %v6665 = vld [vmem:[#allocation2 + $0x3e8] sm:$0xff]
    %v6666 = vld [vmem:[#allocation2 + $0x468] sm:$0xff]
    %v6667 = vld [vmem:[#allocation2 + $0x4e8] sm:$0xff]
    %v6668 = vld [vmem:[#allocation2 + $0x568] sm:$0xff]
    %v6669 = vld [vmem:[#allocation2 + $0x5e8] sm:$0xff]
    %v6670 = vld [vmem:[#allocation2 + $0x668] sm:$0xff]
    %v6671 = vld [vmem:[#allocation2 + $0x6e8] sm:$0xff]
    %v6672 = vld [vmem:[#allocation2 + $0x768] sm:$0xff]
    %v6673 = vld [vmem:[#allocation2 + $0x7e8] sm:$0xff]
    %6674 = vadd.xlane.f32.xlu0 %v6658
    %v6675 = vpop.xlane.xlu0 %6674
    %6676 = vadd.xlane.f32.xlu0 %v6659
    %v6677 = vpop.xlane.xlu0 %6676
    %6678 = vadd.xlane.f32.xlu0 %v6660
    %v6679 = vpop.xlane.xlu0 %6678
    %6680 = vadd.xlane.f32.xlu0 %v6661
    %v6681 = vpop.xlane.xlu0 %6680
    %6682 = vadd.xlane.f32.xlu0 %v6662
    %v6683 = vpop.xlane.xlu0 %6682
    %6684 = vadd.xlane.f32.xlu0 %v6663
    %v6685 = vpop.xlane.xlu0 %6684
    %6686 = vadd.xlane.f32.xlu0 %v6664
    %v6687 = vpop.xlane.xlu0 %6686
    %6688 = vadd.xlane.f32.xlu0 %v6665
    %v6689 = vpop.xlane.xlu0 %6688
    %6690 = vadd.xlane.f32.xlu0 %v6666
    %v6691 = vpop.xlane.xlu0 %6690
    %6692 = vadd.xlane.f32.xlu0 %v6667
    %v6693 = vpop.xlane.xlu0 %6692
    %6694 = vadd.xlane.f32.xlu0 %v6668
    %v6695 = vpop.xlane.xlu0 %6694
    %6696 = vadd.xlane.f32.xlu0 %v6669
    %v6697 = vpop.xlane.xlu0 %6696
    %6698 = vadd.xlane.f32.xlu0 %v6670
    %v6699 = vpop.xlane.xlu0 %6698
    %6700 = vadd.xlane.f32.xlu0 %v6671
    %v6701 = vpop.xlane.xlu0 %6700
    %6702 = vadd.xlane.f32.xlu0 %v6672
    %v6703 = vpop.xlane.xlu0 %6702
    %6704 = vadd.xlane.f32.xlu0 %v6673
    %v6705 = vpop.xlane.xlu0 %6704
    %v6706 = vmul.f32 %v6675, 0.03125
    %v6707 = vmul.f32 %v6677, 0.03125
    %v6708 = vmul.f32 %v6679, 0.03125
    %v6709 = vmul.f32 %v6681, 0.03125
    %v6710 = vmul.f32 %v6683, 0.03125
    %v6711 = vmul.f32 %v6685, 0.03125
    %v6712 = vmul.f32 %v6687, 0.03125
    %v6713 = vmul.f32 %v6689, 0.03125
    %v6714 = vmul.f32 %v6691, 0.03125
    %v6715 = vmul.f32 %v6693, 0.03125
    %v6716 = vmul.f32 %v6695, 0.03125
    %v6717 = vmul.f32 %v6697, 0.03125
    %v6718 = vmul.f32 %v6699, 0.03125
    %v6719 = vmul.f32 %v6701, 0.03125
    %v6720 = vmul.f32 %v6703, 0.03125
    %v6721 = vmul.f32 %v6705, 0.03125
    %v6722 = vmul.f32 %v6658, %v6658
    %v6723 = vmul.f32 %v6659, %v6659
    %v6724 = vmul.f32 %v6660, %v6660
    %v6725 = vmul.f32 %v6661, %v6661
    %v6726 = vmul.f32 %v6662, %v6662
    %v6727 = vmul.f32 %v6663, %v6663
    %v6728 = vmul.f32 %v6664, %v6664
    %v6729 = vmul.f32 %v6665, %v6665
    %v6730 = vmul.f32 %v6666, %v6666
    %v6731 = vmul.f32 %v6667, %v6667
    %v6732 = vmul.f32 %v6668, %v6668
    %v6733 = vmul.f32 %v6669, %v6669
    %v6734 = vmul.f32 %v6670, %v6670
    %v6735 = vmul.f32 %v6671, %v6671
    %v6736 = vmul.f32 %v6672, %v6672
    %v6737 = vmul.f32 %v6673, %v6673
    %6738 = vadd.xlane.f32.xlu0 %v6722
    %v6739 = vpop.xlane.xlu0 %6738
    %6740 = vadd.xlane.f32.xlu0 %v6723
    %v6741 = vpop.xlane.xlu0 %6740
    %6742 = vadd.xlane.f32.xlu0 %v6724
    %v6743 = vpop.xlane.xlu0 %6742
    %6744 = vadd.xlane.f32.xlu0 %v6725
    %v6745 = vpop.xlane.xlu0 %6744
    %6746 = vadd.xlane.f32.xlu0 %v6726
    %v6747 = vpop.xlane.xlu0 %6746
    %6748 = vadd.xlane.f32.xlu0 %v6727
    %v6749 = vpop.xlane.xlu0 %6748
    %6750 = vadd.xlane.f32.xlu0 %v6728
    %v6751 = vpop.xlane.xlu0 %6750
    %6752 = vadd.xlane.f32.xlu0 %v6729
    %v6753 = vpop.xlane.xlu0 %6752
    %6754 = vadd.xlane.f32.xlu0 %v6730
    %v6755 = vpop.xlane.xlu0 %6754
    %6756 = vadd.xlane.f32.xlu0 %v6731
    %v6757 = vpop.xlane.xlu0 %6756
    %6758 = vadd.xlane.f32.xlu0 %v6732
    %v6759 = vpop.xlane.xlu0 %6758
    %6760 = vadd.xlane.f32.xlu0 %v6733
    %v6761 = vpop.xlane.xlu0 %6760
    %6762 = vadd.xlane.f32.xlu0 %v6734
    %v6763 = vpop.xlane.xlu0 %6762
    %6764 = vadd.xlane.f32.xlu0 %v6735
    %v6765 = vpop.xlane.xlu0 %6764
    %6766 = vadd.xlane.f32.xlu0 %v6736
    %v6767 = vpop.xlane.xlu0 %6766
    %6768 = vadd.xlane.f32.xlu0 %v6737
    %v6769 = vpop.xlane.xlu0 %6768
    %v6770 = vmul.f32 %v6739, 0.03125
    %v6771 = vmul.f32 %v6741, 0.03125
    %v6772 = vmul.f32 %v6743, 0.03125
    %v6773 = vmul.f32 %v6745, 0.03125
    %v6774 = vmul.f32 %v6747, 0.03125
    %v6775 = vmul.f32 %v6749, 0.03125
    %v6776 = vmul.f32 %v6751, 0.03125
    %v6777 = vmul.f32 %v6753, 0.03125
    %v6778 = vmul.f32 %v6755, 0.03125
    %v6779 = vmul.f32 %v6757, 0.03125
    %v6780 = vmul.f32 %v6759, 0.03125
    %v6781 = vmul.f32 %v6761, 0.03125
    %v6782 = vmul.f32 %v6763, 0.03125
    %v6783 = vmul.f32 %v6765, 0.03125
    %v6784 = vmul.f32 %v6767, 0.03125
    %v6785 = vmul.f32 %v6769, 0.03125
    %v6786 = vmul.f32 %v6706, %v6706
    %v6787 = vmul.f32 %v6707, %v6707
    %v6788 = vmul.f32 %v6708, %v6708
    %v6789 = vmul.f32 %v6709, %v6709
    %v6790 = vmul.f32 %v6710, %v6710
    %v6791 = vmul.f32 %v6711, %v6711
    %v6792 = vmul.f32 %v6712, %v6712
    %v6793 = vmul.f32 %v6713, %v6713
    %v6794 = vmul.f32 %v6714, %v6714
    %v6795 = vmul.f32 %v6715, %v6715
    %v6796 = vmul.f32 %v6716, %v6716
    %v6797 = vmul.f32 %v6717, %v6717
    %v6798 = vmul.f32 %v6718, %v6718
    %v6799 = vmul.f32 %v6719, %v6719
    %v6800 = vmul.f32 %v6720, %v6720
    %v6801 = vmul.f32 %v6721, %v6721
    %v6802 = vsub.f32 %v6770, %v6786
    %v6803 = vsub.f32 %v6771, %v6787
    %v6804 = vsub.f32 %v6772, %v6788
    %v6805 = vsub.f32 %v6773, %v6789
    %v6806 = vsub.f32 %v6774, %v6790
    %v6807 = vsub.f32 %v6775, %v6791
    %v6808 = vsub.f32 %v6776, %v6792
    %v6809 = vsub.f32 %v6777, %v6793
    %v6810 = vsub.f32 %v6778, %v6794
    %v6811 = vsub.f32 %v6779, %v6795
    %v6812 = vsub.f32 %v6780, %v6796
    %v6813 = vsub.f32 %v6781, %v6797
    %v6814 = vsub.f32 %v6782, %v6798
    %v6815 = vsub.f32 %v6783, %v6799
    %v6816 = vsub.f32 %v6784, %v6800
    %v6817 = vsub.f32 %v6785, %v6801
    %v6818 = vmax.f32 %v6802, 0.0
    %v6819 = vmax.f32 %v6803, 0.0
    %v6820 = vmax.f32 %v6804, 0.0
    %v6821 = vmax.f32 %v6805, 0.0
    %v6822 = vmax.f32 %v6806, 0.0
    %v6823 = vmax.f32 %v6807, 0.0
    %v6824 = vmax.f32 %v6808, 0.0
    %v6825 = vmax.f32 %v6809, 0.0
    %v6826 = vmax.f32 %v6810, 0.0
    %v6827 = vmax.f32 %v6811, 0.0
    %v6828 = vmax.f32 %v6812, 0.0
    %v6829 = vmax.f32 %v6813, 0.0
    %v6830 = vmax.f32 %v6814, 0.0
    %v6831 = vmax.f32 %v6815, 0.0
    %v6832 = vmax.f32 %v6816, 0.0
    %v6833 = vmax.f32 %v6817, 0.0
    %v6834 = vadd.f32 %v6818, 1e-05
    %v6835 = vadd.f32 %v6819, 1e-05
    %v6836 = vadd.f32 %v6820, 1e-05
    %v6837 = vadd.f32 %v6821, 1e-05
    %v6838 = vadd.f32 %v6822, 1e-05
    %v6839 = vadd.f32 %v6823, 1e-05
    %v6840 = vadd.f32 %v6824, 1e-05
    %v6841 = vadd.f32 %v6825, 1e-05
    %v6842 = vadd.f32 %v6826, 1e-05
    %v6843 = vadd.f32 %v6827, 1e-05
    %v6844 = vadd.f32 %v6828, 1e-05
    %v6845 = vadd.f32 %v6829, 1e-05
    %v6846 = vadd.f32 %v6830, 1e-05
    %v6847 = vadd.f32 %v6831, 1e-05
    %v6848 = vadd.f32 %v6832, 1e-05
    %v6849 = vadd.f32 %v6833, 1e-05
    %v6850 = vrsqrt.pop %v6834
    %v6851 = vmul.f32 %v6850, %v6834
    %v6852 = vmul.f32 %v6851, %v6850
    %v6853 = vmul.f32 0.5, %v6852
    %v6854 = vsub.f32 1.5, %v6853
    %v6855 = vmul.f32 %v6850, %v6854
    %vm6856 = vweird.f32 %v6834
    %vm6857 = vweird.f32 %v6850
    %vm6858 = vmor %vm6856, %vm6857
    %v6859 = vsel %vm6858, %v6850, %v6855
    %v6860 = vrsqrt.pop %v6835
    %v6861 = vmul.f32 %v6860, %v6835
    %v6862 = vmul.f32 %v6861, %v6860
    %v6863 = vmul.f32 0.5, %v6862
    %v6864 = vsub.f32 1.5, %v6863
    %v6865 = vmul.f32 %v6860, %v6864
    %vm6866 = vweird.f32 %v6835
    %vm6867 = vweird.f32 %v6860
    %vm6868 = vmor %vm6866, %vm6867
    %v6869 = vsel %vm6868, %v6860, %v6865
    %v6870 = vrsqrt.pop %v6836
    %v6871 = vmul.f32 %v6870, %v6836
    %v6872 = vmul.f32 %v6871, %v6870
    %v6873 = vmul.f32 0.5, %v6872
    %v6874 = vsub.f32 1.5, %v6873
    %v6875 = vmul.f32 %v6870, %v6874
    %vm6876 = vweird.f32 %v6836
    %vm6877 = vweird.f32 %v6870
    %vm6878 = vmor %vm6876, %vm6877
    %v6879 = vsel %vm6878, %v6870, %v6875
    %v6880 = vrsqrt.pop %v6837
    %v6881 = vmul.f32 %v6880, %v6837
    %v6882 = vmul.f32 %v6881, %v6880
    %v6883 = vmul.f32 0.5, %v6882
    %v6884 = vsub.f32 1.5, %v6883
    %v6885 = vmul.f32 %v6880, %v6884
    %vm6886 = vweird.f32 %v6837
    %vm6887 = vweird.f32 %v6880
    %vm6888 = vmor %vm6886, %vm6887
    %v6889 = vsel %vm6888, %v6880, %v6885
    %v6890 = vrsqrt.pop %v6838
    %v6891 = vmul.f32 %v6890, %v6838
    %v6892 = vmul.f32 %v6891, %v6890
    %v6893 = vmul.f32 0.5, %v6892
    %v6894 = vsub.f32 1.5, %v6893
    %v6895 = vmul.f32 %v6890, %v6894
    %vm6896 = vweird.f32 %v6838
    %vm6897 = vweird.f32 %v6890
    %vm6898 = vmor %vm6896, %vm6897
    %v6899 = vsel %vm6898, %v6890, %v6895
    %v6900 = vrsqrt.pop %v6839
    %v6901 = vmul.f32 %v6900, %v6839
    %v6902 = vmul.f32 %v6901, %v6900
    %v6903 = vmul.f32 0.5, %v6902
    %v6904 = vsub.f32 1.5, %v6903
    %v6905 = vmul.f32 %v6900, %v6904
    %vm6906 = vweird.f32 %v6839
    %vm6907 = vweird.f32 %v6900
    %vm6908 = vmor %vm6906, %vm6907
    %v6909 = vsel %vm6908, %v6900, %v6905
    %v6910 = vrsqrt.pop %v6840
    %v6911 = vmul.f32 %v6910, %v6840
    %v6912 = vmul.f32 %v6911, %v6910
    %v6913 = vmul.f32 0.5, %v6912
    %v6914 = vsub.f32 1.5, %v6913
    %v6915 = vmul.f32 %v6910, %v6914
    %vm6916 = vweird.f32 %v6840
    %vm6917 = vweird.f32 %v6910
    %vm6918 = vmor %vm6916, %vm6917
    %v6919 = vsel %vm6918, %v6910, %v6915
    %v6920 = vrsqrt.pop %v6841
    %v6921 = vmul.f32 %v6920, %v6841
    %v6922 = vmul.f32 %v6921, %v6920
    %v6923 = vmul.f32 0.5, %v6922
    %v6924 = vsub.f32 1.5, %v6923
    %v6925 = vmul.f32 %v6920, %v6924
    %vm6926 = vweird.f32 %v6841
    %vm6927 = vweird.f32 %v6920
    %vm6928 = vmor %vm6926, %vm6927
    %v6929 = vsel %vm6928, %v6920, %v6925
    %v6930 = vrsqrt.pop %v6842
    %v6931 = vmul.f32 %v6930, %v6842
    %v6932 = vmul.f32 %v6931, %v6930
    %v6933 = vmul.f32 0.5, %v6932
    %v6934 = vsub.f32 1.5, %v6933
    %v6935 = vmul.f32 %v6930, %v6934
    %vm6936 = vweird.f32 %v6842
    %vm6937 = vweird.f32 %v6930
    %vm6938 = vmor %vm6936, %vm6937
    %v6939 = vsel %vm6938, %v6930, %v6935
    %v6940 = vrsqrt.pop %v6843
    %v6941 = vmul.f32 %v6940, %v6843
    %v6942 = vmul.f32 %v6941, %v6940
    %v6943 = vmul.f32 0.5, %v6942
    %v6944 = vsub.f32 1.5, %v6943
    %v6945 = vmul.f32 %v6940, %v6944
    %vm6946 = vweird.f32 %v6843
    %vm6947 = vweird.f32 %v6940
    %vm6948 = vmor %vm6946, %vm6947
    %v6949 = vsel %vm6948, %v6940, %v6945
    %v6950 = vrsqrt.pop %v6844
    %v6951 = vmul.f32 %v6950, %v6844
    %v6952 = vmul.f32 %v6951, %v6950
    %v6953 = vmul.f32 0.5, %v6952
    %v6954 = vsub.f32 1.5, %v6953
    %v6955 = vmul.f32 %v6950, %v6954
    %vm6956 = vweird.f32 %v6844
    %vm6957 = vweird.f32 %v6950
    %vm6958 = vmor %vm6956, %vm6957
    %v6959 = vsel %vm6958, %v6950, %v6955
    %v6960 = vrsqrt.pop %v6845
    %v6961 = vmul.f32 %v6960, %v6845
    %v6962 = vmul.f32 %v6961, %v6960
    %v6963 = vmul.f32 0.5, %v6962
    %v6964 = vsub.f32 1.5, %v6963
    %v6965 = vmul.f32 %v6960, %v6964
    %vm6966 = vweird.f32 %v6845
    %vm6967 = vweird.f32 %v6960
    %vm6968 = vmor %vm6966, %vm6967
    %v6969 = vsel %vm6968, %v6960, %v6965
    %v6970 = vrsqrt.pop %v6846
    %v6971 = vmul.f32 %v6970, %v6846
    %v6972 = vmul.f32 %v6971, %v6970
    %v6973 = vmul.f32 0.5, %v6972
    %v6974 = vsub.f32 1.5, %v6973
    %v6975 = vmul.f32 %v6970, %v6974
    %vm6976 = vweird.f32 %v6846
    %vm6977 = vweird.f32 %v6970
    %vm6978 = vmor %vm6976, %vm6977
    %v6979 = vsel %vm6978, %v6970, %v6975
    %v6980 = vrsqrt.pop %v6847
    %v6981 = vmul.f32 %v6980, %v6847
    %v6982 = vmul.f32 %v6981, %v6980
    %v6983 = vmul.f32 0.5, %v6982
    %v6984 = vsub.f32 1.5, %v6983
    %v6985 = vmul.f32 %v6980, %v6984
    %vm6986 = vweird.f32 %v6847
    %vm6987 = vweird.f32 %v6980
    %vm6988 = vmor %vm6986, %vm6987
    %v6989 = vsel %vm6988, %v6980, %v6985
    %v6990 = vrsqrt.pop %v6848
    %v6991 = vmul.f32 %v6990, %v6848
    %v6992 = vmul.f32 %v6991, %v6990
    %v6993 = vmul.f32 0.5, %v6992
    %v6994 = vsub.f32 1.5, %v6993
    %v6995 = vmul.f32 %v6990, %v6994
    %vm6996 = vweird.f32 %v6848
    %vm6997 = vweird.f32 %v6990
    %vm6998 = vmor %vm6996, %vm6997
    %v6999 = vsel %vm6998, %v6990, %v6995
    %v7000 = vrsqrt.pop %v6849
    %v7001 = vmul.f32 %v7000, %v6849
    %v7002 = vmul.f32 %v7001, %v7000
    %v7003 = vmul.f32 0.5, %v7002
    %v7004 = vsub.f32 1.5, %v7003
    %v7005 = vmul.f32 %v7000, %v7004
    %vm7006 = vweird.f32 %v6849
    %vm7007 = vweird.f32 %v7000
    %vm7008 = vmor %vm7006, %vm7007
    %v7009 = vsel %vm7008, %v7000, %v7005
    %v7010 = vsub.f32 %v6658, %v6706
    %v7011 = vsub.f32 %v6659, %v6707
    %v7012 = vsub.f32 %v6660, %v6708
    %v7013 = vsub.f32 %v6661, %v6709
    %v7014 = vsub.f32 %v6662, %v6710
    %v7015 = vsub.f32 %v6663, %v6711
    %v7016 = vsub.f32 %v6664, %v6712
    %v7017 = vsub.f32 %v6665, %v6713
    %v7018 = vsub.f32 %v6666, %v6714
    %v7019 = vsub.f32 %v6667, %v6715
    %v7020 = vsub.f32 %v6668, %v6716
    %v7021 = vsub.f32 %v6669, %v6717
    %v7022 = vsub.f32 %v6670, %v6718
    %v7023 = vsub.f32 %v6671, %v6719
    %v7024 = vsub.f32 %v6672, %v6720
    %v7025 = vsub.f32 %v6673, %v6721
    %v7026 = vmul.f32 %v7010, %v6859
    %v7027 = vmul.f32 %v7011, %v6869
    %v7028 = vmul.f32 %v7012, %v6879
    %v7029 = vmul.f32 %v7013, %v6889
    %v7030 = vmul.f32 %v7014, %v6899
    %v7031 = vmul.f32 %v7015, %v6909
    %v7032 = vmul.f32 %v7016, %v6919
    %v7033 = vmul.f32 %v7017, %v6929
    %v7034 = vmul.f32 %v7018, %v6939
    %v7035 = vmul.f32 %v7019, %v6949
    %v7036 = vmul.f32 %v7020, %v6959
    %v7037 = vmul.f32 %v7021, %v6969
    %v7038 = vmul.f32 %v7022, %v6979
    %v7039 = vmul.f32 %v7023, %v6989
    %v7040 = vmul.f32 %v7024, %v6999
    %v7041 = vmul.f32 %v7025, %v7009
    %v7042 = vpack.c.bf16 %v7027, %v7026
    %v7043 = vpack.c.bf16 %v7029, %v7028
    %v7044 = vpack.c.bf16 %v7031, %v7030
    %v7045 = vpack.c.bf16 %v7033, %v7032
    %v7046 = vpack.c.bf16 %v7035, %v7034
    %v7047 = vpack.c.bf16 %v7037, %v7036
    %v7048 = vpack.c.bf16 %v7039, %v7038
    %v7049 = vpack.c.bf16 %v7041, %v7040
    %7050 = vmatpush.bf16.xpose.msra.mxu0 %v7049
    %7051 = vmatpush.bf16.xpose.msra.mxu0 %v7048
    %7052 = vmatpush.bf16.xpose.msra.mxu0 %v7047
    %7053 = vmatpush.bf16.xpose.msra.mxu0 %v7046
    %7054 = vmatpush.bf16.xpose.msra.mxu0 %v7045
    %7055 = vmatpush.bf16.xpose.msra.mxu0 %v7044
    %7056 = vmatpush.bf16.xpose.msra.mxu0 %v7043
    %7057 = vmatpush.bf16.xpose.msra.mxu0 %v7042
    %7058 = vmatmul.bf16.gmra.mxu0 %v1348
    %v7059 = vpop.f32.mrf.mxu0
    %v7060 = vadd.f32 0.0, %v7059
    %v7061 = vpop.f32.mrf.mxu0
    %7062 = vdwg.mxu0
    %v7063 = vadd.f32 %v7060, %v1758
    %s7064 = scalar_lea.vmem [#allocation6], 52
    %7065 = vst [vmem:[%s7064] sm:$0xf] %v7063
    %v7066 = vld [vmem:[#allocation2 + $0x70] sm:$0xff]
    %v7067 = vld [vmem:[#allocation2 + $0xf0] sm:$0xff]
    %v7068 = vld [vmem:[#allocation2 + $0x170] sm:$0xff]
    %v7069 = vld [vmem:[#allocation2 + $0x1f0] sm:$0xff]
    %v7070 = vld [vmem:[#allocation2 + $0x270] sm:$0xff]
    %v7071 = vld [vmem:[#allocation2 + $0x2f0] sm:$0xff]
    %v7072 = vld [vmem:[#allocation2 + $0x370] sm:$0xff]
    %v7073 = vld [vmem:[#allocation2 + $0x3f0] sm:$0xff]
    %v7074 = vld [vmem:[#allocation2 + $0x470] sm:$0xff]
    %v7075 = vld [vmem:[#allocation2 + $0x4f0] sm:$0xff]
    %v7076 = vld [vmem:[#allocation2 + $0x570] sm:$0xff]
    %v7077 = vld [vmem:[#allocation2 + $0x5f0] sm:$0xff]
    %v7078 = vld [vmem:[#allocation2 + $0x670] sm:$0xff]
    %v7079 = vld [vmem:[#allocation2 + $0x6f0] sm:$0xff]
    %v7080 = vld [vmem:[#allocation2 + $0x770] sm:$0xff]
    %v7081 = vld [vmem:[#allocation2 + $0x7f0] sm:$0xff]
    %7082 = vadd.xlane.f32.xlu0 %v7066
    %v7083 = vpop.xlane.xlu0 %7082
    %7084 = vadd.xlane.f32.xlu0 %v7067
    %v7085 = vpop.xlane.xlu0 %7084
    %7086 = vadd.xlane.f32.xlu0 %v7068
    %v7087 = vpop.xlane.xlu0 %7086
    %7088 = vadd.xlane.f32.xlu0 %v7069
    %v7089 = vpop.xlane.xlu0 %7088
    %7090 = vadd.xlane.f32.xlu0 %v7070
    %v7091 = vpop.xlane.xlu0 %7090
    %7092 = vadd.xlane.f32.xlu0 %v7071
    %v7093 = vpop.xlane.xlu0 %7092
    %7094 = vadd.xlane.f32.xlu0 %v7072
    %v7095 = vpop.xlane.xlu0 %7094
    %7096 = vadd.xlane.f32.xlu0 %v7073
    %v7097 = vpop.xlane.xlu0 %7096
    %7098 = vadd.xlane.f32.xlu0 %v7074
    %v7099 = vpop.xlane.xlu0 %7098
    %7100 = vadd.xlane.f32.xlu0 %v7075
    %v7101 = vpop.xlane.xlu0 %7100
    %7102 = vadd.xlane.f32.xlu0 %v7076
    %v7103 = vpop.xlane.xlu0 %7102
    %7104 = vadd.xlane.f32.xlu0 %v7077
    %v7105 = vpop.xlane.xlu0 %7104
    %7106 = vadd.xlane.f32.xlu0 %v7078
    %v7107 = vpop.xlane.xlu0 %7106
    %7108 = vadd.xlane.f32.xlu0 %v7079
    %v7109 = vpop.xlane.xlu0 %7108
    %7110 = vadd.xlane.f32.xlu0 %v7080
    %v7111 = vpop.xlane.xlu0 %7110
    %7112 = vadd.xlane.f32.xlu0 %v7081
    %v7113 = vpop.xlane.xlu0 %7112
    %v7114 = vmul.f32 %v7083, 0.03125
    %v7115 = vmul.f32 %v7085, 0.03125
    %v7116 = vmul.f32 %v7087, 0.03125
    %v7117 = vmul.f32 %v7089, 0.03125
    %v7118 = vmul.f32 %v7091, 0.03125
    %v7119 = vmul.f32 %v7093, 0.03125
    %v7120 = vmul.f32 %v7095, 0.03125
    %v7121 = vmul.f32 %v7097, 0.03125
    %v7122 = vmul.f32 %v7099, 0.03125
    %v7123 = vmul.f32 %v7101, 0.03125
    %v7124 = vmul.f32 %v7103, 0.03125
    %v7125 = vmul.f32 %v7105, 0.03125
    %v7126 = vmul.f32 %v7107, 0.03125
    %v7127 = vmul.f32 %v7109, 0.03125
    %v7128 = vmul.f32 %v7111, 0.03125
    %v7129 = vmul.f32 %v7113, 0.03125
    %v7130 = vmul.f32 %v7066, %v7066
    %v7131 = vmul.f32 %v7067, %v7067
    %v7132 = vmul.f32 %v7068, %v7068
    %v7133 = vmul.f32 %v7069, %v7069
    %v7134 = vmul.f32 %v7070, %v7070
    %v7135 = vmul.f32 %v7071, %v7071
    %v7136 = vmul.f32 %v7072, %v7072
    %v7137 = vmul.f32 %v7073, %v7073
    %v7138 = vmul.f32 %v7074, %v7074
    %v7139 = vmul.f32 %v7075, %v7075
    %v7140 = vmul.f32 %v7076, %v7076
    %v7141 = vmul.f32 %v7077, %v7077
    %v7142 = vmul.f32 %v7078, %v7078
    %v7143 = vmul.f32 %v7079, %v7079
    %v7144 = vmul.f32 %v7080, %v7080
    %v7145 = vmul.f32 %v7081, %v7081
    %7146 = vadd.xlane.f32.xlu0 %v7130
    %v7147 = vpop.xlane.xlu0 %7146
    %7148 = vadd.xlane.f32.xlu0 %v7131
    %v7149 = vpop.xlane.xlu0 %7148
    %7150 = vadd.xlane.f32.xlu0 %v7132
    %v7151 = vpop.xlane.xlu0 %7150
    %7152 = vadd.xlane.f32.xlu0 %v7133
    %v7153 = vpop.xlane.xlu0 %7152
    %7154 = vadd.xlane.f32.xlu0 %v7134
    %v7155 = vpop.xlane.xlu0 %7154
    %7156 = vadd.xlane.f32.xlu0 %v7135
    %v7157 = vpop.xlane.xlu0 %7156
    %7158 = vadd.xlane.f32.xlu0 %v7136
    %v7159 = vpop.xlane.xlu0 %7158
    %7160 = vadd.xlane.f32.xlu0 %v7137
    %v7161 = vpop.xlane.xlu0 %7160
    %7162 = vadd.xlane.f32.xlu0 %v7138
    %v7163 = vpop.xlane.xlu0 %7162
    %7164 = vadd.xlane.f32.xlu0 %v7139
    %v7165 = vpop.xlane.xlu0 %7164
    %7166 = vadd.xlane.f32.xlu0 %v7140
    %v7167 = vpop.xlane.xlu0 %7166
    %7168 = vadd.xlane.f32.xlu0 %v7141
    %v7169 = vpop.xlane.xlu0 %7168
    %7170 = vadd.xlane.f32.xlu0 %v7142
    %v7171 = vpop.xlane.xlu0 %7170
    %7172 = vadd.xlane.f32.xlu0 %v7143
    %v7173 = vpop.xlane.xlu0 %7172
    %7174 = vadd.xlane.f32.xlu0 %v7144
    %v7175 = vpop.xlane.xlu0 %7174
    %7176 = vadd.xlane.f32.xlu0 %v7145
    %v7177 = vpop.xlane.xlu0 %7176
    %v7178 = vmul.f32 %v7147, 0.03125
    %v7179 = vmul.f32 %v7149, 0.03125
    %v7180 = vmul.f32 %v7151, 0.03125
    %v7181 = vmul.f32 %v7153, 0.03125
    %v7182 = vmul.f32 %v7155, 0.03125
    %v7183 = vmul.f32 %v7157, 0.03125
    %v7184 = vmul.f32 %v7159, 0.03125
    %v7185 = vmul.f32 %v7161, 0.03125
    %v7186 = vmul.f32 %v7163, 0.03125
    %v7187 = vmul.f32 %v7165, 0.03125
    %v7188 = vmul.f32 %v7167, 0.03125
    %v7189 = vmul.f32 %v7169, 0.03125
    %v7190 = vmul.f32 %v7171, 0.03125
    %v7191 = vmul.f32 %v7173, 0.03125
    %v7192 = vmul.f32 %v7175, 0.03125
    %v7193 = vmul.f32 %v7177, 0.03125
    %v7194 = vmul.f32 %v7114, %v7114
    %v7195 = vmul.f32 %v7115, %v7115
    %v7196 = vmul.f32 %v7116, %v7116
    %v7197 = vmul.f32 %v7117, %v7117
    %v7198 = vmul.f32 %v7118, %v7118
    %v7199 = vmul.f32 %v7119, %v7119
    %v7200 = vmul.f32 %v7120, %v7120
    %v7201 = vmul.f32 %v7121, %v7121
    %v7202 = vmul.f32 %v7122, %v7122
    %v7203 = vmul.f32 %v7123, %v7123
    %v7204 = vmul.f32 %v7124, %v7124
    %v7205 = vmul.f32 %v7125, %v7125
    %v7206 = vmul.f32 %v7126, %v7126
    %v7207 = vmul.f32 %v7127, %v7127
    %v7208 = vmul.f32 %v7128, %v7128
    %v7209 = vmul.f32 %v7129, %v7129
    %v7210 = vsub.f32 %v7178, %v7194
    %v7211 = vsub.f32 %v7179, %v7195
    %v7212 = vsub.f32 %v7180, %v7196
    %v7213 = vsub.f32 %v7181, %v7197
    %v7214 = vsub.f32 %v7182, %v7198
    %v7215 = vsub.f32 %v7183, %v7199
    %v7216 = vsub.f32 %v7184, %v7200
    %v7217 = vsub.f32 %v7185, %v7201
    %v7218 = vsub.f32 %v7186, %v7202
    %v7219 = vsub.f32 %v7187, %v7203
    %v7220 = vsub.f32 %v7188, %v7204
    %v7221 = vsub.f32 %v7189, %v7205
    %v7222 = vsub.f32 %v7190, %v7206
    %v7223 = vsub.f32 %v7191, %v7207
    %v7224 = vsub.f32 %v7192, %v7208
    %v7225 = vsub.f32 %v7193, %v7209
    %v7226 = vmax.f32 %v7210, 0.0
    %v7227 = vmax.f32 %v7211, 0.0
    %v7228 = vmax.f32 %v7212, 0.0
    %v7229 = vmax.f32 %v7213, 0.0
    %v7230 = vmax.f32 %v7214, 0.0
    %v7231 = vmax.f32 %v7215, 0.0
    %v7232 = vmax.f32 %v7216, 0.0
    %v7233 = vmax.f32 %v7217, 0.0
    %v7234 = vmax.f32 %v7218, 0.0
    %v7235 = vmax.f32 %v7219, 0.0
    %v7236 = vmax.f32 %v7220, 0.0
    %v7237 = vmax.f32 %v7221, 0.0
    %v7238 = vmax.f32 %v7222, 0.0
    %v7239 = vmax.f32 %v7223, 0.0
    %v7240 = vmax.f32 %v7224, 0.0
    %v7241 = vmax.f32 %v7225, 0.0
    %v7242 = vadd.f32 %v7226, 1e-05
    %v7243 = vadd.f32 %v7227, 1e-05
    %v7244 = vadd.f32 %v7228, 1e-05
    %v7245 = vadd.f32 %v7229, 1e-05
    %v7246 = vadd.f32 %v7230, 1e-05
    %v7247 = vadd.f32 %v7231, 1e-05
    %v7248 = vadd.f32 %v7232, 1e-05
    %v7249 = vadd.f32 %v7233, 1e-05
    %v7250 = vadd.f32 %v7234, 1e-05
    %v7251 = vadd.f32 %v7235, 1e-05
    %v7252 = vadd.f32 %v7236, 1e-05
    %v7253 = vadd.f32 %v7237, 1e-05
    %v7254 = vadd.f32 %v7238, 1e-05
    %v7255 = vadd.f32 %v7239, 1e-05
    %v7256 = vadd.f32 %v7240, 1e-05
    %v7257 = vadd.f32 %v7241, 1e-05
    %v7258 = vrsqrt.pop %v7242
    %v7259 = vmul.f32 %v7258, %v7242
    %v7260 = vmul.f32 %v7259, %v7258
    %v7261 = vmul.f32 0.5, %v7260
    %v7262 = vsub.f32 1.5, %v7261
    %v7263 = vmul.f32 %v7258, %v7262
    %vm7264 = vweird.f32 %v7242
    %vm7265 = vweird.f32 %v7258
    %vm7266 = vmor %vm7264, %vm7265
    %v7267 = vsel %vm7266, %v7258, %v7263
    %v7268 = vrsqrt.pop %v7243
    %v7269 = vmul.f32 %v7268, %v7243
    %v7270 = vmul.f32 %v7269, %v7268
    %v7271 = vmul.f32 0.5, %v7270
    %v7272 = vsub.f32 1.5, %v7271
    %v7273 = vmul.f32 %v7268, %v7272
    %vm7274 = vweird.f32 %v7243
    %vm7275 = vweird.f32 %v7268
    %vm7276 = vmor %vm7274, %vm7275
    %v7277 = vsel %vm7276, %v7268, %v7273
    %v7278 = vrsqrt.pop %v7244
    %v7279 = vmul.f32 %v7278, %v7244
    %v7280 = vmul.f32 %v7279, %v7278
    %v7281 = vmul.f32 0.5, %v7280
    %v7282 = vsub.f32 1.5, %v7281
    %v7283 = vmul.f32 %v7278, %v7282
    %vm7284 = vweird.f32 %v7244
    %vm7285 = vweird.f32 %v7278
    %vm7286 = vmor %vm7284, %vm7285
    %v7287 = vsel %vm7286, %v7278, %v7283
    %v7288 = vrsqrt.pop %v7245
    %v7289 = vmul.f32 %v7288, %v7245
    %v7290 = vmul.f32 %v7289, %v7288
    %v7291 = vmul.f32 0.5, %v7290
    %v7292 = vsub.f32 1.5, %v7291
    %v7293 = vmul.f32 %v7288, %v7292
    %vm7294 = vweird.f32 %v7245
    %vm7295 = vweird.f32 %v7288
    %vm7296 = vmor %vm7294, %vm7295
    %v7297 = vsel %vm7296, %v7288, %v7293
    %v7298 = vrsqrt.pop %v7246
    %v7299 = vmul.f32 %v7298, %v7246
    %v7300 = vmul.f32 %v7299, %v7298
    %v7301 = vmul.f32 0.5, %v7300
    %v7302 = vsub.f32 1.5, %v7301
    %v7303 = vmul.f32 %v7298, %v7302
    %vm7304 = vweird.f32 %v7246
    %vm7305 = vweird.f32 %v7298
    %vm7306 = vmor %vm7304, %vm7305
    %v7307 = vsel %vm7306, %v7298, %v7303
    %v7308 = vrsqrt.pop %v7247
    %v7309 = vmul.f32 %v7308, %v7247
    %v7310 = vmul.f32 %v7309, %v7308
    %v7311 = vmul.f32 0.5, %v7310
    %v7312 = vsub.f32 1.5, %v7311
    %v7313 = vmul.f32 %v7308, %v7312
    %vm7314 = vweird.f32 %v7247
    %vm7315 = vweird.f32 %v7308
    %vm7316 = vmor %vm7314, %vm7315
    %v7317 = vsel %vm7316, %v7308, %v7313
    %v7318 = vrsqrt.pop %v7248
    %v7319 = vmul.f32 %v7318, %v7248
    %v7320 = vmul.f32 %v7319, %v7318
    %v7321 = vmul.f32 0.5, %v7320
    %v7322 = vsub.f32 1.5, %v7321
    %v7323 = vmul.f32 %v7318, %v7322
    %vm7324 = vweird.f32 %v7248
    %vm7325 = vweird.f32 %v7318
    %vm7326 = vmor %vm7324, %vm7325
    %v7327 = vsel %vm7326, %v7318, %v7323
    %v7328 = vrsqrt.pop %v7249
    %v7329 = vmul.f32 %v7328, %v7249
    %v7330 = vmul.f32 %v7329, %v7328
    %v7331 = vmul.f32 0.5, %v7330
    %v7332 = vsub.f32 1.5, %v7331
    %v7333 = vmul.f32 %v7328, %v7332
    %vm7334 = vweird.f32 %v7249
    %vm7335 = vweird.f32 %v7328
    %vm7336 = vmor %vm7334, %vm7335
    %v7337 = vsel %vm7336, %v7328, %v7333
    %v7338 = vrsqrt.pop %v7250
    %v7339 = vmul.f32 %v7338, %v7250
    %v7340 = vmul.f32 %v7339, %v7338
    %v7341 = vmul.f32 0.5, %v7340
    %v7342 = vsub.f32 1.5, %v7341
    %v7343 = vmul.f32 %v7338, %v7342
    %vm7344 = vweird.f32 %v7250
    %vm7345 = vweird.f32 %v7338
    %vm7346 = vmor %vm7344, %vm7345
    %v7347 = vsel %vm7346, %v7338, %v7343
    %v7348 = vrsqrt.pop %v7251
    %v7349 = vmul.f32 %v7348, %v7251
    %v7350 = vmul.f32 %v7349, %v7348
    %v7351 = vmul.f32 0.5, %v7350
    %v7352 = vsub.f32 1.5, %v7351
    %v7353 = vmul.f32 %v7348, %v7352
    %vm7354 = vweird.f32 %v7251
    %vm7355 = vweird.f32 %v7348
    %vm7356 = vmor %vm7354, %vm7355
    %v7357 = vsel %vm7356, %v7348, %v7353
    %v7358 = vrsqrt.pop %v7252
    %v7359 = vmul.f32 %v7358, %v7252
    %v7360 = vmul.f32 %v7359, %v7358
    %v7361 = vmul.f32 0.5, %v7360
    %v7362 = vsub.f32 1.5, %v7361
    %v7363 = vmul.f32 %v7358, %v7362
    %vm7364 = vweird.f32 %v7252
    %vm7365 = vweird.f32 %v7358
    %vm7366 = vmor %vm7364, %vm7365
    %v7367 = vsel %vm7366, %v7358, %v7363
    %v7368 = vrsqrt.pop %v7253
    %v7369 = vmul.f32 %v7368, %v7253
    %v7370 = vmul.f32 %v7369, %v7368
    %v7371 = vmul.f32 0.5, %v7370
    %v7372 = vsub.f32 1.5, %v7371
    %v7373 = vmul.f32 %v7368, %v7372
    %vm7374 = vweird.f32 %v7253
    %vm7375 = vweird.f32 %v7368
    %vm7376 = vmor %vm7374, %vm7375
    %v7377 = vsel %vm7376, %v7368, %v7373
    %v7378 = vrsqrt.pop %v7254
    %v7379 = vmul.f32 %v7378, %v7254
    %v7380 = vmul.f32 %v7379, %v7378
    %v7381 = vmul.f32 0.5, %v7380
    %v7382 = vsub.f32 1.5, %v7381
    %v7383 = vmul.f32 %v7378, %v7382
    %vm7384 = vweird.f32 %v7254
    %vm7385 = vweird.f32 %v7378
    %vm7386 = vmor %vm7384, %vm7385
    %v7387 = vsel %vm7386, %v7378, %v7383
    %v7388 = vrsqrt.pop %v7255
    %v7389 = vmul.f32 %v7388, %v7255
    %v7390 = vmul.f32 %v7389, %v7388
    %v7391 = vmul.f32 0.5, %v7390
    %v7392 = vsub.f32 1.5, %v7391
    %v7393 = vmul.f32 %v7388, %v7392
    %vm7394 = vweird.f32 %v7255
    %vm7395 = vweird.f32 %v7388
    %vm7396 = vmor %vm7394, %vm7395
    %v7397 = vsel %vm7396, %v7388, %v7393
    %v7398 = vrsqrt.pop %v7256
    %v7399 = vmul.f32 %v7398, %v7256
    %v7400 = vmul.f32 %v7399, %v7398
    %v7401 = vmul.f32 0.5, %v7400
    %v7402 = vsub.f32 1.5, %v7401
    %v7403 = vmul.f32 %v7398, %v7402
    %vm7404 = vweird.f32 %v7256
    %vm7405 = vweird.f32 %v7398
    %vm7406 = vmor %vm7404, %vm7405
    %v7407 = vsel %vm7406, %v7398, %v7403
    %v7408 = vrsqrt.pop %v7257
    %v7409 = vmul.f32 %v7408, %v7257
    %v7410 = vmul.f32 %v7409, %v7408
    %v7411 = vmul.f32 0.5, %v7410
    %v7412 = vsub.f32 1.5, %v7411
    %v7413 = vmul.f32 %v7408, %v7412
    %vm7414 = vweird.f32 %v7257
    %vm7415 = vweird.f32 %v7408
    %vm7416 = vmor %vm7414, %vm7415
    %v7417 = vsel %vm7416, %v7408, %v7413
    %v7418 = vsub.f32 %v7066, %v7114
    %v7419 = vsub.f32 %v7067, %v7115
    %v7420 = vsub.f32 %v7068, %v7116
    %v7421 = vsub.f32 %v7069, %v7117
    %v7422 = vsub.f32 %v7070, %v7118
    %v7423 = vsub.f32 %v7071, %v7119
    %v7424 = vsub.f32 %v7072, %v7120
    %v7425 = vsub.f32 %v7073, %v7121
    %v7426 = vsub.f32 %v7074, %v7122
    %v7427 = vsub.f32 %v7075, %v7123
    %v7428 = vsub.f32 %v7076, %v7124
    %v7429 = vsub.f32 %v7077, %v7125
    %v7430 = vsub.f32 %v7078, %v7126
    %v7431 = vsub.f32 %v7079, %v7127
    %v7432 = vsub.f32 %v7080, %v7128
    %v7433 = vsub.f32 %v7081, %v7129
    %v7434 = vmul.f32 %v7418, %v7267
    %v7435 = vmul.f32 %v7419, %v7277
    %v7436 = vmul.f32 %v7420, %v7287
    %v7437 = vmul.f32 %v7421, %v7297
    %v7438 = vmul.f32 %v7422, %v7307
    %v7439 = vmul.f32 %v7423, %v7317
    %v7440 = vmul.f32 %v7424, %v7327
    %v7441 = vmul.f32 %v7425, %v7337
    %v7442 = vmul.f32 %v7426, %v7347
    %v7443 = vmul.f32 %v7427, %v7357
    %v7444 = vmul.f32 %v7428, %v7367
    %v7445 = vmul.f32 %v7429, %v7377
    %v7446 = vmul.f32 %v7430, %v7387
    %v7447 = vmul.f32 %v7431, %v7397
    %v7448 = vmul.f32 %v7432, %v7407
    %v7449 = vmul.f32 %v7433, %v7417
    %v7450 = vpack.c.bf16 %v7435, %v7434
    %v7451 = vpack.c.bf16 %v7437, %v7436
    %v7452 = vpack.c.bf16 %v7439, %v7438
    %v7453 = vpack.c.bf16 %v7441, %v7440
    %v7454 = vpack.c.bf16 %v7443, %v7442
    %v7455 = vpack.c.bf16 %v7445, %v7444
    %v7456 = vpack.c.bf16 %v7447, %v7446
    %v7457 = vpack.c.bf16 %v7449, %v7448
    %7458 = vmatpush.bf16.xpose.msra.mxu0 %v7457
    %7459 = vmatpush.bf16.xpose.msra.mxu0 %v7456
    %7460 = vmatpush.bf16.xpose.msra.mxu0 %v7455
    %7461 = vmatpush.bf16.xpose.msra.mxu0 %v7454
    %7462 = vmatpush.bf16.xpose.msra.mxu0 %v7453
    %7463 = vmatpush.bf16.xpose.msra.mxu0 %v7452
    %7464 = vmatpush.bf16.xpose.msra.mxu0 %v7451
    %7465 = vmatpush.bf16.xpose.msra.mxu0 %v7450
    %7466 = vmatmul.bf16.gmra.mxu0 %v1348
    %v7467 = vpop.f32.mrf.mxu0
    %v7468 = vadd.f32 0.0, %v7467
    %v7469 = vpop.f32.mrf.mxu0
    %7470 = vdwg.mxu0
    %v7471 = vadd.f32 %v7468, %v1758
    %s7472 = scalar_lea.vmem [#allocation6], 56
    %7473 = vst [vmem:[%s7472] sm:$0xf] %v7471
    %v7474 = vld [vmem:[#allocation2 + $0x78] sm:$0xff]
    %v7475 = vld [vmem:[#allocation2 + $0xf8] sm:$0xff]
    %v7476 = vld [vmem:[#allocation2 + $0x178] sm:$0xff]
    %v7477 = vld [vmem:[#allocation2 + $0x1f8] sm:$0xff]
    %v7478 = vld [vmem:[#allocation2 + $0x278] sm:$0xff]
    %v7479 = vld [vmem:[#allocation2 + $0x2f8] sm:$0xff]
    %v7480 = vld [vmem:[#allocation2 + $0x378] sm:$0xff]
    %v7481 = vld [vmem:[#allocation2 + $0x3f8] sm:$0xff]
    %v7482 = vld [vmem:[#allocation2 + $0x478] sm:$0xff]
    %v7483 = vld [vmem:[#allocation2 + $0x4f8] sm:$0xff]
    %v7484 = vld [vmem:[#allocation2 + $0x578] sm:$0xff]
    %v7485 = vld [vmem:[#allocation2 + $0x5f8] sm:$0xff]
    %v7486 = vld [vmem:[#allocation2 + $0x678] sm:$0xff]
    %v7487 = vld [vmem:[#allocation2 + $0x6f8] sm:$0xff]
    %v7488 = vld [vmem:[#allocation2 + $0x778] sm:$0xff]
    %v7489 = vld [vmem:[#allocation2 + $0x7f8] sm:$0xff]
    %7490 = vadd.xlane.f32.xlu0 %v7474
    %v7491 = vpop.xlane.xlu0 %7490
    %7492 = vadd.xlane.f32.xlu0 %v7475
    %v7493 = vpop.xlane.xlu0 %7492
    %7494 = vadd.xlane.f32.xlu0 %v7476
    %v7495 = vpop.xlane.xlu0 %7494
    %7496 = vadd.xlane.f32.xlu0 %v7477
    %v7497 = vpop.xlane.xlu0 %7496
    %7498 = vadd.xlane.f32.xlu0 %v7478
    %v7499 = vpop.xlane.xlu0 %7498
    %7500 = vadd.xlane.f32.xlu0 %v7479
    %v7501 = vpop.xlane.xlu0 %7500
    %7502 = vadd.xlane.f32.xlu0 %v7480
    %v7503 = vpop.xlane.xlu0 %7502
    %7504 = vadd.xlane.f32.xlu0 %v7481
    %v7505 = vpop.xlane.xlu0 %7504
    %7506 = vadd.xlane.f32.xlu0 %v7482
    %v7507 = vpop.xlane.xlu0 %7506
    %7508 = vadd.xlane.f32.xlu0 %v7483
    %v7509 = vpop.xlane.xlu0 %7508
    %7510 = vadd.xlane.f32.xlu0 %v7484
    %v7511 = vpop.xlane.xlu0 %7510
    %7512 = vadd.xlane.f32.xlu0 %v7485
    %v7513 = vpop.xlane.xlu0 %7512
    %7514 = vadd.xlane.f32.xlu0 %v7486
    %v7515 = vpop.xlane.xlu0 %7514
    %7516 = vadd.xlane.f32.xlu0 %v7487
    %v7517 = vpop.xlane.xlu0 %7516
    %7518 = vadd.xlane.f32.xlu0 %v7488
    %v7519 = vpop.xlane.xlu0 %7518
    %7520 = vadd.xlane.f32.xlu0 %v7489
    %v7521 = vpop.xlane.xlu0 %7520
    %v7522 = vmul.f32 %v7491, 0.03125
    %v7523 = vmul.f32 %v7493, 0.03125
    %v7524 = vmul.f32 %v7495, 0.03125
    %v7525 = vmul.f32 %v7497, 0.03125
    %v7526 = vmul.f32 %v7499, 0.03125
    %v7527 = vmul.f32 %v7501, 0.03125
    %v7528 = vmul.f32 %v7503, 0.03125
    %v7529 = vmul.f32 %v7505, 0.03125
    %v7530 = vmul.f32 %v7507, 0.03125
    %v7531 = vmul.f32 %v7509, 0.03125
    %v7532 = vmul.f32 %v7511, 0.03125
    %v7533 = vmul.f32 %v7513, 0.03125
    %v7534 = vmul.f32 %v7515, 0.03125
    %v7535 = vmul.f32 %v7517, 0.03125
    %v7536 = vmul.f32 %v7519, 0.03125
    %v7537 = vmul.f32 %v7521, 0.03125
    %v7538 = vmul.f32 %v7474, %v7474
    %v7539 = vmul.f32 %v7475, %v7475
    %v7540 = vmul.f32 %v7476, %v7476
    %v7541 = vmul.f32 %v7477, %v7477
    %v7542 = vmul.f32 %v7478, %v7478
    %v7543 = vmul.f32 %v7479, %v7479
    %v7544 = vmul.f32 %v7480, %v7480
    %v7545 = vmul.f32 %v7481, %v7481
    %v7546 = vmul.f32 %v7482, %v7482
    %v7547 = vmul.f32 %v7483, %v7483
    %v7548 = vmul.f32 %v7484, %v7484
    %v7549 = vmul.f32 %v7485, %v7485
    %v7550 = vmul.f32 %v7486, %v7486
    %v7551 = vmul.f32 %v7487, %v7487
    %v7552 = vmul.f32 %v7488, %v7488
    %v7553 = vmul.f32 %v7489, %v7489
    %7554 = vadd.xlane.f32.xlu0 %v7538
    %v7555 = vpop.xlane.xlu0 %7554
    %7556 = vadd.xlane.f32.xlu0 %v7539
    %v7557 = vpop.xlane.xlu0 %7556
    %7558 = vadd.xlane.f32.xlu0 %v7540
    %v7559 = vpop.xlane.xlu0 %7558
    %7560 = vadd.xlane.f32.xlu0 %v7541
    %v7561 = vpop.xlane.xlu0 %7560
    %7562 = vadd.xlane.f32.xlu0 %v7542
    %v7563 = vpop.xlane.xlu0 %7562
    %7564 = vadd.xlane.f32.xlu0 %v7543
    %v7565 = vpop.xlane.xlu0 %7564
    %7566 = vadd.xlane.f32.xlu0 %v7544
    %v7567 = vpop.xlane.xlu0 %7566
    %7568 = vadd.xlane.f32.xlu0 %v7545
    %v7569 = vpop.xlane.xlu0 %7568
    %7570 = vadd.xlane.f32.xlu0 %v7546
    %v7571 = vpop.xlane.xlu0 %7570
    %7572 = vadd.xlane.f32.xlu0 %v7547
    %v7573 = vpop.xlane.xlu0 %7572
    %7574 = vadd.xlane.f32.xlu0 %v7548
    %v7575 = vpop.xlane.xlu0 %7574
    %7576 = vadd.xlane.f32.xlu0 %v7549
    %v7577 = vpop.xlane.xlu0 %7576
    %7578 = vadd.xlane.f32.xlu0 %v7550
    %v7579 = vpop.xlane.xlu0 %7578
    %7580 = vadd.xlane.f32.xlu0 %v7551
    %v7581 = vpop.xlane.xlu0 %7580
    %7582 = vadd.xlane.f32.xlu0 %v7552
    %v7583 = vpop.xlane.xlu0 %7582
    %7584 = vadd.xlane.f32.xlu0 %v7553
    %v7585 = vpop.xlane.xlu0 %7584
    %v7586 = vmul.f32 %v7555, 0.03125
    %v7587 = vmul.f32 %v7557, 0.03125
    %v7588 = vmul.f32 %v7559, 0.03125
    %v7589 = vmul.f32 %v7561, 0.03125
    %v7590 = vmul.f32 %v7563, 0.03125
    %v7591 = vmul.f32 %v7565, 0.03125
    %v7592 = vmul.f32 %v7567, 0.03125
    %v7593 = vmul.f32 %v7569, 0.03125
    %v7594 = vmul.f32 %v7571, 0.03125
    %v7595 = vmul.f32 %v7573, 0.03125
    %v7596 = vmul.f32 %v7575, 0.03125
    %v7597 = vmul.f32 %v7577, 0.03125
    %v7598 = vmul.f32 %v7579, 0.03125
    %v7599 = vmul.f32 %v7581, 0.03125
    %v7600 = vmul.f32 %v7583, 0.03125
    %v7601 = vmul.f32 %v7585, 0.03125
    %v7602 = vmul.f32 %v7522, %v7522
    %v7603 = vmul.f32 %v7523, %v7523
    %v7604 = vmul.f32 %v7524, %v7524
    %v7605 = vmul.f32 %v7525, %v7525
    %v7606 = vmul.f32 %v7526, %v7526
    %v7607 = vmul.f32 %v7527, %v7527
    %v7608 = vmul.f32 %v7528, %v7528
    %v7609 = vmul.f32 %v7529, %v7529
    %v7610 = vmul.f32 %v7530, %v7530
    %v7611 = vmul.f32 %v7531, %v7531
    %v7612 = vmul.f32 %v7532, %v7532
    %v7613 = vmul.f32 %v7533, %v7533
    %v7614 = vmul.f32 %v7534, %v7534
    %v7615 = vmul.f32 %v7535, %v7535
    %v7616 = vmul.f32 %v7536, %v7536
    %v7617 = vmul.f32 %v7537, %v7537
    %v7618 = vsub.f32 %v7586, %v7602
    %v7619 = vsub.f32 %v7587, %v7603
    %v7620 = vsub.f32 %v7588, %v7604
    %v7621 = vsub.f32 %v7589, %v7605
    %v7622 = vsub.f32 %v7590, %v7606
    %v7623 = vsub.f32 %v7591, %v7607
    %v7624 = vsub.f32 %v7592, %v7608
    %v7625 = vsub.f32 %v7593, %v7609
    %v7626 = vsub.f32 %v7594, %v7610
    %v7627 = vsub.f32 %v7595, %v7611
    %v7628 = vsub.f32 %v7596, %v7612
    %v7629 = vsub.f32 %v7597, %v7613
    %v7630 = vsub.f32 %v7598, %v7614
    %v7631 = vsub.f32 %v7599, %v7615
    %v7632 = vsub.f32 %v7600, %v7616
    %v7633 = vsub.f32 %v7601, %v7617
    %v7634 = vmax.f32 %v7618, 0.0
    %v7635 = vmax.f32 %v7619, 0.0
    %v7636 = vmax.f32 %v7620, 0.0
    %v7637 = vmax.f32 %v7621, 0.0
    %v7638 = vmax.f32 %v7622, 0.0
    %v7639 = vmax.f32 %v7623, 0.0
    %v7640 = vmax.f32 %v7624, 0.0
    %v7641 = vmax.f32 %v7625, 0.0
    %v7642 = vmax.f32 %v7626, 0.0
    %v7643 = vmax.f32 %v7627, 0.0
    %v7644 = vmax.f32 %v7628, 0.0
    %v7645 = vmax.f32 %v7629, 0.0
    %v7646 = vmax.f32 %v7630, 0.0
    %v7647 = vmax.f32 %v7631, 0.0
    %v7648 = vmax.f32 %v7632, 0.0
    %v7649 = vmax.f32 %v7633, 0.0
    %v7650 = vadd.f32 %v7634, 1e-05
    %v7651 = vadd.f32 %v7635, 1e-05
    %v7652 = vadd.f32 %v7636, 1e-05
    %v7653 = vadd.f32 %v7637, 1e-05
    %v7654 = vadd.f32 %v7638, 1e-05
    %v7655 = vadd.f32 %v7639, 1e-05
    %v7656 = vadd.f32 %v7640, 1e-05
    %v7657 = vadd.f32 %v7641, 1e-05
    %v7658 = vadd.f32 %v7642, 1e-05
    %v7659 = vadd.f32 %v7643, 1e-05
    %v7660 = vadd.f32 %v7644, 1e-05
    %v7661 = vadd.f32 %v7645, 1e-05
    %v7662 = vadd.f32 %v7646, 1e-05
    %v7663 = vadd.f32 %v7647, 1e-05
    %v7664 = vadd.f32 %v7648, 1e-05
    %v7665 = vadd.f32 %v7649, 1e-05
    %v7666 = vrsqrt.pop %v7650
    %v7667 = vmul.f32 %v7666, %v7650
    %v7668 = vmul.f32 %v7667, %v7666
    %v7669 = vmul.f32 0.5, %v7668
    %v7670 = vsub.f32 1.5, %v7669
    %v7671 = vmul.f32 %v7666, %v7670
    %vm7672 = vweird.f32 %v7650
    %vm7673 = vweird.f32 %v7666
    %vm7674 = vmor %vm7672, %vm7673
    %v7675 = vsel %vm7674, %v7666, %v7671
    %v7676 = vrsqrt.pop %v7651
    %v7677 = vmul.f32 %v7676, %v7651
    %v7678 = vmul.f32 %v7677, %v7676
    %v7679 = vmul.f32 0.5, %v7678
    %v7680 = vsub.f32 1.5, %v7679
    %v7681 = vmul.f32 %v7676, %v7680
    %vm7682 = vweird.f32 %v7651
    %vm7683 = vweird.f32 %v7676
    %vm7684 = vmor %vm7682, %vm7683
    %v7685 = vsel %vm7684, %v7676, %v7681
    %v7686 = vrsqrt.pop %v7652
    %v7687 = vmul.f32 %v7686, %v7652
    %v7688 = vmul.f32 %v7687, %v7686
    %v7689 = vmul.f32 0.5, %v7688
    %v7690 = vsub.f32 1.5, %v7689
    %v7691 = vmul.f32 %v7686, %v7690
    %vm7692 = vweird.f32 %v7652
    %vm7693 = vweird.f32 %v7686
    %vm7694 = vmor %vm7692, %vm7693
    %v7695 = vsel %vm7694, %v7686, %v7691
    %v7696 = vrsqrt.pop %v7653
    %v7697 = vmul.f32 %v7696, %v7653
    %v7698 = vmul.f32 %v7697, %v7696
    %v7699 = vmul.f32 0.5, %v7698
    %v7700 = vsub.f32 1.5, %v7699
    %v7701 = vmul.f32 %v7696, %v7700
    %vm7702 = vweird.f32 %v7653
    %vm7703 = vweird.f32 %v7696
    %vm7704 = vmor %vm7702, %vm7703
    %v7705 = vsel %vm7704, %v7696, %v7701
    %v7706 = vrsqrt.pop %v7654
    %v7707 = vmul.f32 %v7706, %v7654
    %v7708 = vmul.f32 %v7707, %v7706
    %v7709 = vmul.f32 0.5, %v7708
    %v7710 = vsub.f32 1.5, %v7709
    %v7711 = vmul.f32 %v7706, %v7710
    %vm7712 = vweird.f32 %v7654
    %vm7713 = vweird.f32 %v7706
    %vm7714 = vmor %vm7712, %vm7713
    %v7715 = vsel %vm7714, %v7706, %v7711
    %v7716 = vrsqrt.pop %v7655
    %v7717 = vmul.f32 %v7716, %v7655
    %v7718 = vmul.f32 %v7717, %v7716
    %v7719 = vmul.f32 0.5, %v7718
    %v7720 = vsub.f32 1.5, %v7719
    %v7721 = vmul.f32 %v7716, %v7720
    %vm7722 = vweird.f32 %v7655
    %vm7723 = vweird.f32 %v7716
    %vm7724 = vmor %vm7722, %vm7723
    %v7725 = vsel %vm7724, %v7716, %v7721
    %v7726 = vrsqrt.pop %v7656
    %v7727 = vmul.f32 %v7726, %v7656
    %v7728 = vmul.f32 %v7727, %v7726
    %v7729 = vmul.f32 0.5, %v7728
    %v7730 = vsub.f32 1.5, %v7729
    %v7731 = vmul.f32 %v7726, %v7730
    %vm7732 = vweird.f32 %v7656
    %vm7733 = vweird.f32 %v7726
    %vm7734 = vmor %vm7732, %vm7733
    %v7735 = vsel %vm7734, %v7726, %v7731
    %v7736 = vrsqrt.pop %v7657
    %v7737 = vmul.f32 %v7736, %v7657
    %v7738 = vmul.f32 %v7737, %v7736
    %v7739 = vmul.f32 0.5, %v7738
    %v7740 = vsub.f32 1.5, %v7739
    %v7741 = vmul.f32 %v7736, %v7740
    %vm7742 = vweird.f32 %v7657
    %vm7743 = vweird.f32 %v7736
    %vm7744 = vmor %vm7742, %vm7743
    %v7745 = vsel %vm7744, %v7736, %v7741
    %v7746 = vrsqrt.pop %v7658
    %v7747 = vmul.f32 %v7746, %v7658
    %v7748 = vmul.f32 %v7747, %v7746
    %v7749 = vmul.f32 0.5, %v7748
    %v7750 = vsub.f32 1.5, %v7749
    %v7751 = vmul.f32 %v7746, %v7750
    %vm7752 = vweird.f32 %v7658
    %vm7753 = vweird.f32 %v7746
    %vm7754 = vmor %vm7752, %vm7753
    %v7755 = vsel %vm7754, %v7746, %v7751
    %v7756 = vrsqrt.pop %v7659
    %v7757 = vmul.f32 %v7756, %v7659
    %v7758 = vmul.f32 %v7757, %v7756
    %v7759 = vmul.f32 0.5, %v7758
    %v7760 = vsub.f32 1.5, %v7759
    %v7761 = vmul.f32 %v7756, %v7760
    %vm7762 = vweird.f32 %v7659
    %vm7763 = vweird.f32 %v7756
    %vm7764 = vmor %vm7762, %vm7763
    %v7765 = vsel %vm7764, %v7756, %v7761
    %v7766 = vrsqrt.pop %v7660
    %v7767 = vmul.f32 %v7766, %v7660
    %v7768 = vmul.f32 %v7767, %v7766
    %v7769 = vmul.f32 0.5, %v7768
    %v7770 = vsub.f32 1.5, %v7769
    %v7771 = vmul.f32 %v7766, %v7770
    %vm7772 = vweird.f32 %v7660
    %vm7773 = vweird.f32 %v7766
    %vm7774 = vmor %vm7772, %vm7773
    %v7775 = vsel %vm7774, %v7766, %v7771
    %v7776 = vrsqrt.pop %v7661
    %v7777 = vmul.f32 %v7776, %v7661
    %v7778 = vmul.f32 %v7777, %v7776
    %v7779 = vmul.f32 0.5, %v7778
    %v7780 = vsub.f32 1.5, %v7779
    %v7781 = vmul.f32 %v7776, %v7780
    %vm7782 = vweird.f32 %v7661
    %vm7783 = vweird.f32 %v7776
    %vm7784 = vmor %vm7782, %vm7783
    %v7785 = vsel %vm7784, %v7776, %v7781
    %v7786 = vrsqrt.pop %v7662
    %v7787 = vmul.f32 %v7786, %v7662
    %v7788 = vmul.f32 %v7787, %v7786
    %v7789 = vmul.f32 0.5, %v7788
    %v7790 = vsub.f32 1.5, %v7789
    %v7791 = vmul.f32 %v7786, %v7790
    %vm7792 = vweird.f32 %v7662
    %vm7793 = vweird.f32 %v7786
    %vm7794 = vmor %vm7792, %vm7793
    %v7795 = vsel %vm7794, %v7786, %v7791
    %v7796 = vrsqrt.pop %v7663
    %v7797 = vmul.f32 %v7796, %v7663
    %v7798 = vmul.f32 %v7797, %v7796
    %v7799 = vmul.f32 0.5, %v7798
    %v7800 = vsub.f32 1.5, %v7799
    %v7801 = vmul.f32 %v7796, %v7800
    %vm7802 = vweird.f32 %v7663
    %vm7803 = vweird.f32 %v7796
    %vm7804 = vmor %vm7802, %vm7803
    %v7805 = vsel %vm7804, %v7796, %v7801
    %v7806 = vrsqrt.pop %v7664
    %v7807 = vmul.f32 %v7806, %v7664
    %v7808 = vmul.f32 %v7807, %v7806
    %v7809 = vmul.f32 0.5, %v7808
    %v7810 = vsub.f32 1.5, %v7809
    %v7811 = vmul.f32 %v7806, %v7810
    %vm7812 = vweird.f32 %v7664
    %vm7813 = vweird.f32 %v7806
    %vm7814 = vmor %vm7812, %vm7813
    %v7815 = vsel %vm7814, %v7806, %v7811
    %v7816 = vrsqrt.pop %v7665
    %v7817 = vmul.f32 %v7816, %v7665
    %v7818 = vmul.f32 %v7817, %v7816
    %v7819 = vmul.f32 0.5, %v7818
    %v7820 = vsub.f32 1.5, %v7819
    %v7821 = vmul.f32 %v7816, %v7820
    %vm7822 = vweird.f32 %v7665
    %vm7823 = vweird.f32 %v7816
    %vm7824 = vmor %vm7822, %vm7823
    %v7825 = vsel %vm7824, %v7816, %v7821
    %v7826 = vsub.f32 %v7474, %v7522
    %v7827 = vsub.f32 %v7475, %v7523
    %v7828 = vsub.f32 %v7476, %v7524
    %v7829 = vsub.f32 %v7477, %v7525
    %v7830 = vsub.f32 %v7478, %v7526
    %v7831 = vsub.f32 %v7479, %v7527
    %v7832 = vsub.f32 %v7480, %v7528
    %v7833 = vsub.f32 %v7481, %v7529
    %v7834 = vsub.f32 %v7482, %v7530
    %v7835 = vsub.f32 %v7483, %v7531
    %v7836 = vsub.f32 %v7484, %v7532
    %v7837 = vsub.f32 %v7485, %v7533
    %v7838 = vsub.f32 %v7486, %v7534
    %v7839 = vsub.f32 %v7487, %v7535
    %v7840 = vsub.f32 %v7488, %v7536
    %v7841 = vsub.f32 %v7489, %v7537
    %v7842 = vmul.f32 %v7826, %v7675
    %v7843 = vmul.f32 %v7827, %v7685
    %v7844 = vmul.f32 %v7828, %v7695
    %v7845 = vmul.f32 %v7829, %v7705
    %v7846 = vmul.f32 %v7830, %v7715
    %v7847 = vmul.f32 %v7831, %v7725
    %v7848 = vmul.f32 %v7832, %v7735
    %v7849 = vmul.f32 %v7833, %v7745
    %v7850 = vmul.f32 %v7834, %v7755
    %v7851 = vmul.f32 %v7835, %v7765
    %v7852 = vmul.f32 %v7836, %v7775
    %v7853 = vmul.f32 %v7837, %v7785
    %v7854 = vmul.f32 %v7838, %v7795
    %v7855 = vmul.f32 %v7839, %v7805
    %v7856 = vmul.f32 %v7840, %v7815
    %v7857 = vmul.f32 %v7841, %v7825
    %v7858 = vpack.c.bf16 %v7843, %v7842
    %v7859 = vpack.c.bf16 %v7845, %v7844
    %v7860 = vpack.c.bf16 %v7847, %v7846
    %v7861 = vpack.c.bf16 %v7849, %v7848
    %v7862 = vpack.c.bf16 %v7851, %v7850
    %v7863 = vpack.c.bf16 %v7853, %v7852
    %v7864 = vpack.c.bf16 %v7855, %v7854
    %v7865 = vpack.c.bf16 %v7857, %v7856
    %7866 = vmatpush.bf16.xpose.msra.mxu0 %v7865
    %7867 = vmatpush.bf16.xpose.msra.mxu0 %v7864
    %7868 = vmatpush.bf16.xpose.msra.mxu0 %v7863
    %7869 = vmatpush.bf16.xpose.msra.mxu0 %v7862
    %7870 = vmatpush.bf16.xpose.msra.mxu0 %v7861
    %7871 = vmatpush.bf16.xpose.msra.mxu0 %v7860
    %7872 = vmatpush.bf16.xpose.msra.mxu0 %v7859
    %7873 = vmatpush.bf16.xpose.msra.mxu0 %v7858
    %7874 = vmatmul.bf16.gmra.mxu0 %v1348
    %v7875 = vpop.f32.mrf.mxu0
    %v7876 = vadd.f32 0.0, %v7875
    %v7877 = vpop.f32.mrf.mxu0
    %7878 = vdwg.mxu0
    %v7879 = vadd.f32 %v7876, %v1758
    %s7880 = scalar_lea.vmem [#allocation6], 60
    %7881 = vst [vmem:[%s7880] sm:$0xf] %v7879
    // Predicated region
    $region22: #{tpu_custom_call.1} parent=1 // pred_check
      _
    $region23: #{tpu_custom_call.1} parent=1 // pred_check_branch
      %7883 = sbr.rel (0) target = $region25
    $region24: #{tpu_custom_call.1} parent=1 // pred_region
      %7885 = vsyncadd [#allocation5], 0
      %s7886 = sshll.u32 [#allocation6], 4
      %s7887 = int_to_ptr.vmem [resolvable:$true] %s7886
      %s7888 = sshll.u32 %s4, 4
      %s7889 = int_to_ptr.hbm [resolvable:$true] %s7888
      %7894 = dma.vmem_to_hbm [thread:$0]  %s7887, 1024, %s7889, [#allocation5], 64, 64, 4
    $region25: #{tpu_custom_call.1} parent=1 // pred_fallthru
      _
    // Predicated region
    $region26: #{tpu_custom_call.1} parent=1 // pred_check
      _
    $region27: #{tpu_custom_call.1} parent=1 // pred_check_branch
      %7896 = sbr.rel (0) target = $region29
    $region28: #{tpu_custom_call.1} parent=1 // pred_region
      %7898 = dma.done [#allocation5], 1024
    $region29: #{tpu_custom_call.1} parent=1 // pred_fallthru
      _
    %7899 = vsyncpa [#allocation4], 1
    %7900 = vsyncpa [#allocation5], 1

</llo_original>
